<compile_context>
chip_gen: v7x
topology: tpu7x:2x2x1
jax: 0.10.0
libtpu: 0.0.40
codegen_flags: <defaults>
</compile_context>

<pallas_src>
import jax
import jax.numpy as jnp
from jax import lax
from jax.experimental import pallas as pl
from jax.experimental.pallas import tpu as pltpu


def _round_up(x, m):
    return (x + m - 1) // m * m


# -------------------- Pallas kernels --------------------

def conv_relu_pool_kernel(p_ref, w_ref, b_ref, o_ref):
    """Single-matmul conv(im2col) + bias + ReLU + fused 2x2 max-pool.

    p_ref: (N*4*Pp, Kp) bf16  im2col patches, rows ordered (batch, pool-offset, pos)
    w_ref: (Kp, Cout)   bf16  conv weight matrix (K zero-padded to Kp)
    b_ref: (1, Cout)    f32   bias
    o_ref: (N, Pp, Cout) f32  pooled activations (Pp = 8-padded pooled positions)
    """
    N, Pp, Cout = o_ref.shape
    y = jnp.dot(p_ref[...], w_ref[...], preferred_element_type=jnp.float32)
    y = jnp.maximum(y + b_ref[...], 0.0)
    # Pp and 4*Pp are multiples of 8, so this split is tile-aligned (no relayout).
    y = y.reshape(N, 4, Pp, Cout)
    o_ref[...] = jnp.max(y, axis=1)          # 2x2 max-pool over the 4 offsets


def fc_fused_kernel(x_ref, w1_ref, b1_ref, w2_ref, o_ref):
    """One fc1 column block: relu(x @ w1_blk.T + b1_blk) @ w2_blk.T (partial fc2).

    x_ref:  (N, Kf)   bf16
    w1_ref: (TN, Kf)  bf16   fc1 weight rows for this block (native (out,in) layout)
    b1_ref: (1, TN)   f32
    w2_ref: (O2, TN)  bf16   fc2 weight columns for this block
    o_ref:  (1, N, O2) f32   partial fc2 output for this block (summed in glue)
    """
    h = lax.dot_general(x_ref[...], w1_ref[...],
                        (((1,), (1,)), ((), ())),
                        preferred_element_type=jnp.float32)          # (N, TN)
    h = jnp.maximum(h + b1_ref[...], 0.0).astype(jnp.bfloat16)
    o_ref[0] = lax.dot_general(h, w2_ref[...],
                               (((1,), (1,)), ((), ())),
                               preferred_element_type=jnp.float32)   # (N, O2)


# -------------------- JAX glue (pure data layout) --------------------

def _im2col_pool_groups(x_nhwc, k, pad, pp, kp):
    """(N,H,W,C) -> (N*4*pp, kp) bf16 patches; rows in (n, pool-offset, pos) order."""
    N, H, W, C = x_nhwc.shape
    P = (H // 2) * (W // 2)
    K = k * k * C
    xp = jnp.pad(x_nhwc, ((0, 0), (pad, pad), (pad, pad), (0, 0)))
    cols = [xp[:, kh:kh + H, kw:kw + W, :] for kh in range(k) for kw in range(k)]
    p = jnp.stack(cols, axis=3).reshape(N, H, W, K)          # (kh,kw,c) minor order
    p = p.reshape(N, H // 2, 2, W // 2, 2, K)
    p = jnp.transpose(p, (0, 2, 4, 1, 3, 5)).reshape(N, 4, P, K)   # (n, a*2+b, pos, K)
    p = jnp.pad(p, ((0, 0), (0, 0), (0, pp - P), (0, kp - K)))     # pad P->pp, K->kp
    return p.reshape(N * 4 * pp, kp).astype(jnp.bfloat16)


def conv_relu_pool(x_nhwc, wmat, bmat):
    # TODO(synk): fold im2col into the kernel (tap-accumulation over a VMEM-resident
    # NHWC tile) to remove the remaining patch-tensor HBM round trip.
    N, H, W, Cin = x_nhwc.shape
    Kp, Cout = wmat.shape
    P = (H // 2) * (W // 2)
    Pp = _round_up(P, 8)
    patches = _im2col_pool_groups(x_nhwc, 5, 2, Pp, Kp)      # (N*4*Pp, Kp) bf16
    out = pl.pallas_call(
        conv_relu_pool_kernel,
        out_shape=jax.ShapeDtypeStruct((N, Pp, Cout), jnp.float32),
        grid=(1,),   # whole (small) batch folded into the matmul M dimension
        in_specs=[
            pl.BlockSpec((N * 4 * Pp, Kp), lambda i: (0, 0)),
            pl.BlockSpec((Kp, Cout), lambda i: (0, 0)),
            pl.BlockSpec((1, Cout), lambda i: (0, 0)),
        ],
        out_specs=pl.BlockSpec((N, Pp, Cout), lambda i: (0, 0, 0)),
        compiler_params=pltpu.CompilerParams(
            dimension_semantics=("parallel",),
            vmem_limit_bytes=32 << 20),
    )(patches, wmat, bmat)
    return out[:, :P, :]                                     # drop P padding rows


def mlp_head(feat, w1, b1, w2, b2, *, tn=128):
    """Fused fc1+ReLU+fc2, gridded over fc1 output columns (parallel axis)."""
    N, Kf = feat.shape
    O1 = w1.shape[0]
    O2 = w2.shape[0]
    G = O1 // tn
    partial = pl.pallas_call(
        fc_fused_kernel,
        out_shape=jax.ShapeDtypeStruct((G, N, O2), jnp.float32),
        grid=(G,),
        in_specs=[
            pl.BlockSpec((N, Kf), lambda j: (0, 0)),
            pl.BlockSpec((tn, Kf), lambda j: (j, 0)),
            pl.BlockSpec((1, tn), lambda j: (0, j)),
            pl.BlockSpec((O2, tn), lambda j: (0, j)),
        ],
        out_specs=pl.BlockSpec((1, N, O2), lambda j: (j, 0, 0)),
        compiler_params=pltpu.CompilerParams(
            dimension_semantics=("parallel",),
            vmem_limit_bytes=32 << 20),
    )(feat.astype(jnp.bfloat16), w1, b1, w2)
    return partial.sum(axis=0) + b2                          # tiny XLA epilogue


def flnet_forward(x_nchw, q):
    N = x_nchw.shape[0]
    x = jnp.transpose(x_nchw, (0, 2, 3, 1))                  # NCHW -> NHWC
    y1 = conv_relu_pool(x, q["conv1_w"], q["conv1_b"])       # (N,196,32)
    y1 = y1.reshape(N, 14, 14, 32)
    y2 = conv_relu_pool(y1, q["conv2_w"], q["conv2_b"])      # (N,49,64)
    y2 = y2.reshape(N, 7, 7, 64)
    # PyTorch's x.view(-1, C*H*W) flattens NCHW, i.e. (c,h,w) order:
    feat = jnp.transpose(y2, (0, 3, 1, 2)).reshape(N, 64 * 7 * 7)
    return mlp_head(feat, q["fc1_w"], q["fc1_b"], q["fc2_w"], q["fc2_b"])


# -------------------- params, one-time prep & reference --------------------

def init_params(key):
    ks = jax.random.split(key, 8)
    s = 0.05
    return {
        "conv1_w": s * jax.random.normal(ks[0], (32, 1, 5, 5), jnp.float32),
        "conv1_b": s * jax.random.normal(ks[1], (32,), jnp.float32),
        "conv2_w": s * jax.random.normal(ks[2], (64, 32, 5, 5), jnp.float32),
        "conv2_b": s * jax.random.normal(ks[3], (64,), jnp.float32),
        "fc1_w": s * jax.random.normal(ks[4], (512, 64 * 7 * 7), jnp.float32),
        "fc1_b": s * jax.random.normal(ks[5], (512,), jnp.float32),
        "fc2_w": s * jax.random.normal(ks[6], (10, 512), jnp.float32),
        "fc2_b": s * jax.random.normal(ks[7], (10,), jnp.float32),
    }


def prepare_params(p):
    """One-time weight layout/cast (outside the jitted hot path)."""
    def conv_w(w):
        cout, cin, kh, kw = w.shape
        k2c = kh * kw * cin
        m = jnp.transpose(w, (2, 3, 1, 0)).reshape(k2c, cout)        # (kh,kw,cin)xcout
        m = jnp.pad(m, ((0, _round_up(k2c, 128) - k2c), (0, 0)))     # K -> 128-multiple
        return m.astype(jnp.bfloat16)
    return {
        "conv1_w": conv_w(p["conv1_w"]),
        "conv1_b": p["conv1_b"].reshape(1, -1),
        "conv2_w": conv_w(p["conv2_w"]),
        "conv2_b": p["conv2_b"].reshape(1, -1),
        "fc1_w": p["fc1_w"].astype(jnp.bfloat16),   # native (out,in) layout, no .T
        "fc1_b": p["fc1_b"].reshape(1, -1),
        "fc2_w": p["fc2_w"].astype(jnp.bfloat16),
        "fc2_b": p["fc2_b"].reshape(1, -1),
    }


def reference_forward(x_nchw, p):
    """Pure-JAX f32 reference mirroring the PyTorch module."""
    x = jnp.transpose(x_nchw, (0, 2, 3, 1))

    def conv_block(x, w, b):
        y = lax.conv_general_dilated(
            x, jnp.transpose(w, (2, 3, 1, 0)), (1, 1), "SAME",
            dimension_numbers=("NHWC", "HWIO", "NHWC")) + b
        y = jnp.maximum(y, 0.0)
        return lax.reduce_window(y, -jnp.inf, lax.max,
                                 (1, 2, 2, 1), (1, 2, 2, 1), "VALID")

    y = conv_block(x, p["conv1_w"], p["conv1_b"])
    y = conv_block(y, p["conv2_w"], p["conv2_b"])
    N = x.shape[0]
    feat = jnp.transpose(y, (0, 3, 1, 2)).reshape(N, -1)
    h = jnp.maximum(feat @ p["fc1_w"].T + p["fc1_b"], 0.0)
    return h @ p["fc2_w"].T + p["fc2_b"]


if __name__ == "__main__":
    key = jax.random.PRNGKey(0)
    kx, kp = jax.random.split(key)
    # Shapes implied by the module: fc1 expects 64*7*7 -> input is (N,1,28,28).
    x = jax.random.normal(kx, (2, 1, 28, 28), jnp.float32)
    params = init_params(kp)
    prepped = prepare_params(params)

    out = jax.block_until_ready(jax.jit(flnet_forward)(x, prepped))
    ref = reference_forward(x, params)

    assert out.shape == (2, 10), out.shape
    max_err = float(jnp.max(jnp.abs(out - ref)))
    # bf16 matmul operands with f32 accumulation -> loosened tolerance.
    assert jnp.allclose(out, ref, rtol=5e-2, atol=5e-2), max_err
    print("KERNEL_OK")
</pallas_src>

<mosaic_0001>
module attributes {stable_mosaic.version = 11 : i64} {
  func.func @conv_relu_pool_kernel(%arg0: i32, %arg1: memref<1600x128xbf16, #tpu.memory_space<vmem>>, %arg2: memref<128x32xbf16, #tpu.memory_space<vmem>>, %arg3: memref<1x32xf32, #tpu.memory_space<vmem>>, %arg4: memref<2x200x32xf32, #tpu.memory_space<vmem>>) attributes {dimension_semantics = [#tpu.dimension_semantics<parallel>], iteration_bounds = array<i64: 1>, scalar_prefetch = 0 : i64, scratch_operands = 0 : i64, tpu.core_type = #tpu.core_type<tc>, window_params = [{pipeline_mode = #tpu.pipeline_mode<synchronous>, transform_indices = @transform_0, window_bounds = array<i64: 1600, 128>}, {pipeline_mode = #tpu.pipeline_mode<synchronous>, transform_indices = @transform_1, window_bounds = array<i64: 128, 32>}, {pipeline_mode = #tpu.pipeline_mode<synchronous>, transform_indices = @transform_2, window_bounds = array<i64: 1, 32>}, {pipeline_mode = #tpu.pipeline_mode<synchronous>, transform_indices = @transform_3, window_bounds = array<i64: 2, 200, 32>}]} {
    %c0 = arith.constant 0 : index
    %c0_0 = arith.constant 0 : index
    %0 = vector.load %arg1[%c0, %c0_0] : memref<1600x128xbf16, #tpu.memory_space<vmem>>, vector<1600x128xbf16>
    %c0_1 = arith.constant 0 : index
    %c0_2 = arith.constant 0 : index
    %1 = vector.load %arg2[%c0_1, %c0_2] : memref<128x32xbf16, #tpu.memory_space<vmem>>, vector<128x32xbf16>
    %cst = arith.constant dense<0.000000e+00> : vector<1600x32xf32>
    %2 = tpu.matmul %0, %1, %cst {dimension_numbers = #tpu.dot_dimension_numbers<[1], [0], [0], [1], [0, 0, 1, 1], [], []>} : vector<1600x128xbf16>, vector<128x32xbf16>, vector<1600x32xf32> -> vector<1600x32xf32>
    %c0_3 = arith.constant 0 : index
    %c0_4 = arith.constant 0 : index
    %3 = vector.load %arg3[%c0_3, %c0_4] : memref<1x32xf32, #tpu.memory_space<vmem>>, vector<1x32xf32>
    %4 = vector.broadcast %3 : vector<1x32xf32> to vector<1600x32xf32>
    %5 = arith.addf %2, %4 : vector<1600x32xf32>
    %cst_5 = arith.constant 0.000000e+00 : f32
    %6 = vector.broadcast %cst_5 : f32 to vector<1600x32xf32>
    %7 = arith.maximumf %5, %6 : vector<1600x32xf32>
    %8 = vector.shape_cast %7 : vector<1600x32xf32> to vector<2x4x200x32xf32>
    %cst_6 = arith.constant dense<0xFF800000> : vector<2x200x32xf32>
    %9 = vector.multi_reduction <maximumf>, %8, %cst_6 [1] : vector<2x4x200x32xf32> to vector<2x200x32xf32>
    %c0_7 = arith.constant 0 : index
    %c0_8 = arith.constant 0 : index
    %c0_9 = arith.constant 0 : index
    %10 = vector.load %arg4[%c0_7, %c0_8, %c0_9] : memref<2x200x32xf32, #tpu.memory_space<vmem>>, vector<2x200x32xf32>
    tpu.vector_store %arg4[%c0_7, %c0_8, %c0_9], %9 {strides = array<i32>} : memref<2x200x32xf32, #tpu.memory_space<vmem>>, vector<2x200x32xf32>,
    return
  }
  func.func @transform_0(%arg0: i32) -> (i32, i32) {
    %c0_i32 = arith.constant 0 : i32
    %c0_i32_0 = arith.constant 0 : i32
    %c0_i32_1 = arith.constant 0 : i32
    return %c0_i32, %c0_i32_0 : i32, i32
  }
  func.func @transform_1(%arg0: i32) -> (i32, i32) {
    %c0_i32 = arith.constant 0 : i32
    %c0_i32_0 = arith.constant 0 : i32
    %c0_i32_1 = arith.constant 0 : i32
    return %c0_i32, %c0_i32_0 : i32, i32
  }
  func.func @transform_2(%arg0: i32) -> (i32, i32) {
    %c0_i32 = arith.constant 0 : i32
    %c0_i32_0 = arith.constant 0 : i32
    %c0_i32_1 = arith.constant 0 : i32
    return %c0_i32, %c0_i32_0 : i32, i32
  }
  func.func @transform_3(%arg0: i32) -> (i32, i32, i32) {
    %c0_i32 = arith.constant 0 : i32
    %c0_i32_0 = arith.constant 0 : i32
    %c0_i32_1 = arith.constant 0 : i32
    %c0_i32_2 = arith.constant 0 : i32
    return %c0_i32, %c0_i32_0, %c0_i32_1 : i32, i32, i32
  }
}

module attributes {stable_mosaic.version = 11 : i64} {
  func.func @conv_relu_pool_kernel(%arg0: i32, %arg1: memref<448x896xbf16, #tpu.memory_space<vmem>>, %arg2: memref<896x64xbf16, #tpu.memory_space<vmem>>, %arg3: memref<1x64xf32, #tpu.memory_space<vmem>>, %arg4: memref<2x56x64xf32, #tpu.memory_space<vmem>>) attributes {dimension_semantics = [#tpu.dimension_semantics<parallel>], iteration_bounds = array<i64: 1>, scalar_prefetch = 0 : i64, scratch_operands = 0 : i64, tpu.core_type = #tpu.core_type<tc>, window_params = [{pipeline_mode = #tpu.pipeline_mode<synchronous>, transform_indices = @transform_0, window_bounds = array<i64: 448, 896>}, {pipeline_mode = #tpu.pipeline_mode<synchronous>, transform_indices = @transform_1, window_bounds = array<i64: 896, 64>}, {pipeline_mode = #tpu.pipeline_mode<synchronous>, transform_indices = @transform_2, window_bounds = array<i64: 1, 64>}, {pipeline_mode = #tpu.pipeline_mode<synchronous>, transform_indices = @transform_3, window_bounds = array<i64: 2, 56, 64>}]} {
    %c0 = arith.constant 0 : index
    %c0_0 = arith.constant 0 : index
    %0 = vector.load %arg1[%c0, %c0_0] : memref<448x896xbf16, #tpu.memory_space<vmem>>, vector<448x896xbf16>
    %c0_1 = arith.constant 0 : index
    %c0_2 = arith.constant 0 : index
    %1 = vector.load %arg2[%c0_1, %c0_2] : memref<896x64xbf16, #tpu.memory_space<vmem>>, vector<896x64xbf16>
    %cst = arith.constant dense<0.000000e+00> : vector<448x64xf32>
    %2 = tpu.matmul %0, %1, %cst {dimension_numbers = #tpu.dot_dimension_numbers<[1], [0], [0], [1], [0, 0, 1, 1], [], []>} : vector<448x896xbf16>, vector<896x64xbf16>, vector<448x64xf32> -> vector<448x64xf32>
    %c0_3 = arith.constant 0 : index
    %c0_4 = arith.constant 0 : index
    %3 = vector.load %arg3[%c0_3, %c0_4] : memref<1x64xf32, #tpu.memory_space<vmem>>, vector<1x64xf32>
    %4 = vector.broadcast %3 : vector<1x64xf32> to vector<448x64xf32>
    %5 = arith.addf %2, %4 : vector<448x64xf32>
    %cst_5 = arith.constant 0.000000e+00 : f32
    %6 = vector.broadcast %cst_5 : f32 to vector<448x64xf32>
    %7 = arith.maximumf %5, %6 : vector<448x64xf32>
    %8 = vector.shape_cast %7 : vector<448x64xf32> to vector<2x4x56x64xf32>
    %cst_6 = arith.constant dense<0xFF800000> : vector<2x56x64xf32>
    %9 = vector.multi_reduction <maximumf>, %8, %cst_6 [1] : vector<2x4x56x64xf32> to vector<2x56x64xf32>
    %c0_7 = arith.constant 0 : index
    %c0_8 = arith.constant 0 : index
    %c0_9 = arith.constant 0 : index
    %10 = vector.load %arg4[%c0_7, %c0_8, %c0_9] : memref<2x56x64xf32, #tpu.memory_space<vmem>>, vector<2x56x64xf32>
    tpu.vector_store %arg4[%c0_7, %c0_8, %c0_9], %9 {strides = array<i32>} : memref<2x56x64xf32, #tpu.memory_space<vmem>>, vector<2x56x64xf32>,
    return
  }
  func.func @transform_0(%arg0: i32) -> (i32, i32) {
    %c0_i32 = arith.constant 0 : i32
    %c0_i32_0 = arith.constant 0 : i32
    %c0_i32_1 = arith.constant 0 : i32
    return %c0_i32, %c0_i32_0 : i32, i32
  }
  func.func @transform_1(%arg0: i32) -> (i32, i32) {
    %c0_i32 = arith.constant 0 : i32
    %c0_i32_0 = arith.constant 0 : i32
    %c0_i32_1 = arith.constant 0 : i32
    return %c0_i32, %c0_i32_0 : i32, i32
  }
  func.func @transform_2(%arg0: i32) -> (i32, i32) {
    %c0_i32 = arith.constant 0 : i32
    %c0_i32_0 = arith.constant 0 : i32
    %c0_i32_1 = arith.constant 0 : i32
    return %c0_i32, %c0_i32_0 : i32, i32
  }
  func.func @transform_3(%arg0: i32) -> (i32, i32, i32) {
    %c0_i32 = arith.constant 0 : i32
    %c0_i32_0 = arith.constant 0 : i32
    %c0_i32_1 = arith.constant 0 : i32
    %c0_i32_2 = arith.constant 0 : i32
    return %c0_i32, %c0_i32_0, %c0_i32_1 : i32, i32, i32
  }
}

module attributes {stable_mosaic.version = 11 : i64} {
  func.func @fc_fused_kernel(%arg0: i32, %arg1: memref<2x3136xbf16, #tpu.memory_space<vmem>>, %arg2: memref<128x3136xbf16, #tpu.memory_space<vmem>>, %arg3: memref<1x128xf32, #tpu.memory_space<vmem>>, %arg4: memref<10x128xbf16, #tpu.memory_space<vmem>>, %arg5: memref<1x2x10xf32, #tpu.memory_space<vmem>>) attributes {dimension_semantics = [#tpu.dimension_semantics<parallel>], iteration_bounds = array<i64: 4>, scalar_prefetch = 0 : i64, scratch_operands = 0 : i64, tpu.core_type = #tpu.core_type<tc>, window_params = [{pipeline_mode = #tpu.pipeline_mode<synchronous>, transform_indices = @transform_0, window_bounds = array<i64: 2, 3136>}, {transform_indices = @transform_1, window_bounds = array<i64: 128, 3136>}, {transform_indices = @transform_2, window_bounds = array<i64: 1, 128>}, {transform_indices = @transform_3, window_bounds = array<i64: 10, 128>}, {transform_indices = @transform_4, window_bounds = array<i64: 1, 2, 10>}]} {
    %c0 = arith.constant 0 : index
    %c0_0 = arith.constant 0 : index
    %0 = vector.load %arg1[%c0, %c0_0] : memref<2x3136xbf16, #tpu.memory_space<vmem>>, vector<2x3136xbf16>
    %c0_1 = arith.constant 0 : index
    %c0_2 = arith.constant 0 : index
    %1 = vector.load %arg2[%c0_1, %c0_2] : memref<128x3136xbf16, #tpu.memory_space<vmem>>, vector<128x3136xbf16>
    %cst = arith.constant dense<0.000000e+00> : vector<2x128xf32>
    %2 = tpu.matmul %0, %1, %cst {dimension_numbers = #tpu.dot_dimension_numbers<[1], [1], [0], [0], [0, 0, 1, 0], [], []>} : vector<2x3136xbf16>, vector<128x3136xbf16>, vector<2x128xf32> -> vector<2x128xf32>
    %c0_3 = arith.constant 0 : index
    %c0_4 = arith.constant 0 : index
    %3 = vector.load %arg3[%c0_3, %c0_4] : memref<1x128xf32, #tpu.memory_space<vmem>>, vector<1x128xf32>
    %4 = vector.broadcast %3 : vector<1x128xf32> to vector<2x128xf32>
    %5 = arith.addf %2, %4 : vector<2x128xf32>
    %cst_5 = arith.constant 0.000000e+00 : f32
    %6 = vector.broadcast %cst_5 : f32 to vector<2x128xf32>
    %7 = arith.maximumf %5, %6 : vector<2x128xf32>
    %8 = arith.truncf %7 : vector<2x128xf32> to vector<2x128xbf16>
    %c0_6 = arith.constant 0 : index
    %c0_7 = arith.constant 0 : index
    %9 = vector.load %arg4[%c0_6, %c0_7] : memref<10x128xbf16, #tpu.memory_space<vmem>>, vector<10x128xbf16>
    %cst_8 = arith.constant dense<0.000000e+00> : vector<2x10xf32>
    %10 = tpu.matmul %8, %9, %cst_8 {dimension_numbers = #tpu.dot_dimension_numbers<[1], [1], [0], [0], [0, 0, 1, 0], [], []>} : vector<2x128xbf16>, vector<10x128xbf16>, vector<2x10xf32> -> vector<2x10xf32>
    %c0_9 = arith.constant 0 : index
    %c0_10 = arith.constant 0 : index
    %c0_11 = arith.constant 0 : index
    %11 = vector.load %arg5[%c0_9, %c0_10, %c0_11] : memref<1x2x10xf32, #tpu.memory_space<vmem>>, vector<1x2x10xf32>
    %12 = vector.shape_cast %11 : vector<1x2x10xf32> to vector<2x10xf32>
    %13 = vector.shape_cast %10 : vector<2x10xf32> to vector<1x2x10xf32>
    tpu.vector_store %arg5[%c0_9, %c0_10, %c0_11], %13 {strides = array<i32>} : memref<1x2x10xf32, #tpu.memory_space<vmem>>, vector<1x2x10xf32>,
    return
  }
  func.func @transform_0(%arg0: i32) -> (i32, i32) {
    %c0_i32 = arith.constant 0 : i32
    %c0_i32_0 = arith.constant 0 : i32
    %c0_i32_1 = arith.constant 0 : i32
    return %c0_i32, %c0_i32_0 : i32, i32
  }
  func.func @transform_1(%arg0: i32) -> (i32, i32) {
    %c0_i32 = arith.constant 0 : i32
    %c0_i32_0 = arith.constant 0 : i32
    return %arg0, %c0_i32 : i32, i32
  }
  func.func @transform_2(%arg0: i32) -> (i32, i32) {
    %c0_i32 = arith.constant 0 : i32
    %c0_i32_0 = arith.constant 0 : i32
    return %c0_i32, %arg0 : i32, i32
  }
  func.func @transform_3(%arg0: i32) -> (i32, i32) {
    %c0_i32 = arith.constant 0 : i32
    %c0_i32_0 = arith.constant 0 : i32
    return %c0_i32, %arg0 : i32, i32
  }
  func.func @transform_4(%arg0: i32) -> (i32, i32, i32) {
    %c0_i32 = arith.constant 0 : i32
    %c0_i32_0 = arith.constant 0 : i32
    %c0_i32_1 = arith.constant 0 : i32
    return %arg0, %c0_i32, %c0_i32_0 : i32, i32, i32
  }
}

</mosaic_0001>

<llo_original>
// kernel: flnet_forward.3
$region0: #{flnet_forward.3}
  #allocation0 [shape = 'u32[]', space=smem, size = 0x4, offset = 0x4, fixed_abs, tag = 'smem constant byte address 0x4 - core index']
  #allocation1 [shape = 'u32[144,128]{1,0:T(1,128)}', space=vmem, size = 0x12000, scoped, tag = 'internal scratch']
  %s0 = inlined_call_operand.vmem [shape: bf16[1600,128], index: 0, kind: input, shape index: {}]
  %s1 = inlined_call_operand.vmem [shape: bf16[128,32], index: 1, kind: input, shape index: {}]
  %s2 = inlined_call_operand.vmem [shape: f32[1,32], index: 2, kind: input, shape index: {}]
  %s3 = inlined_call_operand.vmem [shape: f32[2,200,32], index: 3, kind: output, shape index: {}]
  %s4 = sld [smem:[#allocation0]]
  $region22: #{flnet_forward.3} parent=0
    _
  %s6 = ssub.s32 1, %s4
  %s7 = scalar_select 0, %s6, %s4
  // Predicated region
  $region2: #{flnet_forward.3} parent=0 // pred_check
    _
  $region3: #{flnet_forward.3} parent=0 // pred_check_branch
    %9 = sbr.rel (0) target = $region5
  $region4: #{flnet_forward.3} parent=0 // pred_region
    _
  $region5: #{flnet_forward.3} parent=0 // pred_fallthru
    _
  // Predicated region
  $region6: #{flnet_forward.3} parent=0 // pred_check
    _
  $region7: #{flnet_forward.3} parent=0 // pred_check_branch
    %11 = sbr.rel (0) target = $region9
  $region8: #{flnet_forward.3} parent=0 // pred_region
    _
  $region9: #{flnet_forward.3} parent=0 // pred_fallthru
    _
  // Predicated region
  $region10: #{flnet_forward.3} parent=0 // pred_check
    _
  $region11: #{flnet_forward.3} parent=0 // pred_check_branch
    %13 = sbr.rel (0) target = $region13
  $region12: #{flnet_forward.3} parent=0 // pred_region
    _
  $region13: #{flnet_forward.3} parent=0 // pred_fallthru
    _
  %v15 = vld [vmem:[%s0] sm:$0xf]
  %v16 = vld [vmem:[%s0 + $0x4] sm:$0xf]
  %v17 = vld [vmem:[%s0 + $0x8] sm:$0xf]
  %v18 = vld [vmem:[%s0 + $0xc] sm:$0xf]
  %v19 = vld [vmem:[%s0 + $0x10] sm:$0xf]
  %v20 = vld [vmem:[%s0 + $0x14] sm:$0xf]
  %v21 = vld [vmem:[%s0 + $0x18] sm:$0xf]
  %v22 = vld [vmem:[%s0 + $0x1c] sm:$0xf]
  %v23 = vld [vmem:[%s0 + $0x20] sm:$0xf]
  %v24 = vld [vmem:[%s0 + $0x24] sm:$0xf]
  %v25 = vld [vmem:[%s0 + $0x28] sm:$0xf]
  %v26 = vld [vmem:[%s0 + $0x2c] sm:$0xf]
  %v27 = vld [vmem:[%s0 + $0x30] sm:$0xf]
  %v28 = vld [vmem:[%s0 + $0x34] sm:$0xf]
  %v29 = vld [vmem:[%s0 + $0x38] sm:$0xf]
  %v30 = vld [vmem:[%s0 + $0x3c] sm:$0xf]
  %v31 = vld [vmem:[%s0 + $0x40] sm:$0xf]
  %v32 = vld [vmem:[%s0 + $0x44] sm:$0xf]
  %v33 = vld [vmem:[%s0 + $0x48] sm:$0xf]
  %v34 = vld [vmem:[%s0 + $0x4c] sm:$0xf]
  %v35 = vld [vmem:[%s0 + $0x50] sm:$0xf]
  %v36 = vld [vmem:[%s0 + $0x54] sm:$0xf]
  %v37 = vld [vmem:[%s0 + $0x58] sm:$0xf]
  %v38 = vld [vmem:[%s0 + $0x5c] sm:$0xf]
  %v39 = vld [vmem:[%s0 + $0x60] sm:$0xf]
  %v40 = vld [vmem:[%s0 + $0x64] sm:$0xf]
  %v41 = vld [vmem:[%s0 + $0x68] sm:$0xf]
  %v42 = vld [vmem:[%s0 + $0x6c] sm:$0xf]
  %v43 = vld [vmem:[%s0 + $0x70] sm:$0xf]
  %v44 = vld [vmem:[%s0 + $0x74] sm:$0xf]
  %v45 = vld [vmem:[%s0 + $0x78] sm:$0xf]
  %v46 = vld [vmem:[%s0 + $0x7c] sm:$0xf]
  %v47 = vld [vmem:[%s0 + $0x80] sm:$0xf]
  %v48 = vld [vmem:[%s0 + $0x84] sm:$0xf]
  %v49 = vld [vmem:[%s0 + $0x88] sm:$0xf]
  %v50 = vld [vmem:[%s0 + $0x8c] sm:$0xf]
  %v51 = vld [vmem:[%s0 + $0x90] sm:$0xf]
  %v52 = vld [vmem:[%s0 + $0x94] sm:$0xf]
  %v53 = vld [vmem:[%s0 + $0x98] sm:$0xf]
  %v54 = vld [vmem:[%s0 + $0x9c] sm:$0xf]
  %v55 = vld [vmem:[%s0 + $0xa0] sm:$0xf]
  %v56 = vld [vmem:[%s0 + $0xa4] sm:$0xf]
  %v57 = vld [vmem:[%s0 + $0xa8] sm:$0xf]
  %v58 = vld [vmem:[%s0 + $0xac] sm:$0xf]
  %v59 = vld [vmem:[%s0 + $0xb0] sm:$0xf]
  %v60 = vld [vmem:[%s0 + $0xb4] sm:$0xf]
  %v61 = vld [vmem:[%s0 + $0xb8] sm:$0xf]
  %v62 = vld [vmem:[%s0 + $0xbc] sm:$0xf]
  %v63 = vld [vmem:[%s0 + $0xc0] sm:$0xf]
  %v64 = vld [vmem:[%s0 + $0xc4] sm:$0xf]
  %v65 = vld [vmem:[%s0 + $0xc8] sm:$0xf]
  %v66 = vld [vmem:[%s0 + $0xcc] sm:$0xf]
  %v67 = vld [vmem:[%s0 + $0xd0] sm:$0xf]
  %v68 = vld [vmem:[%s0 + $0xd4] sm:$0xf]
  %v69 = vld [vmem:[%s0 + $0xd8] sm:$0xf]
  %v70 = vld [vmem:[%s0 + $0xdc] sm:$0xf]
  %v71 = vld [vmem:[%s0 + $0xe0] sm:$0xf]
  %v72 = vld [vmem:[%s0 + $0xe4] sm:$0xf]
  %v73 = vld [vmem:[%s0 + $0xe8] sm:$0xf]
  %v74 = vld [vmem:[%s0 + $0xec] sm:$0xf]
  %v75 = vld [vmem:[%s0 + $0xf0] sm:$0xf]
  %v76 = vld [vmem:[%s0 + $0xf4] sm:$0xf]
  %v77 = vld [vmem:[%s0 + $0xf8] sm:$0xf]
  %v78 = vld [vmem:[%s0 + $0xfc] sm:$0xf]
  %v79 = vld [vmem:[%s0 + $0x100] sm:$0xf]
  %v80 = vld [vmem:[%s0 + $0x104] sm:$0xf]
  %v81 = vld [vmem:[%s0 + $0x108] sm:$0xf]
  %v82 = vld [vmem:[%s0 + $0x10c] sm:$0xf]
  %v83 = vld [vmem:[%s0 + $0x110] sm:$0xf]
  %v84 = vld [vmem:[%s0 + $0x114] sm:$0xf]
  %v85 = vld [vmem:[%s0 + $0x118] sm:$0xf]
  %v86 = vld [vmem:[%s0 + $0x11c] sm:$0xf]
  %v87 = vld [vmem:[%s0 + $0x120] sm:$0xf]
  %v88 = vld [vmem:[%s0 + $0x124] sm:$0xf]
  %v89 = vld [vmem:[%s0 + $0x128] sm:$0xf]
  %v90 = vld [vmem:[%s0 + $0x12c] sm:$0xf]
  %v91 = vld [vmem:[%s0 + $0x130] sm:$0xf]
  %v92 = vld [vmem:[%s0 + $0x134] sm:$0xf]
  %v93 = vld [vmem:[%s0 + $0x138] sm:$0xf]
  %v94 = vld [vmem:[%s0 + $0x13c] sm:$0xf]
  %v95 = vld [vmem:[%s0 + $0x140] sm:$0xf]
  %v96 = vld [vmem:[%s0 + $0x144] sm:$0xf]
  %v97 = vld [vmem:[%s0 + $0x148] sm:$0xf]
  %v98 = vld [vmem:[%s0 + $0x14c] sm:$0xf]
  %v99 = vld [vmem:[%s0 + $0x150] sm:$0xf]
  %v100 = vld [vmem:[%s0 + $0x154] sm:$0xf]
  %v101 = vld [vmem:[%s0 + $0x158] sm:$0xf]
  %v102 = vld [vmem:[%s0 + $0x15c] sm:$0xf]
  %v103 = vld [vmem:[%s0 + $0x160] sm:$0xf]
  %v104 = vld [vmem:[%s0 + $0x164] sm:$0xf]
  %v105 = vld [vmem:[%s0 + $0x168] sm:$0xf]
  %v106 = vld [vmem:[%s0 + $0x16c] sm:$0xf]
  %v107 = vld [vmem:[%s0 + $0x170] sm:$0xf]
  %v108 = vld [vmem:[%s0 + $0x174] sm:$0xf]
  %v109 = vld [vmem:[%s0 + $0x178] sm:$0xf]
  %v110 = vld [vmem:[%s0 + $0x17c] sm:$0xf]
  %v111 = vld [vmem:[%s0 + $0x180] sm:$0xf]
  %v112 = vld [vmem:[%s0 + $0x184] sm:$0xf]
  %v113 = vld [vmem:[%s0 + $0x188] sm:$0xf]
  %v114 = vld [vmem:[%s0 + $0x18c] sm:$0xf]
  %v115 = vld [vmem:[%s0 + $0x190] sm:$0xf]
  %v116 = vld [vmem:[%s0 + $0x194] sm:$0xf]
  %v117 = vld [vmem:[%s0 + $0x198] sm:$0xf]
  %v118 = vld [vmem:[%s0 + $0x19c] sm:$0xf]
  %v119 = vld [vmem:[%s0 + $0x1a0] sm:$0xf]
  %v120 = vld [vmem:[%s0 + $0x1a4] sm:$0xf]
  %v121 = vld [vmem:[%s0 + $0x1a8] sm:$0xf]
  %v122 = vld [vmem:[%s0 + $0x1ac] sm:$0xf]
  %v123 = vld [vmem:[%s0 + $0x1b0] sm:$0xf]
  %v124 = vld [vmem:[%s0 + $0x1b4] sm:$0xf]
  %v125 = vld [vmem:[%s0 + $0x1b8] sm:$0xf]
  %v126 = vld [vmem:[%s0 + $0x1bc] sm:$0xf]
  %v127 = vld [vmem:[%s0 + $0x1c0] sm:$0xf]
  %v128 = vld [vmem:[%s0 + $0x1c4] sm:$0xf]
  %v129 = vld [vmem:[%s0 + $0x1c8] sm:$0xf]
  %v130 = vld [vmem:[%s0 + $0x1cc] sm:$0xf]
  %v131 = vld [vmem:[%s0 + $0x1d0] sm:$0xf]
  %v132 = vld [vmem:[%s0 + $0x1d4] sm:$0xf]
  %v133 = vld [vmem:[%s0 + $0x1d8] sm:$0xf]
  %v134 = vld [vmem:[%s0 + $0x1dc] sm:$0xf]
  %v135 = vld [vmem:[%s0 + $0x1e0] sm:$0xf]
  %v136 = vld [vmem:[%s0 + $0x1e4] sm:$0xf]
  %v137 = vld [vmem:[%s0 + $0x1e8] sm:$0xf]
  %v138 = vld [vmem:[%s0 + $0x1ec] sm:$0xf]
  %v139 = vld [vmem:[%s0 + $0x1f0] sm:$0xf]
  %v140 = vld [vmem:[%s0 + $0x1f4] sm:$0xf]
  %v141 = vld [vmem:[%s0 + $0x1f8] sm:$0xf]
  %v142 = vld [vmem:[%s0 + $0x1fc] sm:$0xf]
  %v143 = vld [vmem:[%s0 + $0x200] sm:$0xf]
  %v144 = vld [vmem:[%s0 + $0x204] sm:$0xf]
  %v145 = vld [vmem:[%s0 + $0x208] sm:$0xf]
  %v146 = vld [vmem:[%s0 + $0x20c] sm:$0xf]
  %v147 = vld [vmem:[%s0 + $0x210] sm:$0xf]
  %v148 = vld [vmem:[%s0 + $0x214] sm:$0xf]
  %v149 = vld [vmem:[%s0 + $0x218] sm:$0xf]
  %v150 = vld [vmem:[%s0 + $0x21c] sm:$0xf]
  %v151 = vld [vmem:[%s0 + $0x220] sm:$0xf]
  %v152 = vld [vmem:[%s0 + $0x224] sm:$0xf]
  %v153 = vld [vmem:[%s0 + $0x228] sm:$0xf]
  %v154 = vld [vmem:[%s0 + $0x22c] sm:$0xf]
  %v155 = vld [vmem:[%s0 + $0x230] sm:$0xf]
  %v156 = vld [vmem:[%s0 + $0x234] sm:$0xf]
  %v157 = vld [vmem:[%s0 + $0x238] sm:$0xf]
  %v158 = vld [vmem:[%s0 + $0x23c] sm:$0xf]
  %v159 = vld [vmem:[%s0 + $0x240] sm:$0xf]
  %v160 = vld [vmem:[%s0 + $0x244] sm:$0xf]
  %v161 = vld [vmem:[%s0 + $0x248] sm:$0xf]
  %v162 = vld [vmem:[%s0 + $0x24c] sm:$0xf]
  %v163 = vld [vmem:[%s0 + $0x250] sm:$0xf]
  %v164 = vld [vmem:[%s0 + $0x254] sm:$0xf]
  %v165 = vld [vmem:[%s0 + $0x258] sm:$0xf]
  %v166 = vld [vmem:[%s0 + $0x25c] sm:$0xf]
  %v167 = vld [vmem:[%s0 + $0x260] sm:$0xf]
  %v168 = vld [vmem:[%s0 + $0x264] sm:$0xf]
  %v169 = vld [vmem:[%s0 + $0x268] sm:$0xf]
  %v170 = vld [vmem:[%s0 + $0x26c] sm:$0xf]
  %v171 = vld [vmem:[%s0 + $0x270] sm:$0xf]
  %v172 = vld [vmem:[%s0 + $0x274] sm:$0xf]
  %v173 = vld [vmem:[%s0 + $0x278] sm:$0xf]
  %v174 = vld [vmem:[%s0 + $0x27c] sm:$0xf]
  %v175 = vld [vmem:[%s0 + $0x280] sm:$0xf]
  %v176 = vld [vmem:[%s0 + $0x284] sm:$0xf]
  %v177 = vld [vmem:[%s0 + $0x288] sm:$0xf]
  %v178 = vld [vmem:[%s0 + $0x28c] sm:$0xf]
  %v179 = vld [vmem:[%s0 + $0x290] sm:$0xf]
  %v180 = vld [vmem:[%s0 + $0x294] sm:$0xf]
  %v181 = vld [vmem:[%s0 + $0x298] sm:$0xf]
  %v182 = vld [vmem:[%s0 + $0x29c] sm:$0xf]
  %v183 = vld [vmem:[%s0 + $0x2a0] sm:$0xf]
  %v184 = vld [vmem:[%s0 + $0x2a4] sm:$0xf]
  %v185 = vld [vmem:[%s0 + $0x2a8] sm:$0xf]
  %v186 = vld [vmem:[%s0 + $0x2ac] sm:$0xf]
  %v187 = vld [vmem:[%s0 + $0x2b0] sm:$0xf]
  %v188 = vld [vmem:[%s0 + $0x2b4] sm:$0xf]
  %v189 = vld [vmem:[%s0 + $0x2b8] sm:$0xf]
  %v190 = vld [vmem:[%s0 + $0x2bc] sm:$0xf]
  %v191 = vld [vmem:[%s0 + $0x2c0] sm:$0xf]
  %v192 = vld [vmem:[%s0 + $0x2c4] sm:$0xf]
  %v193 = vld [vmem:[%s0 + $0x2c8] sm:$0xf]
  %v194 = vld [vmem:[%s0 + $0x2cc] sm:$0xf]
  %v195 = vld [vmem:[%s0 + $0x2d0] sm:$0xf]
  %v196 = vld [vmem:[%s0 + $0x2d4] sm:$0xf]
  %v197 = vld [vmem:[%s0 + $0x2d8] sm:$0xf]
  %v198 = vld [vmem:[%s0 + $0x2dc] sm:$0xf]
  %v199 = vld [vmem:[%s0 + $0x2e0] sm:$0xf]
  %v200 = vld [vmem:[%s0 + $0x2e4] sm:$0xf]
  %v201 = vld [vmem:[%s0 + $0x2e8] sm:$0xf]
  %v202 = vld [vmem:[%s0 + $0x2ec] sm:$0xf]
  %v203 = vld [vmem:[%s0 + $0x2f0] sm:$0xf]
  %v204 = vld [vmem:[%s0 + $0x2f4] sm:$0xf]
  %v205 = vld [vmem:[%s0 + $0x2f8] sm:$0xf]
  %v206 = vld [vmem:[%s0 + $0x2fc] sm:$0xf]
  %v207 = vld [vmem:[%s0 + $0x300] sm:$0xf]
  %v208 = vld [vmem:[%s0 + $0x304] sm:$0xf]
  %v209 = vld [vmem:[%s0 + $0x308] sm:$0xf]
  %v210 = vld [vmem:[%s0 + $0x30c] sm:$0xf]
  %v211 = vld [vmem:[%s0 + $0x310] sm:$0xf]
  %v212 = vld [vmem:[%s0 + $0x314] sm:$0xf]
  %v213 = vld [vmem:[%s0 + $0x318] sm:$0xf]
  %v214 = vld [vmem:[%s0 + $0x31c] sm:$0xf]
  %v215 = vld [vmem:[%s1] sm:$0xf]
  %v216 = vld [vmem:[%s1 + $0x4] sm:$0xf]
  %v217 = vld [vmem:[%s1 + $0x8] sm:$0xf]
  %v218 = vld [vmem:[%s1 + $0xc] sm:$0xf]
  %v219 = vld [vmem:[%s1 + $0x10] sm:$0xf]
  %v220 = vld [vmem:[%s1 + $0x14] sm:$0xf]
  %v221 = vld [vmem:[%s1 + $0x18] sm:$0xf]
  %v222 = vld [vmem:[%s1 + $0x1c] sm:$0xf]
  %v223 = vld [vmem:[%s1 + $0x20] sm:$0xf]
  %v224 = vld [vmem:[%s1 + $0x24] sm:$0xf]
  %v225 = vld [vmem:[%s1 + $0x28] sm:$0xf]
  %v226 = vld [vmem:[%s1 + $0x2c] sm:$0xf]
  %v227 = vld [vmem:[%s1 + $0x30] sm:$0xf]
  %v228 = vld [vmem:[%s1 + $0x34] sm:$0xf]
  %v229 = vld [vmem:[%s1 + $0x38] sm:$0xf]
  %v230 = vld [vmem:[%s1 + $0x3c] sm:$0xf]
  %v231 = vld [vmem:[%s2] sm:$0x1]
  %v233 = vlaneseq
  %v234 = vshrl.u32 %v233, 7
  %v235 = vsub.s32 0, %v234
  %v236 = vrot.slane %v231, %v235
  %v438 = vunpack.c.l.b16 %v15
  %v439 = vunpack.c.l.b16 %v16
  %v440 = vunpack.c.l.b16 %v17
  %v441 = vunpack.c.l.b16 %v18
  %v442 = vunpack.c.l.b16 %v19
  %v443 = vunpack.c.l.b16 %v20
  %v444 = vunpack.c.l.b16 %v21
  %v445 = vunpack.c.l.b16 %v22
  %v446 = vunpack.c.l.b16 %v23
  %v447 = vunpack.c.l.b16 %v24
  %v448 = vunpack.c.l.b16 %v25
  %v449 = vunpack.c.l.b16 %v26
  %v450 = vunpack.c.l.b16 %v27
  %v451 = vunpack.c.l.b16 %v28
  %v452 = vunpack.c.l.b16 %v29
  %v453 = vunpack.c.l.b16 %v30
  %v454 = vunpack.c.l.b16 %v31
  %v455 = vunpack.c.l.b16 %v32
  %v456 = vunpack.c.l.b16 %v33
  %v457 = vunpack.c.l.b16 %v34
  %v458 = vunpack.c.l.b16 %v35
  %v459 = vunpack.c.l.b16 %v36
  %v460 = vunpack.c.l.b16 %v37
  %v461 = vunpack.c.l.b16 %v38
  %v462 = vunpack.c.l.b16 %v39
  %v463 = vunpack.c.l.b16 %v40
  %v464 = vunpack.c.l.b16 %v41
  %v465 = vunpack.c.l.b16 %v42
  %v466 = vunpack.c.l.b16 %v43
  %v467 = vunpack.c.l.b16 %v44
  %v468 = vunpack.c.l.b16 %v45
  %v469 = vunpack.c.l.b16 %v46
  %v470 = vunpack.c.l.b16 %v47
  %v471 = vunpack.c.l.b16 %v48
  %v472 = vunpack.c.l.b16 %v49
  %v473 = vunpack.c.l.b16 %v50
  %v474 = vunpack.c.l.b16 %v51
  %v475 = vunpack.c.l.b16 %v52
  %v476 = vunpack.c.l.b16 %v53
  %v477 = vunpack.c.l.b16 %v54
  %v478 = vunpack.c.l.b16 %v55
  %v479 = vunpack.c.l.b16 %v56
  %v480 = vunpack.c.l.b16 %v57
  %v481 = vunpack.c.l.b16 %v58
  %v482 = vunpack.c.l.b16 %v59
  %v483 = vunpack.c.l.b16 %v60
  %v484 = vunpack.c.l.b16 %v61
  %v485 = vunpack.c.l.b16 %v62
  %v486 = vunpack.c.l.b16 %v63
  %v487 = vunpack.c.l.b16 %v64
  %v488 = vunpack.c.l.b16 %v65
  %v489 = vunpack.c.l.b16 %v66
  %v490 = vunpack.c.l.b16 %v67
  %v491 = vunpack.c.l.b16 %v68
  %v492 = vunpack.c.l.b16 %v69
  %v493 = vunpack.c.l.b16 %v70
  %v494 = vunpack.c.l.b16 %v71
  %v495 = vunpack.c.l.b16 %v72
  %v496 = vunpack.c.l.b16 %v73
  %v497 = vunpack.c.l.b16 %v74
  %v498 = vunpack.c.l.b16 %v75
  %v499 = vunpack.c.l.b16 %v76
  %v500 = vunpack.c.l.b16 %v77
  %v501 = vunpack.c.l.b16 %v78
  %v502 = vunpack.c.l.b16 %v79
  %v503 = vunpack.c.l.b16 %v80
  %v504 = vunpack.c.l.b16 %v81
  %v505 = vunpack.c.l.b16 %v82
  %v506 = vunpack.c.l.b16 %v83
  %v507 = vunpack.c.l.b16 %v84
  %v508 = vunpack.c.l.b16 %v85
  %v509 = vunpack.c.l.b16 %v86
  %v510 = vunpack.c.l.b16 %v87
  %v511 = vunpack.c.l.b16 %v88
  %v512 = vunpack.c.l.b16 %v89
  %v513 = vunpack.c.l.b16 %v90
  %v514 = vunpack.c.l.b16 %v91
  %v515 = vunpack.c.l.b16 %v92
  %v516 = vunpack.c.l.b16 %v93
  %v517 = vunpack.c.l.b16 %v94
  %v518 = vunpack.c.l.b16 %v95
  %v519 = vunpack.c.l.b16 %v96
  %v520 = vunpack.c.l.b16 %v97
  %v521 = vunpack.c.l.b16 %v98
  %v522 = vunpack.c.l.b16 %v99
  %v523 = vunpack.c.l.b16 %v100
  %v524 = vunpack.c.l.b16 %v101
  %v525 = vunpack.c.l.b16 %v102
  %v526 = vunpack.c.l.b16 %v103
  %v527 = vunpack.c.l.b16 %v104
  %v528 = vunpack.c.l.b16 %v105
  %v529 = vunpack.c.l.b16 %v106
  %v530 = vunpack.c.l.b16 %v107
  %v531 = vunpack.c.l.b16 %v108
  %v532 = vunpack.c.l.b16 %v109
  %v533 = vunpack.c.l.b16 %v110
  %v534 = vunpack.c.l.b16 %v111
  %v535 = vunpack.c.l.b16 %v112
  %v536 = vunpack.c.l.b16 %v113
  %v537 = vunpack.c.l.b16 %v114
  %v538 = vunpack.c.l.b16 %v115
  %v539 = vunpack.c.l.b16 %v116
  %v540 = vunpack.c.l.b16 %v117
  %v541 = vunpack.c.l.b16 %v118
  %v542 = vunpack.c.l.b16 %v119
  %v543 = vunpack.c.l.b16 %v120
  %v544 = vunpack.c.l.b16 %v121
  %v545 = vunpack.c.l.b16 %v122
  %v546 = vunpack.c.l.b16 %v123
  %v547 = vunpack.c.l.b16 %v124
  %v548 = vunpack.c.l.b16 %v125
  %v549 = vunpack.c.l.b16 %v126
  %v550 = vunpack.c.l.b16 %v127
  %v551 = vunpack.c.l.b16 %v128
  %v552 = vunpack.c.l.b16 %v129
  %v553 = vunpack.c.l.b16 %v130
  %v554 = vunpack.c.l.b16 %v131
  %v555 = vunpack.c.l.b16 %v132
  %v556 = vunpack.c.l.b16 %v133
  %v557 = vunpack.c.l.b16 %v134
  %v558 = vunpack.c.l.b16 %v135
  %v559 = vunpack.c.l.b16 %v136
  %v560 = vunpack.c.l.b16 %v137
  %v561 = vunpack.c.l.b16 %v138
  %v562 = vunpack.c.l.b16 %v139
  %v563 = vunpack.c.l.b16 %v140
  %v564 = vunpack.c.l.b16 %v141
  %v565 = vunpack.c.l.b16 %v142
  %v566 = vunpack.c.l.b16 %v143
  %v567 = vunpack.c.l.b16 %v144
  %v568 = vunpack.c.l.b16 %v145
  %v569 = vunpack.c.l.b16 %v146
  %v570 = vunpack.c.l.b16 %v147
  %v571 = vunpack.c.l.b16 %v148
  %v572 = vunpack.c.l.b16 %v149
  %v573 = vunpack.c.l.b16 %v150
  %v574 = vunpack.c.l.b16 %v151
  %v575 = vunpack.c.l.b16 %v152
  %v576 = vunpack.c.l.b16 %v153
  %v577 = vunpack.c.l.b16 %v154
  %v578 = vunpack.c.l.b16 %v155
  %v579 = vunpack.c.l.b16 %v156
  %v580 = vunpack.c.l.b16 %v157
  %v581 = vunpack.c.l.b16 %v158
  %v582 = vunpack.c.l.b16 %v159
  %v583 = vunpack.c.l.b16 %v160
  %v584 = vunpack.c.l.b16 %v161
  %v585 = vunpack.c.l.b16 %v162
  %v586 = vunpack.c.l.b16 %v163
  %v587 = vunpack.c.l.b16 %v164
  %v588 = vunpack.c.l.b16 %v165
  %v589 = vunpack.c.l.b16 %v166
  %v590 = vunpack.c.l.b16 %v167
  %v591 = vunpack.c.l.b16 %v168
  %v592 = vunpack.c.l.b16 %v169
  %v593 = vunpack.c.l.b16 %v170
  %v594 = vunpack.c.l.b16 %v171
  %v595 = vunpack.c.l.b16 %v172
  %v596 = vunpack.c.l.b16 %v173
  %v597 = vunpack.c.l.b16 %v174
  %v598 = vunpack.c.l.b16 %v175
  %v599 = vunpack.c.l.b16 %v176
  %v600 = vunpack.c.l.b16 %v177
  %v601 = vunpack.c.l.b16 %v178
  %v602 = vunpack.c.l.b16 %v179
  %v603 = vunpack.c.l.b16 %v180
  %v604 = vunpack.c.l.b16 %v181
  %v605 = vunpack.c.l.b16 %v182
  %v606 = vunpack.c.l.b16 %v183
  %v607 = vunpack.c.l.b16 %v184
  %v608 = vunpack.c.l.b16 %v185
  %v609 = vunpack.c.l.b16 %v186
  %v610 = vunpack.c.l.b16 %v187
  %v611 = vunpack.c.l.b16 %v188
  %v612 = vunpack.c.l.b16 %v189
  %v613 = vunpack.c.l.b16 %v190
  %v614 = vunpack.c.l.b16 %v191
  %v615 = vunpack.c.l.b16 %v192
  %v616 = vunpack.c.l.b16 %v193
  %v617 = vunpack.c.l.b16 %v194
  %v618 = vunpack.c.l.b16 %v195
  %v619 = vunpack.c.l.b16 %v196
  %v620 = vunpack.c.l.b16 %v197
  %v621 = vunpack.c.l.b16 %v198
  %v622 = vunpack.c.l.b16 %v199
  %v623 = vunpack.c.l.b16 %v200
  %v624 = vunpack.c.l.b16 %v201
  %v625 = vunpack.c.l.b16 %v202
  %v626 = vunpack.c.l.b16 %v203
  %v627 = vunpack.c.l.b16 %v204
  %v628 = vunpack.c.l.b16 %v205
  %v629 = vunpack.c.l.b16 %v206
  %v630 = vunpack.c.l.b16 %v207
  %v631 = vunpack.c.l.b16 %v208
  %v632 = vunpack.c.l.b16 %v209
  %v633 = vunpack.c.l.b16 %v210
  %v634 = vunpack.c.l.b16 %v211
  %v635 = vunpack.c.l.b16 %v212
  %v636 = vunpack.c.l.b16 %v213
  %v637 = vunpack.c.l.b16 %v214
  %v638 = vpack.c.b16 %v439, %v438
  %v639 = vpack.c.b16 %v441, %v440
  %v640 = vpack.c.b16 %v443, %v442
  %v641 = vpack.c.b16 %v445, %v444
  %v642 = vpack.c.b16 %v447, %v446
  %v643 = vpack.c.b16 %v449, %v448
  %v644 = vpack.c.b16 %v451, %v450
  %v645 = vpack.c.b16 %v453, %v452
  %v646 = vpack.c.b16 %v455, %v454
  %v647 = vpack.c.b16 %v457, %v456
  %v648 = vpack.c.b16 %v459, %v458
  %v649 = vpack.c.b16 %v461, %v460
  %v650 = vpack.c.b16 %v463, %v462
  %v651 = vpack.c.b16 %v465, %v464
  %v652 = vpack.c.b16 %v467, %v466
  %v653 = vpack.c.b16 %v469, %v468
  %v654 = vpack.c.b16 %v471, %v470
  %v655 = vpack.c.b16 %v473, %v472
  %v656 = vpack.c.b16 %v475, %v474
  %v657 = vpack.c.b16 %v477, %v476
  %v658 = vpack.c.b16 %v479, %v478
  %v659 = vpack.c.b16 %v481, %v480
  %v660 = vpack.c.b16 %v483, %v482
  %v661 = vpack.c.b16 %v485, %v484
  %v662 = vpack.c.b16 %v487, %v486
  %v663 = vpack.c.b16 %v489, %v488
  %v664 = vpack.c.b16 %v491, %v490
  %v665 = vpack.c.b16 %v493, %v492
  %v666 = vpack.c.b16 %v495, %v494
  %v667 = vpack.c.b16 %v497, %v496
  %v668 = vpack.c.b16 %v499, %v498
  %v669 = vpack.c.b16 %v501, %v500
  %v670 = vpack.c.b16 %v503, %v502
  %v671 = vpack.c.b16 %v505, %v504
  %v672 = vpack.c.b16 %v507, %v506
  %v673 = vpack.c.b16 %v509, %v508
  %v674 = vpack.c.b16 %v511, %v510
  %v675 = vpack.c.b16 %v513, %v512
  %v676 = vpack.c.b16 %v515, %v514
  %v677 = vpack.c.b16 %v517, %v516
  %v678 = vpack.c.b16 %v519, %v518
  %v679 = vpack.c.b16 %v521, %v520
  %v680 = vpack.c.b16 %v523, %v522
  %v681 = vpack.c.b16 %v525, %v524
  %v682 = vpack.c.b16 %v527, %v526
  %v683 = vpack.c.b16 %v529, %v528
  %v684 = vpack.c.b16 %v531, %v530
  %v685 = vpack.c.b16 %v533, %v532
  %v686 = vpack.c.b16 %v535, %v534
  %v687 = vpack.c.b16 %v537, %v536
  %v688 = vpack.c.b16 %v539, %v538
  %v689 = vpack.c.b16 %v541, %v540
  %v690 = vpack.c.b16 %v543, %v542
  %v691 = vpack.c.b16 %v545, %v544
  %v692 = vpack.c.b16 %v547, %v546
  %v693 = vpack.c.b16 %v549, %v548
  %v694 = vpack.c.b16 %v551, %v550
  %v695 = vpack.c.b16 %v553, %v552
  %v696 = vpack.c.b16 %v555, %v554
  %v697 = vpack.c.b16 %v557, %v556
  %v698 = vpack.c.b16 %v559, %v558
  %v699 = vpack.c.b16 %v561, %v560
  %v700 = vpack.c.b16 %v563, %v562
  %v701 = vpack.c.b16 %v565, %v564
  %v702 = vpack.c.b16 %v567, %v566
  %v703 = vpack.c.b16 %v569, %v568
  %v704 = vpack.c.b16 %v571, %v570
  %v705 = vpack.c.b16 %v573, %v572
  %v706 = vpack.c.b16 %v575, %v574
  %v707 = vpack.c.b16 %v577, %v576
  %v708 = vpack.c.b16 %v579, %v578
  %v709 = vpack.c.b16 %v581, %v580
  %v710 = vpack.c.b16 %v583, %v582
  %v711 = vpack.c.b16 %v585, %v584
  %v712 = vpack.c.b16 %v587, %v586
  %v713 = vpack.c.b16 %v589, %v588
  %v714 = vpack.c.b16 %v591, %v590
  %v715 = vpack.c.b16 %v593, %v592
  %v716 = vpack.c.b16 %v595, %v594
  %v717 = vpack.c.b16 %v597, %v596
  %v718 = vpack.c.b16 %v599, %v598
  %v719 = vpack.c.b16 %v601, %v600
  %v720 = vpack.c.b16 %v603, %v602
  %v721 = vpack.c.b16 %v605, %v604
  %v722 = vpack.c.b16 %v607, %v606
  %v723 = vpack.c.b16 %v609, %v608
  %v724 = vpack.c.b16 %v611, %v610
  %v725 = vpack.c.b16 %v613, %v612
  %v726 = vpack.c.b16 %v615, %v614
  %v727 = vpack.c.b16 %v617, %v616
  %v728 = vpack.c.b16 %v619, %v618
  %v729 = vpack.c.b16 %v621, %v620
  %v730 = vpack.c.b16 %v623, %v622
  %v731 = vpack.c.b16 %v625, %v624
  %v732 = vpack.c.b16 %v627, %v626
  %v733 = vpack.c.b16 %v629, %v628
  %v734 = vpack.c.b16 %v631, %v630
  %v735 = vpack.c.b16 %v633, %v632
  %v736 = vpack.c.b16 %v635, %v634
  %v737 = vpack.c.b16 %v637, %v636
  %v854 = vunpack.c.l.b16 %v215
  %v855 = vunpack.c.l.b16 %v216
  %v856 = vunpack.c.l.b16 %v217
  %v857 = vunpack.c.l.b16 %v218
  %v858 = vunpack.c.l.b16 %v219
  %v859 = vunpack.c.l.b16 %v220
  %v860 = vunpack.c.l.b16 %v221
  %v861 = vunpack.c.l.b16 %v222
  %v862 = vunpack.c.l.b16 %v223
  %v863 = vunpack.c.l.b16 %v224
  %v864 = vunpack.c.l.b16 %v225
  %v865 = vunpack.c.l.b16 %v226
  %v866 = vunpack.c.l.b16 %v227
  %v867 = vunpack.c.l.b16 %v228
  %v868 = vunpack.c.l.b16 %v229
  %v869 = vunpack.c.l.b16 %v230
  %v870 = vpack.c.b16 %v855, %v854
  %v871 = vpack.c.b16 %v857, %v856
  %v872 = vpack.c.b16 %v859, %v858
  %v873 = vpack.c.b16 %v861, %v860
  %v874 = vpack.c.b16 %v863, %v862
  %v875 = vpack.c.b16 %v865, %v864
  %v876 = vpack.c.b16 %v867, %v866
  %v877 = vpack.c.b16 %v869, %v868
  %886 = vmatprep.subr.bf16.mxu0 0
  %887 = vmatpush1.bf16.msra.mxu0 %v870
  %888 = vmatprep.subr.bf16.mxu0 0
  %889 = vmatpush1.bf16.msra.mxu0 %v871
  %890 = vmatprep.subr.bf16.mxu0 0
  %891 = vmatpush1.bf16.msra.mxu0 %v872
  %892 = vmatprep.subr.bf16.mxu0 0
  %893 = vmatpush1.bf16.msra.mxu0 %v873
  %894 = vmatprep.subr.bf16.mxu0 0
  %895 = vmatpush1.bf16.msra.mxu0 %v874
  %896 = vmatprep.subr.bf16.mxu0 0
  %897 = vmatpush1.bf16.msra.mxu0 %v875
  %898 = vmatprep.subr.bf16.mxu0 0
  %899 = vmatpush1.bf16.msra.mxu0 %v876
  %900 = vmatprep.subr.bf16.mxu0 0
  %901 = vmatpush1.bf16.msra.mxu0 %v877
  %902 = vmatprep.subr.bf16.mxu0 0
  %903 = vmatpush1.bf16.msra.mxu0 0
  %904 = vmatprep.subr.bf16.mxu0 0
  %905 = vmatpush1.bf16.msra.mxu0 0
  %906 = vmatprep.subr.bf16.mxu0 0
  %907 = vmatpush1.bf16.msra.mxu0 0
  %908 = vmatprep.subr.bf16.mxu0 0
  %909 = vmatpush1.bf16.msra.mxu0 0
  %910 = vmatprep.subr.bf16.mxu0 0
  %911 = vmatpush1.bf16.msra.mxu0 0
  %912 = vmatprep.subr.bf16.mxu0 0
  %913 = vmatpush1.bf16.msra.mxu0 0
  %914 = vmatprep.subr.bf16.mxu0 0
  %915 = vmatpush1.bf16.msra.mxu0 0
  %916 = vmatprep.subr.bf16.mxu0 0
  %917 = vmatpush1.bf16.msra.mxu0 0
  %918 = vmatprep.mubr.bf16.mxu0 0
  %919 = vmatmul.mubr.bf16.gmra.mrb[0].mxu0 %v638
  %v920 = vpop.f32.mrb[0].mxu0
  %v921 = vadd.f32 %v236, %v920
  %v922 = vpop.f32.mrb[0].mxu0
  %v923 = vpop.f32.mrb[0].mxu0
  %v924 = vadd.f32 %v236, %v923
  %v925 = vpop.f32.mrb[0].mxu0
  %926 = vmatprep.mubr.bf16.mxu0 0
  %927 = vmatmul.mubr.bf16.gmra.mrb[0].mxu0 %v639
  %v928 = vpop.f32.mrb[0].mxu0
  %v929 = vadd.f32 %v236, %v928
  %v930 = vpop.f32.mrb[0].mxu0
  %v931 = vpop.f32.mrb[0].mxu0
  %v932 = vadd.f32 %v236, %v931
  %v933 = vpop.f32.mrb[0].mxu0
  %934 = vmatprep.mubr.bf16.mxu0 0
  %935 = vmatmul.mubr.bf16.gmra.mrb[0].mxu0 %v640
  %v936 = vpop.f32.mrb[0].mxu0
  %v937 = vadd.f32 %v236, %v936
  %v938 = vpop.f32.mrb[0].mxu0
  %v939 = vpop.f32.mrb[0].mxu0
  %v940 = vadd.f32 %v236, %v939
  %v941 = vpop.f32.mrb[0].mxu0
  %942 = vmatprep.mubr.bf16.mxu0 0
  %943 = vmatmul.mubr.bf16.gmra.mrb[0].mxu0 %v641
  %v944 = vpop.f32.mrb[0].mxu0
  %v945 = vadd.f32 %v236, %v944
  %v946 = vpop.f32.mrb[0].mxu0
  %v947 = vpop.f32.mrb[0].mxu0
  %v948 = vadd.f32 %v236, %v947
  %v949 = vpop.f32.mrb[0].mxu0
  %950 = vmatprep.mubr.bf16.mxu0 0
  %951 = vmatmul.mubr.bf16.gmra.mrb[0].mxu0 %v642
  %v952 = vpop.f32.mrb[0].mxu0
  %v953 = vadd.f32 %v236, %v952
  %v954 = vpop.f32.mrb[0].mxu0
  %v955 = vpop.f32.mrb[0].mxu0
  %v956 = vadd.f32 %v236, %v955
  %v957 = vpop.f32.mrb[0].mxu0
  %958 = vmatprep.mubr.bf16.mxu0 0
  %959 = vmatmul.mubr.bf16.gmra.mrb[0].mxu0 %v643
  %v960 = vpop.f32.mrb[0].mxu0
  %v961 = vadd.f32 %v236, %v960
  %v962 = vpop.f32.mrb[0].mxu0
  %v963 = vpop.f32.mrb[0].mxu0
  %v964 = vadd.f32 %v236, %v963
  %v965 = vpop.f32.mrb[0].mxu0
  %966 = vmatprep.mubr.bf16.mxu0 0
  %967 = vmatmul.mubr.bf16.gmra.mrb[0].mxu0 %v644
  %v968 = vpop.f32.mrb[0].mxu0
  %v969 = vadd.f32 %v236, %v968
  %v970 = vpop.f32.mrb[0].mxu0
  %v971 = vpop.f32.mrb[0].mxu0
  %v972 = vadd.f32 %v236, %v971
  %v973 = vpop.f32.mrb[0].mxu0
  %974 = vmatprep.mubr.bf16.mxu0 0
  %975 = vmatmul.mubr.bf16.gmra.mrb[0].mxu0 %v645
  %v976 = vpop.f32.mrb[0].mxu0
  %v977 = vadd.f32 %v236, %v976
  %v978 = vpop.f32.mrb[0].mxu0
  %v979 = vpop.f32.mrb[0].mxu0
  %v980 = vadd.f32 %v236, %v979
  %v981 = vpop.f32.mrb[0].mxu0
  %982 = vmatprep.mubr.bf16.mxu0 0
  %983 = vmatmul.mubr.bf16.gmra.mrb[0].mxu0 %v646
  %v984 = vpop.f32.mrb[0].mxu0
  %v985 = vadd.f32 %v236, %v984
  %v986 = vpop.f32.mrb[0].mxu0
  %v987 = vpop.f32.mrb[0].mxu0
  %v988 = vadd.f32 %v236, %v987
  %v989 = vpop.f32.mrb[0].mxu0
  %990 = vmatprep.mubr.bf16.mxu0 0
  %991 = vmatmul.mubr.bf16.gmra.mrb[0].mxu0 %v647
  %v992 = vpop.f32.mrb[0].mxu0
  %v993 = vadd.f32 %v236, %v992
  %v994 = vpop.f32.mrb[0].mxu0
  %v995 = vpop.f32.mrb[0].mxu0
  %v996 = vadd.f32 %v236, %v995
  %v997 = vpop.f32.mrb[0].mxu0
  %998 = vmatprep.mubr.bf16.mxu0 0
  %999 = vmatmul.mubr.bf16.gmra.mrb[0].mxu0 %v648
  %v1000 = vpop.f32.mrb[0].mxu0
  %v1001 = vadd.f32 %v236, %v1000
  %v1002 = vpop.f32.mrb[0].mxu0
  %v1003 = vpop.f32.mrb[0].mxu0
  %v1004 = vadd.f32 %v236, %v1003
  %v1005 = vpop.f32.mrb[0].mxu0
  %1006 = vmatprep.mubr.bf16.mxu0 0
  %1007 = vmatmul.mubr.bf16.gmra.mrb[0].mxu0 %v649
  %v1008 = vpop.f32.mrb[0].mxu0
  %v1009 = vadd.f32 %v236, %v1008
  %v1010 = vpop.f32.mrb[0].mxu0
  %v1011 = vpop.f32.mrb[0].mxu0
  %v1012 = vadd.f32 %v236, %v1011
  %v1013 = vpop.f32.mrb[0].mxu0
  %1014 = vmatprep.mubr.bf16.mxu0 0
  %1015 = vmatmul.mubr.bf16.gmra.mrb[0].mxu0 %v650
  %v1016 = vpop.f32.mrb[0].mxu0
  %v1017 = vadd.f32 %v236, %v1016
  %v1018 = vpop.f32.mrb[0].mxu0
  %v1019 = vpop.f32.mrb[0].mxu0
  %v1020 = vadd.f32 %v236, %v1019
  %v1021 = vpop.f32.mrb[0].mxu0
  %1022 = vmatprep.mubr.bf16.mxu0 0
  %1023 = vmatmul.mubr.bf16.gmra.mrb[0].mxu0 %v651
  %v1024 = vpop.f32.mrb[0].mxu0
  %v1025 = vadd.f32 %v236, %v1024
  %v1026 = vpop.f32.mrb[0].mxu0
  %v1027 = vpop.f32.mrb[0].mxu0
  %v1028 = vadd.f32 %v236, %v1027
  %v1029 = vpop.f32.mrb[0].mxu0
  %1030 = vmatprep.mubr.bf16.mxu0 0
  %1031 = vmatmul.mubr.bf16.gmra.mrb[0].mxu0 %v652
  %v1032 = vpop.f32.mrb[0].mxu0
  %v1033 = vadd.f32 %v236, %v1032
  %v1034 = vpop.f32.mrb[0].mxu0
  %v1035 = vpop.f32.mrb[0].mxu0
  %v1036 = vadd.f32 %v236, %v1035
  %v1037 = vpop.f32.mrb[0].mxu0
  %1038 = vmatprep.mubr.bf16.mxu0 0
  %1039 = vmatmul.mubr.bf16.gmra.mrb[0].mxu0 %v653
  %v1040 = vpop.f32.mrb[0].mxu0
  %v1041 = vadd.f32 %v236, %v1040
  %v1042 = vpop.f32.mrb[0].mxu0
  %v1043 = vpop.f32.mrb[0].mxu0
  %v1044 = vadd.f32 %v236, %v1043
  %v1045 = vpop.f32.mrb[0].mxu0
  %1046 = vmatprep.mubr.bf16.mxu0 0
  %1047 = vmatmul.mubr.bf16.gmra.mrb[0].mxu0 %v654
  %v1048 = vpop.f32.mrb[0].mxu0
  %v1049 = vadd.f32 %v236, %v1048
  %v1050 = vpop.f32.mrb[0].mxu0
  %v1051 = vpop.f32.mrb[0].mxu0
  %v1052 = vadd.f32 %v236, %v1051
  %v1053 = vpop.f32.mrb[0].mxu0
  %1054 = vmatprep.mubr.bf16.mxu0 0
  %1055 = vmatmul.mubr.bf16.gmra.mrb[0].mxu0 %v655
  %v1056 = vpop.f32.mrb[0].mxu0
  %v1057 = vadd.f32 %v236, %v1056
  %v1058 = vpop.f32.mrb[0].mxu0
  %v1059 = vpop.f32.mrb[0].mxu0
  %v1060 = vadd.f32 %v236, %v1059
  %v1061 = vpop.f32.mrb[0].mxu0
  %1062 = vmatprep.mubr.bf16.mxu0 0
  %1063 = vmatmul.mubr.bf16.gmra.mrb[0].mxu0 %v656
  %v1064 = vpop.f32.mrb[0].mxu0
  %v1065 = vadd.f32 %v236, %v1064
  %v1066 = vpop.f32.mrb[0].mxu0
  %v1067 = vpop.f32.mrb[0].mxu0
  %v1068 = vadd.f32 %v236, %v1067
  %v1069 = vpop.f32.mrb[0].mxu0
  %1070 = vmatprep.mubr.bf16.mxu0 0
  %1071 = vmatmul.mubr.bf16.gmra.mrb[0].mxu0 %v657
  %v1072 = vpop.f32.mrb[0].mxu0
  %v1073 = vadd.f32 %v236, %v1072
  %v1074 = vpop.f32.mrb[0].mxu0
  %v1075 = vpop.f32.mrb[0].mxu0
  %v1076 = vadd.f32 %v236, %v1075
  %v1077 = vpop.f32.mrb[0].mxu0
  %1078 = vmatprep.mubr.bf16.mxu0 0
  %1079 = vmatmul.mubr.bf16.gmra.mrb[0].mxu0 %v658
  %v1080 = vpop.f32.mrb[0].mxu0
  %v1081 = vadd.f32 %v236, %v1080
  %v1082 = vpop.f32.mrb[0].mxu0
  %v1083 = vpop.f32.mrb[0].mxu0
  %v1084 = vadd.f32 %v236, %v1083
  %v1085 = vpop.f32.mrb[0].mxu0
  %1086 = vmatprep.mubr.bf16.mxu0 0
  %1087 = vmatmul.mubr.bf16.gmra.mrb[0].mxu0 %v659
  %v1088 = vpop.f32.mrb[0].mxu0
  %v1089 = vadd.f32 %v236, %v1088
  %v1090 = vpop.f32.mrb[0].mxu0
  %v1091 = vpop.f32.mrb[0].mxu0
  %v1092 = vadd.f32 %v236, %v1091
  %v1093 = vpop.f32.mrb[0].mxu0
  %1094 = vmatprep.mubr.bf16.mxu0 0
  %1095 = vmatmul.mubr.bf16.gmra.mrb[0].mxu0 %v660
  %v1096 = vpop.f32.mrb[0].mxu0
  %v1097 = vadd.f32 %v236, %v1096
  %v1098 = vpop.f32.mrb[0].mxu0
  %v1099 = vpop.f32.mrb[0].mxu0
  %v1100 = vadd.f32 %v236, %v1099
  %v1101 = vpop.f32.mrb[0].mxu0
  %1102 = vmatprep.mubr.bf16.mxu0 0
  %1103 = vmatmul.mubr.bf16.gmra.mrb[0].mxu0 %v661
  %v1104 = vpop.f32.mrb[0].mxu0
  %v1105 = vadd.f32 %v236, %v1104
  %v1106 = vpop.f32.mrb[0].mxu0
  %v1107 = vpop.f32.mrb[0].mxu0
  %v1108 = vadd.f32 %v236, %v1107
  %v1109 = vpop.f32.mrb[0].mxu0
  %1110 = vmatprep.mubr.bf16.mxu0 0
  %1111 = vmatmul.mubr.bf16.gmra.mrb[0].mxu0 %v662
  %v1112 = vpop.f32.mrb[0].mxu0
  %v1113 = vadd.f32 %v236, %v1112
  %v1114 = vpop.f32.mrb[0].mxu0
  %v1115 = vpop.f32.mrb[0].mxu0
  %v1116 = vadd.f32 %v236, %v1115
  %v1117 = vpop.f32.mrb[0].mxu0
  %1118 = vmatprep.mubr.bf16.mxu0 0
  %1119 = vmatmul.mubr.bf16.gmra.mrb[0].mxu0 %v663
  %v1120 = vpop.f32.mrb[0].mxu0
  %v1121 = vadd.f32 %v236, %v1120
  %v1122 = vpop.f32.mrb[0].mxu0
  %v1123 = vpop.f32.mrb[0].mxu0
  %v1124 = vadd.f32 %v236, %v1123
  %v1125 = vpop.f32.mrb[0].mxu0
  %1126 = vmatprep.mubr.bf16.mxu0 0
  %1127 = vmatmul.mubr.bf16.gmra.mrb[0].mxu0 %v664
  %v1128 = vpop.f32.mrb[0].mxu0
  %v1129 = vadd.f32 %v236, %v1128
  %v1130 = vpop.f32.mrb[0].mxu0
  %v1131 = vpop.f32.mrb[0].mxu0
  %v1132 = vadd.f32 %v236, %v1131
  %v1133 = vpop.f32.mrb[0].mxu0
  %1134 = vmatprep.mubr.bf16.mxu0 0
  %1135 = vmatmul.mubr.bf16.gmra.mrb[0].mxu0 %v665
  %v1136 = vpop.f32.mrb[0].mxu0
  %v1137 = vadd.f32 %v236, %v1136
  %v1138 = vpop.f32.mrb[0].mxu0
  %v1139 = vpop.f32.mrb[0].mxu0
  %v1140 = vadd.f32 %v236, %v1139
  %v1141 = vpop.f32.mrb[0].mxu0
  %1142 = vmatprep.mubr.bf16.mxu0 0
  %1143 = vmatmul.mubr.bf16.gmra.mrb[0].mxu0 %v666
  %v1144 = vpop.f32.mrb[0].mxu0
  %v1145 = vadd.f32 %v236, %v1144
  %v1146 = vpop.f32.mrb[0].mxu0
  %v1147 = vpop.f32.mrb[0].mxu0
  %v1148 = vadd.f32 %v236, %v1147
  %v1149 = vpop.f32.mrb[0].mxu0
  %1150 = vmatprep.mubr.bf16.mxu0 0
  %1151 = vmatmul.mubr.bf16.gmra.mrb[0].mxu0 %v667
  %v1152 = vpop.f32.mrb[0].mxu0
  %v1153 = vadd.f32 %v236, %v1152
  %v1154 = vpop.f32.mrb[0].mxu0
  %v1155 = vpop.f32.mrb[0].mxu0
  %v1156 = vadd.f32 %v236, %v1155
  %v1157 = vpop.f32.mrb[0].mxu0
  %1158 = vmatprep.mubr.bf16.mxu0 0
  %1159 = vmatmul.mubr.bf16.gmra.mrb[0].mxu0 %v668
  %v1160 = vpop.f32.mrb[0].mxu0
  %v1161 = vadd.f32 %v236, %v1160
  %v1162 = vpop.f32.mrb[0].mxu0
  %v1163 = vpop.f32.mrb[0].mxu0
  %v1164 = vadd.f32 %v236, %v1163
  %v1165 = vpop.f32.mrb[0].mxu0
  %1166 = vmatprep.mubr.bf16.mxu0 0
  %1167 = vmatmul.mubr.bf16.gmra.mrb[0].mxu0 %v669
  %v1168 = vpop.f32.mrb[0].mxu0
  %v1169 = vadd.f32 %v236, %v1168
  %v1170 = vpop.f32.mrb[0].mxu0
  %v1171 = vpop.f32.mrb[0].mxu0
  %v1172 = vadd.f32 %v236, %v1171
  %v1173 = vpop.f32.mrb[0].mxu0
  %1174 = vmatprep.mubr.bf16.mxu0 0
  %1175 = vmatmul.mubr.bf16.gmra.mrb[0].mxu0 %v670
  %v1176 = vpop.f32.mrb[0].mxu0
  %v1177 = vadd.f32 %v236, %v1176
  %v1178 = vpop.f32.mrb[0].mxu0
  %v1179 = vpop.f32.mrb[0].mxu0
  %v1180 = vadd.f32 %v236, %v1179
  %v1181 = vpop.f32.mrb[0].mxu0
  %1182 = vmatprep.mubr.bf16.mxu0 0
  %1183 = vmatmul.mubr.bf16.gmra.mrb[0].mxu0 %v671
  %v1184 = vpop.f32.mrb[0].mxu0
  %v1185 = vadd.f32 %v236, %v1184
  %v1186 = vpop.f32.mrb[0].mxu0
  %v1187 = vpop.f32.mrb[0].mxu0
  %v1188 = vadd.f32 %v236, %v1187
  %v1189 = vpop.f32.mrb[0].mxu0
  %1190 = vmatprep.mubr.bf16.mxu0 0
  %1191 = vmatmul.mubr.bf16.gmra.mrb[0].mxu0 %v672
  %v1192 = vpop.f32.mrb[0].mxu0
  %v1193 = vadd.f32 %v236, %v1192
  %v1194 = vpop.f32.mrb[0].mxu0
  %v1195 = vpop.f32.mrb[0].mxu0
  %v1196 = vadd.f32 %v236, %v1195
  %v1197 = vpop.f32.mrb[0].mxu0
  %1198 = vmatprep.mubr.bf16.mxu0 0
  %1199 = vmatmul.mubr.bf16.gmra.mrb[0].mxu0 %v673
  %v1200 = vpop.f32.mrb[0].mxu0
  %v1201 = vadd.f32 %v236, %v1200
  %v1202 = vpop.f32.mrb[0].mxu0
  %v1203 = vpop.f32.mrb[0].mxu0
  %v1204 = vadd.f32 %v236, %v1203
  %v1205 = vpop.f32.mrb[0].mxu0
  %1206 = vmatprep.mubr.bf16.mxu0 0
  %1207 = vmatmul.mubr.bf16.gmra.mrb[0].mxu0 %v674
  %v1208 = vpop.f32.mrb[0].mxu0
  %v1209 = vadd.f32 %v236, %v1208
  %v1210 = vpop.f32.mrb[0].mxu0
  %v1211 = vpop.f32.mrb[0].mxu0
  %v1212 = vadd.f32 %v236, %v1211
  %v1213 = vpop.f32.mrb[0].mxu0
  %1214 = vmatprep.mubr.bf16.mxu0 0
  %1215 = vmatmul.mubr.bf16.gmra.mrb[0].mxu0 %v675
  %v1216 = vpop.f32.mrb[0].mxu0
  %v1217 = vadd.f32 %v236, %v1216
  %v1218 = vpop.f32.mrb[0].mxu0
  %v1219 = vpop.f32.mrb[0].mxu0
  %v1220 = vadd.f32 %v236, %v1219
  %v1221 = vpop.f32.mrb[0].mxu0
  %1222 = vmatprep.mubr.bf16.mxu0 0
  %1223 = vmatmul.mubr.bf16.gmra.mrb[0].mxu0 %v676
  %v1224 = vpop.f32.mrb[0].mxu0
  %v1225 = vadd.f32 %v236, %v1224
  %v1226 = vpop.f32.mrb[0].mxu0
  %v1227 = vpop.f32.mrb[0].mxu0
  %v1228 = vadd.f32 %v236, %v1227
  %v1229 = vpop.f32.mrb[0].mxu0
  %1230 = vmatprep.mubr.bf16.mxu0 0
  %1231 = vmatmul.mubr.bf16.gmra.mrb[0].mxu0 %v677
  %v1232 = vpop.f32.mrb[0].mxu0
  %v1233 = vadd.f32 %v236, %v1232
  %v1234 = vpop.f32.mrb[0].mxu0
  %v1235 = vpop.f32.mrb[0].mxu0
  %v1236 = vadd.f32 %v236, %v1235
  %v1237 = vpop.f32.mrb[0].mxu0
  %1238 = vmatprep.mubr.bf16.mxu0 0
  %1239 = vmatmul.mubr.bf16.gmra.mrb[0].mxu0 %v678
  %v1240 = vpop.f32.mrb[0].mxu0
  %v1241 = vadd.f32 %v236, %v1240
  %v1242 = vpop.f32.mrb[0].mxu0
  %v1243 = vpop.f32.mrb[0].mxu0
  %v1244 = vadd.f32 %v236, %v1243
  %v1245 = vpop.f32.mrb[0].mxu0
  %1246 = vmatprep.mubr.bf16.mxu0 0
  %1247 = vmatmul.mubr.bf16.gmra.mrb[0].mxu0 %v679
  %v1248 = vpop.f32.mrb[0].mxu0
  %v1249 = vadd.f32 %v236, %v1248
  %v1250 = vpop.f32.mrb[0].mxu0
  %v1251 = vpop.f32.mrb[0].mxu0
  %v1252 = vadd.f32 %v236, %v1251
  %v1253 = vpop.f32.mrb[0].mxu0
  %1254 = vmatprep.mubr.bf16.mxu0 0
  %1255 = vmatmul.mubr.bf16.gmra.mrb[0].mxu0 %v680
  %v1256 = vpop.f32.mrb[0].mxu0
  %v1257 = vadd.f32 %v236, %v1256
  %v1258 = vpop.f32.mrb[0].mxu0
  %v1259 = vpop.f32.mrb[0].mxu0
  %v1260 = vadd.f32 %v236, %v1259
  %v1261 = vpop.f32.mrb[0].mxu0
  %1262 = vmatprep.mubr.bf16.mxu0 0
  %1263 = vmatmul.mubr.bf16.gmra.mrb[0].mxu0 %v681
  %v1264 = vpop.f32.mrb[0].mxu0
  %v1265 = vadd.f32 %v236, %v1264
  %v1266 = vpop.f32.mrb[0].mxu0
  %v1267 = vpop.f32.mrb[0].mxu0
  %v1268 = vadd.f32 %v236, %v1267
  %v1269 = vpop.f32.mrb[0].mxu0
  %1270 = vmatprep.mubr.bf16.mxu0 0
  %1271 = vmatmul.mubr.bf16.gmra.mrb[0].mxu0 %v682
  %v1272 = vpop.f32.mrb[0].mxu0
  %v1273 = vadd.f32 %v236, %v1272
  %v1274 = vpop.f32.mrb[0].mxu0
  %v1275 = vpop.f32.mrb[0].mxu0
  %v1276 = vadd.f32 %v236, %v1275
  %v1277 = vpop.f32.mrb[0].mxu0
  %1278 = vmatprep.mubr.bf16.mxu0 0
  %1279 = vmatmul.mubr.bf16.gmra.mrb[0].mxu0 %v683
  %v1280 = vpop.f32.mrb[0].mxu0
  %v1281 = vadd.f32 %v236, %v1280
  %v1282 = vpop.f32.mrb[0].mxu0
  %v1283 = vpop.f32.mrb[0].mxu0
  %v1284 = vadd.f32 %v236, %v1283
  %v1285 = vpop.f32.mrb[0].mxu0
  %1286 = vmatprep.mubr.bf16.mxu0 0
  %1287 = vmatmul.mubr.bf16.gmra.mrb[0].mxu0 %v684
  %v1288 = vpop.f32.mrb[0].mxu0
  %v1289 = vadd.f32 %v236, %v1288
  %v1290 = vpop.f32.mrb[0].mxu0
  %v1291 = vpop.f32.mrb[0].mxu0
  %v1292 = vadd.f32 %v236, %v1291
  %v1293 = vpop.f32.mrb[0].mxu0
  %1294 = vmatprep.mubr.bf16.mxu0 0
  %1295 = vmatmul.mubr.bf16.gmra.mrb[0].mxu0 %v685
  %v1296 = vpop.f32.mrb[0].mxu0
  %v1297 = vadd.f32 %v236, %v1296
  %v1298 = vpop.f32.mrb[0].mxu0
  %v1299 = vpop.f32.mrb[0].mxu0
  %v1300 = vadd.f32 %v236, %v1299
  %v1301 = vpop.f32.mrb[0].mxu0
  %1302 = vmatprep.mubr.bf16.mxu0 0
  %1303 = vmatmul.mubr.bf16.gmra.mrb[0].mxu0 %v686
  %v1304 = vpop.f32.mrb[0].mxu0
  %v1305 = vadd.f32 %v236, %v1304
  %v1306 = vpop.f32.mrb[0].mxu0
  %v1307 = vpop.f32.mrb[0].mxu0
  %v1308 = vadd.f32 %v236, %v1307
  %v1309 = vpop.f32.mrb[0].mxu0
  %1310 = vmatprep.mubr.bf16.mxu0 0
  %1311 = vmatmul.mubr.bf16.gmra.mrb[0].mxu0 %v687
  %v1312 = vpop.f32.mrb[0].mxu0
  %v1313 = vadd.f32 %v236, %v1312
  %v1314 = vpop.f32.mrb[0].mxu0
  %v1315 = vpop.f32.mrb[0].mxu0
  %v1316 = vadd.f32 %v236, %v1315
  %v1317 = vpop.f32.mrb[0].mxu0
  %1318 = vmatprep.mubr.bf16.mxu0 0
  %1319 = vmatmul.mubr.bf16.gmra.mrb[0].mxu0 %v688
  %v1320 = vpop.f32.mrb[0].mxu0
  %v1321 = vadd.f32 %v236, %v1320
  %v1322 = vpop.f32.mrb[0].mxu0
  %v1323 = vpop.f32.mrb[0].mxu0
  %v1324 = vadd.f32 %v236, %v1323
  %v1325 = vpop.f32.mrb[0].mxu0
  %1326 = vmatprep.mubr.bf16.mxu0 0
  %1327 = vmatmul.mubr.bf16.gmra.mrb[0].mxu0 %v689
  %v1328 = vpop.f32.mrb[0].mxu0
  %v1329 = vadd.f32 %v236, %v1328
  %v1330 = vpop.f32.mrb[0].mxu0
  %v1331 = vpop.f32.mrb[0].mxu0
  %v1332 = vadd.f32 %v236, %v1331
  %v1333 = vpop.f32.mrb[0].mxu0
  %1334 = vmatprep.mubr.bf16.mxu0 0
  %1335 = vmatmul.mubr.bf16.gmra.mrb[0].mxu0 %v690
  %v1336 = vpop.f32.mrb[0].mxu0
  %v1337 = vadd.f32 %v236, %v1336
  %v1338 = vpop.f32.mrb[0].mxu0
  %v1339 = vpop.f32.mrb[0].mxu0
  %v1340 = vadd.f32 %v236, %v1339
  %v1341 = vpop.f32.mrb[0].mxu0
  %1342 = vmatprep.mubr.bf16.mxu0 0
  %1343 = vmatmul.mubr.bf16.gmra.mrb[0].mxu0 %v691
  %v1344 = vpop.f32.mrb[0].mxu0
  %v1345 = vadd.f32 %v236, %v1344
  %v1346 = vpop.f32.mrb[0].mxu0
  %v1347 = vpop.f32.mrb[0].mxu0
  %v1348 = vadd.f32 %v236, %v1347
  %v1349 = vpop.f32.mrb[0].mxu0
  %1350 = vmatprep.mubr.bf16.mxu0 0
  %1351 = vmatmul.mubr.bf16.gmra.mrb[0].mxu0 %v692
  %v1352 = vpop.f32.mrb[0].mxu0
  %v1353 = vadd.f32 %v236, %v1352
  %v1354 = vpop.f32.mrb[0].mxu0
  %v1355 = vpop.f32.mrb[0].mxu0
  %v1356 = vadd.f32 %v236, %v1355
  %v1357 = vpop.f32.mrb[0].mxu0
  %1358 = vmatprep.mubr.bf16.mxu0 0
  %1359 = vmatmul.mubr.bf16.gmra.mrb[0].mxu0 %v693
  %v1360 = vpop.f32.mrb[0].mxu0
  %v1361 = vadd.f32 %v236, %v1360
  %v1362 = vpop.f32.mrb[0].mxu0
  %v1363 = vpop.f32.mrb[0].mxu0
  %v1364 = vadd.f32 %v236, %v1363
  %v1365 = vpop.f32.mrb[0].mxu0
  %1366 = vmatprep.mubr.bf16.mxu0 0
  %1367 = vmatmul.mubr.bf16.gmra.mrb[0].mxu0 %v694
  %v1368 = vpop.f32.mrb[0].mxu0
  %v1369 = vadd.f32 %v236, %v1368
  %v1370 = vpop.f32.mrb[0].mxu0
  %v1371 = vpop.f32.mrb[0].mxu0
  %v1372 = vadd.f32 %v236, %v1371
  %v1373 = vpop.f32.mrb[0].mxu0
  %1374 = vmatprep.mubr.bf16.mxu0 0
  %1375 = vmatmul.mubr.bf16.gmra.mrb[0].mxu0 %v695
  %v1376 = vpop.f32.mrb[0].mxu0
  %v1377 = vadd.f32 %v236, %v1376
  %v1378 = vpop.f32.mrb[0].mxu0
  %v1379 = vpop.f32.mrb[0].mxu0
  %v1380 = vadd.f32 %v236, %v1379
  %v1381 = vpop.f32.mrb[0].mxu0
  %1382 = vmatprep.mubr.bf16.mxu0 0
  %1383 = vmatmul.mubr.bf16.gmra.mrb[0].mxu0 %v696
  %v1384 = vpop.f32.mrb[0].mxu0
  %v1385 = vadd.f32 %v236, %v1384
  %v1386 = vpop.f32.mrb[0].mxu0
  %v1387 = vpop.f32.mrb[0].mxu0
  %v1388 = vadd.f32 %v236, %v1387
  %v1389 = vpop.f32.mrb[0].mxu0
  %1390 = vmatprep.mubr.bf16.mxu0 0
  %1391 = vmatmul.mubr.bf16.gmra.mrb[0].mxu0 %v697
  %v1392 = vpop.f32.mrb[0].mxu0
  %v1393 = vadd.f32 %v236, %v1392
  %v1394 = vpop.f32.mrb[0].mxu0
  %v1395 = vpop.f32.mrb[0].mxu0
  %v1396 = vadd.f32 %v236, %v1395
  %v1397 = vpop.f32.mrb[0].mxu0
  %1398 = vmatprep.mubr.bf16.mxu0 0
  %1399 = vmatmul.mubr.bf16.gmra.mrb[0].mxu0 %v698
  %v1400 = vpop.f32.mrb[0].mxu0
  %v1401 = vadd.f32 %v236, %v1400
  %v1402 = vpop.f32.mrb[0].mxu0
  %v1403 = vpop.f32.mrb[0].mxu0
  %v1404 = vadd.f32 %v236, %v1403
  %v1405 = vpop.f32.mrb[0].mxu0
  %1406 = vmatprep.mubr.bf16.mxu0 0
  %1407 = vmatmul.mubr.bf16.gmra.mrb[0].mxu0 %v699
  %v1408 = vpop.f32.mrb[0].mxu0
  %v1409 = vadd.f32 %v236, %v1408
  %v1410 = vpop.f32.mrb[0].mxu0
  %v1411 = vpop.f32.mrb[0].mxu0
  %v1412 = vadd.f32 %v236, %v1411
  %v1413 = vpop.f32.mrb[0].mxu0
  %1414 = vmatprep.mubr.bf16.mxu0 0
  %1415 = vmatmul.mubr.bf16.gmra.mrb[0].mxu0 %v700
  %v1416 = vpop.f32.mrb[0].mxu0
  %v1417 = vadd.f32 %v236, %v1416
  %v1418 = vpop.f32.mrb[0].mxu0
  %v1419 = vpop.f32.mrb[0].mxu0
  %v1420 = vadd.f32 %v236, %v1419
  %v1421 = vpop.f32.mrb[0].mxu0
  %1422 = vmatprep.mubr.bf16.mxu0 0
  %1423 = vmatmul.mubr.bf16.gmra.mrb[0].mxu0 %v701
  %v1424 = vpop.f32.mrb[0].mxu0
  %v1425 = vadd.f32 %v236, %v1424
  %v1426 = vpop.f32.mrb[0].mxu0
  %v1427 = vpop.f32.mrb[0].mxu0
  %v1428 = vadd.f32 %v236, %v1427
  %v1429 = vpop.f32.mrb[0].mxu0
  %1430 = vmatprep.mubr.bf16.mxu0 0
  %1431 = vmatmul.mubr.bf16.gmra.mrb[0].mxu0 %v702
  %v1432 = vpop.f32.mrb[0].mxu0
  %v1433 = vadd.f32 %v236, %v1432
  %v1434 = vpop.f32.mrb[0].mxu0
  %v1435 = vpop.f32.mrb[0].mxu0
  %v1436 = vadd.f32 %v236, %v1435
  %v1437 = vpop.f32.mrb[0].mxu0
  %1438 = vmatprep.mubr.bf16.mxu0 0
  %1439 = vmatmul.mubr.bf16.gmra.mrb[0].mxu0 %v703
  %v1440 = vpop.f32.mrb[0].mxu0
  %v1441 = vadd.f32 %v236, %v1440
  %v1442 = vpop.f32.mrb[0].mxu0
  %v1443 = vpop.f32.mrb[0].mxu0
  %v1444 = vadd.f32 %v236, %v1443
  %v1445 = vpop.f32.mrb[0].mxu0
  %1446 = vmatprep.mubr.bf16.mxu0 0
  %1447 = vmatmul.mubr.bf16.gmra.mrb[0].mxu0 %v704
  %v1448 = vpop.f32.mrb[0].mxu0
  %v1449 = vadd.f32 %v236, %v1448
  %v1450 = vpop.f32.mrb[0].mxu0
  %v1451 = vpop.f32.mrb[0].mxu0
  %v1452 = vadd.f32 %v236, %v1451
  %v1453 = vpop.f32.mrb[0].mxu0
  %1454 = vmatprep.mubr.bf16.mxu0 0
  %1455 = vmatmul.mubr.bf16.gmra.mrb[0].mxu0 %v705
  %v1456 = vpop.f32.mrb[0].mxu0
  %v1457 = vadd.f32 %v236, %v1456
  %v1458 = vpop.f32.mrb[0].mxu0
  %v1459 = vpop.f32.mrb[0].mxu0
  %v1460 = vadd.f32 %v236, %v1459
  %v1461 = vpop.f32.mrb[0].mxu0
  %1462 = vmatprep.mubr.bf16.mxu0 0
  %1463 = vmatmul.mubr.bf16.gmra.mrb[0].mxu0 %v706
  %v1464 = vpop.f32.mrb[0].mxu0
  %v1465 = vadd.f32 %v236, %v1464
  %v1466 = vpop.f32.mrb[0].mxu0
  %v1467 = vpop.f32.mrb[0].mxu0
  %v1468 = vadd.f32 %v236, %v1467
  %v1469 = vpop.f32.mrb[0].mxu0
  %1470 = vmatprep.mubr.bf16.mxu0 0
  %1471 = vmatmul.mubr.bf16.gmra.mrb[0].mxu0 %v707
  %v1472 = vpop.f32.mrb[0].mxu0
  %v1473 = vadd.f32 %v236, %v1472
  %v1474 = vpop.f32.mrb[0].mxu0
  %v1475 = vpop.f32.mrb[0].mxu0
  %v1476 = vadd.f32 %v236, %v1475
  %v1477 = vpop.f32.mrb[0].mxu0
  %1478 = vmatprep.mubr.bf16.mxu0 0
  %1479 = vmatmul.mubr.bf16.gmra.mrb[0].mxu0 %v708
  %v1480 = vpop.f32.mrb[0].mxu0
  %v1481 = vadd.f32 %v236, %v1480
  %v1482 = vpop.f32.mrb[0].mxu0
  %v1483 = vpop.f32.mrb[0].mxu0
  %v1484 = vadd.f32 %v236, %v1483
  %v1485 = vpop.f32.mrb[0].mxu0
  %1486 = vmatprep.mubr.bf16.mxu0 0
  %1487 = vmatmul.mubr.bf16.gmra.mrb[0].mxu0 %v709
  %v1488 = vpop.f32.mrb[0].mxu0
  %v1489 = vadd.f32 %v236, %v1488
  %v1490 = vpop.f32.mrb[0].mxu0
  %v1491 = vpop.f32.mrb[0].mxu0
  %v1492 = vadd.f32 %v236, %v1491
  %v1493 = vpop.f32.mrb[0].mxu0
  %1494 = vmatprep.mubr.bf16.mxu0 0
  %1495 = vmatmul.mubr.bf16.gmra.mrb[0].mxu0 %v710
  %v1496 = vpop.f32.mrb[0].mxu0
  %v1497 = vadd.f32 %v236, %v1496
  %v1498 = vpop.f32.mrb[0].mxu0
  %v1499 = vpop.f32.mrb[0].mxu0
  %v1500 = vadd.f32 %v236, %v1499
  %v1501 = vpop.f32.mrb[0].mxu0
  %1502 = vmatprep.mubr.bf16.mxu0 0
  %1503 = vmatmul.mubr.bf16.gmra.mrb[0].mxu0 %v711
  %v1504 = vpop.f32.mrb[0].mxu0
  %v1505 = vadd.f32 %v236, %v1504
  %v1506 = vpop.f32.mrb[0].mxu0
  %v1507 = vpop.f32.mrb[0].mxu0
  %v1508 = vadd.f32 %v236, %v1507
  %v1509 = vpop.f32.mrb[0].mxu0
  %1510 = vmatprep.mubr.bf16.mxu0 0
  %1511 = vmatmul.mubr.bf16.gmra.mrb[0].mxu0 %v712
  %v1512 = vpop.f32.mrb[0].mxu0
  %v1513 = vadd.f32 %v236, %v1512
  %v1514 = vpop.f32.mrb[0].mxu0
  %v1515 = vpop.f32.mrb[0].mxu0
  %v1516 = vadd.f32 %v236, %v1515
  %v1517 = vpop.f32.mrb[0].mxu0
  %1518 = vmatprep.mubr.bf16.mxu0 0
  %1519 = vmatmul.mubr.bf16.gmra.mrb[0].mxu0 %v713
  %v1520 = vpop.f32.mrb[0].mxu0
  %v1521 = vadd.f32 %v236, %v1520
  %v1522 = vpop.f32.mrb[0].mxu0
  %v1523 = vpop.f32.mrb[0].mxu0
  %v1524 = vadd.f32 %v236, %v1523
  %v1525 = vpop.f32.mrb[0].mxu0
  %1526 = vmatprep.mubr.bf16.mxu0 0
  %1527 = vmatmul.mubr.bf16.gmra.mrb[0].mxu0 %v714
  %v1528 = vpop.f32.mrb[0].mxu0
  %v1529 = vadd.f32 %v236, %v1528
  %v1530 = vpop.f32.mrb[0].mxu0
  %v1531 = vpop.f32.mrb[0].mxu0
  %v1532 = vadd.f32 %v236, %v1531
  %v1533 = vpop.f32.mrb[0].mxu0
  %1534 = vmatprep.mubr.bf16.mxu0 0
  %1535 = vmatmul.mubr.bf16.gmra.mrb[0].mxu0 %v715
  %v1536 = vpop.f32.mrb[0].mxu0
  %v1537 = vadd.f32 %v236, %v1536
  %v1538 = vpop.f32.mrb[0].mxu0
  %v1539 = vpop.f32.mrb[0].mxu0
  %v1540 = vadd.f32 %v236, %v1539
  %v1541 = vpop.f32.mrb[0].mxu0
  %1542 = vmatprep.mubr.bf16.mxu0 0
  %1543 = vmatmul.mubr.bf16.gmra.mrb[0].mxu0 %v716
  %v1544 = vpop.f32.mrb[0].mxu0
  %v1545 = vadd.f32 %v236, %v1544
  %v1546 = vpop.f32.mrb[0].mxu0
  %v1547 = vpop.f32.mrb[0].mxu0
  %v1548 = vadd.f32 %v236, %v1547
  %v1549 = vpop.f32.mrb[0].mxu0
  %1550 = vmatprep.mubr.bf16.mxu0 0
  %1551 = vmatmul.mubr.bf16.gmra.mrb[0].mxu0 %v717
  %v1552 = vpop.f32.mrb[0].mxu0
  %v1553 = vadd.f32 %v236, %v1552
  %v1554 = vpop.f32.mrb[0].mxu0
  %v1555 = vpop.f32.mrb[0].mxu0
  %v1556 = vadd.f32 %v236, %v1555
  %v1557 = vpop.f32.mrb[0].mxu0
  %1558 = vmatprep.mubr.bf16.mxu0 0
  %1559 = vmatmul.mubr.bf16.gmra.mrb[0].mxu0 %v718
  %v1560 = vpop.f32.mrb[0].mxu0
  %v1561 = vadd.f32 %v236, %v1560
  %v1562 = vpop.f32.mrb[0].mxu0
  %v1563 = vpop.f32.mrb[0].mxu0
  %v1564 = vadd.f32 %v236, %v1563
  %v1565 = vpop.f32.mrb[0].mxu0
  %1566 = vmatprep.mubr.bf16.mxu0 0
  %1567 = vmatmul.mubr.bf16.gmra.mrb[0].mxu0 %v719
  %v1568 = vpop.f32.mrb[0].mxu0
  %v1569 = vadd.f32 %v236, %v1568
  %v1570 = vpop.f32.mrb[0].mxu0
  %v1571 = vpop.f32.mrb[0].mxu0
  %v1572 = vadd.f32 %v236, %v1571
  %v1573 = vpop.f32.mrb[0].mxu0
  %1574 = vmatprep.mubr.bf16.mxu0 0
  %1575 = vmatmul.mubr.bf16.gmra.mrb[0].mxu0 %v720
  %v1576 = vpop.f32.mrb[0].mxu0
  %v1577 = vadd.f32 %v236, %v1576
  %v1578 = vpop.f32.mrb[0].mxu0
  %v1579 = vpop.f32.mrb[0].mxu0
  %v1580 = vadd.f32 %v236, %v1579
  %v1581 = vpop.f32.mrb[0].mxu0
  %1582 = vmatprep.mubr.bf16.mxu0 0
  %1583 = vmatmul.mubr.bf16.gmra.mrb[0].mxu0 %v721
  %v1584 = vpop.f32.mrb[0].mxu0
  %v1585 = vadd.f32 %v236, %v1584
  %v1586 = vpop.f32.mrb[0].mxu0
  %v1587 = vpop.f32.mrb[0].mxu0
  %v1588 = vadd.f32 %v236, %v1587
  %v1589 = vpop.f32.mrb[0].mxu0
  %1590 = vmatprep.mubr.bf16.mxu0 0
  %1591 = vmatmul.mubr.bf16.gmra.mrb[0].mxu0 %v722
  %v1592 = vpop.f32.mrb[0].mxu0
  %v1593 = vadd.f32 %v236, %v1592
  %v1594 = vpop.f32.mrb[0].mxu0
  %v1595 = vpop.f32.mrb[0].mxu0
  %v1596 = vadd.f32 %v236, %v1595
  %v1597 = vpop.f32.mrb[0].mxu0
  %1598 = vmatprep.mubr.bf16.mxu0 0
  %1599 = vmatmul.mubr.bf16.gmra.mrb[0].mxu0 %v723
  %v1600 = vpop.f32.mrb[0].mxu0
  %v1601 = vadd.f32 %v236, %v1600
  %v1602 = vpop.f32.mrb[0].mxu0
  %v1603 = vpop.f32.mrb[0].mxu0
  %v1604 = vadd.f32 %v236, %v1603
  %v1605 = vpop.f32.mrb[0].mxu0
  %1606 = vmatprep.mubr.bf16.mxu0 0
  %1607 = vmatmul.mubr.bf16.gmra.mrb[0].mxu0 %v724
  %v1608 = vpop.f32.mrb[0].mxu0
  %v1609 = vadd.f32 %v236, %v1608
  %v1610 = vpop.f32.mrb[0].mxu0
  %v1611 = vpop.f32.mrb[0].mxu0
  %v1612 = vadd.f32 %v236, %v1611
  %v1613 = vpop.f32.mrb[0].mxu0
  %1614 = vmatprep.mubr.bf16.mxu0 0
  %1615 = vmatmul.mubr.bf16.gmra.mrb[0].mxu0 %v725
  %v1616 = vpop.f32.mrb[0].mxu0
  %v1617 = vadd.f32 %v236, %v1616
  %v1618 = vpop.f32.mrb[0].mxu0
  %v1619 = vpop.f32.mrb[0].mxu0
  %v1620 = vadd.f32 %v236, %v1619
  %v1621 = vpop.f32.mrb[0].mxu0
  %1622 = vmatprep.mubr.bf16.mxu0 0
  %1623 = vmatmul.mubr.bf16.gmra.mrb[0].mxu0 %v726
  %v1624 = vpop.f32.mrb[0].mxu0
  %v1625 = vadd.f32 %v236, %v1624
  %v1626 = vpop.f32.mrb[0].mxu0
  %v1627 = vpop.f32.mrb[0].mxu0
  %v1628 = vadd.f32 %v236, %v1627
  %v1629 = vpop.f32.mrb[0].mxu0
  %1630 = vmatprep.mubr.bf16.mxu0 0
  %1631 = vmatmul.mubr.bf16.gmra.mrb[0].mxu0 %v727
  %v1632 = vpop.f32.mrb[0].mxu0
  %v1633 = vadd.f32 %v236, %v1632
  %v1634 = vpop.f32.mrb[0].mxu0
  %v1635 = vpop.f32.mrb[0].mxu0
  %v1636 = vadd.f32 %v236, %v1635
  %v1637 = vpop.f32.mrb[0].mxu0
  %1638 = vmatprep.mubr.bf16.mxu0 0
  %1639 = vmatmul.mubr.bf16.gmra.mrb[0].mxu0 %v728
  %v1640 = vpop.f32.mrb[0].mxu0
  %v1641 = vadd.f32 %v236, %v1640
  %v1642 = vpop.f32.mrb[0].mxu0
  %v1643 = vpop.f32.mrb[0].mxu0
  %v1644 = vadd.f32 %v236, %v1643
  %v1645 = vpop.f32.mrb[0].mxu0
  %1646 = vmatprep.mubr.bf16.mxu0 0
  %1647 = vmatmul.mubr.bf16.gmra.mrb[0].mxu0 %v729
  %v1648 = vpop.f32.mrb[0].mxu0
  %v1649 = vadd.f32 %v236, %v1648
  %v1650 = vpop.f32.mrb[0].mxu0
  %v1651 = vpop.f32.mrb[0].mxu0
  %v1652 = vadd.f32 %v236, %v1651
  %v1653 = vpop.f32.mrb[0].mxu0
  %1654 = vmatprep.mubr.bf16.mxu0 0
  %1655 = vmatmul.mubr.bf16.gmra.mrb[0].mxu0 %v730
  %v1656 = vpop.f32.mrb[0].mxu0
  %v1657 = vadd.f32 %v236, %v1656
  %v1658 = vpop.f32.mrb[0].mxu0
  %v1659 = vpop.f32.mrb[0].mxu0
  %v1660 = vadd.f32 %v236, %v1659
  %v1661 = vpop.f32.mrb[0].mxu0
  %1662 = vmatprep.mubr.bf16.mxu0 0
  %1663 = vmatmul.mubr.bf16.gmra.mrb[0].mxu0 %v731
  %v1664 = vpop.f32.mrb[0].mxu0
  %v1665 = vadd.f32 %v236, %v1664
  %v1666 = vpop.f32.mrb[0].mxu0
  %v1667 = vpop.f32.mrb[0].mxu0
  %v1668 = vadd.f32 %v236, %v1667
  %v1669 = vpop.f32.mrb[0].mxu0
  %1670 = vmatprep.mubr.bf16.mxu0 0
  %1671 = vmatmul.mubr.bf16.gmra.mrb[0].mxu0 %v732
  %v1672 = vpop.f32.mrb[0].mxu0
  %v1673 = vadd.f32 %v236, %v1672
  %v1674 = vpop.f32.mrb[0].mxu0
  %v1675 = vpop.f32.mrb[0].mxu0
  %v1676 = vadd.f32 %v236, %v1675
  %v1677 = vpop.f32.mrb[0].mxu0
  %1678 = vmatprep.mubr.bf16.mxu0 0
  %1679 = vmatmul.mubr.bf16.gmra.mrb[0].mxu0 %v733
  %v1680 = vpop.f32.mrb[0].mxu0
  %v1681 = vadd.f32 %v236, %v1680
  %v1682 = vpop.f32.mrb[0].mxu0
  %v1683 = vpop.f32.mrb[0].mxu0
  %v1684 = vadd.f32 %v236, %v1683
  %v1685 = vpop.f32.mrb[0].mxu0
  %1686 = vmatprep.mubr.bf16.mxu0 0
  %1687 = vmatmul.mubr.bf16.gmra.mrb[0].mxu0 %v734
  %v1688 = vpop.f32.mrb[0].mxu0
  %v1689 = vadd.f32 %v236, %v1688
  %v1690 = vpop.f32.mrb[0].mxu0
  %v1691 = vpop.f32.mrb[0].mxu0
  %v1692 = vadd.f32 %v236, %v1691
  %v1693 = vpop.f32.mrb[0].mxu0
  %1694 = vmatprep.mubr.bf16.mxu0 0
  %1695 = vmatmul.mubr.bf16.gmra.mrb[0].mxu0 %v735
  %v1696 = vpop.f32.mrb[0].mxu0
  %v1697 = vadd.f32 %v236, %v1696
  %v1698 = vpop.f32.mrb[0].mxu0
  %v1699 = vpop.f32.mrb[0].mxu0
  %v1700 = vadd.f32 %v236, %v1699
  %v1701 = vpop.f32.mrb[0].mxu0
  %1702 = vmatprep.mubr.bf16.mxu0 0
  %1703 = vmatmul.mubr.bf16.gmra.mrb[0].mxu0 %v736
  %v1704 = vpop.f32.mrb[0].mxu0
  %v1705 = vadd.f32 %v236, %v1704
  %v1706 = vpop.f32.mrb[0].mxu0
  %v1707 = vpop.f32.mrb[0].mxu0
  %v1708 = vadd.f32 %v236, %v1707
  %v1709 = vpop.f32.mrb[0].mxu0
  %1710 = vmatprep.mubr.bf16.mxu0 0
  %1711 = vmatmul.mubr.bf16.gmra.mrb[0].mxu0 %v737
  %v1712 = vpop.f32.mrb[0].mxu0
  %v1713 = vadd.f32 %v236, %v1712
  %v1714 = vpop.f32.mrb[0].mxu0
  %v1715 = vpop.f32.mrb[0].mxu0
  %v1716 = vadd.f32 %v236, %v1715
  %v1717 = vpop.f32.mrb[0].mxu0
  %1718 = vdwg.mxu0
  %v1719 = vmax.f32 %v921, 0.0
  %v1720 = vmax.f32 %v924, 0.0
  %v1721 = vmax.f32 %v929, 0.0
  %v1722 = vmax.f32 %v932, 0.0
  %v1723 = vmax.f32 %v937, 0.0
  %v1724 = vmax.f32 %v940, 0.0
  %v1725 = vmax.f32 %v945, 0.0
  %v1726 = vmax.f32 %v948, 0.0
  %v1727 = vmax.f32 %v953, 0.0
  %v1728 = vmax.f32 %v956, 0.0
  %v1729 = vmax.f32 %v961, 0.0
  %v1730 = vmax.f32 %v964, 0.0
  %v1731 = vmax.f32 %v969, 0.0
  %v1732 = vmax.f32 %v972, 0.0
  %v1733 = vmax.f32 %v977, 0.0
  %v1734 = vmax.f32 %v980, 0.0
  %v1735 = vmax.f32 %v985, 0.0
  %v1736 = vmax.f32 %v988, 0.0
  %v1737 = vmax.f32 %v993, 0.0
  %v1738 = vmax.f32 %v996, 0.0
  %v1739 = vmax.f32 %v1001, 0.0
  %v1740 = vmax.f32 %v1004, 0.0
  %v1741 = vmax.f32 %v1009, 0.0
  %v1742 = vmax.f32 %v1012, 0.0
  %v1743 = vmax.f32 %v1017, 0.0
  %v1744 = vmax.f32 %v1020, 0.0
  %v1745 = vmax.f32 %v1025, 0.0
  %v1746 = vmax.f32 %v1028, 0.0
  %v1747 = vmax.f32 %v1033, 0.0
  %v1748 = vmax.f32 %v1036, 0.0
  %v1749 = vmax.f32 %v1041, 0.0
  %v1750 = vmax.f32 %v1044, 0.0
  %v1751 = vmax.f32 %v1049, 0.0
  %v1752 = vmax.f32 %v1052, 0.0
  %v1753 = vmax.f32 %v1057, 0.0
  %v1754 = vmax.f32 %v1060, 0.0
  %v1755 = vmax.f32 %v1065, 0.0
  %v1756 = vmax.f32 %v1068, 0.0
  %v1757 = vmax.f32 %v1073, 0.0
  %v1758 = vmax.f32 %v1076, 0.0
  %v1759 = vmax.f32 %v1081, 0.0
  %v1760 = vmax.f32 %v1084, 0.0
  %v1761 = vmax.f32 %v1089, 0.0
  %v1762 = vmax.f32 %v1092, 0.0
  %v1763 = vmax.f32 %v1097, 0.0
  %v1764 = vmax.f32 %v1100, 0.0
  %v1765 = vmax.f32 %v1105, 0.0
  %v1766 = vmax.f32 %v1108, 0.0
  %v1767 = vmax.f32 %v1113, 0.0
  %v1768 = vmax.f32 %v1116, 0.0
  %v1769 = vmax.f32 %v1121, 0.0
  %v1770 = vmax.f32 %v1124, 0.0
  %v1771 = vmax.f32 %v1129, 0.0
  %v1772 = vmax.f32 %v1132, 0.0
  %v1773 = vmax.f32 %v1137, 0.0
  %v1774 = vmax.f32 %v1140, 0.0
  %v1775 = vmax.f32 %v1145, 0.0
  %v1776 = vmax.f32 %v1148, 0.0
  %v1777 = vmax.f32 %v1153, 0.0
  %v1778 = vmax.f32 %v1156, 0.0
  %v1779 = vmax.f32 %v1161, 0.0
  %v1780 = vmax.f32 %v1164, 0.0
  %v1781 = vmax.f32 %v1169, 0.0
  %v1782 = vmax.f32 %v1172, 0.0
  %v1783 = vmax.f32 %v1177, 0.0
  %v1784 = vmax.f32 %v1180, 0.0
  %v1785 = vmax.f32 %v1185, 0.0
  %v1786 = vmax.f32 %v1188, 0.0
  %v1787 = vmax.f32 %v1193, 0.0
  %v1788 = vmax.f32 %v1196, 0.0
  %v1789 = vmax.f32 %v1201, 0.0
  %v1790 = vmax.f32 %v1204, 0.0
  %v1791 = vmax.f32 %v1209, 0.0
  %v1792 = vmax.f32 %v1212, 0.0
  %v1793 = vmax.f32 %v1217, 0.0
  %v1794 = vmax.f32 %v1220, 0.0
  %v1795 = vmax.f32 %v1225, 0.0
  %v1796 = vmax.f32 %v1228, 0.0
  %v1797 = vmax.f32 %v1233, 0.0
  %v1798 = vmax.f32 %v1236, 0.0
  %v1799 = vmax.f32 %v1241, 0.0
  %v1800 = vmax.f32 %v1244, 0.0
  %v1801 = vmax.f32 %v1249, 0.0
  %v1802 = vmax.f32 %v1252, 0.0
  %v1803 = vmax.f32 %v1257, 0.0
  %v1804 = vmax.f32 %v1260, 0.0
  %v1805 = vmax.f32 %v1265, 0.0
  %v1806 = vmax.f32 %v1268, 0.0
  %v1807 = vmax.f32 %v1273, 0.0
  %v1808 = vmax.f32 %v1276, 0.0
  %v1809 = vmax.f32 %v1281, 0.0
  %v1810 = vmax.f32 %v1284, 0.0
  %v1811 = vmax.f32 %v1289, 0.0
  %v1812 = vmax.f32 %v1292, 0.0
  %v1813 = vmax.f32 %v1297, 0.0
  %v1814 = vmax.f32 %v1300, 0.0
  %v1815 = vmax.f32 %v1305, 0.0
  %v1816 = vmax.f32 %v1308, 0.0
  %v1817 = vmax.f32 %v1313, 0.0
  %v1818 = vmax.f32 %v1316, 0.0
  %v1819 = vmax.f32 %v1321, 0.0
  %v1820 = vmax.f32 %v1324, 0.0
  %v1821 = vmax.f32 %v1329, 0.0
  %v1822 = vmax.f32 %v1332, 0.0
  %v1823 = vmax.f32 %v1337, 0.0
  %v1824 = vmax.f32 %v1340, 0.0
  %v1825 = vmax.f32 %v1345, 0.0
  %v1826 = vmax.f32 %v1348, 0.0
  %v1827 = vmax.f32 %v1353, 0.0
  %v1828 = vmax.f32 %v1356, 0.0
  %v1829 = vmax.f32 %v1361, 0.0
  %v1830 = vmax.f32 %v1364, 0.0
  %v1831 = vmax.f32 %v1369, 0.0
  %v1832 = vmax.f32 %v1372, 0.0
  %v1833 = vmax.f32 %v1377, 0.0
  %v1834 = vmax.f32 %v1380, 0.0
  %v1835 = vmax.f32 %v1385, 0.0
  %v1836 = vmax.f32 %v1388, 0.0
  %v1837 = vmax.f32 %v1393, 0.0
  %v1838 = vmax.f32 %v1396, 0.0
  %v1839 = vmax.f32 %v1401, 0.0
  %v1840 = vmax.f32 %v1404, 0.0
  %v1841 = vmax.f32 %v1409, 0.0
  %v1842 = vmax.f32 %v1412, 0.0
  %v1843 = vmax.f32 %v1417, 0.0
  %v1844 = vmax.f32 %v1420, 0.0
  %v1845 = vmax.f32 %v1425, 0.0
  %v1846 = vmax.f32 %v1428, 0.0
  %v1847 = vmax.f32 %v1433, 0.0
  %v1848 = vmax.f32 %v1436, 0.0
  %v1849 = vmax.f32 %v1441, 0.0
  %v1850 = vmax.f32 %v1444, 0.0
  %v1851 = vmax.f32 %v1449, 0.0
  %v1852 = vmax.f32 %v1452, 0.0
  %v1853 = vmax.f32 %v1457, 0.0
  %v1854 = vmax.f32 %v1460, 0.0
  %v1855 = vmax.f32 %v1465, 0.0
  %v1856 = vmax.f32 %v1468, 0.0
  %v1857 = vmax.f32 %v1473, 0.0
  %v1858 = vmax.f32 %v1476, 0.0
  %v1859 = vmax.f32 %v1481, 0.0
  %v1860 = vmax.f32 %v1484, 0.0
  %v1861 = vmax.f32 %v1489, 0.0
  %v1862 = vmax.f32 %v1492, 0.0
  %v1863 = vmax.f32 %v1497, 0.0
  %v1864 = vmax.f32 %v1500, 0.0
  %v1865 = vmax.f32 %v1505, 0.0
  %v1866 = vmax.f32 %v1508, 0.0
  %v1867 = vmax.f32 %v1513, 0.0
  %v1868 = vmax.f32 %v1516, 0.0
  %v1869 = vmax.f32 %v1521, 0.0
  %v1870 = vmax.f32 %v1524, 0.0
  %v1871 = vmax.f32 %v1529, 0.0
  %v1872 = vmax.f32 %v1532, 0.0
  %v1873 = vmax.f32 %v1537, 0.0
  %v1874 = vmax.f32 %v1540, 0.0
  %v1875 = vmax.f32 %v1545, 0.0
  %v1876 = vmax.f32 %v1548, 0.0
  %v1877 = vmax.f32 %v1553, 0.0
  %v1878 = vmax.f32 %v1556, 0.0
  %v1879 = vmax.f32 %v1561, 0.0
  %v1880 = vmax.f32 %v1564, 0.0
  %v1881 = vmax.f32 %v1569, 0.0
  %v1882 = vmax.f32 %v1572, 0.0
  %v1883 = vmax.f32 %v1577, 0.0
  %v1884 = vmax.f32 %v1580, 0.0
  %v1885 = vmax.f32 %v1585, 0.0
  %v1886 = vmax.f32 %v1588, 0.0
  %v1887 = vmax.f32 %v1593, 0.0
  %v1888 = vmax.f32 %v1596, 0.0
  %v1889 = vmax.f32 %v1601, 0.0
  %v1890 = vmax.f32 %v1604, 0.0
  %v1891 = vmax.f32 %v1609, 0.0
  %v1892 = vmax.f32 %v1612, 0.0
  %v1893 = vmax.f32 %v1617, 0.0
  %v1894 = vmax.f32 %v1620, 0.0
  %v1895 = vmax.f32 %v1625, 0.0
  %v1896 = vmax.f32 %v1628, 0.0
  %v1897 = vmax.f32 %v1633, 0.0
  %v1898 = vmax.f32 %v1636, 0.0
  %v1899 = vmax.f32 %v1641, 0.0
  %v1900 = vmax.f32 %v1644, 0.0
  %v1901 = vmax.f32 %v1649, 0.0
  %v1902 = vmax.f32 %v1652, 0.0
  %v1903 = vmax.f32 %v1657, 0.0
  %v1904 = vmax.f32 %v1660, 0.0
  %v1905 = vmax.f32 %v1665, 0.0
  %v1906 = vmax.f32 %v1668, 0.0
  %v1907 = vmax.f32 %v1673, 0.0
  %v1908 = vmax.f32 %v1676, 0.0
  %v1909 = vmax.f32 %v1681, 0.0
  %v1910 = vmax.f32 %v1684, 0.0
  %v1911 = vmax.f32 %v1689, 0.0
  %v1912 = vmax.f32 %v1692, 0.0
  %v1913 = vmax.f32 %v1697, 0.0
  %v1914 = vmax.f32 %v1700, 0.0
  %v1915 = vmax.f32 %v1705, 0.0
  %v1916 = vmax.f32 %v1708, 0.0
  %v1917 = vmax.f32 %v1713, 0.0
  %v1918 = vmax.f32 %v1716, 0.0
  %vm1919 = vcmask 261120
  %v1920 = vsel %vm1919, %v1719, -inf
  %v1921 = vsel %vm1919, %v1744, -inf
  %v1922 = vmax.f32 %v1920, %v1921
  %v1923 = vsel %vm1919, %v1769, -inf
  %v1924 = vmax.f32 %v1922, %v1923
  %v1925 = vsel %vm1919, %v1794, -inf
  %v1926 = vmax.f32 %v1924, %v1925
  %v1927 = vsel %vm1919, %v1720, -inf
  %v1928 = vsel %vm1919, %v1745, -inf
  %v1929 = vmax.f32 %v1927, %v1928
  %v1930 = vsel %vm1919, %v1770, -inf
  %v1931 = vmax.f32 %v1929, %v1930
  %v1932 = vsel %vm1919, %v1795, -inf
  %v1933 = vmax.f32 %v1931, %v1932
  %v1934 = vsel %vm1919, %v1721, -inf
  %v1935 = vsel %vm1919, %v1746, -inf
  %v1936 = vmax.f32 %v1934, %v1935
  %v1937 = vsel %vm1919, %v1771, -inf
  %v1938 = vmax.f32 %v1936, %v1937
  %v1939 = vsel %vm1919, %v1796, -inf
  %v1940 = vmax.f32 %v1938, %v1939
  %v1941 = vsel %vm1919, %v1722, -inf
  %v1942 = vsel %vm1919, %v1747, -inf
  %v1943 = vmax.f32 %v1941, %v1942
  %v1944 = vsel %vm1919, %v1772, -inf
  %v1945 = vmax.f32 %v1943, %v1944
  %v1946 = vsel %vm1919, %v1797, -inf
  %v1947 = vmax.f32 %v1945, %v1946
  %v1948 = vsel %vm1919, %v1723, -inf
  %v1949 = vsel %vm1919, %v1748, -inf
  %v1950 = vmax.f32 %v1948, %v1949
  %v1951 = vsel %vm1919, %v1773, -inf
  %v1952 = vmax.f32 %v1950, %v1951
  %v1953 = vsel %vm1919, %v1798, -inf
  %v1954 = vmax.f32 %v1952, %v1953
  %v1955 = vsel %vm1919, %v1724, -inf
  %v1956 = vsel %vm1919, %v1749, -inf
  %v1957 = vmax.f32 %v1955, %v1956
  %v1958 = vsel %vm1919, %v1774, -inf
  %v1959 = vmax.f32 %v1957, %v1958
  %v1960 = vsel %vm1919, %v1799, -inf
  %v1961 = vmax.f32 %v1959, %v1960
  %v1962 = vsel %vm1919, %v1725, -inf
  %v1963 = vsel %vm1919, %v1750, -inf
  %v1964 = vmax.f32 %v1962, %v1963
  %v1965 = vsel %vm1919, %v1775, -inf
  %v1966 = vmax.f32 %v1964, %v1965
  %v1967 = vsel %vm1919, %v1800, -inf
  %v1968 = vmax.f32 %v1966, %v1967
  %v1969 = vsel %vm1919, %v1726, -inf
  %v1970 = vsel %vm1919, %v1751, -inf
  %v1971 = vmax.f32 %v1969, %v1970
  %v1972 = vsel %vm1919, %v1776, -inf
  %v1973 = vmax.f32 %v1971, %v1972
  %v1974 = vsel %vm1919, %v1801, -inf
  %v1975 = vmax.f32 %v1973, %v1974
  %v1976 = vsel %vm1919, %v1727, -inf
  %v1977 = vsel %vm1919, %v1752, -inf
  %v1978 = vmax.f32 %v1976, %v1977
  %v1979 = vsel %vm1919, %v1777, -inf
  %v1980 = vmax.f32 %v1978, %v1979
  %v1981 = vsel %vm1919, %v1802, -inf
  %v1982 = vmax.f32 %v1980, %v1981
  %v1983 = vsel %vm1919, %v1728, -inf
  %v1984 = vsel %vm1919, %v1753, -inf
  %v1985 = vmax.f32 %v1983, %v1984
  %v1986 = vsel %vm1919, %v1778, -inf
  %v1987 = vmax.f32 %v1985, %v1986
  %v1988 = vsel %vm1919, %v1803, -inf
  %v1989 = vmax.f32 %v1987, %v1988
  %v1990 = vsel %vm1919, %v1729, -inf
  %v1991 = vsel %vm1919, %v1754, -inf
  %v1992 = vmax.f32 %v1990, %v1991
  %v1993 = vsel %vm1919, %v1779, -inf
  %v1994 = vmax.f32 %v1992, %v1993
  %v1995 = vsel %vm1919, %v1804, -inf
  %v1996 = vmax.f32 %v1994, %v1995
  %v1997 = vsel %vm1919, %v1730, -inf
  %v1998 = vsel %vm1919, %v1755, -inf
  %v1999 = vmax.f32 %v1997, %v1998
  %v2000 = vsel %vm1919, %v1780, -inf
  %v2001 = vmax.f32 %v1999, %v2000
  %v2002 = vsel %vm1919, %v1805, -inf
  %v2003 = vmax.f32 %v2001, %v2002
  %v2004 = vsel %vm1919, %v1731, -inf
  %v2005 = vsel %vm1919, %v1756, -inf
  %v2006 = vmax.f32 %v2004, %v2005
  %v2007 = vsel %vm1919, %v1781, -inf
  %v2008 = vmax.f32 %v2006, %v2007
  %v2009 = vsel %vm1919, %v1806, -inf
  %v2010 = vmax.f32 %v2008, %v2009
  %v2011 = vsel %vm1919, %v1732, -inf
  %v2012 = vsel %vm1919, %v1757, -inf
  %v2013 = vmax.f32 %v2011, %v2012
  %v2014 = vsel %vm1919, %v1782, -inf
  %v2015 = vmax.f32 %v2013, %v2014
  %v2016 = vsel %vm1919, %v1807, -inf
  %v2017 = vmax.f32 %v2015, %v2016
  %v2018 = vsel %vm1919, %v1733, -inf
  %v2019 = vsel %vm1919, %v1758, -inf
  %v2020 = vmax.f32 %v2018, %v2019
  %v2021 = vsel %vm1919, %v1783, -inf
  %v2022 = vmax.f32 %v2020, %v2021
  %v2023 = vsel %vm1919, %v1808, -inf
  %v2024 = vmax.f32 %v2022, %v2023
  %v2025 = vsel %vm1919, %v1734, -inf
  %v2026 = vsel %vm1919, %v1759, -inf
  %v2027 = vmax.f32 %v2025, %v2026
  %v2028 = vsel %vm1919, %v1784, -inf
  %v2029 = vmax.f32 %v2027, %v2028
  %v2030 = vsel %vm1919, %v1809, -inf
  %v2031 = vmax.f32 %v2029, %v2030
  %v2032 = vsel %vm1919, %v1735, -inf
  %v2033 = vsel %vm1919, %v1760, -inf
  %v2034 = vmax.f32 %v2032, %v2033
  %v2035 = vsel %vm1919, %v1785, -inf
  %v2036 = vmax.f32 %v2034, %v2035
  %v2037 = vsel %vm1919, %v1810, -inf
  %v2038 = vmax.f32 %v2036, %v2037
  %v2039 = vsel %vm1919, %v1736, -inf
  %v2040 = vsel %vm1919, %v1761, -inf
  %v2041 = vmax.f32 %v2039, %v2040
  %v2042 = vsel %vm1919, %v1786, -inf
  %v2043 = vmax.f32 %v2041, %v2042
  %v2044 = vsel %vm1919, %v1811, -inf
  %v2045 = vmax.f32 %v2043, %v2044
  %v2046 = vsel %vm1919, %v1737, -inf
  %v2047 = vsel %vm1919, %v1762, -inf
  %v2048 = vmax.f32 %v2046, %v2047
  %v2049 = vsel %vm1919, %v1787, -inf
  %v2050 = vmax.f32 %v2048, %v2049
  %v2051 = vsel %vm1919, %v1812, -inf
  %v2052 = vmax.f32 %v2050, %v2051
  %v2053 = vsel %vm1919, %v1738, -inf
  %v2054 = vsel %vm1919, %v1763, -inf
  %v2055 = vmax.f32 %v2053, %v2054
  %v2056 = vsel %vm1919, %v1788, -inf
  %v2057 = vmax.f32 %v2055, %v2056
  %v2058 = vsel %vm1919, %v1813, -inf
  %v2059 = vmax.f32 %v2057, %v2058
  %v2060 = vsel %vm1919, %v1739, -inf
  %v2061 = vsel %vm1919, %v1764, -inf
  %v2062 = vmax.f32 %v2060, %v2061
  %v2063 = vsel %vm1919, %v1789, -inf
  %v2064 = vmax.f32 %v2062, %v2063
  %v2065 = vsel %vm1919, %v1814, -inf
  %v2066 = vmax.f32 %v2064, %v2065
  %v2067 = vsel %vm1919, %v1740, -inf
  %v2068 = vsel %vm1919, %v1765, -inf
  %v2069 = vmax.f32 %v2067, %v2068
  %v2070 = vsel %vm1919, %v1790, -inf
  %v2071 = vmax.f32 %v2069, %v2070
  %v2072 = vsel %vm1919, %v1815, -inf
  %v2073 = vmax.f32 %v2071, %v2072
  %v2074 = vsel %vm1919, %v1741, -inf
  %v2075 = vsel %vm1919, %v1766, -inf
  %v2076 = vmax.f32 %v2074, %v2075
  %v2077 = vsel %vm1919, %v1791, -inf
  %v2078 = vmax.f32 %v2076, %v2077
  %v2079 = vsel %vm1919, %v1816, -inf
  %v2080 = vmax.f32 %v2078, %v2079
  %v2081 = vsel %vm1919, %v1742, -inf
  %v2082 = vsel %vm1919, %v1767, -inf
  %v2083 = vmax.f32 %v2081, %v2082
  %v2084 = vsel %vm1919, %v1792, -inf
  %v2085 = vmax.f32 %v2083, %v2084
  %v2086 = vsel %vm1919, %v1817, -inf
  %v2087 = vmax.f32 %v2085, %v2086
  %v2088 = vsel %vm1919, %v1743, -inf
  %v2089 = vsel %vm1919, %v1768, -inf
  %v2090 = vmax.f32 %v2088, %v2089
  %v2091 = vsel %vm1919, %v1793, -inf
  %v2092 = vmax.f32 %v2090, %v2091
  %v2093 = vsel %vm1919, %v1818, -inf
  %v2094 = vmax.f32 %v2092, %v2093
  %v2095 = vsel %vm1919, %v1819, -inf
  %v2096 = vsel %vm1919, %v1844, -inf
  %v2097 = vmax.f32 %v2095, %v2096
  %v2098 = vsel %vm1919, %v1869, -inf
  %v2099 = vmax.f32 %v2097, %v2098
  %v2100 = vsel %vm1919, %v1894, -inf
  %v2101 = vmax.f32 %v2099, %v2100
  %v2102 = vsel %vm1919, %v1820, -inf
  %v2103 = vsel %vm1919, %v1845, -inf
  %v2104 = vmax.f32 %v2102, %v2103
  %v2105 = vsel %vm1919, %v1870, -inf
  %v2106 = vmax.f32 %v2104, %v2105
  %v2107 = vsel %vm1919, %v1895, -inf
  %v2108 = vmax.f32 %v2106, %v2107
  %v2109 = vsel %vm1919, %v1821, -inf
  %v2110 = vsel %vm1919, %v1846, -inf
  %v2111 = vmax.f32 %v2109, %v2110
  %v2112 = vsel %vm1919, %v1871, -inf
  %v2113 = vmax.f32 %v2111, %v2112
  %v2114 = vsel %vm1919, %v1896, -inf
  %v2115 = vmax.f32 %v2113, %v2114
  %v2116 = vsel %vm1919, %v1822, -inf
  %v2117 = vsel %vm1919, %v1847, -inf
  %v2118 = vmax.f32 %v2116, %v2117
  %v2119 = vsel %vm1919, %v1872, -inf
  %v2120 = vmax.f32 %v2118, %v2119
  %v2121 = vsel %vm1919, %v1897, -inf
  %v2122 = vmax.f32 %v2120, %v2121
  %v2123 = vsel %vm1919, %v1823, -inf
  %v2124 = vsel %vm1919, %v1848, -inf
  %v2125 = vmax.f32 %v2123, %v2124
  %v2126 = vsel %vm1919, %v1873, -inf
  %v2127 = vmax.f32 %v2125, %v2126
  %v2128 = vsel %vm1919, %v1898, -inf
  %v2129 = vmax.f32 %v2127, %v2128
  %v2130 = vsel %vm1919, %v1824, -inf
  %v2131 = vsel %vm1919, %v1849, -inf
  %v2132 = vmax.f32 %v2130, %v2131
  %v2133 = vsel %vm1919, %v1874, -inf
  %v2134 = vmax.f32 %v2132, %v2133
  %v2135 = vsel %vm1919, %v1899, -inf
  %v2136 = vmax.f32 %v2134, %v2135
  %v2137 = vsel %vm1919, %v1825, -inf
  %v2138 = vsel %vm1919, %v1850, -inf
  %v2139 = vmax.f32 %v2137, %v2138
  %v2140 = vsel %vm1919, %v1875, -inf
  %v2141 = vmax.f32 %v2139, %v2140
  %v2142 = vsel %vm1919, %v1900, -inf
  %v2143 = vmax.f32 %v2141, %v2142
  %v2144 = vsel %vm1919, %v1826, -inf
  %v2145 = vsel %vm1919, %v1851, -inf
  %v2146 = vmax.f32 %v2144, %v2145
  %v2147 = vsel %vm1919, %v1876, -inf
  %v2148 = vmax.f32 %v2146, %v2147
  %v2149 = vsel %vm1919, %v1901, -inf
  %v2150 = vmax.f32 %v2148, %v2149
  %v2151 = vsel %vm1919, %v1827, -inf
  %v2152 = vsel %vm1919, %v1852, -inf
  %v2153 = vmax.f32 %v2151, %v2152
  %v2154 = vsel %vm1919, %v1877, -inf
  %v2155 = vmax.f32 %v2153, %v2154
  %v2156 = vsel %vm1919, %v1902, -inf
  %v2157 = vmax.f32 %v2155, %v2156
  %v2158 = vsel %vm1919, %v1828, -inf
  %v2159 = vsel %vm1919, %v1853, -inf
  %v2160 = vmax.f32 %v2158, %v2159
  %v2161 = vsel %vm1919, %v1878, -inf
  %v2162 = vmax.f32 %v2160, %v2161
  %v2163 = vsel %vm1919, %v1903, -inf
  %v2164 = vmax.f32 %v2162, %v2163
  %v2165 = vsel %vm1919, %v1829, -inf
  %v2166 = vsel %vm1919, %v1854, -inf
  %v2167 = vmax.f32 %v2165, %v2166
  %v2168 = vsel %vm1919, %v1879, -inf
  %v2169 = vmax.f32 %v2167, %v2168
  %v2170 = vsel %vm1919, %v1904, -inf
  %v2171 = vmax.f32 %v2169, %v2170
  %v2172 = vsel %vm1919, %v1830, -inf
  %v2173 = vsel %vm1919, %v1855, -inf
  %v2174 = vmax.f32 %v2172, %v2173
  %v2175 = vsel %vm1919, %v1880, -inf
  %v2176 = vmax.f32 %v2174, %v2175
  %v2177 = vsel %vm1919, %v1905, -inf
  %v2178 = vmax.f32 %v2176, %v2177
  %v2179 = vsel %vm1919, %v1831, -inf
  %v2180 = vsel %vm1919, %v1856, -inf
  %v2181 = vmax.f32 %v2179, %v2180
  %v2182 = vsel %vm1919, %v1881, -inf
  %v2183 = vmax.f32 %v2181, %v2182
  %v2184 = vsel %vm1919, %v1906, -inf
  %v2185 = vmax.f32 %v2183, %v2184
  %v2186 = vsel %vm1919, %v1832, -inf
  %v2187 = vsel %vm1919, %v1857, -inf
  %v2188 = vmax.f32 %v2186, %v2187
  %v2189 = vsel %vm1919, %v1882, -inf
  %v2190 = vmax.f32 %v2188, %v2189
  %v2191 = vsel %vm1919, %v1907, -inf
  %v2192 = vmax.f32 %v2190, %v2191
  %v2193 = vsel %vm1919, %v1833, -inf
  %v2194 = vsel %vm1919, %v1858, -inf
  %v2195 = vmax.f32 %v2193, %v2194
  %v2196 = vsel %vm1919, %v1883, -inf
  %v2197 = vmax.f32 %v2195, %v2196
  %v2198 = vsel %vm1919, %v1908, -inf
  %v2199 = vmax.f32 %v2197, %v2198
  %v2200 = vsel %vm1919, %v1834, -inf
  %v2201 = vsel %vm1919, %v1859, -inf
  %v2202 = vmax.f32 %v2200, %v2201
  %v2203 = vsel %vm1919, %v1884, -inf
  %v2204 = vmax.f32 %v2202, %v2203
  %v2205 = vsel %vm1919, %v1909, -inf
  %v2206 = vmax.f32 %v2204, %v2205
  %v2207 = vsel %vm1919, %v1835, -inf
  %v2208 = vsel %vm1919, %v1860, -inf
  %v2209 = vmax.f32 %v2207, %v2208
  %v2210 = vsel %vm1919, %v1885, -inf
  %v2211 = vmax.f32 %v2209, %v2210
  %v2212 = vsel %vm1919, %v1910, -inf
  %v2213 = vmax.f32 %v2211, %v2212
  %v2214 = vsel %vm1919, %v1836, -inf
  %v2215 = vsel %vm1919, %v1861, -inf
  %v2216 = vmax.f32 %v2214, %v2215
  %v2217 = vsel %vm1919, %v1886, -inf
  %v2218 = vmax.f32 %v2216, %v2217
  %v2219 = vsel %vm1919, %v1911, -inf
  %v2220 = vmax.f32 %v2218, %v2219
  %v2221 = vsel %vm1919, %v1837, -inf
  %v2222 = vsel %vm1919, %v1862, -inf
  %v2223 = vmax.f32 %v2221, %v2222
  %v2224 = vsel %vm1919, %v1887, -inf
  %v2225 = vmax.f32 %v2223, %v2224
  %v2226 = vsel %vm1919, %v1912, -inf
  %v2227 = vmax.f32 %v2225, %v2226
  %v2228 = vsel %vm1919, %v1838, -inf
  %v2229 = vsel %vm1919, %v1863, -inf
  %v2230 = vmax.f32 %v2228, %v2229
  %v2231 = vsel %vm1919, %v1888, -inf
  %v2232 = vmax.f32 %v2230, %v2231
  %v2233 = vsel %vm1919, %v1913, -inf
  %v2234 = vmax.f32 %v2232, %v2233
  %v2235 = vsel %vm1919, %v1839, -inf
  %v2236 = vsel %vm1919, %v1864, -inf
  %v2237 = vmax.f32 %v2235, %v2236
  %v2238 = vsel %vm1919, %v1889, -inf
  %v2239 = vmax.f32 %v2237, %v2238
  %v2240 = vsel %vm1919, %v1914, -inf
  %v2241 = vmax.f32 %v2239, %v2240
  %v2242 = vsel %vm1919, %v1840, -inf
  %v2243 = vsel %vm1919, %v1865, -inf
  %v2244 = vmax.f32 %v2242, %v2243
  %v2245 = vsel %vm1919, %v1890, -inf
  %v2246 = vmax.f32 %v2244, %v2245
  %v2247 = vsel %vm1919, %v1915, -inf
  %v2248 = vmax.f32 %v2246, %v2247
  %v2249 = vsel %vm1919, %v1841, -inf
  %v2250 = vsel %vm1919, %v1866, -inf
  %v2251 = vmax.f32 %v2249, %v2250
  %v2252 = vsel %vm1919, %v1891, -inf
  %v2253 = vmax.f32 %v2251, %v2252
  %v2254 = vsel %vm1919, %v1916, -inf
  %v2255 = vmax.f32 %v2253, %v2254
  %v2256 = vsel %vm1919, %v1842, -inf
  %v2257 = vsel %vm1919, %v1867, -inf
  %v2258 = vmax.f32 %v2256, %v2257
  %v2259 = vsel %vm1919, %v1892, -inf
  %v2260 = vmax.f32 %v2258, %v2259
  %v2261 = vsel %vm1919, %v1917, -inf
  %v2262 = vmax.f32 %v2260, %v2261
  %v2263 = vsel %vm1919, %v1843, -inf
  %v2264 = vsel %vm1919, %v1868, -inf
  %v2265 = vmax.f32 %v2263, %v2264
  %v2266 = vsel %vm1919, %v1893, -inf
  %v2267 = vmax.f32 %v2265, %v2266
  %v2268 = vsel %vm1919, %v1918, -inf
  %v2269 = vmax.f32 %v2267, %v2268
  %2270 = vst.msk [vmem:[%s3] sm:$0xff] %vm1919, %v1926
  %2271 = vst.msk [vmem:[%s3 + $0x8] sm:$0xff] %vm1919, %v1933
  %2272 = vst.msk [vmem:[%s3 + $0x10] sm:$0xff] %vm1919, %v1940
  %2273 = vst.msk [vmem:[%s3 + $0x18] sm:$0xff] %vm1919, %v1947
  %2274 = vst.msk [vmem:[%s3 + $0x20] sm:$0xff] %vm1919, %v1954
  %2275 = vst.msk [vmem:[%s3 + $0x28] sm:$0xff] %vm1919, %v1961
  %2276 = vst.msk [vmem:[%s3 + $0x30] sm:$0xff] %vm1919, %v1968
  %2277 = vst.msk [vmem:[%s3 + $0x38] sm:$0xff] %vm1919, %v1975
  %2278 = vst.msk [vmem:[%s3 + $0x40] sm:$0xff] %vm1919, %v1982
  %2279 = vst.msk [vmem:[%s3 + $0x48] sm:$0xff] %vm1919, %v1989
  %2280 = vst.msk [vmem:[%s3 + $0x50] sm:$0xff] %vm1919, %v1996
  %2281 = vst.msk [vmem:[%s3 + $0x58] sm:$0xff] %vm1919, %v2003
  %2282 = vst.msk [vmem:[%s3 + $0x60] sm:$0xff] %vm1919, %v2010
  %2283 = vst.msk [vmem:[%s3 + $0x68] sm:$0xff] %vm1919, %v2017
  %2284 = vst.msk [vmem:[%s3 + $0x70] sm:$0xff] %vm1919, %v2024
  %2285 = vst.msk [vmem:[%s3 + $0x78] sm:$0xff] %vm1919, %v2031
  %2286 = vst.msk [vmem:[%s3 + $0x80] sm:$0xff] %vm1919, %v2038
  %2287 = vst.msk [vmem:[%s3 + $0x88] sm:$0xff] %vm1919, %v2045
  %2288 = vst.msk [vmem:[%s3 + $0x90] sm:$0xff] %vm1919, %v2052
  %2289 = vst.msk [vmem:[%s3 + $0x98] sm:$0xff] %vm1919, %v2059
  %2290 = vst.msk [vmem:[%s3 + $0xa0] sm:$0xff] %vm1919, %v2066
  %2291 = vst.msk [vmem:[%s3 + $0xa8] sm:$0xff] %vm1919, %v2073
  %2292 = vst.msk [vmem:[%s3 + $0xb0] sm:$0xff] %vm1919, %v2080
  %2293 = vst.msk [vmem:[%s3 + $0xb8] sm:$0xff] %vm1919, %v2087
  %2294 = vst.msk [vmem:[%s3 + $0xc0] sm:$0xff] %vm1919, %v2094
  %2295 = vst.msk [vmem:[%s3 + $0xc8] sm:$0xff] %vm1919, %v2101
  %2296 = vst.msk [vmem:[%s3 + $0xd0] sm:$0xff] %vm1919, %v2108
  %2297 = vst.msk [vmem:[%s3 + $0xd8] sm:$0xff] %vm1919, %v2115
  %2298 = vst.msk [vmem:[%s3 + $0xe0] sm:$0xff] %vm1919, %v2122
  %2299 = vst.msk [vmem:[%s3 + $0xe8] sm:$0xff] %vm1919, %v2129
  %2300 = vst.msk [vmem:[%s3 + $0xf0] sm:$0xff] %vm1919, %v2136
  %2301 = vst.msk [vmem:[%s3 + $0xf8] sm:$0xff] %vm1919, %v2143
  %2302 = vst.msk [vmem:[%s3 + $0x100] sm:$0xff] %vm1919, %v2150
  %2303 = vst.msk [vmem:[%s3 + $0x108] sm:$0xff] %vm1919, %v2157
  %2304 = vst.msk [vmem:[%s3 + $0x110] sm:$0xff] %vm1919, %v2164
  %2305 = vst.msk [vmem:[%s3 + $0x118] sm:$0xff] %vm1919, %v2171
  %2306 = vst.msk [vmem:[%s3 + $0x120] sm:$0xff] %vm1919, %v2178
  %2307 = vst.msk [vmem:[%s3 + $0x128] sm:$0xff] %vm1919, %v2185
  %2308 = vst.msk [vmem:[%s3 + $0x130] sm:$0xff] %vm1919, %v2192
  %2309 = vst.msk [vmem:[%s3 + $0x138] sm:$0xff] %vm1919, %v2199
  %2310 = vst.msk [vmem:[%s3 + $0x140] sm:$0xff] %vm1919, %v2206
  %2311 = vst.msk [vmem:[%s3 + $0x148] sm:$0xff] %vm1919, %v2213
  %2312 = vst.msk [vmem:[%s3 + $0x150] sm:$0xff] %vm1919, %v2220
  %2313 = vst.msk [vmem:[%s3 + $0x158] sm:$0xff] %vm1919, %v2227
  %2314 = vst.msk [vmem:[%s3 + $0x160] sm:$0xff] %vm1919, %v2234
  %2315 = vst.msk [vmem:[%s3 + $0x168] sm:$0xff] %vm1919, %v2241
  %2316 = vst.msk [vmem:[%s3 + $0x170] sm:$0xff] %vm1919, %v2248
  %2317 = vst.msk [vmem:[%s3 + $0x178] sm:$0xff] %vm1919, %v2255
  %2318 = vst.msk [vmem:[%s3 + $0x180] sm:$0xff] %vm1919, %v2262
  %2319 = vst.msk [vmem:[%s3 + $0x188] sm:$0xff] %vm1919, %v2269
  // Predicated region
  $region14: #{flnet_forward.3} parent=0 // pred_check
    _
  $region15: #{flnet_forward.3} parent=0 // pred_check_branch
    %2321 = sbr.rel (0) target = $region17
  $region16: #{flnet_forward.3} parent=0 // pred_region
    _
  $region17: #{flnet_forward.3} parent=0 // pred_fallthru
    _
  // Predicated region
  $region18: #{flnet_forward.3} parent=0 // pred_check
    _
  $region19: #{flnet_forward.3} parent=0 // pred_check_branch
    %2323 = sbr.rel (0) target = $region21
  $region20: #{flnet_forward.3} parent=0 // pred_region
    _
  $region21: #{flnet_forward.3} parent=0 // pred_fallthru
    _

// kernel: flnet_forward.4
$region0: #{flnet_forward.4}
  #allocation0 [shape = 'u32[]', space=smem, size = 0x4, offset = 0x4, fixed_abs, tag = 'smem constant byte address 0x4 - core index']
  #allocation1 [shape = 'u32[144,128]{1,0:T(1,128)}', space=vmem, size = 0x12000, scoped, tag = 'internal scratch']
  %s0 = inlined_call_operand.vmem [shape: bf16[448,896], index: 0, kind: input, shape index: {}]
  %s1 = inlined_call_operand.vmem [shape: bf16[896,64], index: 1, kind: input, shape index: {}]
  %s2 = inlined_call_operand.vmem [shape: f32[1,64], index: 2, kind: input, shape index: {}]
  %s3 = inlined_call_operand.vmem [shape: f32[2,56,64], index: 3, kind: output, shape index: {}]
  %s4 = sld [smem:[#allocation0]]
  $region22: #{flnet_forward.4} parent=0
    _
  %s6 = ssub.s32 1, %s4
  %s7 = scalar_select 0, %s6, %s4
  // Predicated region
  $region2: #{flnet_forward.4} parent=0 // pred_check
    _
  $region3: #{flnet_forward.4} parent=0 // pred_check_branch
    %9 = sbr.rel (0) target = $region5
  $region4: #{flnet_forward.4} parent=0 // pred_region
    _
  $region5: #{flnet_forward.4} parent=0 // pred_fallthru
    _
  // Predicated region
  $region6: #{flnet_forward.4} parent=0 // pred_check
    _
  $region7: #{flnet_forward.4} parent=0 // pred_check_branch
    %11 = sbr.rel (0) target = $region9
  $region8: #{flnet_forward.4} parent=0 // pred_region
    _
  $region9: #{flnet_forward.4} parent=0 // pred_fallthru
    _
  // Predicated region
  $region10: #{flnet_forward.4} parent=0 // pred_check
    _
  $region11: #{flnet_forward.4} parent=0 // pred_check_branch
    %13 = sbr.rel (0) target = $region13
  $region12: #{flnet_forward.4} parent=0 // pred_region
    _
  $region13: #{flnet_forward.4} parent=0 // pred_fallthru
    _
  %v15 = vld [vmem:[%s0] sm:$0xff]
  %v16 = vld [vmem:[%s0 + $0x8] sm:$0xff]
  %v17 = vld [vmem:[%s0 + $0x10] sm:$0xff]
  %v18 = vld [vmem:[%s0 + $0x18] sm:$0xf]
  %v19 = vld [vmem:[%s0 + $0x1c] sm:$0xff]
  %v20 = vld [vmem:[%s0 + $0x24] sm:$0xff]
  %v21 = vld [vmem:[%s0 + $0x2c] sm:$0xff]
  %v22 = vld [vmem:[%s0 + $0x34] sm:$0xf]
  %v23 = vld [vmem:[%s0 + $0x38] sm:$0xff]
  %v24 = vld [vmem:[%s0 + $0x40] sm:$0xff]
  %v25 = vld [vmem:[%s0 + $0x48] sm:$0xff]
  %v26 = vld [vmem:[%s0 + $0x50] sm:$0xf]
  %v27 = vld [vmem:[%s0 + $0x54] sm:$0xff]
  %v28 = vld [vmem:[%s0 + $0x5c] sm:$0xff]
  %v29 = vld [vmem:[%s0 + $0x64] sm:$0xff]
  %v30 = vld [vmem:[%s0 + $0x6c] sm:$0xf]
  %v31 = vld [vmem:[%s0 + $0x70] sm:$0xff]
  %v32 = vld [vmem:[%s0 + $0x78] sm:$0xff]
  %v33 = vld [vmem:[%s0 + $0x80] sm:$0xff]
  %v34 = vld [vmem:[%s0 + $0x88] sm:$0xf]
  %v35 = vld [vmem:[%s0 + $0x8c] sm:$0xff]
  %v36 = vld [vmem:[%s0 + $0x94] sm:$0xff]
  %v37 = vld [vmem:[%s0 + $0x9c] sm:$0xff]
  %v38 = vld [vmem:[%s0 + $0xa4] sm:$0xf]
  %v39 = vld [vmem:[%s0 + $0xa8] sm:$0xff]
  %v40 = vld [vmem:[%s0 + $0xb0] sm:$0xff]
  %v41 = vld [vmem:[%s0 + $0xb8] sm:$0xff]
  %v42 = vld [vmem:[%s0 + $0xc0] sm:$0xf]
  %v43 = vld [vmem:[%s0 + $0xc4] sm:$0xff]
  %v44 = vld [vmem:[%s0 + $0xcc] sm:$0xff]
  %v45 = vld [vmem:[%s0 + $0xd4] sm:$0xff]
  %v46 = vld [vmem:[%s0 + $0xdc] sm:$0xf]
  %v47 = vld [vmem:[%s0 + $0xe0] sm:$0xff]
  %v48 = vld [vmem:[%s0 + $0xe8] sm:$0xff]
  %v49 = vld [vmem:[%s0 + $0xf0] sm:$0xff]
  %v50 = vld [vmem:[%s0 + $0xf8] sm:$0xf]
  %v51 = vld [vmem:[%s0 + $0xfc] sm:$0xff]
  %v52 = vld [vmem:[%s0 + $0x104] sm:$0xff]
  %v53 = vld [vmem:[%s0 + $0x10c] sm:$0xff]
  %v54 = vld [vmem:[%s0 + $0x114] sm:$0xf]
  %v55 = vld [vmem:[%s0 + $0x118] sm:$0xff]
  %v56 = vld [vmem:[%s0 + $0x120] sm:$0xff]
  %v57 = vld [vmem:[%s0 + $0x128] sm:$0xff]
  %v58 = vld [vmem:[%s0 + $0x130] sm:$0xf]
  %v59 = vld [vmem:[%s0 + $0x134] sm:$0xff]
  %v60 = vld [vmem:[%s0 + $0x13c] sm:$0xff]
  %v61 = vld [vmem:[%s0 + $0x144] sm:$0xff]
  %v62 = vld [vmem:[%s0 + $0x14c] sm:$0xf]
  %v63 = vld [vmem:[%s0 + $0x150] sm:$0xff]
  %v64 = vld [vmem:[%s0 + $0x158] sm:$0xff]
  %v65 = vld [vmem:[%s0 + $0x160] sm:$0xff]
  %v66 = vld [vmem:[%s0 + $0x168] sm:$0xf]
  %v67 = vld [vmem:[%s0 + $0x16c] sm:$0xff]
  %v68 = vld [vmem:[%s0 + $0x174] sm:$0xff]
  %v69 = vld [vmem:[%s0 + $0x17c] sm:$0xff]
  %v70 = vld [vmem:[%s0 + $0x184] sm:$0xf]
  %v71 = vld [vmem:[%s0 + $0x188] sm:$0xff]
  %v72 = vld [vmem:[%s0 + $0x190] sm:$0xff]
  %v73 = vld [vmem:[%s0 + $0x198] sm:$0xff]
  %v74 = vld [vmem:[%s0 + $0x1a0] sm:$0xf]
  %v75 = vld [vmem:[%s0 + $0x1a4] sm:$0xff]
  %v76 = vld [vmem:[%s0 + $0x1ac] sm:$0xff]
  %v77 = vld [vmem:[%s0 + $0x1b4] sm:$0xff]
  %v78 = vld [vmem:[%s0 + $0x1bc] sm:$0xf]
  %v79 = vld [vmem:[%s0 + $0x1c0] sm:$0xff]
  %v80 = vld [vmem:[%s0 + $0x1c8] sm:$0xff]
  %v81 = vld [vmem:[%s0 + $0x1d0] sm:$0xff]
  %v82 = vld [vmem:[%s0 + $0x1d8] sm:$0xf]
  %v83 = vld [vmem:[%s0 + $0x1dc] sm:$0xff]
  %v84 = vld [vmem:[%s0 + $0x1e4] sm:$0xff]
  %v85 = vld [vmem:[%s0 + $0x1ec] sm:$0xff]
  %v86 = vld [vmem:[%s0 + $0x1f4] sm:$0xf]
  %v87 = vld [vmem:[%s0 + $0x1f8] sm:$0xff]
  %v88 = vld [vmem:[%s0 + $0x200] sm:$0xff]
  %v89 = vld [vmem:[%s0 + $0x208] sm:$0xff]
  %v90 = vld [vmem:[%s0 + $0x210] sm:$0xf]
  %v91 = vld [vmem:[%s0 + $0x214] sm:$0xff]
  %v92 = vld [vmem:[%s0 + $0x21c] sm:$0xff]
  %v93 = vld [vmem:[%s0 + $0x224] sm:$0xff]
  %v94 = vld [vmem:[%s0 + $0x22c] sm:$0xf]
  %v95 = vld [vmem:[%s0 + $0x230] sm:$0xff]
  %v96 = vld [vmem:[%s0 + $0x238] sm:$0xff]
  %v97 = vld [vmem:[%s0 + $0x240] sm:$0xff]
  %v98 = vld [vmem:[%s0 + $0x248] sm:$0xf]
  %v99 = vld [vmem:[%s0 + $0x24c] sm:$0xff]
  %v100 = vld [vmem:[%s0 + $0x254] sm:$0xff]
  %v101 = vld [vmem:[%s0 + $0x25c] sm:$0xff]
  %v102 = vld [vmem:[%s0 + $0x264] sm:$0xf]
  %v103 = vld [vmem:[%s0 + $0x268] sm:$0xff]
  %v104 = vld [vmem:[%s0 + $0x270] sm:$0xff]
  %v105 = vld [vmem:[%s0 + $0x278] sm:$0xff]
  %v106 = vld [vmem:[%s0 + $0x280] sm:$0xf]
  %v107 = vld [vmem:[%s0 + $0x284] sm:$0xff]
  %v108 = vld [vmem:[%s0 + $0x28c] sm:$0xff]
  %v109 = vld [vmem:[%s0 + $0x294] sm:$0xff]
  %v110 = vld [vmem:[%s0 + $0x29c] sm:$0xf]
  %v111 = vld [vmem:[%s0 + $0x2a0] sm:$0xff]
  %v112 = vld [vmem:[%s0 + $0x2a8] sm:$0xff]
  %v113 = vld [vmem:[%s0 + $0x2b0] sm:$0xff]
  %v114 = vld [vmem:[%s0 + $0x2b8] sm:$0xf]
  %v115 = vld [vmem:[%s0 + $0x2bc] sm:$0xff]
  %v116 = vld [vmem:[%s0 + $0x2c4] sm:$0xff]
  %v117 = vld [vmem:[%s0 + $0x2cc] sm:$0xff]
  %v118 = vld [vmem:[%s0 + $0x2d4] sm:$0xf]
  %v119 = vld [vmem:[%s0 + $0x2d8] sm:$0xff]
  %v120 = vld [vmem:[%s0 + $0x2e0] sm:$0xff]
  %v121 = vld [vmem:[%s0 + $0x2e8] sm:$0xff]
  %v122 = vld [vmem:[%s0 + $0x2f0] sm:$0xf]
  %v123 = vld [vmem:[%s0 + $0x2f4] sm:$0xff]
  %v124 = vld [vmem:[%s0 + $0x2fc] sm:$0xff]
  %v125 = vld [vmem:[%s0 + $0x304] sm:$0xff]
  %v126 = vld [vmem:[%s0 + $0x30c] sm:$0xf]
  %v127 = vld [vmem:[%s0 + $0x310] sm:$0xff]
  %v128 = vld [vmem:[%s0 + $0x318] sm:$0xff]
  %v129 = vld [vmem:[%s0 + $0x320] sm:$0xff]
  %v130 = vld [vmem:[%s0 + $0x328] sm:$0xf]
  %v131 = vld [vmem:[%s0 + $0x32c] sm:$0xff]
  %v132 = vld [vmem:[%s0 + $0x334] sm:$0xff]
  %v133 = vld [vmem:[%s0 + $0x33c] sm:$0xff]
  %v134 = vld [vmem:[%s0 + $0x344] sm:$0xf]
  %v135 = vld [vmem:[%s0 + $0x348] sm:$0xff]
  %v136 = vld [vmem:[%s0 + $0x350] sm:$0xff]
  %v137 = vld [vmem:[%s0 + $0x358] sm:$0xff]
  %v138 = vld [vmem:[%s0 + $0x360] sm:$0xf]
  %v139 = vld [vmem:[%s0 + $0x364] sm:$0xff]
  %v140 = vld [vmem:[%s0 + $0x36c] sm:$0xff]
  %v141 = vld [vmem:[%s0 + $0x374] sm:$0xff]
  %v142 = vld [vmem:[%s0 + $0x37c] sm:$0xf]
  %v143 = vld [vmem:[%s0 + $0x380] sm:$0xff]
  %v144 = vld [vmem:[%s0 + $0x388] sm:$0xff]
  %v145 = vld [vmem:[%s0 + $0x390] sm:$0xff]
  %v146 = vld [vmem:[%s0 + $0x398] sm:$0xf]
  %v147 = vld [vmem:[%s0 + $0x39c] sm:$0xff]
  %v148 = vld [vmem:[%s0 + $0x3a4] sm:$0xff]
  %v149 = vld [vmem:[%s0 + $0x3ac] sm:$0xff]
  %v150 = vld [vmem:[%s0 + $0x3b4] sm:$0xf]
  %v151 = vld [vmem:[%s0 + $0x3b8] sm:$0xff]
  %v152 = vld [vmem:[%s0 + $0x3c0] sm:$0xff]
  %v153 = vld [vmem:[%s0 + $0x3c8] sm:$0xff]
  %v154 = vld [vmem:[%s0 + $0x3d0] sm:$0xf]
  %v155 = vld [vmem:[%s0 + $0x3d4] sm:$0xff]
  %v156 = vld [vmem:[%s0 + $0x3dc] sm:$0xff]
  %v157 = vld [vmem:[%s0 + $0x3e4] sm:$0xff]
  %v158 = vld [vmem:[%s0 + $0x3ec] sm:$0xf]
  %v159 = vld [vmem:[%s0 + $0x3f0] sm:$0xff]
  %v160 = vld [vmem:[%s0 + $0x3f8] sm:$0xff]
  %v161 = vld [vmem:[%s0 + $0x400] sm:$0xff]
  %v162 = vld [vmem:[%s0 + $0x408] sm:$0xf]
  %v163 = vld [vmem:[%s0 + $0x40c] sm:$0xff]
  %v164 = vld [vmem:[%s0 + $0x414] sm:$0xff]
  %v165 = vld [vmem:[%s0 + $0x41c] sm:$0xff]
  %v166 = vld [vmem:[%s0 + $0x424] sm:$0xf]
  %v167 = vld [vmem:[%s0 + $0x428] sm:$0xff]
  %v168 = vld [vmem:[%s0 + $0x430] sm:$0xff]
  %v169 = vld [vmem:[%s0 + $0x438] sm:$0xff]
  %v170 = vld [vmem:[%s0 + $0x440] sm:$0xf]
  %v171 = vld [vmem:[%s0 + $0x444] sm:$0xff]
  %v172 = vld [vmem:[%s0 + $0x44c] sm:$0xff]
  %v173 = vld [vmem:[%s0 + $0x454] sm:$0xff]
  %v174 = vld [vmem:[%s0 + $0x45c] sm:$0xf]
  %v175 = vld [vmem:[%s0 + $0x460] sm:$0xff]
  %v176 = vld [vmem:[%s0 + $0x468] sm:$0xff]
  %v177 = vld [vmem:[%s0 + $0x470] sm:$0xff]
  %v178 = vld [vmem:[%s0 + $0x478] sm:$0xf]
  %v179 = vld [vmem:[%s0 + $0x47c] sm:$0xff]
  %v180 = vld [vmem:[%s0 + $0x484] sm:$0xff]
  %v181 = vld [vmem:[%s0 + $0x48c] sm:$0xff]
  %v182 = vld [vmem:[%s0 + $0x494] sm:$0xf]
  %v183 = vld [vmem:[%s0 + $0x498] sm:$0xff]
  %v184 = vld [vmem:[%s0 + $0x4a0] sm:$0xff]
  %v185 = vld [vmem:[%s0 + $0x4a8] sm:$0xff]
  %v186 = vld [vmem:[%s0 + $0x4b0] sm:$0xf]
  %v187 = vld [vmem:[%s0 + $0x4b4] sm:$0xff]
  %v188 = vld [vmem:[%s0 + $0x4bc] sm:$0xff]
  %v189 = vld [vmem:[%s0 + $0x4c4] sm:$0xff]
  %v190 = vld [vmem:[%s0 + $0x4cc] sm:$0xf]
  %v191 = vld [vmem:[%s0 + $0x4d0] sm:$0xff]
  %v192 = vld [vmem:[%s0 + $0x4d8] sm:$0xff]
  %v193 = vld [vmem:[%s0 + $0x4e0] sm:$0xff]
  %v194 = vld [vmem:[%s0 + $0x4e8] sm:$0xf]
  %v195 = vld [vmem:[%s0 + $0x4ec] sm:$0xff]
  %v196 = vld [vmem:[%s0 + $0x4f4] sm:$0xff]
  %v197 = vld [vmem:[%s0 + $0x4fc] sm:$0xff]
  %v198 = vld [vmem:[%s0 + $0x504] sm:$0xf]
  %v199 = vld [vmem:[%s0 + $0x508] sm:$0xff]
  %v200 = vld [vmem:[%s0 + $0x510] sm:$0xff]
  %v201 = vld [vmem:[%s0 + $0x518] sm:$0xff]
  %v202 = vld [vmem:[%s0 + $0x520] sm:$0xf]
  %v203 = vld [vmem:[%s0 + $0x524] sm:$0xff]
  %v204 = vld [vmem:[%s0 + $0x52c] sm:$0xff]
  %v205 = vld [vmem:[%s0 + $0x534] sm:$0xff]
  %v206 = vld [vmem:[%s0 + $0x53c] sm:$0xf]
  %v207 = vld [vmem:[%s0 + $0x540] sm:$0xff]
  %v208 = vld [vmem:[%s0 + $0x548] sm:$0xff]
  %v209 = vld [vmem:[%s0 + $0x550] sm:$0xff]
  %v210 = vld [vmem:[%s0 + $0x558] sm:$0xf]
  %v211 = vld [vmem:[%s0 + $0x55c] sm:$0xff]
  %v212 = vld [vmem:[%s0 + $0x564] sm:$0xff]
  %v213 = vld [vmem:[%s0 + $0x56c] sm:$0xff]
  %v214 = vld [vmem:[%s0 + $0x574] sm:$0xf]
  %v215 = vld [vmem:[%s0 + $0x578] sm:$0xff]
  %v216 = vld [vmem:[%s0 + $0x580] sm:$0xff]
  %v217 = vld [vmem:[%s0 + $0x588] sm:$0xff]
  %v218 = vld [vmem:[%s0 + $0x590] sm:$0xf]
  %v219 = vld [vmem:[%s0 + $0x594] sm:$0xff]
  %v220 = vld [vmem:[%s0 + $0x59c] sm:$0xff]
  %v221 = vld [vmem:[%s0 + $0x5a4] sm:$0xff]
  %v222 = vld [vmem:[%s0 + $0x5ac] sm:$0xf]
  %v223 = vld [vmem:[%s0 + $0x5b0] sm:$0xff]
  %v224 = vld [vmem:[%s0 + $0x5b8] sm:$0xff]
  %v225 = vld [vmem:[%s0 + $0x5c0] sm:$0xff]
  %v226 = vld [vmem:[%s0 + $0x5c8] sm:$0xf]
  %v227 = vld [vmem:[%s0 + $0x5cc] sm:$0xff]
  %v228 = vld [vmem:[%s0 + $0x5d4] sm:$0xff]
  %v229 = vld [vmem:[%s0 + $0x5dc] sm:$0xff]
  %v230 = vld [vmem:[%s0 + $0x5e4] sm:$0xf]
  %v231 = vld [vmem:[%s0 + $0x5e8] sm:$0xff]
  %v232 = vld [vmem:[%s0 + $0x5f0] sm:$0xff]
  %v233 = vld [vmem:[%s0 + $0x5f8] sm:$0xff]
  %v234 = vld [vmem:[%s0 + $0x600] sm:$0xf]
  %v235 = vld [vmem:[%s0 + $0x604] sm:$0xff]
  %v236 = vld [vmem:[%s0 + $0x60c] sm:$0xff]
  %v237 = vld [vmem:[%s0 + $0x614] sm:$0xff]
  %v238 = vld [vmem:[%s0 + $0x61c] sm:$0xf]
  %v239 = vld [vmem:[%s1] sm:$0xf]
  %v240 = vld [vmem:[%s1 + $0x4] sm:$0xf]
  %v241 = vld [vmem:[%s1 + $0x8] sm:$0xf]
  %v242 = vld [vmem:[%s1 + $0xc] sm:$0xf]
  %v243 = vld [vmem:[%s1 + $0x10] sm:$0xf]
  %v244 = vld [vmem:[%s1 + $0x14] sm:$0xf]
  %v245 = vld [vmem:[%s1 + $0x18] sm:$0xf]
  %v246 = vld [vmem:[%s1 + $0x1c] sm:$0xf]
  %v247 = vld [vmem:[%s1 + $0x20] sm:$0xf]
  %v248 = vld [vmem:[%s1 + $0x24] sm:$0xf]
  %v249 = vld [vmem:[%s1 + $0x28] sm:$0xf]
  %v250 = vld [vmem:[%s1 + $0x2c] sm:$0xf]
  %v251 = vld [vmem:[%s1 + $0x30] sm:$0xf]
  %v252 = vld [vmem:[%s1 + $0x34] sm:$0xf]
  %v253 = vld [vmem:[%s1 + $0x38] sm:$0xf]
  %v254 = vld [vmem:[%s1 + $0x3c] sm:$0xf]
  %v255 = vld [vmem:[%s1 + $0x40] sm:$0xf]
  %v256 = vld [vmem:[%s1 + $0x44] sm:$0xf]
  %v257 = vld [vmem:[%s1 + $0x48] sm:$0xf]
  %v258 = vld [vmem:[%s1 + $0x4c] sm:$0xf]
  %v259 = vld [vmem:[%s1 + $0x50] sm:$0xf]
  %v260 = vld [vmem:[%s1 + $0x54] sm:$0xf]
  %v261 = vld [vmem:[%s1 + $0x58] sm:$0xf]
  %v262 = vld [vmem:[%s1 + $0x5c] sm:$0xf]
  %v263 = vld [vmem:[%s1 + $0x60] sm:$0xf]
  %v264 = vld [vmem:[%s1 + $0x64] sm:$0xf]
  %v265 = vld [vmem:[%s1 + $0x68] sm:$0xf]
  %v266 = vld [vmem:[%s1 + $0x6c] sm:$0xf]
  %v267 = vld [vmem:[%s1 + $0x70] sm:$0xf]
  %v268 = vld [vmem:[%s1 + $0x74] sm:$0xf]
  %v269 = vld [vmem:[%s1 + $0x78] sm:$0xf]
  %v270 = vld [vmem:[%s1 + $0x7c] sm:$0xf]
  %v271 = vld [vmem:[%s1 + $0x80] sm:$0xf]
  %v272 = vld [vmem:[%s1 + $0x84] sm:$0xf]
  %v273 = vld [vmem:[%s1 + $0x88] sm:$0xf]
  %v274 = vld [vmem:[%s1 + $0x8c] sm:$0xf]
  %v275 = vld [vmem:[%s1 + $0x90] sm:$0xf]
  %v276 = vld [vmem:[%s1 + $0x94] sm:$0xf]
  %v277 = vld [vmem:[%s1 + $0x98] sm:$0xf]
  %v278 = vld [vmem:[%s1 + $0x9c] sm:$0xf]
  %v279 = vld [vmem:[%s1 + $0xa0] sm:$0xf]
  %v280 = vld [vmem:[%s1 + $0xa4] sm:$0xf]
  %v281 = vld [vmem:[%s1 + $0xa8] sm:$0xf]
  %v282 = vld [vmem:[%s1 + $0xac] sm:$0xf]
  %v283 = vld [vmem:[%s1 + $0xb0] sm:$0xf]
  %v284 = vld [vmem:[%s1 + $0xb4] sm:$0xf]
  %v285 = vld [vmem:[%s1 + $0xb8] sm:$0xf]
  %v286 = vld [vmem:[%s1 + $0xbc] sm:$0xf]
  %v287 = vld [vmem:[%s1 + $0xc0] sm:$0xf]
  %v288 = vld [vmem:[%s1 + $0xc4] sm:$0xf]
  %v289 = vld [vmem:[%s1 + $0xc8] sm:$0xf]
  %v290 = vld [vmem:[%s1 + $0xcc] sm:$0xf]
  %v291 = vld [vmem:[%s1 + $0xd0] sm:$0xf]
  %v292 = vld [vmem:[%s1 + $0xd4] sm:$0xf]
  %v293 = vld [vmem:[%s1 + $0xd8] sm:$0xf]
  %v294 = vld [vmem:[%s1 + $0xdc] sm:$0xf]
  %v295 = vld [vmem:[%s1 + $0xe0] sm:$0xf]
  %v296 = vld [vmem:[%s1 + $0xe4] sm:$0xf]
  %v297 = vld [vmem:[%s1 + $0xe8] sm:$0xf]
  %v298 = vld [vmem:[%s1 + $0xec] sm:$0xf]
  %v299 = vld [vmem:[%s1 + $0xf0] sm:$0xf]
  %v300 = vld [vmem:[%s1 + $0xf4] sm:$0xf]
  %v301 = vld [vmem:[%s1 + $0xf8] sm:$0xf]
  %v302 = vld [vmem:[%s1 + $0xfc] sm:$0xf]
  %v303 = vld [vmem:[%s1 + $0x100] sm:$0xf]
  %v304 = vld [vmem:[%s1 + $0x104] sm:$0xf]
  %v305 = vld [vmem:[%s1 + $0x108] sm:$0xf]
  %v306 = vld [vmem:[%s1 + $0x10c] sm:$0xf]
  %v307 = vld [vmem:[%s1 + $0x110] sm:$0xf]
  %v308 = vld [vmem:[%s1 + $0x114] sm:$0xf]
  %v309 = vld [vmem:[%s1 + $0x118] sm:$0xf]
  %v310 = vld [vmem:[%s1 + $0x11c] sm:$0xf]
  %v311 = vld [vmem:[%s1 + $0x120] sm:$0xf]
  %v312 = vld [vmem:[%s1 + $0x124] sm:$0xf]
  %v313 = vld [vmem:[%s1 + $0x128] sm:$0xf]
  %v314 = vld [vmem:[%s1 + $0x12c] sm:$0xf]
  %v315 = vld [vmem:[%s1 + $0x130] sm:$0xf]
  %v316 = vld [vmem:[%s1 + $0x134] sm:$0xf]
  %v317 = vld [vmem:[%s1 + $0x138] sm:$0xf]
  %v318 = vld [vmem:[%s1 + $0x13c] sm:$0xf]
  %v319 = vld [vmem:[%s1 + $0x140] sm:$0xf]
  %v320 = vld [vmem:[%s1 + $0x144] sm:$0xf]
  %v321 = vld [vmem:[%s1 + $0x148] sm:$0xf]
  %v322 = vld [vmem:[%s1 + $0x14c] sm:$0xf]
  %v323 = vld [vmem:[%s1 + $0x150] sm:$0xf]
  %v324 = vld [vmem:[%s1 + $0x154] sm:$0xf]
  %v325 = vld [vmem:[%s1 + $0x158] sm:$0xf]
  %v326 = vld [vmem:[%s1 + $0x15c] sm:$0xf]
  %v327 = vld [vmem:[%s1 + $0x160] sm:$0xf]
  %v328 = vld [vmem:[%s1 + $0x164] sm:$0xf]
  %v329 = vld [vmem:[%s1 + $0x168] sm:$0xf]
  %v330 = vld [vmem:[%s1 + $0x16c] sm:$0xf]
  %v331 = vld [vmem:[%s1 + $0x170] sm:$0xf]
  %v332 = vld [vmem:[%s1 + $0x174] sm:$0xf]
  %v333 = vld [vmem:[%s1 + $0x178] sm:$0xf]
  %v334 = vld [vmem:[%s1 + $0x17c] sm:$0xf]
  %v335 = vld [vmem:[%s1 + $0x180] sm:$0xf]
  %v336 = vld [vmem:[%s1 + $0x184] sm:$0xf]
  %v337 = vld [vmem:[%s1 + $0x188] sm:$0xf]
  %v338 = vld [vmem:[%s1 + $0x18c] sm:$0xf]
  %v339 = vld [vmem:[%s1 + $0x190] sm:$0xf]
  %v340 = vld [vmem:[%s1 + $0x194] sm:$0xf]
  %v341 = vld [vmem:[%s1 + $0x198] sm:$0xf]
  %v342 = vld [vmem:[%s1 + $0x19c] sm:$0xf]
  %v343 = vld [vmem:[%s1 + $0x1a0] sm:$0xf]
  %v344 = vld [vmem:[%s1 + $0x1a4] sm:$0xf]
  %v345 = vld [vmem:[%s1 + $0x1a8] sm:$0xf]
  %v346 = vld [vmem:[%s1 + $0x1ac] sm:$0xf]
  %v347 = vld [vmem:[%s1 + $0x1b0] sm:$0xf]
  %v348 = vld [vmem:[%s1 + $0x1b4] sm:$0xf]
  %v349 = vld [vmem:[%s1 + $0x1b8] sm:$0xf]
  %v350 = vld [vmem:[%s1 + $0x1bc] sm:$0xf]
  %v351 = vld [vmem:[%s2] sm:$0x1]
  %v353 = vlaneseq
  %v354 = vshrl.u32 %v353, 7
  %v355 = vsub.s32 0, %v354
  %v356 = vrot.slane %v351, %v355
  %v582 = vunpack.c.l.b16 %v15
  %v583 = vunpack.c.h.b16 %v15
  %v584 = vunpack.c.l.b16 %v16
  %v585 = vunpack.c.h.b16 %v16
  %v586 = vunpack.c.l.b16 %v17
  %v587 = vunpack.c.h.b16 %v17
  %v588 = vunpack.c.l.b16 %v18
  %v589 = vunpack.c.l.b16 %v19
  %v590 = vunpack.c.h.b16 %v19
  %v591 = vunpack.c.l.b16 %v20
  %v592 = vunpack.c.h.b16 %v20
  %v593 = vunpack.c.l.b16 %v21
  %v594 = vunpack.c.h.b16 %v21
  %v595 = vunpack.c.l.b16 %v22
  %v596 = vunpack.c.l.b16 %v23
  %v597 = vunpack.c.h.b16 %v23
  %v598 = vunpack.c.l.b16 %v24
  %v599 = vunpack.c.h.b16 %v24
  %v600 = vunpack.c.l.b16 %v25
  %v601 = vunpack.c.h.b16 %v25
  %v602 = vunpack.c.l.b16 %v26
  %v603 = vunpack.c.l.b16 %v27
  %v604 = vunpack.c.h.b16 %v27
  %v605 = vunpack.c.l.b16 %v28
  %v606 = vunpack.c.h.b16 %v28
  %v607 = vunpack.c.l.b16 %v29
  %v608 = vunpack.c.h.b16 %v29
  %v609 = vunpack.c.l.b16 %v30
  %v610 = vunpack.c.l.b16 %v31
  %v611 = vunpack.c.h.b16 %v31
  %v612 = vunpack.c.l.b16 %v32
  %v613 = vunpack.c.h.b16 %v32
  %v614 = vunpack.c.l.b16 %v33
  %v615 = vunpack.c.h.b16 %v33
  %v616 = vunpack.c.l.b16 %v34
  %v617 = vunpack.c.l.b16 %v35
  %v618 = vunpack.c.h.b16 %v35
  %v619 = vunpack.c.l.b16 %v36
  %v620 = vunpack.c.h.b16 %v36
  %v621 = vunpack.c.l.b16 %v37
  %v622 = vunpack.c.h.b16 %v37
  %v623 = vunpack.c.l.b16 %v38
  %v624 = vunpack.c.l.b16 %v39
  %v625 = vunpack.c.h.b16 %v39
  %v626 = vunpack.c.l.b16 %v40
  %v627 = vunpack.c.h.b16 %v40
  %v628 = vunpack.c.l.b16 %v41
  %v629 = vunpack.c.h.b16 %v41
  %v630 = vunpack.c.l.b16 %v42
  %v631 = vunpack.c.l.b16 %v43
  %v632 = vunpack.c.h.b16 %v43
  %v633 = vunpack.c.l.b16 %v44
  %v634 = vunpack.c.h.b16 %v44
  %v635 = vunpack.c.l.b16 %v45
  %v636 = vunpack.c.h.b16 %v45
  %v637 = vunpack.c.l.b16 %v46
  %v638 = vunpack.c.l.b16 %v47
  %v639 = vunpack.c.h.b16 %v47
  %v640 = vunpack.c.l.b16 %v48
  %v641 = vunpack.c.h.b16 %v48
  %v642 = vunpack.c.l.b16 %v49
  %v643 = vunpack.c.h.b16 %v49
  %v644 = vunpack.c.l.b16 %v50
  %v645 = vunpack.c.l.b16 %v51
  %v646 = vunpack.c.h.b16 %v51
  %v647 = vunpack.c.l.b16 %v52
  %v648 = vunpack.c.h.b16 %v52
  %v649 = vunpack.c.l.b16 %v53
  %v650 = vunpack.c.h.b16 %v53
  %v651 = vunpack.c.l.b16 %v54
  %v652 = vunpack.c.l.b16 %v55
  %v653 = vunpack.c.h.b16 %v55
  %v654 = vunpack.c.l.b16 %v56
  %v655 = vunpack.c.h.b16 %v56
  %v656 = vunpack.c.l.b16 %v57
  %v657 = vunpack.c.h.b16 %v57
  %v658 = vunpack.c.l.b16 %v58
  %v659 = vunpack.c.l.b16 %v59
  %v660 = vunpack.c.h.b16 %v59
  %v661 = vunpack.c.l.b16 %v60
  %v662 = vunpack.c.h.b16 %v60
  %v663 = vunpack.c.l.b16 %v61
  %v664 = vunpack.c.h.b16 %v61
  %v665 = vunpack.c.l.b16 %v62
  %v666 = vunpack.c.l.b16 %v63
  %v667 = vunpack.c.h.b16 %v63
  %v668 = vunpack.c.l.b16 %v64
  %v669 = vunpack.c.h.b16 %v64
  %v670 = vunpack.c.l.b16 %v65
  %v671 = vunpack.c.h.b16 %v65
  %v672 = vunpack.c.l.b16 %v66
  %v673 = vunpack.c.l.b16 %v67
  %v674 = vunpack.c.h.b16 %v67
  %v675 = vunpack.c.l.b16 %v68
  %v676 = vunpack.c.h.b16 %v68
  %v677 = vunpack.c.l.b16 %v69
  %v678 = vunpack.c.h.b16 %v69
  %v679 = vunpack.c.l.b16 %v70
  %v680 = vunpack.c.l.b16 %v71
  %v681 = vunpack.c.h.b16 %v71
  %v682 = vunpack.c.l.b16 %v72
  %v683 = vunpack.c.h.b16 %v72
  %v684 = vunpack.c.l.b16 %v73
  %v685 = vunpack.c.h.b16 %v73
  %v686 = vunpack.c.l.b16 %v74
  %v687 = vunpack.c.l.b16 %v75
  %v688 = vunpack.c.h.b16 %v75
  %v689 = vunpack.c.l.b16 %v76
  %v690 = vunpack.c.h.b16 %v76
  %v691 = vunpack.c.l.b16 %v77
  %v692 = vunpack.c.h.b16 %v77
  %v693 = vunpack.c.l.b16 %v78
  %v694 = vunpack.c.l.b16 %v79
  %v695 = vunpack.c.h.b16 %v79
  %v696 = vunpack.c.l.b16 %v80
  %v697 = vunpack.c.h.b16 %v80
  %v698 = vunpack.c.l.b16 %v81
  %v699 = vunpack.c.h.b16 %v81
  %v700 = vunpack.c.l.b16 %v82
  %v701 = vunpack.c.l.b16 %v83
  %v702 = vunpack.c.h.b16 %v83
  %v703 = vunpack.c.l.b16 %v84
  %v704 = vunpack.c.h.b16 %v84
  %v705 = vunpack.c.l.b16 %v85
  %v706 = vunpack.c.h.b16 %v85
  %v707 = vunpack.c.l.b16 %v86
  %v708 = vunpack.c.l.b16 %v87
  %v709 = vunpack.c.h.b16 %v87
  %v710 = vunpack.c.l.b16 %v88
  %v711 = vunpack.c.h.b16 %v88
  %v712 = vunpack.c.l.b16 %v89
  %v713 = vunpack.c.h.b16 %v89
  %v714 = vunpack.c.l.b16 %v90
  %v715 = vunpack.c.l.b16 %v91
  %v716 = vunpack.c.h.b16 %v91
  %v717 = vunpack.c.l.b16 %v92
  %v718 = vunpack.c.h.b16 %v92
  %v719 = vunpack.c.l.b16 %v93
  %v720 = vunpack.c.h.b16 %v93
  %v721 = vunpack.c.l.b16 %v94
  %v722 = vunpack.c.l.b16 %v95
  %v723 = vunpack.c.h.b16 %v95
  %v724 = vunpack.c.l.b16 %v96
  %v725 = vunpack.c.h.b16 %v96
  %v726 = vunpack.c.l.b16 %v97
  %v727 = vunpack.c.h.b16 %v97
  %v728 = vunpack.c.l.b16 %v98
  %v729 = vunpack.c.l.b16 %v99
  %v730 = vunpack.c.h.b16 %v99
  %v731 = vunpack.c.l.b16 %v100
  %v732 = vunpack.c.h.b16 %v100
  %v733 = vunpack.c.l.b16 %v101
  %v734 = vunpack.c.h.b16 %v101
  %v735 = vunpack.c.l.b16 %v102
  %v736 = vunpack.c.l.b16 %v103
  %v737 = vunpack.c.h.b16 %v103
  %v738 = vunpack.c.l.b16 %v104
  %v739 = vunpack.c.h.b16 %v104
  %v740 = vunpack.c.l.b16 %v105
  %v741 = vunpack.c.h.b16 %v105
  %v742 = vunpack.c.l.b16 %v106
  %v743 = vunpack.c.l.b16 %v107
  %v744 = vunpack.c.h.b16 %v107
  %v745 = vunpack.c.l.b16 %v108
  %v746 = vunpack.c.h.b16 %v108
  %v747 = vunpack.c.l.b16 %v109
  %v748 = vunpack.c.h.b16 %v109
  %v749 = vunpack.c.l.b16 %v110
  %v750 = vunpack.c.l.b16 %v111
  %v751 = vunpack.c.h.b16 %v111
  %v752 = vunpack.c.l.b16 %v112
  %v753 = vunpack.c.h.b16 %v112
  %v754 = vunpack.c.l.b16 %v113
  %v755 = vunpack.c.h.b16 %v113
  %v756 = vunpack.c.l.b16 %v114
  %v757 = vunpack.c.l.b16 %v115
  %v758 = vunpack.c.h.b16 %v115
  %v759 = vunpack.c.l.b16 %v116
  %v760 = vunpack.c.h.b16 %v116
  %v761 = vunpack.c.l.b16 %v117
  %v762 = vunpack.c.h.b16 %v117
  %v763 = vunpack.c.l.b16 %v118
  %v764 = vunpack.c.l.b16 %v119
  %v765 = vunpack.c.h.b16 %v119
  %v766 = vunpack.c.l.b16 %v120
  %v767 = vunpack.c.h.b16 %v120
  %v768 = vunpack.c.l.b16 %v121
  %v769 = vunpack.c.h.b16 %v121
  %v770 = vunpack.c.l.b16 %v122
  %v771 = vunpack.c.l.b16 %v123
  %v772 = vunpack.c.h.b16 %v123
  %v773 = vunpack.c.l.b16 %v124
  %v774 = vunpack.c.h.b16 %v124
  %v775 = vunpack.c.l.b16 %v125
  %v776 = vunpack.c.h.b16 %v125
  %v777 = vunpack.c.l.b16 %v126
  %v778 = vunpack.c.l.b16 %v127
  %v779 = vunpack.c.h.b16 %v127
  %v780 = vunpack.c.l.b16 %v128
  %v781 = vunpack.c.h.b16 %v128
  %v782 = vunpack.c.l.b16 %v129
  %v783 = vunpack.c.h.b16 %v129
  %v784 = vunpack.c.l.b16 %v130
  %v785 = vunpack.c.l.b16 %v131
  %v786 = vunpack.c.h.b16 %v131
  %v787 = vunpack.c.l.b16 %v132
  %v788 = vunpack.c.h.b16 %v132
  %v789 = vunpack.c.l.b16 %v133
  %v790 = vunpack.c.h.b16 %v133
  %v791 = vunpack.c.l.b16 %v134
  %v792 = vunpack.c.l.b16 %v135
  %v793 = vunpack.c.h.b16 %v135
  %v794 = vunpack.c.l.b16 %v136
  %v795 = vunpack.c.h.b16 %v136
  %v796 = vunpack.c.l.b16 %v137
  %v797 = vunpack.c.h.b16 %v137
  %v798 = vunpack.c.l.b16 %v138
  %v799 = vunpack.c.l.b16 %v139
  %v800 = vunpack.c.h.b16 %v139
  %v801 = vunpack.c.l.b16 %v140
  %v802 = vunpack.c.h.b16 %v140
  %v803 = vunpack.c.l.b16 %v141
  %v804 = vunpack.c.h.b16 %v141
  %v805 = vunpack.c.l.b16 %v142
  %v806 = vunpack.c.l.b16 %v143
  %v807 = vunpack.c.h.b16 %v143
  %v808 = vunpack.c.l.b16 %v144
  %v809 = vunpack.c.h.b16 %v144
  %v810 = vunpack.c.l.b16 %v145
  %v811 = vunpack.c.h.b16 %v145
  %v812 = vunpack.c.l.b16 %v146
  %v813 = vunpack.c.l.b16 %v147
  %v814 = vunpack.c.h.b16 %v147
  %v815 = vunpack.c.l.b16 %v148
  %v816 = vunpack.c.h.b16 %v148
  %v817 = vunpack.c.l.b16 %v149
  %v818 = vunpack.c.h.b16 %v149
  %v819 = vunpack.c.l.b16 %v150
  %v820 = vunpack.c.l.b16 %v151
  %v821 = vunpack.c.h.b16 %v151
  %v822 = vunpack.c.l.b16 %v152
  %v823 = vunpack.c.h.b16 %v152
  %v824 = vunpack.c.l.b16 %v153
  %v825 = vunpack.c.h.b16 %v153
  %v826 = vunpack.c.l.b16 %v154
  %v827 = vunpack.c.l.b16 %v155
  %v828 = vunpack.c.h.b16 %v155
  %v829 = vunpack.c.l.b16 %v156
  %v830 = vunpack.c.h.b16 %v156
  %v831 = vunpack.c.l.b16 %v157
  %v832 = vunpack.c.h.b16 %v157
  %v833 = vunpack.c.l.b16 %v158
  %v834 = vunpack.c.l.b16 %v159
  %v835 = vunpack.c.h.b16 %v159
  %v836 = vunpack.c.l.b16 %v160
  %v837 = vunpack.c.h.b16 %v160
  %v838 = vunpack.c.l.b16 %v161
  %v839 = vunpack.c.h.b16 %v161
  %v840 = vunpack.c.l.b16 %v162
  %v841 = vunpack.c.l.b16 %v163
  %v842 = vunpack.c.h.b16 %v163
  %v843 = vunpack.c.l.b16 %v164
  %v844 = vunpack.c.h.b16 %v164
  %v845 = vunpack.c.l.b16 %v165
  %v846 = vunpack.c.h.b16 %v165
  %v847 = vunpack.c.l.b16 %v166
  %v848 = vunpack.c.l.b16 %v167
  %v849 = vunpack.c.h.b16 %v167
  %v850 = vunpack.c.l.b16 %v168
  %v851 = vunpack.c.h.b16 %v168
  %v852 = vunpack.c.l.b16 %v169
  %v853 = vunpack.c.h.b16 %v169
  %v854 = vunpack.c.l.b16 %v170
  %v855 = vunpack.c.l.b16 %v171
  %v856 = vunpack.c.h.b16 %v171
  %v857 = vunpack.c.l.b16 %v172
  %v858 = vunpack.c.h.b16 %v172
  %v859 = vunpack.c.l.b16 %v173
  %v860 = vunpack.c.h.b16 %v173
  %v861 = vunpack.c.l.b16 %v174
  %v862 = vunpack.c.l.b16 %v175
  %v863 = vunpack.c.h.b16 %v175
  %v864 = vunpack.c.l.b16 %v176
  %v865 = vunpack.c.h.b16 %v176
  %v866 = vunpack.c.l.b16 %v177
  %v867 = vunpack.c.h.b16 %v177
  %v868 = vunpack.c.l.b16 %v178
  %v869 = vunpack.c.l.b16 %v179
  %v870 = vunpack.c.h.b16 %v179
  %v871 = vunpack.c.l.b16 %v180
  %v872 = vunpack.c.h.b16 %v180
  %v873 = vunpack.c.l.b16 %v181
  %v874 = vunpack.c.h.b16 %v181
  %v875 = vunpack.c.l.b16 %v182
  %v876 = vunpack.c.l.b16 %v183
  %v877 = vunpack.c.h.b16 %v183
  %v878 = vunpack.c.l.b16 %v184
  %v879 = vunpack.c.h.b16 %v184
  %v880 = vunpack.c.l.b16 %v185
  %v881 = vunpack.c.h.b16 %v185
  %v882 = vunpack.c.l.b16 %v186
  %v883 = vunpack.c.l.b16 %v187
  %v884 = vunpack.c.h.b16 %v187
  %v885 = vunpack.c.l.b16 %v188
  %v886 = vunpack.c.h.b16 %v188
  %v887 = vunpack.c.l.b16 %v189
  %v888 = vunpack.c.h.b16 %v189
  %v889 = vunpack.c.l.b16 %v190
  %v890 = vunpack.c.l.b16 %v191
  %v891 = vunpack.c.h.b16 %v191
  %v892 = vunpack.c.l.b16 %v192
  %v893 = vunpack.c.h.b16 %v192
  %v894 = vunpack.c.l.b16 %v193
  %v895 = vunpack.c.h.b16 %v193
  %v896 = vunpack.c.l.b16 %v194
  %v897 = vunpack.c.l.b16 %v195
  %v898 = vunpack.c.h.b16 %v195
  %v899 = vunpack.c.l.b16 %v196
  %v900 = vunpack.c.h.b16 %v196
  %v901 = vunpack.c.l.b16 %v197
  %v902 = vunpack.c.h.b16 %v197
  %v903 = vunpack.c.l.b16 %v198
  %v904 = vunpack.c.l.b16 %v199
  %v905 = vunpack.c.h.b16 %v199
  %v906 = vunpack.c.l.b16 %v200
  %v907 = vunpack.c.h.b16 %v200
  %v908 = vunpack.c.l.b16 %v201
  %v909 = vunpack.c.h.b16 %v201
  %v910 = vunpack.c.l.b16 %v202
  %v911 = vunpack.c.l.b16 %v203
  %v912 = vunpack.c.h.b16 %v203
  %v913 = vunpack.c.l.b16 %v204
  %v914 = vunpack.c.h.b16 %v204
  %v915 = vunpack.c.l.b16 %v205
  %v916 = vunpack.c.h.b16 %v205
  %v917 = vunpack.c.l.b16 %v206
  %v918 = vunpack.c.l.b16 %v207
  %v919 = vunpack.c.h.b16 %v207
  %v920 = vunpack.c.l.b16 %v208
  %v921 = vunpack.c.h.b16 %v208
  %v922 = vunpack.c.l.b16 %v209
  %v923 = vunpack.c.h.b16 %v209
  %v924 = vunpack.c.l.b16 %v210
  %v925 = vunpack.c.l.b16 %v211
  %v926 = vunpack.c.h.b16 %v211
  %v927 = vunpack.c.l.b16 %v212
  %v928 = vunpack.c.h.b16 %v212
  %v929 = vunpack.c.l.b16 %v213
  %v930 = vunpack.c.h.b16 %v213
  %v931 = vunpack.c.l.b16 %v214
  %v932 = vunpack.c.l.b16 %v215
  %v933 = vunpack.c.h.b16 %v215
  %v934 = vunpack.c.l.b16 %v216
  %v935 = vunpack.c.h.b16 %v216
  %v936 = vunpack.c.l.b16 %v217
  %v937 = vunpack.c.h.b16 %v217
  %v938 = vunpack.c.l.b16 %v218
  %v939 = vunpack.c.l.b16 %v219
  %v940 = vunpack.c.h.b16 %v219
  %v941 = vunpack.c.l.b16 %v220
  %v942 = vunpack.c.h.b16 %v220
  %v943 = vunpack.c.l.b16 %v221
  %v944 = vunpack.c.h.b16 %v221
  %v945 = vunpack.c.l.b16 %v222
  %v946 = vunpack.c.l.b16 %v223
  %v947 = vunpack.c.h.b16 %v223
  %v948 = vunpack.c.l.b16 %v224
  %v949 = vunpack.c.h.b16 %v224
  %v950 = vunpack.c.l.b16 %v225
  %v951 = vunpack.c.h.b16 %v225
  %v952 = vunpack.c.l.b16 %v226
  %v953 = vunpack.c.l.b16 %v227
  %v954 = vunpack.c.h.b16 %v227
  %v955 = vunpack.c.l.b16 %v228
  %v956 = vunpack.c.h.b16 %v228
  %v957 = vunpack.c.l.b16 %v229
  %v958 = vunpack.c.h.b16 %v229
  %v959 = vunpack.c.l.b16 %v230
  %v960 = vunpack.c.l.b16 %v231
  %v961 = vunpack.c.h.b16 %v231
  %v962 = vunpack.c.l.b16 %v232
  %v963 = vunpack.c.h.b16 %v232
  %v964 = vunpack.c.l.b16 %v233
  %v965 = vunpack.c.h.b16 %v233
  %v966 = vunpack.c.l.b16 %v234
  %v967 = vunpack.c.l.b16 %v235
  %v968 = vunpack.c.h.b16 %v235
  %v969 = vunpack.c.l.b16 %v236
  %v970 = vunpack.c.h.b16 %v236
  %v971 = vunpack.c.l.b16 %v237
  %v972 = vunpack.c.h.b16 %v237
  %v973 = vunpack.c.l.b16 %v238
  %v974 = vpack.c.b16 %v589, %v582
  %v975 = vpack.c.b16 %v590, %v583
  %v976 = vpack.c.b16 %v591, %v584
  %v977 = vpack.c.b16 %v592, %v585
  %v978 = vpack.c.b16 %v593, %v586
  %v979 = vpack.c.b16 %v594, %v587
  %v980 = vpack.c.b16 %v595, %v588
  %v981 = vpack.c.b16 %v603, %v596
  %v982 = vpack.c.b16 %v604, %v597
  %v983 = vpack.c.b16 %v605, %v598
  %v984 = vpack.c.b16 %v606, %v599
  %v985 = vpack.c.b16 %v607, %v600
  %v986 = vpack.c.b16 %v608, %v601
  %v987 = vpack.c.b16 %v609, %v602
  %v988 = vpack.c.b16 %v617, %v610
  %v989 = vpack.c.b16 %v618, %v611
  %v990 = vpack.c.b16 %v619, %v612
  %v991 = vpack.c.b16 %v620, %v613
  %v992 = vpack.c.b16 %v621, %v614
  %v993 = vpack.c.b16 %v622, %v615
  %v994 = vpack.c.b16 %v623, %v616
  %v995 = vpack.c.b16 %v631, %v624
  %v996 = vpack.c.b16 %v632, %v625
  %v997 = vpack.c.b16 %v633, %v626
  %v998 = vpack.c.b16 %v634, %v627
  %v999 = vpack.c.b16 %v635, %v628
  %v1000 = vpack.c.b16 %v636, %v629
  %v1001 = vpack.c.b16 %v637, %v630
  %v1002 = vpack.c.b16 %v645, %v638
  %v1003 = vpack.c.b16 %v646, %v639
  %v1004 = vpack.c.b16 %v647, %v640
  %v1005 = vpack.c.b16 %v648, %v641
  %v1006 = vpack.c.b16 %v649, %v642
  %v1007 = vpack.c.b16 %v650, %v643
  %v1008 = vpack.c.b16 %v651, %v644
  %v1009 = vpack.c.b16 %v659, %v652
  %v1010 = vpack.c.b16 %v660, %v653
  %v1011 = vpack.c.b16 %v661, %v654
  %v1012 = vpack.c.b16 %v662, %v655
  %v1013 = vpack.c.b16 %v663, %v656
  %v1014 = vpack.c.b16 %v664, %v657
  %v1015 = vpack.c.b16 %v665, %v658
  %v1016 = vpack.c.b16 %v673, %v666
  %v1017 = vpack.c.b16 %v674, %v667
  %v1018 = vpack.c.b16 %v675, %v668
  %v1019 = vpack.c.b16 %v676, %v669
  %v1020 = vpack.c.b16 %v677, %v670
  %v1021 = vpack.c.b16 %v678, %v671
  %v1022 = vpack.c.b16 %v679, %v672
  %v1023 = vpack.c.b16 %v687, %v680
  %v1024 = vpack.c.b16 %v688, %v681
  %v1025 = vpack.c.b16 %v689, %v682
  %v1026 = vpack.c.b16 %v690, %v683
  %v1027 = vpack.c.b16 %v691, %v684
  %v1028 = vpack.c.b16 %v692, %v685
  %v1029 = vpack.c.b16 %v693, %v686
  %v1030 = vpack.c.b16 %v701, %v694
  %v1031 = vpack.c.b16 %v702, %v695
  %v1032 = vpack.c.b16 %v703, %v696
  %v1033 = vpack.c.b16 %v704, %v697
  %v1034 = vpack.c.b16 %v705, %v698
  %v1035 = vpack.c.b16 %v706, %v699
  %v1036 = vpack.c.b16 %v707, %v700
  %v1037 = vpack.c.b16 %v715, %v708
  %v1038 = vpack.c.b16 %v716, %v709
  %v1039 = vpack.c.b16 %v717, %v710
  %v1040 = vpack.c.b16 %v718, %v711
  %v1041 = vpack.c.b16 %v719, %v712
  %v1042 = vpack.c.b16 %v720, %v713
  %v1043 = vpack.c.b16 %v721, %v714
  %v1044 = vpack.c.b16 %v729, %v722
  %v1045 = vpack.c.b16 %v730, %v723
  %v1046 = vpack.c.b16 %v731, %v724
  %v1047 = vpack.c.b16 %v732, %v725
  %v1048 = vpack.c.b16 %v733, %v726
  %v1049 = vpack.c.b16 %v734, %v727
  %v1050 = vpack.c.b16 %v735, %v728
  %v1051 = vpack.c.b16 %v743, %v736
  %v1052 = vpack.c.b16 %v744, %v737
  %v1053 = vpack.c.b16 %v745, %v738
  %v1054 = vpack.c.b16 %v746, %v739
  %v1055 = vpack.c.b16 %v747, %v740
  %v1056 = vpack.c.b16 %v748, %v741
  %v1057 = vpack.c.b16 %v749, %v742
  %v1058 = vpack.c.b16 %v757, %v750
  %v1059 = vpack.c.b16 %v758, %v751
  %v1060 = vpack.c.b16 %v759, %v752
  %v1061 = vpack.c.b16 %v760, %v753
  %v1062 = vpack.c.b16 %v761, %v754
  %v1063 = vpack.c.b16 %v762, %v755
  %v1064 = vpack.c.b16 %v763, %v756
  %v1065 = vpack.c.b16 %v771, %v764
  %v1066 = vpack.c.b16 %v772, %v765
  %v1067 = vpack.c.b16 %v773, %v766
  %v1068 = vpack.c.b16 %v774, %v767
  %v1069 = vpack.c.b16 %v775, %v768
  %v1070 = vpack.c.b16 %v776, %v769
  %v1071 = vpack.c.b16 %v777, %v770
  %v1072 = vpack.c.b16 %v785, %v778
  %v1073 = vpack.c.b16 %v786, %v779
  %v1074 = vpack.c.b16 %v787, %v780
  %v1075 = vpack.c.b16 %v788, %v781
  %v1076 = vpack.c.b16 %v789, %v782
  %v1077 = vpack.c.b16 %v790, %v783
  %v1078 = vpack.c.b16 %v791, %v784
  %v1079 = vpack.c.b16 %v799, %v792
  %v1080 = vpack.c.b16 %v800, %v793
  %v1081 = vpack.c.b16 %v801, %v794
  %v1082 = vpack.c.b16 %v802, %v795
  %v1083 = vpack.c.b16 %v803, %v796
  %v1084 = vpack.c.b16 %v804, %v797
  %v1085 = vpack.c.b16 %v805, %v798
  %v1086 = vpack.c.b16 %v813, %v806
  %v1087 = vpack.c.b16 %v814, %v807
  %v1088 = vpack.c.b16 %v815, %v808
  %v1089 = vpack.c.b16 %v816, %v809
  %v1090 = vpack.c.b16 %v817, %v810
  %v1091 = vpack.c.b16 %v818, %v811
  %v1092 = vpack.c.b16 %v819, %v812
  %v1093 = vpack.c.b16 %v827, %v820
  %v1094 = vpack.c.b16 %v828, %v821
  %v1095 = vpack.c.b16 %v829, %v822
  %v1096 = vpack.c.b16 %v830, %v823
  %v1097 = vpack.c.b16 %v831, %v824
  %v1098 = vpack.c.b16 %v832, %v825
  %v1099 = vpack.c.b16 %v833, %v826
  %v1100 = vpack.c.b16 %v841, %v834
  %v1101 = vpack.c.b16 %v842, %v835
  %v1102 = vpack.c.b16 %v843, %v836
  %v1103 = vpack.c.b16 %v844, %v837
  %v1104 = vpack.c.b16 %v845, %v838
  %v1105 = vpack.c.b16 %v846, %v839
  %v1106 = vpack.c.b16 %v847, %v840
  %v1107 = vpack.c.b16 %v855, %v848
  %v1108 = vpack.c.b16 %v856, %v849
  %v1109 = vpack.c.b16 %v857, %v850
  %v1110 = vpack.c.b16 %v858, %v851
  %v1111 = vpack.c.b16 %v859, %v852
  %v1112 = vpack.c.b16 %v860, %v853
  %v1113 = vpack.c.b16 %v861, %v854
  %v1114 = vpack.c.b16 %v869, %v862
  %v1115 = vpack.c.b16 %v870, %v863
  %v1116 = vpack.c.b16 %v871, %v864
  %v1117 = vpack.c.b16 %v872, %v865
  %v1118 = vpack.c.b16 %v873, %v866
  %v1119 = vpack.c.b16 %v874, %v867
  %v1120 = vpack.c.b16 %v875, %v868
  %v1121 = vpack.c.b16 %v883, %v876
  %v1122 = vpack.c.b16 %v884, %v877
  %v1123 = vpack.c.b16 %v885, %v878
  %v1124 = vpack.c.b16 %v886, %v879
  %v1125 = vpack.c.b16 %v887, %v880
  %v1126 = vpack.c.b16 %v888, %v881
  %v1127 = vpack.c.b16 %v889, %v882
  %v1128 = vpack.c.b16 %v897, %v890
  %v1129 = vpack.c.b16 %v898, %v891
  %v1130 = vpack.c.b16 %v899, %v892
  %v1131 = vpack.c.b16 %v900, %v893
  %v1132 = vpack.c.b16 %v901, %v894
  %v1133 = vpack.c.b16 %v902, %v895
  %v1134 = vpack.c.b16 %v903, %v896
  %v1135 = vpack.c.b16 %v911, %v904
  %v1136 = vpack.c.b16 %v912, %v905
  %v1137 = vpack.c.b16 %v913, %v906
  %v1138 = vpack.c.b16 %v914, %v907
  %v1139 = vpack.c.b16 %v915, %v908
  %v1140 = vpack.c.b16 %v916, %v909
  %v1141 = vpack.c.b16 %v917, %v910
  %v1142 = vpack.c.b16 %v925, %v918
  %v1143 = vpack.c.b16 %v926, %v919
  %v1144 = vpack.c.b16 %v927, %v920
  %v1145 = vpack.c.b16 %v928, %v921
  %v1146 = vpack.c.b16 %v929, %v922
  %v1147 = vpack.c.b16 %v930, %v923
  %v1148 = vpack.c.b16 %v931, %v924
  %v1149 = vpack.c.b16 %v939, %v932
  %v1150 = vpack.c.b16 %v940, %v933
  %v1151 = vpack.c.b16 %v941, %v934
  %v1152 = vpack.c.b16 %v942, %v935
  %v1153 = vpack.c.b16 %v943, %v936
  %v1154 = vpack.c.b16 %v944, %v937
  %v1155 = vpack.c.b16 %v945, %v938
  %v1156 = vpack.c.b16 %v953, %v946
  %v1157 = vpack.c.b16 %v954, %v947
  %v1158 = vpack.c.b16 %v955, %v948
  %v1159 = vpack.c.b16 %v956, %v949
  %v1160 = vpack.c.b16 %v957, %v950
  %v1161 = vpack.c.b16 %v958, %v951
  %v1162 = vpack.c.b16 %v959, %v952
  %v1163 = vpack.c.b16 %v967, %v960
  %v1164 = vpack.c.b16 %v968, %v961
  %v1165 = vpack.c.b16 %v969, %v962
  %v1166 = vpack.c.b16 %v970, %v963
  %v1167 = vpack.c.b16 %v971, %v964
  %v1168 = vpack.c.b16 %v972, %v965
  %v1169 = vpack.c.b16 %v973, %v966
  %v1478 = vunpack.c.l.b16 %v239
  %v1479 = vunpack.c.l.b16 %v240
  %v1480 = vunpack.c.l.b16 %v241
  %v1481 = vunpack.c.l.b16 %v242
  %v1482 = vunpack.c.l.b16 %v243
  %v1483 = vunpack.c.l.b16 %v244
  %v1484 = vunpack.c.l.b16 %v245
  %v1485 = vunpack.c.l.b16 %v246
  %v1486 = vunpack.c.l.b16 %v247
  %v1487 = vunpack.c.l.b16 %v248
  %v1488 = vunpack.c.l.b16 %v249
  %v1489 = vunpack.c.l.b16 %v250
  %v1490 = vunpack.c.l.b16 %v251
  %v1491 = vunpack.c.l.b16 %v252
  %v1492 = vunpack.c.l.b16 %v253
  %v1493 = vunpack.c.l.b16 %v254
  %v1494 = vunpack.c.l.b16 %v255
  %v1495 = vunpack.c.l.b16 %v256
  %v1496 = vunpack.c.l.b16 %v257
  %v1497 = vunpack.c.l.b16 %v258
  %v1498 = vunpack.c.l.b16 %v259
  %v1499 = vunpack.c.l.b16 %v260
  %v1500 = vunpack.c.l.b16 %v261
  %v1501 = vunpack.c.l.b16 %v262
  %v1502 = vunpack.c.l.b16 %v263
  %v1503 = vunpack.c.l.b16 %v264
  %v1504 = vunpack.c.l.b16 %v265
  %v1505 = vunpack.c.l.b16 %v266
  %v1506 = vunpack.c.l.b16 %v267
  %v1507 = vunpack.c.l.b16 %v268
  %v1508 = vunpack.c.l.b16 %v269
  %v1509 = vunpack.c.l.b16 %v270
  %v1510 = vunpack.c.l.b16 %v271
  %v1511 = vunpack.c.l.b16 %v272
  %v1512 = vunpack.c.l.b16 %v273
  %v1513 = vunpack.c.l.b16 %v274
  %v1514 = vunpack.c.l.b16 %v275
  %v1515 = vunpack.c.l.b16 %v276
  %v1516 = vunpack.c.l.b16 %v277
  %v1517 = vunpack.c.l.b16 %v278
  %v1518 = vunpack.c.l.b16 %v279
  %v1519 = vunpack.c.l.b16 %v280
  %v1520 = vunpack.c.l.b16 %v281
  %v1521 = vunpack.c.l.b16 %v282
  %v1522 = vunpack.c.l.b16 %v283
  %v1523 = vunpack.c.l.b16 %v284
  %v1524 = vunpack.c.l.b16 %v285
  %v1525 = vunpack.c.l.b16 %v286
  %v1526 = vunpack.c.l.b16 %v287
  %v1527 = vunpack.c.l.b16 %v288
  %v1528 = vunpack.c.l.b16 %v289
  %v1529 = vunpack.c.l.b16 %v290
  %v1530 = vunpack.c.l.b16 %v291
  %v1531 = vunpack.c.l.b16 %v292
  %v1532 = vunpack.c.l.b16 %v293
  %v1533 = vunpack.c.l.b16 %v294
  %v1534 = vunpack.c.l.b16 %v295
  %v1535 = vunpack.c.l.b16 %v296
  %v1536 = vunpack.c.l.b16 %v297
  %v1537 = vunpack.c.l.b16 %v298
  %v1538 = vunpack.c.l.b16 %v299
  %v1539 = vunpack.c.l.b16 %v300
  %v1540 = vunpack.c.l.b16 %v301
  %v1541 = vunpack.c.l.b16 %v302
  %v1542 = vunpack.c.l.b16 %v303
  %v1543 = vunpack.c.l.b16 %v304
  %v1544 = vunpack.c.l.b16 %v305
  %v1545 = vunpack.c.l.b16 %v306
  %v1546 = vunpack.c.l.b16 %v307
  %v1547 = vunpack.c.l.b16 %v308
  %v1548 = vunpack.c.l.b16 %v309
  %v1549 = vunpack.c.l.b16 %v310
  %v1550 = vunpack.c.l.b16 %v311
  %v1551 = vunpack.c.l.b16 %v312
  %v1552 = vunpack.c.l.b16 %v313
  %v1553 = vunpack.c.l.b16 %v314
  %v1554 = vunpack.c.l.b16 %v315
  %v1555 = vunpack.c.l.b16 %v316
  %v1556 = vunpack.c.l.b16 %v317
  %v1557 = vunpack.c.l.b16 %v318
  %v1558 = vunpack.c.l.b16 %v319
  %v1559 = vunpack.c.l.b16 %v320
  %v1560 = vunpack.c.l.b16 %v321
  %v1561 = vunpack.c.l.b16 %v322
  %v1562 = vunpack.c.l.b16 %v323
  %v1563 = vunpack.c.l.b16 %v324
  %v1564 = vunpack.c.l.b16 %v325
  %v1565 = vunpack.c.l.b16 %v326
  %v1566 = vunpack.c.l.b16 %v327
  %v1567 = vunpack.c.l.b16 %v328
  %v1568 = vunpack.c.l.b16 %v329
  %v1569 = vunpack.c.l.b16 %v330
  %v1570 = vunpack.c.l.b16 %v331
  %v1571 = vunpack.c.l.b16 %v332
  %v1572 = vunpack.c.l.b16 %v333
  %v1573 = vunpack.c.l.b16 %v334
  %v1574 = vunpack.c.l.b16 %v335
  %v1575 = vunpack.c.l.b16 %v336
  %v1576 = vunpack.c.l.b16 %v337
  %v1577 = vunpack.c.l.b16 %v338
  %v1578 = vunpack.c.l.b16 %v339
  %v1579 = vunpack.c.l.b16 %v340
  %v1580 = vunpack.c.l.b16 %v341
  %v1581 = vunpack.c.l.b16 %v342
  %v1582 = vunpack.c.l.b16 %v343
  %v1583 = vunpack.c.l.b16 %v344
  %v1584 = vunpack.c.l.b16 %v345
  %v1585 = vunpack.c.l.b16 %v346
  %v1586 = vunpack.c.l.b16 %v347
  %v1587 = vunpack.c.l.b16 %v348
  %v1588 = vunpack.c.l.b16 %v349
  %v1589 = vunpack.c.l.b16 %v350
  %v1590 = vpack.c.b16 %v1479, %v1478
  %v1591 = vpack.c.b16 %v1481, %v1480
  %v1592 = vpack.c.b16 %v1483, %v1482
  %v1593 = vpack.c.b16 %v1485, %v1484
  %v1594 = vpack.c.b16 %v1487, %v1486
  %v1595 = vpack.c.b16 %v1489, %v1488
  %v1596 = vpack.c.b16 %v1491, %v1490
  %v1597 = vpack.c.b16 %v1493, %v1492
  %v1598 = vpack.c.b16 %v1495, %v1494
  %v1599 = vpack.c.b16 %v1497, %v1496
  %v1600 = vpack.c.b16 %v1499, %v1498
  %v1601 = vpack.c.b16 %v1501, %v1500
  %v1602 = vpack.c.b16 %v1503, %v1502
  %v1603 = vpack.c.b16 %v1505, %v1504
  %v1604 = vpack.c.b16 %v1507, %v1506
  %v1605 = vpack.c.b16 %v1509, %v1508
  %v1606 = vpack.c.b16 %v1511, %v1510
  %v1607 = vpack.c.b16 %v1513, %v1512
  %v1608 = vpack.c.b16 %v1515, %v1514
  %v1609 = vpack.c.b16 %v1517, %v1516
  %v1610 = vpack.c.b16 %v1519, %v1518
  %v1611 = vpack.c.b16 %v1521, %v1520
  %v1612 = vpack.c.b16 %v1523, %v1522
  %v1613 = vpack.c.b16 %v1525, %v1524
  %v1614 = vpack.c.b16 %v1527, %v1526
  %v1615 = vpack.c.b16 %v1529, %v1528
  %v1616 = vpack.c.b16 %v1531, %v1530
  %v1617 = vpack.c.b16 %v1533, %v1532
  %v1618 = vpack.c.b16 %v1535, %v1534
  %v1619 = vpack.c.b16 %v1537, %v1536
  %v1620 = vpack.c.b16 %v1539, %v1538
  %v1621 = vpack.c.b16 %v1541, %v1540
  %v1622 = vpack.c.b16 %v1543, %v1542
  %v1623 = vpack.c.b16 %v1545, %v1544
  %v1624 = vpack.c.b16 %v1547, %v1546
  %v1625 = vpack.c.b16 %v1549, %v1548
  %v1626 = vpack.c.b16 %v1551, %v1550
  %v1627 = vpack.c.b16 %v1553, %v1552
  %v1628 = vpack.c.b16 %v1555, %v1554
  %v1629 = vpack.c.b16 %v1557, %v1556
  %v1630 = vpack.c.b16 %v1559, %v1558
  %v1631 = vpack.c.b16 %v1561, %v1560
  %v1632 = vpack.c.b16 %v1563, %v1562
  %v1633 = vpack.c.b16 %v1565, %v1564
  %v1634 = vpack.c.b16 %v1567, %v1566
  %v1635 = vpack.c.b16 %v1569, %v1568
  %v1636 = vpack.c.b16 %v1571, %v1570
  %v1637 = vpack.c.b16 %v1573, %v1572
  %v1638 = vpack.c.b16 %v1575, %v1574
  %v1639 = vpack.c.b16 %v1577, %v1576
  %v1640 = vpack.c.b16 %v1579, %v1578
  %v1641 = vpack.c.b16 %v1581, %v1580
  %v1642 = vpack.c.b16 %v1583, %v1582
  %v1643 = vpack.c.b16 %v1585, %v1584
  %v1644 = vpack.c.b16 %v1587, %v1586
  %v1645 = vpack.c.b16 %v1589, %v1588
  %1702 = vmatprep.subr.bf16.mxu0 0
  %1703 = vmatpush1.bf16.msra.mxu0 %v1590
  %1704 = vmatprep.subr.bf16.mxu0 0
  %1705 = vmatpush1.bf16.msra.mxu0 %v1591
  %1706 = vmatprep.subr.bf16.mxu0 0
  %1707 = vmatpush1.bf16.msra.mxu0 %v1592
  %1708 = vmatprep.subr.bf16.mxu0 0
  %1709 = vmatpush1.bf16.msra.mxu0 %v1593
  %1710 = vmatprep.subr.bf16.mxu0 0
  %1711 = vmatpush1.bf16.msra.mxu0 %v1594
  %1712 = vmatprep.subr.bf16.mxu0 0
  %1713 = vmatpush1.bf16.msra.mxu0 %v1595
  %1714 = vmatprep.subr.bf16.mxu0 0
  %1715 = vmatpush1.bf16.msra.mxu0 %v1596
  %1716 = vmatprep.subr.bf16.mxu0 0
  %1717 = vmatpush1.bf16.msra.mxu0 %v1597
  %1718 = vmatprep.subr.bf16.mxu0 0
  %1719 = vmatpush1.bf16.msra.mxu0 %v1598
  %1720 = vmatprep.subr.bf16.mxu0 0
  %1721 = vmatpush1.bf16.msra.mxu0 %v1599
  %1722 = vmatprep.subr.bf16.mxu0 0
  %1723 = vmatpush1.bf16.msra.mxu0 %v1600
  %1724 = vmatprep.subr.bf16.mxu0 0
  %1725 = vmatpush1.bf16.msra.mxu0 %v1601
  %1726 = vmatprep.subr.bf16.mxu0 0
  %1727 = vmatpush1.bf16.msra.mxu0 %v1602
  %1728 = vmatprep.subr.bf16.mxu0 0
  %1729 = vmatpush1.bf16.msra.mxu0 %v1603
  %1730 = vmatprep.subr.bf16.mxu0 0
  %1731 = vmatpush1.bf16.msra.mxu0 %v1604
  %1732 = vmatprep.subr.bf16.mxu0 0
  %1733 = vmatpush1.bf16.msra.mxu0 %v1605
  %1734 = vmatprep.mubr.bf16.mxu0 %v975
  %1735 = vmatmul.mubr.bf16.gmra.mrb[0].mxu0 %v974
  %v1736 = vpop.f32.mrb[0].mxu0
  %v1737 = vadd.f32 %v356, %v1736
  %v1738 = vpop.f32.mrb[0].mxu0
  %v1739 = vpop.f32.mrb[0].mxu0
  %v1740 = vadd.f32 %v356, %v1739
  %v1741 = vpop.f32.mrb[0].mxu0
  %1742 = vmatprep.mubr.bf16.mxu0 %v982
  %1743 = vmatmul.mubr.bf16.gmra.mrb[0].mxu0 %v981
  %v1744 = vpop.f32.mrb[0].mxu0
  %v1745 = vadd.f32 %v356, %v1744
  %v1746 = vpop.f32.mrb[0].mxu0
  %v1747 = vpop.f32.mrb[0].mxu0
  %v1748 = vadd.f32 %v356, %v1747
  %v1749 = vpop.f32.mrb[0].mxu0
  %1750 = vmatprep.mubr.bf16.mxu0 %v989
  %1751 = vmatmul.mubr.bf16.gmra.mrb[0].mxu0 %v988
  %v1752 = vpop.f32.mrb[0].mxu0
  %v1753 = vadd.f32 %v356, %v1752
  %v1754 = vpop.f32.mrb[0].mxu0
  %v1755 = vpop.f32.mrb[0].mxu0
  %v1756 = vadd.f32 %v356, %v1755
  %v1757 = vpop.f32.mrb[0].mxu0
  %1758 = vmatprep.mubr.bf16.mxu0 %v996
  %1759 = vmatmul.mubr.bf16.gmra.mrb[0].mxu0 %v995
  %v1760 = vpop.f32.mrb[0].mxu0
  %v1761 = vadd.f32 %v356, %v1760
  %v1762 = vpop.f32.mrb[0].mxu0
  %v1763 = vpop.f32.mrb[0].mxu0
  %v1764 = vadd.f32 %v356, %v1763
  %v1765 = vpop.f32.mrb[0].mxu0
  %1766 = vmatprep.mubr.bf16.mxu0 %v1003
  %1767 = vmatmul.mubr.bf16.gmra.mrb[0].mxu0 %v1002
  %v1768 = vpop.f32.mrb[0].mxu0
  %v1769 = vadd.f32 %v356, %v1768
  %v1770 = vpop.f32.mrb[0].mxu0
  %v1771 = vpop.f32.mrb[0].mxu0
  %v1772 = vadd.f32 %v356, %v1771
  %v1773 = vpop.f32.mrb[0].mxu0
  %1774 = vmatprep.mubr.bf16.mxu0 %v1010
  %1775 = vmatmul.mubr.bf16.gmra.mrb[0].mxu0 %v1009
  %v1776 = vpop.f32.mrb[0].mxu0
  %v1777 = vadd.f32 %v356, %v1776
  %v1778 = vpop.f32.mrb[0].mxu0
  %v1779 = vpop.f32.mrb[0].mxu0
  %v1780 = vadd.f32 %v356, %v1779
  %v1781 = vpop.f32.mrb[0].mxu0
  %1782 = vmatprep.mubr.bf16.mxu0 %v1017
  %1783 = vmatmul.mubr.bf16.gmra.mrb[0].mxu0 %v1016
  %v1784 = vpop.f32.mrb[0].mxu0
  %v1785 = vadd.f32 %v356, %v1784
  %v1786 = vpop.f32.mrb[0].mxu0
  %v1787 = vpop.f32.mrb[0].mxu0
  %v1788 = vadd.f32 %v356, %v1787
  %v1789 = vpop.f32.mrb[0].mxu0
  %1790 = vmatprep.mubr.bf16.mxu0 %v1024
  %1791 = vmatmul.mubr.bf16.gmra.mrb[0].mxu0 %v1023
  %v1792 = vpop.f32.mrb[0].mxu0
  %v1793 = vadd.f32 %v356, %v1792
  %v1794 = vpop.f32.mrb[0].mxu0
  %v1795 = vpop.f32.mrb[0].mxu0
  %v1796 = vadd.f32 %v356, %v1795
  %v1797 = vpop.f32.mrb[0].mxu0
  %1798 = vmatprep.mubr.bf16.mxu0 %v1031
  %1799 = vmatmul.mubr.bf16.gmra.mrb[0].mxu0 %v1030
  %v1800 = vpop.f32.mrb[0].mxu0
  %v1801 = vadd.f32 %v356, %v1800
  %v1802 = vpop.f32.mrb[0].mxu0
  %v1803 = vpop.f32.mrb[0].mxu0
  %v1804 = vadd.f32 %v356, %v1803
  %v1805 = vpop.f32.mrb[0].mxu0
  %1806 = vmatprep.mubr.bf16.mxu0 %v1038
  %1807 = vmatmul.mubr.bf16.gmra.mrb[0].mxu0 %v1037
  %v1808 = vpop.f32.mrb[0].mxu0
  %v1809 = vadd.f32 %v356, %v1808
  %v1810 = vpop.f32.mrb[0].mxu0
  %v1811 = vpop.f32.mrb[0].mxu0
  %v1812 = vadd.f32 %v356, %v1811
  %v1813 = vpop.f32.mrb[0].mxu0
  %1814 = vmatprep.mubr.bf16.mxu0 %v1045
  %1815 = vmatmul.mubr.bf16.gmra.mrb[0].mxu0 %v1044
  %v1816 = vpop.f32.mrb[0].mxu0
  %v1817 = vadd.f32 %v356, %v1816
  %v1818 = vpop.f32.mrb[0].mxu0
  %v1819 = vpop.f32.mrb[0].mxu0
  %v1820 = vadd.f32 %v356, %v1819
  %v1821 = vpop.f32.mrb[0].mxu0
  %1822 = vmatprep.mubr.bf16.mxu0 %v1052
  %1823 = vmatmul.mubr.bf16.gmra.mrb[0].mxu0 %v1051
  %v1824 = vpop.f32.mrb[0].mxu0
  %v1825 = vadd.f32 %v356, %v1824
  %v1826 = vpop.f32.mrb[0].mxu0
  %v1827 = vpop.f32.mrb[0].mxu0
  %v1828 = vadd.f32 %v356, %v1827
  %v1829 = vpop.f32.mrb[0].mxu0
  %1830 = vmatprep.mubr.bf16.mxu0 %v1059
  %1831 = vmatmul.mubr.bf16.gmra.mrb[0].mxu0 %v1058
  %v1832 = vpop.f32.mrb[0].mxu0
  %v1833 = vadd.f32 %v356, %v1832
  %v1834 = vpop.f32.mrb[0].mxu0
  %v1835 = vpop.f32.mrb[0].mxu0
  %v1836 = vadd.f32 %v356, %v1835
  %v1837 = vpop.f32.mrb[0].mxu0
  %1838 = vmatprep.mubr.bf16.mxu0 %v1066
  %1839 = vmatmul.mubr.bf16.gmra.mrb[0].mxu0 %v1065
  %v1840 = vpop.f32.mrb[0].mxu0
  %v1841 = vadd.f32 %v356, %v1840
  %v1842 = vpop.f32.mrb[0].mxu0
  %v1843 = vpop.f32.mrb[0].mxu0
  %v1844 = vadd.f32 %v356, %v1843
  %v1845 = vpop.f32.mrb[0].mxu0
  %1846 = vmatprep.mubr.bf16.mxu0 %v1073
  %1847 = vmatmul.mubr.bf16.gmra.mrb[0].mxu0 %v1072
  %v1848 = vpop.f32.mrb[0].mxu0
  %v1849 = vadd.f32 %v356, %v1848
  %v1850 = vpop.f32.mrb[0].mxu0
  %v1851 = vpop.f32.mrb[0].mxu0
  %v1852 = vadd.f32 %v356, %v1851
  %v1853 = vpop.f32.mrb[0].mxu0
  %1854 = vmatprep.mubr.bf16.mxu0 %v1080
  %1855 = vmatmul.mubr.bf16.gmra.mrb[0].mxu0 %v1079
  %v1856 = vpop.f32.mrb[0].mxu0
  %v1857 = vadd.f32 %v356, %v1856
  %v1858 = vpop.f32.mrb[0].mxu0
  %v1859 = vpop.f32.mrb[0].mxu0
  %v1860 = vadd.f32 %v356, %v1859
  %v1861 = vpop.f32.mrb[0].mxu0
  %1862 = vmatprep.mubr.bf16.mxu0 %v1087
  %1863 = vmatmul.mubr.bf16.gmra.mrb[0].mxu0 %v1086
  %v1864 = vpop.f32.mrb[0].mxu0
  %v1865 = vadd.f32 %v356, %v1864
  %v1866 = vpop.f32.mrb[0].mxu0
  %v1867 = vpop.f32.mrb[0].mxu0
  %v1868 = vadd.f32 %v356, %v1867
  %v1869 = vpop.f32.mrb[0].mxu0
  %1870 = vmatprep.mubr.bf16.mxu0 %v1094
  %1871 = vmatmul.mubr.bf16.gmra.mrb[0].mxu0 %v1093
  %v1872 = vpop.f32.mrb[0].mxu0
  %v1873 = vadd.f32 %v356, %v1872
  %v1874 = vpop.f32.mrb[0].mxu0
  %v1875 = vpop.f32.mrb[0].mxu0
  %v1876 = vadd.f32 %v356, %v1875
  %v1877 = vpop.f32.mrb[0].mxu0
  %1878 = vmatprep.mubr.bf16.mxu0 %v1101
  %1879 = vmatmul.mubr.bf16.gmra.mrb[0].mxu0 %v1100
  %v1880 = vpop.f32.mrb[0].mxu0
  %v1881 = vadd.f32 %v356, %v1880
  %v1882 = vpop.f32.mrb[0].mxu0
  %v1883 = vpop.f32.mrb[0].mxu0
  %v1884 = vadd.f32 %v356, %v1883
  %v1885 = vpop.f32.mrb[0].mxu0
  %1886 = vmatprep.mubr.bf16.mxu0 %v1108
  %1887 = vmatmul.mubr.bf16.gmra.mrb[0].mxu0 %v1107
  %v1888 = vpop.f32.mrb[0].mxu0
  %v1889 = vadd.f32 %v356, %v1888
  %v1890 = vpop.f32.mrb[0].mxu0
  %v1891 = vpop.f32.mrb[0].mxu0
  %v1892 = vadd.f32 %v356, %v1891
  %v1893 = vpop.f32.mrb[0].mxu0
  %1894 = vmatprep.mubr.bf16.mxu0 %v1115
  %1895 = vmatmul.mubr.bf16.gmra.mrb[0].mxu0 %v1114
  %v1896 = vpop.f32.mrb[0].mxu0
  %v1897 = vadd.f32 %v356, %v1896
  %v1898 = vpop.f32.mrb[0].mxu0
  %v1899 = vpop.f32.mrb[0].mxu0
  %v1900 = vadd.f32 %v356, %v1899
  %v1901 = vpop.f32.mrb[0].mxu0
  %1902 = vmatprep.mubr.bf16.mxu0 %v1122
  %1903 = vmatmul.mubr.bf16.gmra.mrb[0].mxu0 %v1121
  %v1904 = vpop.f32.mrb[0].mxu0
  %v1905 = vadd.f32 %v356, %v1904
  %v1906 = vpop.f32.mrb[0].mxu0
  %v1907 = vpop.f32.mrb[0].mxu0
  %v1908 = vadd.f32 %v356, %v1907
  %v1909 = vpop.f32.mrb[0].mxu0
  %1910 = vmatprep.mubr.bf16.mxu0 %v1129
  %1911 = vmatmul.mubr.bf16.gmra.mrb[0].mxu0 %v1128
  %v1912 = vpop.f32.mrb[0].mxu0
  %v1913 = vadd.f32 %v356, %v1912
  %v1914 = vpop.f32.mrb[0].mxu0
  %v1915 = vpop.f32.mrb[0].mxu0
  %v1916 = vadd.f32 %v356, %v1915
  %v1917 = vpop.f32.mrb[0].mxu0
  %1918 = vmatprep.mubr.bf16.mxu0 %v1136
  %1919 = vmatmul.mubr.bf16.gmra.mrb[0].mxu0 %v1135
  %v1920 = vpop.f32.mrb[0].mxu0
  %v1921 = vadd.f32 %v356, %v1920
  %v1922 = vpop.f32.mrb[0].mxu0
  %v1923 = vpop.f32.mrb[0].mxu0
  %v1924 = vadd.f32 %v356, %v1923
  %v1925 = vpop.f32.mrb[0].mxu0
  %1926 = vmatprep.mubr.bf16.mxu0 %v1143
  %1927 = vmatmul.mubr.bf16.gmra.mrb[0].mxu0 %v1142
  %v1928 = vpop.f32.mrb[0].mxu0
  %v1929 = vadd.f32 %v356, %v1928
  %v1930 = vpop.f32.mrb[0].mxu0
  %v1931 = vpop.f32.mrb[0].mxu0
  %v1932 = vadd.f32 %v356, %v1931
  %v1933 = vpop.f32.mrb[0].mxu0
  %1934 = vmatprep.mubr.bf16.mxu0 %v1150
  %1935 = vmatmul.mubr.bf16.gmra.mrb[0].mxu0 %v1149
  %v1936 = vpop.f32.mrb[0].mxu0
  %v1937 = vadd.f32 %v356, %v1936
  %v1938 = vpop.f32.mrb[0].mxu0
  %v1939 = vpop.f32.mrb[0].mxu0
  %v1940 = vadd.f32 %v356, %v1939
  %v1941 = vpop.f32.mrb[0].mxu0
  %1942 = vmatprep.mubr.bf16.mxu0 %v1157
  %1943 = vmatmul.mubr.bf16.gmra.mrb[0].mxu0 %v1156
  %v1944 = vpop.f32.mrb[0].mxu0
  %v1945 = vadd.f32 %v356, %v1944
  %v1946 = vpop.f32.mrb[0].mxu0
  %v1947 = vpop.f32.mrb[0].mxu0
  %v1948 = vadd.f32 %v356, %v1947
  %v1949 = vpop.f32.mrb[0].mxu0
  %1950 = vmatprep.mubr.bf16.mxu0 %v1164
  %1951 = vmatmul.mubr.bf16.gmra.mrb[0].mxu0 %v1163
  %v1952 = vpop.f32.mrb[0].mxu0
  %v1953 = vadd.f32 %v356, %v1952
  %v1954 = vpop.f32.mrb[0].mxu0
  %v1955 = vpop.f32.mrb[0].mxu0
  %v1956 = vadd.f32 %v356, %v1955
  %v1957 = vpop.f32.mrb[0].mxu0
  %1958 = vdwg.mxu0
  %1959 = vmatprep.subr.bf16.mxu0 0
  %1960 = vmatpush1.bf16.msra.mxu0 %v1606
  %1961 = vmatprep.subr.bf16.mxu0 0
  %1962 = vmatpush1.bf16.msra.mxu0 %v1607
  %1963 = vmatprep.subr.bf16.mxu0 0
  %1964 = vmatpush1.bf16.msra.mxu0 %v1608
  %1965 = vmatprep.subr.bf16.mxu0 0
  %1966 = vmatpush1.bf16.msra.mxu0 %v1609
  %1967 = vmatprep.subr.bf16.mxu0 0
  %1968 = vmatpush1.bf16.msra.mxu0 %v1610
  %1969 = vmatprep.subr.bf16.mxu0 0
  %1970 = vmatpush1.bf16.msra.mxu0 %v1611
  %1971 = vmatprep.subr.bf16.mxu0 0
  %1972 = vmatpush1.bf16.msra.mxu0 %v1612
  %1973 = vmatprep.subr.bf16.mxu0 0
  %1974 = vmatpush1.bf16.msra.mxu0 %v1613
  %1975 = vmatprep.subr.bf16.mxu0 0
  %1976 = vmatpush1.bf16.msra.mxu0 %v1614
  %1977 = vmatprep.subr.bf16.mxu0 0
  %1978 = vmatpush1.bf16.msra.mxu0 %v1615
  %1979 = vmatprep.subr.bf16.mxu0 0
  %1980 = vmatpush1.bf16.msra.mxu0 %v1616
  %1981 = vmatprep.subr.bf16.mxu0 0
  %1982 = vmatpush1.bf16.msra.mxu0 %v1617
  %1983 = vmatprep.subr.bf16.mxu0 0
  %1984 = vmatpush1.bf16.msra.mxu0 %v1618
  %1985 = vmatprep.subr.bf16.mxu0 0
  %1986 = vmatpush1.bf16.msra.mxu0 %v1619
  %1987 = vmatprep.subr.bf16.mxu0 0
  %1988 = vmatpush1.bf16.msra.mxu0 %v1620
  %1989 = vmatprep.subr.bf16.mxu0 0
  %1990 = vmatpush1.bf16.msra.mxu0 %v1621
  %1991 = vmatprep.mubr.bf16.mxu0 %v977
  %1992 = vmatmul.mubr.bf16.gmra.mrb[0].mxu0 %v976
  %v1993 = vpop.f32.mrb[0].mxu0
  %v1994 = vadd.f32 %v1737, %v1993
  %v1995 = vpop.f32.mrb[0].mxu0
  %v1996 = vpop.f32.mrb[0].mxu0
  %v1997 = vadd.f32 %v1740, %v1996
  %v1998 = vpop.f32.mrb[0].mxu0
  %1999 = vmatprep.mubr.bf16.mxu0 %v984
  %2000 = vmatmul.mubr.bf16.gmra.mrb[0].mxu0 %v983
  %v2001 = vpop.f32.mrb[0].mxu0
  %v2002 = vadd.f32 %v1745, %v2001
  %v2003 = vpop.f32.mrb[0].mxu0
  %v2004 = vpop.f32.mrb[0].mxu0
  %v2005 = vadd.f32 %v1748, %v2004
  %v2006 = vpop.f32.mrb[0].mxu0
  %2007 = vmatprep.mubr.bf16.mxu0 %v991
  %2008 = vmatmul.mubr.bf16.gmra.mrb[0].mxu0 %v990
  %v2009 = vpop.f32.mrb[0].mxu0
  %v2010 = vadd.f32 %v1753, %v2009
  %v2011 = vpop.f32.mrb[0].mxu0
  %v2012 = vpop.f32.mrb[0].mxu0
  %v2013 = vadd.f32 %v1756, %v2012
  %v2014 = vpop.f32.mrb[0].mxu0
  %2015 = vmatprep.mubr.bf16.mxu0 %v998
  %2016 = vmatmul.mubr.bf16.gmra.mrb[0].mxu0 %v997
  %v2017 = vpop.f32.mrb[0].mxu0
  %v2018 = vadd.f32 %v1761, %v2017
  %v2019 = vpop.f32.mrb[0].mxu0
  %v2020 = vpop.f32.mrb[0].mxu0
  %v2021 = vadd.f32 %v1764, %v2020
  %v2022 = vpop.f32.mrb[0].mxu0
  %2023 = vmatprep.mubr.bf16.mxu0 %v1005
  %2024 = vmatmul.mubr.bf16.gmra.mrb[0].mxu0 %v1004
  %v2025 = vpop.f32.mrb[0].mxu0
  %v2026 = vadd.f32 %v1769, %v2025
  %v2027 = vpop.f32.mrb[0].mxu0
  %v2028 = vpop.f32.mrb[0].mxu0
  %v2029 = vadd.f32 %v1772, %v2028
  %v2030 = vpop.f32.mrb[0].mxu0
  %2031 = vmatprep.mubr.bf16.mxu0 %v1012
  %2032 = vmatmul.mubr.bf16.gmra.mrb[0].mxu0 %v1011
  %v2033 = vpop.f32.mrb[0].mxu0
  %v2034 = vadd.f32 %v1777, %v2033
  %v2035 = vpop.f32.mrb[0].mxu0
  %v2036 = vpop.f32.mrb[0].mxu0
  %v2037 = vadd.f32 %v1780, %v2036
  %v2038 = vpop.f32.mrb[0].mxu0
  %2039 = vmatprep.mubr.bf16.mxu0 %v1019
  %2040 = vmatmul.mubr.bf16.gmra.mrb[0].mxu0 %v1018
  %v2041 = vpop.f32.mrb[0].mxu0
  %v2042 = vadd.f32 %v1785, %v2041
  %v2043 = vpop.f32.mrb[0].mxu0
  %v2044 = vpop.f32.mrb[0].mxu0
  %v2045 = vadd.f32 %v1788, %v2044
  %v2046 = vpop.f32.mrb[0].mxu0
  %2047 = vmatprep.mubr.bf16.mxu0 %v1026
  %2048 = vmatmul.mubr.bf16.gmra.mrb[0].mxu0 %v1025
  %v2049 = vpop.f32.mrb[0].mxu0
  %v2050 = vadd.f32 %v1793, %v2049
  %v2051 = vpop.f32.mrb[0].mxu0
  %v2052 = vpop.f32.mrb[0].mxu0
  %v2053 = vadd.f32 %v1796, %v2052
  %v2054 = vpop.f32.mrb[0].mxu0
  %2055 = vmatprep.mubr.bf16.mxu0 %v1033
  %2056 = vmatmul.mubr.bf16.gmra.mrb[0].mxu0 %v1032
  %v2057 = vpop.f32.mrb[0].mxu0
  %v2058 = vadd.f32 %v1801, %v2057
  %v2059 = vpop.f32.mrb[0].mxu0
  %v2060 = vpop.f32.mrb[0].mxu0
  %v2061 = vadd.f32 %v1804, %v2060
  %v2062 = vpop.f32.mrb[0].mxu0
  %2063 = vmatprep.mubr.bf16.mxu0 %v1040
  %2064 = vmatmul.mubr.bf16.gmra.mrb[0].mxu0 %v1039
  %v2065 = vpop.f32.mrb[0].mxu0
  %v2066 = vadd.f32 %v1809, %v2065
  %v2067 = vpop.f32.mrb[0].mxu0
  %v2068 = vpop.f32.mrb[0].mxu0
  %v2069 = vadd.f32 %v1812, %v2068
  %v2070 = vpop.f32.mrb[0].mxu0
  %2071 = vmatprep.mubr.bf16.mxu0 %v1047
  %2072 = vmatmul.mubr.bf16.gmra.mrb[0].mxu0 %v1046
  %v2073 = vpop.f32.mrb[0].mxu0
  %v2074 = vadd.f32 %v1817, %v2073
  %v2075 = vpop.f32.mrb[0].mxu0
  %v2076 = vpop.f32.mrb[0].mxu0
  %v2077 = vadd.f32 %v1820, %v2076
  %v2078 = vpop.f32.mrb[0].mxu0
  %2079 = vmatprep.mubr.bf16.mxu0 %v1054
  %2080 = vmatmul.mubr.bf16.gmra.mrb[0].mxu0 %v1053
  %v2081 = vpop.f32.mrb[0].mxu0
  %v2082 = vadd.f32 %v1825, %v2081
  %v2083 = vpop.f32.mrb[0].mxu0
  %v2084 = vpop.f32.mrb[0].mxu0
  %v2085 = vadd.f32 %v1828, %v2084
  %v2086 = vpop.f32.mrb[0].mxu0
  %2087 = vmatprep.mubr.bf16.mxu0 %v1061
  %2088 = vmatmul.mubr.bf16.gmra.mrb[0].mxu0 %v1060
  %v2089 = vpop.f32.mrb[0].mxu0
  %v2090 = vadd.f32 %v1833, %v2089
  %v2091 = vpop.f32.mrb[0].mxu0
  %v2092 = vpop.f32.mrb[0].mxu0
  %v2093 = vadd.f32 %v1836, %v2092
  %v2094 = vpop.f32.mrb[0].mxu0
  %2095 = vmatprep.mubr.bf16.mxu0 %v1068
  %2096 = vmatmul.mubr.bf16.gmra.mrb[0].mxu0 %v1067
  %v2097 = vpop.f32.mrb[0].mxu0
  %v2098 = vadd.f32 %v1841, %v2097
  %v2099 = vpop.f32.mrb[0].mxu0
  %v2100 = vpop.f32.mrb[0].mxu0
  %v2101 = vadd.f32 %v1844, %v2100
  %v2102 = vpop.f32.mrb[0].mxu0
  %2103 = vmatprep.mubr.bf16.mxu0 %v1075
  %2104 = vmatmul.mubr.bf16.gmra.mrb[0].mxu0 %v1074
  %v2105 = vpop.f32.mrb[0].mxu0
  %v2106 = vadd.f32 %v1849, %v2105
  %v2107 = vpop.f32.mrb[0].mxu0
  %v2108 = vpop.f32.mrb[0].mxu0
  %v2109 = vadd.f32 %v1852, %v2108
  %v2110 = vpop.f32.mrb[0].mxu0
  %2111 = vmatprep.mubr.bf16.mxu0 %v1082
  %2112 = vmatmul.mubr.bf16.gmra.mrb[0].mxu0 %v1081
  %v2113 = vpop.f32.mrb[0].mxu0
  %v2114 = vadd.f32 %v1857, %v2113
  %v2115 = vpop.f32.mrb[0].mxu0
  %v2116 = vpop.f32.mrb[0].mxu0
  %v2117 = vadd.f32 %v1860, %v2116
  %v2118 = vpop.f32.mrb[0].mxu0
  %2119 = vmatprep.mubr.bf16.mxu0 %v1089
  %2120 = vmatmul.mubr.bf16.gmra.mrb[0].mxu0 %v1088
  %v2121 = vpop.f32.mrb[0].mxu0
  %v2122 = vadd.f32 %v1865, %v2121
  %v2123 = vpop.f32.mrb[0].mxu0
  %v2124 = vpop.f32.mrb[0].mxu0
  %v2125 = vadd.f32 %v1868, %v2124
  %v2126 = vpop.f32.mrb[0].mxu0
  %2127 = vmatprep.mubr.bf16.mxu0 %v1096
  %2128 = vmatmul.mubr.bf16.gmra.mrb[0].mxu0 %v1095
  %v2129 = vpop.f32.mrb[0].mxu0
  %v2130 = vadd.f32 %v1873, %v2129
  %v2131 = vpop.f32.mrb[0].mxu0
  %v2132 = vpop.f32.mrb[0].mxu0
  %v2133 = vadd.f32 %v1876, %v2132
  %v2134 = vpop.f32.mrb[0].mxu0
  %2135 = vmatprep.mubr.bf16.mxu0 %v1103
  %2136 = vmatmul.mubr.bf16.gmra.mrb[0].mxu0 %v1102
  %v2137 = vpop.f32.mrb[0].mxu0
  %v2138 = vadd.f32 %v1881, %v2137
  %v2139 = vpop.f32.mrb[0].mxu0
  %v2140 = vpop.f32.mrb[0].mxu0
  %v2141 = vadd.f32 %v1884, %v2140
  %v2142 = vpop.f32.mrb[0].mxu0
  %2143 = vmatprep.mubr.bf16.mxu0 %v1110
  %2144 = vmatmul.mubr.bf16.gmra.mrb[0].mxu0 %v1109
  %v2145 = vpop.f32.mrb[0].mxu0
  %v2146 = vadd.f32 %v1889, %v2145
  %v2147 = vpop.f32.mrb[0].mxu0
  %v2148 = vpop.f32.mrb[0].mxu0
  %v2149 = vadd.f32 %v1892, %v2148
  %v2150 = vpop.f32.mrb[0].mxu0
  %2151 = vmatprep.mubr.bf16.mxu0 %v1117
  %2152 = vmatmul.mubr.bf16.gmra.mrb[0].mxu0 %v1116
  %v2153 = vpop.f32.mrb[0].mxu0
  %v2154 = vadd.f32 %v1897, %v2153
  %v2155 = vpop.f32.mrb[0].mxu0
  %v2156 = vpop.f32.mrb[0].mxu0
  %v2157 = vadd.f32 %v1900, %v2156
  %v2158 = vpop.f32.mrb[0].mxu0
  %2159 = vmatprep.mubr.bf16.mxu0 %v1124
  %2160 = vmatmul.mubr.bf16.gmra.mrb[0].mxu0 %v1123
  %v2161 = vpop.f32.mrb[0].mxu0
  %v2162 = vadd.f32 %v1905, %v2161
  %v2163 = vpop.f32.mrb[0].mxu0
  %v2164 = vpop.f32.mrb[0].mxu0
  %v2165 = vadd.f32 %v1908, %v2164
  %v2166 = vpop.f32.mrb[0].mxu0
  %2167 = vmatprep.mubr.bf16.mxu0 %v1131
  %2168 = vmatmul.mubr.bf16.gmra.mrb[0].mxu0 %v1130
  %v2169 = vpop.f32.mrb[0].mxu0
  %v2170 = vadd.f32 %v1913, %v2169
  %v2171 = vpop.f32.mrb[0].mxu0
  %v2172 = vpop.f32.mrb[0].mxu0
  %v2173 = vadd.f32 %v1916, %v2172
  %v2174 = vpop.f32.mrb[0].mxu0
  %2175 = vmatprep.mubr.bf16.mxu0 %v1138
  %2176 = vmatmul.mubr.bf16.gmra.mrb[0].mxu0 %v1137
  %v2177 = vpop.f32.mrb[0].mxu0
  %v2178 = vadd.f32 %v1921, %v2177
  %v2179 = vpop.f32.mrb[0].mxu0
  %v2180 = vpop.f32.mrb[0].mxu0
  %v2181 = vadd.f32 %v1924, %v2180
  %v2182 = vpop.f32.mrb[0].mxu0
  %2183 = vmatprep.mubr.bf16.mxu0 %v1145
  %2184 = vmatmul.mubr.bf16.gmra.mrb[0].mxu0 %v1144
  %v2185 = vpop.f32.mrb[0].mxu0
  %v2186 = vadd.f32 %v1929, %v2185
  %v2187 = vpop.f32.mrb[0].mxu0
  %v2188 = vpop.f32.mrb[0].mxu0
  %v2189 = vadd.f32 %v1932, %v2188
  %v2190 = vpop.f32.mrb[0].mxu0
  %2191 = vmatprep.mubr.bf16.mxu0 %v1152
  %2192 = vmatmul.mubr.bf16.gmra.mrb[0].mxu0 %v1151
  %v2193 = vpop.f32.mrb[0].mxu0
  %v2194 = vadd.f32 %v1937, %v2193
  %v2195 = vpop.f32.mrb[0].mxu0
  %v2196 = vpop.f32.mrb[0].mxu0
  %v2197 = vadd.f32 %v1940, %v2196
  %v2198 = vpop.f32.mrb[0].mxu0
  %2199 = vmatprep.mubr.bf16.mxu0 %v1159
  %2200 = vmatmul.mubr.bf16.gmra.mrb[0].mxu0 %v1158
  %v2201 = vpop.f32.mrb[0].mxu0
  %v2202 = vadd.f32 %v1945, %v2201
  %v2203 = vpop.f32.mrb[0].mxu0
  %v2204 = vpop.f32.mrb[0].mxu0
  %v2205 = vadd.f32 %v1948, %v2204
  %v2206 = vpop.f32.mrb[0].mxu0
  %2207 = vmatprep.mubr.bf16.mxu0 %v1166
  %2208 = vmatmul.mubr.bf16.gmra.mrb[0].mxu0 %v1165
  %v2209 = vpop.f32.mrb[0].mxu0
  %v2210 = vadd.f32 %v1953, %v2209
  %v2211 = vpop.f32.mrb[0].mxu0
  %v2212 = vpop.f32.mrb[0].mxu0
  %v2213 = vadd.f32 %v1956, %v2212
  %v2214 = vpop.f32.mrb[0].mxu0
  %2215 = vdwg.mxu0
  %2216 = vmatprep.subr.bf16.mxu0 0
  %2217 = vmatpush1.bf16.msra.mxu0 %v1622
  %2218 = vmatprep.subr.bf16.mxu0 0
  %2219 = vmatpush1.bf16.msra.mxu0 %v1623
  %2220 = vmatprep.subr.bf16.mxu0 0
  %2221 = vmatpush1.bf16.msra.mxu0 %v1624
  %2222 = vmatprep.subr.bf16.mxu0 0
  %2223 = vmatpush1.bf16.msra.mxu0 %v1625
  %2224 = vmatprep.subr.bf16.mxu0 0
  %2225 = vmatpush1.bf16.msra.mxu0 %v1626
  %2226 = vmatprep.subr.bf16.mxu0 0
  %2227 = vmatpush1.bf16.msra.mxu0 %v1627
  %2228 = vmatprep.subr.bf16.mxu0 0
  %2229 = vmatpush1.bf16.msra.mxu0 %v1628
  %2230 = vmatprep.subr.bf16.mxu0 0
  %2231 = vmatpush1.bf16.msra.mxu0 %v1629
  %2232 = vmatprep.subr.bf16.mxu0 0
  %2233 = vmatpush1.bf16.msra.mxu0 %v1630
  %2234 = vmatprep.subr.bf16.mxu0 0
  %2235 = vmatpush1.bf16.msra.mxu0 %v1631
  %2236 = vmatprep.subr.bf16.mxu0 0
  %2237 = vmatpush1.bf16.msra.mxu0 %v1632
  %2238 = vmatprep.subr.bf16.mxu0 0
  %2239 = vmatpush1.bf16.msra.mxu0 %v1633
  %2240 = vmatprep.subr.bf16.mxu0 0
  %2241 = vmatpush1.bf16.msra.mxu0 %v1634
  %2242 = vmatprep.subr.bf16.mxu0 0
  %2243 = vmatpush1.bf16.msra.mxu0 %v1635
  %2244 = vmatprep.subr.bf16.mxu0 0
  %2245 = vmatpush1.bf16.msra.mxu0 %v1636
  %2246 = vmatprep.subr.bf16.mxu0 0
  %2247 = vmatpush1.bf16.msra.mxu0 %v1637
  %2248 = vmatprep.mubr.bf16.mxu0 %v979
  %2249 = vmatmul.mubr.bf16.gmra.mrb[0].mxu0 %v978
  %v2250 = vpop.f32.mrb[0].mxu0
  %v2251 = vadd.f32 %v1994, %v2250
  %v2252 = vpop.f32.mrb[0].mxu0
  %v2253 = vpop.f32.mrb[0].mxu0
  %v2254 = vadd.f32 %v1997, %v2253
  %v2255 = vpop.f32.mrb[0].mxu0
  %2256 = vmatprep.mubr.bf16.mxu0 %v986
  %2257 = vmatmul.mubr.bf16.gmra.mrb[0].mxu0 %v985
  %v2258 = vpop.f32.mrb[0].mxu0
  %v2259 = vadd.f32 %v2002, %v2258
  %v2260 = vpop.f32.mrb[0].mxu0
  %v2261 = vpop.f32.mrb[0].mxu0
  %v2262 = vadd.f32 %v2005, %v2261
  %v2263 = vpop.f32.mrb[0].mxu0
  %2264 = vmatprep.mubr.bf16.mxu0 %v993
  %2265 = vmatmul.mubr.bf16.gmra.mrb[0].mxu0 %v992
  %v2266 = vpop.f32.mrb[0].mxu0
  %v2267 = vadd.f32 %v2010, %v2266
  %v2268 = vpop.f32.mrb[0].mxu0
  %v2269 = vpop.f32.mrb[0].mxu0
  %v2270 = vadd.f32 %v2013, %v2269
  %v2271 = vpop.f32.mrb[0].mxu0
  %2272 = vmatprep.mubr.bf16.mxu0 %v1000
  %2273 = vmatmul.mubr.bf16.gmra.mrb[0].mxu0 %v999
  %v2274 = vpop.f32.mrb[0].mxu0
  %v2275 = vadd.f32 %v2018, %v2274
  %v2276 = vpop.f32.mrb[0].mxu0
  %v2277 = vpop.f32.mrb[0].mxu0
  %v2278 = vadd.f32 %v2021, %v2277
  %v2279 = vpop.f32.mrb[0].mxu0
  %2280 = vmatprep.mubr.bf16.mxu0 %v1007
  %2281 = vmatmul.mubr.bf16.gmra.mrb[0].mxu0 %v1006
  %v2282 = vpop.f32.mrb[0].mxu0
  %v2283 = vadd.f32 %v2026, %v2282
  %v2284 = vpop.f32.mrb[0].mxu0
  %v2285 = vpop.f32.mrb[0].mxu0
  %v2286 = vadd.f32 %v2029, %v2285
  %v2287 = vpop.f32.mrb[0].mxu0
  %2288 = vmatprep.mubr.bf16.mxu0 %v1014
  %2289 = vmatmul.mubr.bf16.gmra.mrb[0].mxu0 %v1013
  %v2290 = vpop.f32.mrb[0].mxu0
  %v2291 = vadd.f32 %v2034, %v2290
  %v2292 = vpop.f32.mrb[0].mxu0
  %v2293 = vpop.f32.mrb[0].mxu0
  %v2294 = vadd.f32 %v2037, %v2293
  %v2295 = vpop.f32.mrb[0].mxu0
  %2296 = vmatprep.mubr.bf16.mxu0 %v1021
  %2297 = vmatmul.mubr.bf16.gmra.mrb[0].mxu0 %v1020
  %v2298 = vpop.f32.mrb[0].mxu0
  %v2299 = vadd.f32 %v2042, %v2298
  %v2300 = vpop.f32.mrb[0].mxu0
  %v2301 = vpop.f32.mrb[0].mxu0
  %v2302 = vadd.f32 %v2045, %v2301
  %v2303 = vpop.f32.mrb[0].mxu0
  %2304 = vmatprep.mubr.bf16.mxu0 %v1028
  %2305 = vmatmul.mubr.bf16.gmra.mrb[0].mxu0 %v1027
  %v2306 = vpop.f32.mrb[0].mxu0
  %v2307 = vadd.f32 %v2050, %v2306
  %v2308 = vpop.f32.mrb[0].mxu0
  %v2309 = vpop.f32.mrb[0].mxu0
  %v2310 = vadd.f32 %v2053, %v2309
  %v2311 = vpop.f32.mrb[0].mxu0
  %2312 = vmatprep.mubr.bf16.mxu0 %v1035
  %2313 = vmatmul.mubr.bf16.gmra.mrb[0].mxu0 %v1034
  %v2314 = vpop.f32.mrb[0].mxu0
  %v2315 = vadd.f32 %v2058, %v2314
  %v2316 = vpop.f32.mrb[0].mxu0
  %v2317 = vpop.f32.mrb[0].mxu0
  %v2318 = vadd.f32 %v2061, %v2317
  %v2319 = vpop.f32.mrb[0].mxu0
  %2320 = vmatprep.mubr.bf16.mxu0 %v1042
  %2321 = vmatmul.mubr.bf16.gmra.mrb[0].mxu0 %v1041
  %v2322 = vpop.f32.mrb[0].mxu0
  %v2323 = vadd.f32 %v2066, %v2322
  %v2324 = vpop.f32.mrb[0].mxu0
  %v2325 = vpop.f32.mrb[0].mxu0
  %v2326 = vadd.f32 %v2069, %v2325
  %v2327 = vpop.f32.mrb[0].mxu0
  %2328 = vmatprep.mubr.bf16.mxu0 %v1049
  %2329 = vmatmul.mubr.bf16.gmra.mrb[0].mxu0 %v1048
  %v2330 = vpop.f32.mrb[0].mxu0
  %v2331 = vadd.f32 %v2074, %v2330
  %v2332 = vpop.f32.mrb[0].mxu0
  %v2333 = vpop.f32.mrb[0].mxu0
  %v2334 = vadd.f32 %v2077, %v2333
  %v2335 = vpop.f32.mrb[0].mxu0
  %2336 = vmatprep.mubr.bf16.mxu0 %v1056
  %2337 = vmatmul.mubr.bf16.gmra.mrb[0].mxu0 %v1055
  %v2338 = vpop.f32.mrb[0].mxu0
  %v2339 = vadd.f32 %v2082, %v2338
  %v2340 = vpop.f32.mrb[0].mxu0
  %v2341 = vpop.f32.mrb[0].mxu0
  %v2342 = vadd.f32 %v2085, %v2341
  %v2343 = vpop.f32.mrb[0].mxu0
  %2344 = vmatprep.mubr.bf16.mxu0 %v1063
  %2345 = vmatmul.mubr.bf16.gmra.mrb[0].mxu0 %v1062
  %v2346 = vpop.f32.mrb[0].mxu0
  %v2347 = vadd.f32 %v2090, %v2346
  %v2348 = vpop.f32.mrb[0].mxu0
  %v2349 = vpop.f32.mrb[0].mxu0
  %v2350 = vadd.f32 %v2093, %v2349
  %v2351 = vpop.f32.mrb[0].mxu0
  %2352 = vmatprep.mubr.bf16.mxu0 %v1070
  %2353 = vmatmul.mubr.bf16.gmra.mrb[0].mxu0 %v1069
  %v2354 = vpop.f32.mrb[0].mxu0
  %v2355 = vadd.f32 %v2098, %v2354
  %v2356 = vpop.f32.mrb[0].mxu0
  %v2357 = vpop.f32.mrb[0].mxu0
  %v2358 = vadd.f32 %v2101, %v2357
  %v2359 = vpop.f32.mrb[0].mxu0
  %2360 = vmatprep.mubr.bf16.mxu0 %v1077
  %2361 = vmatmul.mubr.bf16.gmra.mrb[0].mxu0 %v1076
  %v2362 = vpop.f32.mrb[0].mxu0
  %v2363 = vadd.f32 %v2106, %v2362
  %v2364 = vpop.f32.mrb[0].mxu0
  %v2365 = vpop.f32.mrb[0].mxu0
  %v2366 = vadd.f32 %v2109, %v2365
  %v2367 = vpop.f32.mrb[0].mxu0
  %2368 = vmatprep.mubr.bf16.mxu0 %v1084
  %2369 = vmatmul.mubr.bf16.gmra.mrb[0].mxu0 %v1083
  %v2370 = vpop.f32.mrb[0].mxu0
  %v2371 = vadd.f32 %v2114, %v2370
  %v2372 = vpop.f32.mrb[0].mxu0
  %v2373 = vpop.f32.mrb[0].mxu0
  %v2374 = vadd.f32 %v2117, %v2373
  %v2375 = vpop.f32.mrb[0].mxu0
  %2376 = vmatprep.mubr.bf16.mxu0 %v1091
  %2377 = vmatmul.mubr.bf16.gmra.mrb[0].mxu0 %v1090
  %v2378 = vpop.f32.mrb[0].mxu0
  %v2379 = vadd.f32 %v2122, %v2378
  %v2380 = vpop.f32.mrb[0].mxu0
  %v2381 = vpop.f32.mrb[0].mxu0
  %v2382 = vadd.f32 %v2125, %v2381
  %v2383 = vpop.f32.mrb[0].mxu0
  %2384 = vmatprep.mubr.bf16.mxu0 %v1098
  %2385 = vmatmul.mubr.bf16.gmra.mrb[0].mxu0 %v1097
  %v2386 = vpop.f32.mrb[0].mxu0
  %v2387 = vadd.f32 %v2130, %v2386
  %v2388 = vpop.f32.mrb[0].mxu0
  %v2389 = vpop.f32.mrb[0].mxu0
  %v2390 = vadd.f32 %v2133, %v2389
  %v2391 = vpop.f32.mrb[0].mxu0
  %2392 = vmatprep.mubr.bf16.mxu0 %v1105
  %2393 = vmatmul.mubr.bf16.gmra.mrb[0].mxu0 %v1104
  %v2394 = vpop.f32.mrb[0].mxu0
  %v2395 = vadd.f32 %v2138, %v2394
  %v2396 = vpop.f32.mrb[0].mxu0
  %v2397 = vpop.f32.mrb[0].mxu0
  %v2398 = vadd.f32 %v2141, %v2397
  %v2399 = vpop.f32.mrb[0].mxu0
  %2400 = vmatprep.mubr.bf16.mxu0 %v1112
  %2401 = vmatmul.mubr.bf16.gmra.mrb[0].mxu0 %v1111
  %v2402 = vpop.f32.mrb[0].mxu0
  %v2403 = vadd.f32 %v2146, %v2402
  %v2404 = vpop.f32.mrb[0].mxu0
  %v2405 = vpop.f32.mrb[0].mxu0
  %v2406 = vadd.f32 %v2149, %v2405
  %v2407 = vpop.f32.mrb[0].mxu0
  %2408 = vmatprep.mubr.bf16.mxu0 %v1119
  %2409 = vmatmul.mubr.bf16.gmra.mrb[0].mxu0 %v1118
  %v2410 = vpop.f32.mrb[0].mxu0
  %v2411 = vadd.f32 %v2154, %v2410
  %v2412 = vpop.f32.mrb[0].mxu0
  %v2413 = vpop.f32.mrb[0].mxu0
  %v2414 = vadd.f32 %v2157, %v2413
  %v2415 = vpop.f32.mrb[0].mxu0
  %2416 = vmatprep.mubr.bf16.mxu0 %v1126
  %2417 = vmatmul.mubr.bf16.gmra.mrb[0].mxu0 %v1125
  %v2418 = vpop.f32.mrb[0].mxu0
  %v2419 = vadd.f32 %v2162, %v2418
  %v2420 = vpop.f32.mrb[0].mxu0
  %v2421 = vpop.f32.mrb[0].mxu0
  %v2422 = vadd.f32 %v2165, %v2421
  %v2423 = vpop.f32.mrb[0].mxu0
  %2424 = vmatprep.mubr.bf16.mxu0 %v1133
  %2425 = vmatmul.mubr.bf16.gmra.mrb[0].mxu0 %v1132
  %v2426 = vpop.f32.mrb[0].mxu0
  %v2427 = vadd.f32 %v2170, %v2426
  %v2428 = vpop.f32.mrb[0].mxu0
  %v2429 = vpop.f32.mrb[0].mxu0
  %v2430 = vadd.f32 %v2173, %v2429
  %v2431 = vpop.f32.mrb[0].mxu0
  %2432 = vmatprep.mubr.bf16.mxu0 %v1140
  %2433 = vmatmul.mubr.bf16.gmra.mrb[0].mxu0 %v1139
  %v2434 = vpop.f32.mrb[0].mxu0
  %v2435 = vadd.f32 %v2178, %v2434
  %v2436 = vpop.f32.mrb[0].mxu0
  %v2437 = vpop.f32.mrb[0].mxu0
  %v2438 = vadd.f32 %v2181, %v2437
  %v2439 = vpop.f32.mrb[0].mxu0
  %2440 = vmatprep.mubr.bf16.mxu0 %v1147
  %2441 = vmatmul.mubr.bf16.gmra.mrb[0].mxu0 %v1146
  %v2442 = vpop.f32.mrb[0].mxu0
  %v2443 = vadd.f32 %v2186, %v2442
  %v2444 = vpop.f32.mrb[0].mxu0
  %v2445 = vpop.f32.mrb[0].mxu0
  %v2446 = vadd.f32 %v2189, %v2445
  %v2447 = vpop.f32.mrb[0].mxu0
  %2448 = vmatprep.mubr.bf16.mxu0 %v1154
  %2449 = vmatmul.mubr.bf16.gmra.mrb[0].mxu0 %v1153
  %v2450 = vpop.f32.mrb[0].mxu0
  %v2451 = vadd.f32 %v2194, %v2450
  %v2452 = vpop.f32.mrb[0].mxu0
  %v2453 = vpop.f32.mrb[0].mxu0
  %v2454 = vadd.f32 %v2197, %v2453
  %v2455 = vpop.f32.mrb[0].mxu0
  %2456 = vmatprep.mubr.bf16.mxu0 %v1161
  %2457 = vmatmul.mubr.bf16.gmra.mrb[0].mxu0 %v1160
  %v2458 = vpop.f32.mrb[0].mxu0
  %v2459 = vadd.f32 %v2202, %v2458
  %v2460 = vpop.f32.mrb[0].mxu0
  %v2461 = vpop.f32.mrb[0].mxu0
  %v2462 = vadd.f32 %v2205, %v2461
  %v2463 = vpop.f32.mrb[0].mxu0
  %2464 = vmatprep.mubr.bf16.mxu0 %v1168
  %2465 = vmatmul.mubr.bf16.gmra.mrb[0].mxu0 %v1167
  %v2466 = vpop.f32.mrb[0].mxu0
  %v2467 = vadd.f32 %v2210, %v2466
  %v2468 = vpop.f32.mrb[0].mxu0
  %v2469 = vpop.f32.mrb[0].mxu0
  %v2470 = vadd.f32 %v2213, %v2469
  %v2471 = vpop.f32.mrb[0].mxu0
  %2472 = vdwg.mxu0
  %2473 = vmatprep.subr.bf16.mxu0 0
  %2474 = vmatpush1.bf16.msra.mxu0 %v1638
  %2475 = vmatprep.subr.bf16.mxu0 0
  %2476 = vmatpush1.bf16.msra.mxu0 %v1639
  %2477 = vmatprep.subr.bf16.mxu0 0
  %2478 = vmatpush1.bf16.msra.mxu0 %v1640
  %2479 = vmatprep.subr.bf16.mxu0 0
  %2480 = vmatpush1.bf16.msra.mxu0 %v1641
  %2481 = vmatprep.subr.bf16.mxu0 0
  %2482 = vmatpush1.bf16.msra.mxu0 %v1642
  %2483 = vmatprep.subr.bf16.mxu0 0
  %2484 = vmatpush1.bf16.msra.mxu0 %v1643
  %2485 = vmatprep.subr.bf16.mxu0 0
  %2486 = vmatpush1.bf16.msra.mxu0 %v1644
  %2487 = vmatprep.subr.bf16.mxu0 0
  %2488 = vmatpush1.bf16.msra.mxu0 %v1645
  %2489 = vmatprep.subr.bf16.mxu0 0
  %2490 = vmatpush1.bf16.msra.mxu0 0
  %2491 = vmatprep.subr.bf16.mxu0 0
  %2492 = vmatpush1.bf16.msra.mxu0 0
  %2493 = vmatprep.subr.bf16.mxu0 0
  %2494 = vmatpush1.bf16.msra.mxu0 0
  %2495 = vmatprep.subr.bf16.mxu0 0
  %2496 = vmatpush1.bf16.msra.mxu0 0
  %2497 = vmatprep.subr.bf16.mxu0 0
  %2498 = vmatpush1.bf16.msra.mxu0 0
  %2499 = vmatprep.subr.bf16.mxu0 0
  %2500 = vmatpush1.bf16.msra.mxu0 0
  %2501 = vmatprep.subr.bf16.mxu0 0
  %2502 = vmatpush1.bf16.msra.mxu0 0
  %2503 = vmatprep.subr.bf16.mxu0 0
  %2504 = vmatpush1.bf16.msra.mxu0 0
  %2505 = vmatprep.mubr.bf16.mxu0 0
  %2506 = vmatmul.mubr.bf16.gmra.mrb[0].mxu0 %v980
  %v2507 = vpop.f32.mrb[0].mxu0
  %v2508 = vadd.f32 %v2251, %v2507
  %v2509 = vpop.f32.mrb[0].mxu0
  %v2510 = vpop.f32.mrb[0].mxu0
  %v2511 = vadd.f32 %v2254, %v2510
  %v2512 = vpop.f32.mrb[0].mxu0
  %2513 = vmatprep.mubr.bf16.mxu0 0
  %2514 = vmatmul.mubr.bf16.gmra.mrb[0].mxu0 %v987
  %v2515 = vpop.f32.mrb[0].mxu0
  %v2516 = vadd.f32 %v2259, %v2515
  %v2517 = vpop.f32.mrb[0].mxu0
  %v2518 = vpop.f32.mrb[0].mxu0
  %v2519 = vadd.f32 %v2262, %v2518
  %v2520 = vpop.f32.mrb[0].mxu0
  %2521 = vmatprep.mubr.bf16.mxu0 0
  %2522 = vmatmul.mubr.bf16.gmra.mrb[0].mxu0 %v994
  %v2523 = vpop.f32.mrb[0].mxu0
  %v2524 = vadd.f32 %v2267, %v2523
  %v2525 = vpop.f32.mrb[0].mxu0
  %v2526 = vpop.f32.mrb[0].mxu0
  %v2527 = vadd.f32 %v2270, %v2526
  %v2528 = vpop.f32.mrb[0].mxu0
  %2529 = vmatprep.mubr.bf16.mxu0 0
  %2530 = vmatmul.mubr.bf16.gmra.mrb[0].mxu0 %v1001
  %v2531 = vpop.f32.mrb[0].mxu0
  %v2532 = vadd.f32 %v2275, %v2531
  %v2533 = vpop.f32.mrb[0].mxu0
  %v2534 = vpop.f32.mrb[0].mxu0
  %v2535 = vadd.f32 %v2278, %v2534
  %v2536 = vpop.f32.mrb[0].mxu0
  %2537 = vmatprep.mubr.bf16.mxu0 0
  %2538 = vmatmul.mubr.bf16.gmra.mrb[0].mxu0 %v1008
  %v2539 = vpop.f32.mrb[0].mxu0
  %v2540 = vadd.f32 %v2283, %v2539
  %v2541 = vpop.f32.mrb[0].mxu0
  %v2542 = vpop.f32.mrb[0].mxu0
  %v2543 = vadd.f32 %v2286, %v2542
  %v2544 = vpop.f32.mrb[0].mxu0
  %2545 = vmatprep.mubr.bf16.mxu0 0
  %2546 = vmatmul.mubr.bf16.gmra.mrb[0].mxu0 %v1015
  %v2547 = vpop.f32.mrb[0].mxu0
  %v2548 = vadd.f32 %v2291, %v2547
  %v2549 = vpop.f32.mrb[0].mxu0
  %v2550 = vpop.f32.mrb[0].mxu0
  %v2551 = vadd.f32 %v2294, %v2550
  %v2552 = vpop.f32.mrb[0].mxu0
  %2553 = vmatprep.mubr.bf16.mxu0 0
  %2554 = vmatmul.mubr.bf16.gmra.mrb[0].mxu0 %v1022
  %v2555 = vpop.f32.mrb[0].mxu0
  %v2556 = vadd.f32 %v2299, %v2555
  %v2557 = vpop.f32.mrb[0].mxu0
  %v2558 = vpop.f32.mrb[0].mxu0
  %v2559 = vadd.f32 %v2302, %v2558
  %v2560 = vpop.f32.mrb[0].mxu0
  %2561 = vmatprep.mubr.bf16.mxu0 0
  %2562 = vmatmul.mubr.bf16.gmra.mrb[0].mxu0 %v1029
  %v2563 = vpop.f32.mrb[0].mxu0
  %v2564 = vadd.f32 %v2307, %v2563
  %v2565 = vpop.f32.mrb[0].mxu0
  %v2566 = vpop.f32.mrb[0].mxu0
  %v2567 = vadd.f32 %v2310, %v2566
  %v2568 = vpop.f32.mrb[0].mxu0
  %2569 = vmatprep.mubr.bf16.mxu0 0
  %2570 = vmatmul.mubr.bf16.gmra.mrb[0].mxu0 %v1036
  %v2571 = vpop.f32.mrb[0].mxu0
  %v2572 = vadd.f32 %v2315, %v2571
  %v2573 = vpop.f32.mrb[0].mxu0
  %v2574 = vpop.f32.mrb[0].mxu0
  %v2575 = vadd.f32 %v2318, %v2574
  %v2576 = vpop.f32.mrb[0].mxu0
  %2577 = vmatprep.mubr.bf16.mxu0 0
  %2578 = vmatmul.mubr.bf16.gmra.mrb[0].mxu0 %v1043
  %v2579 = vpop.f32.mrb[0].mxu0
  %v2580 = vadd.f32 %v2323, %v2579
  %v2581 = vpop.f32.mrb[0].mxu0
  %v2582 = vpop.f32.mrb[0].mxu0
  %v2583 = vadd.f32 %v2326, %v2582
  %v2584 = vpop.f32.mrb[0].mxu0
  %2585 = vmatprep.mubr.bf16.mxu0 0
  %2586 = vmatmul.mubr.bf16.gmra.mrb[0].mxu0 %v1050
  %v2587 = vpop.f32.mrb[0].mxu0
  %v2588 = vadd.f32 %v2331, %v2587
  %v2589 = vpop.f32.mrb[0].mxu0
  %v2590 = vpop.f32.mrb[0].mxu0
  %v2591 = vadd.f32 %v2334, %v2590
  %v2592 = vpop.f32.mrb[0].mxu0
  %2593 = vmatprep.mubr.bf16.mxu0 0
  %2594 = vmatmul.mubr.bf16.gmra.mrb[0].mxu0 %v1057
  %v2595 = vpop.f32.mrb[0].mxu0
  %v2596 = vadd.f32 %v2339, %v2595
  %v2597 = vpop.f32.mrb[0].mxu0
  %v2598 = vpop.f32.mrb[0].mxu0
  %v2599 = vadd.f32 %v2342, %v2598
  %v2600 = vpop.f32.mrb[0].mxu0
  %2601 = vmatprep.mubr.bf16.mxu0 0
  %2602 = vmatmul.mubr.bf16.gmra.mrb[0].mxu0 %v1064
  %v2603 = vpop.f32.mrb[0].mxu0
  %v2604 = vadd.f32 %v2347, %v2603
  %v2605 = vpop.f32.mrb[0].mxu0
  %v2606 = vpop.f32.mrb[0].mxu0
  %v2607 = vadd.f32 %v2350, %v2606
  %v2608 = vpop.f32.mrb[0].mxu0
  %2609 = vmatprep.mubr.bf16.mxu0 0
  %2610 = vmatmul.mubr.bf16.gmra.mrb[0].mxu0 %v1071
  %v2611 = vpop.f32.mrb[0].mxu0
  %v2612 = vadd.f32 %v2355, %v2611
  %v2613 = vpop.f32.mrb[0].mxu0
  %v2614 = vpop.f32.mrb[0].mxu0
  %v2615 = vadd.f32 %v2358, %v2614
  %v2616 = vpop.f32.mrb[0].mxu0
  %2617 = vmatprep.mubr.bf16.mxu0 0
  %2618 = vmatmul.mubr.bf16.gmra.mrb[0].mxu0 %v1078
  %v2619 = vpop.f32.mrb[0].mxu0
  %v2620 = vadd.f32 %v2363, %v2619
  %v2621 = vpop.f32.mrb[0].mxu0
  %v2622 = vpop.f32.mrb[0].mxu0
  %v2623 = vadd.f32 %v2366, %v2622
  %v2624 = vpop.f32.mrb[0].mxu0
  %2625 = vmatprep.mubr.bf16.mxu0 0
  %2626 = vmatmul.mubr.bf16.gmra.mrb[0].mxu0 %v1085
  %v2627 = vpop.f32.mrb[0].mxu0
  %v2628 = vadd.f32 %v2371, %v2627
  %v2629 = vpop.f32.mrb[0].mxu0
  %v2630 = vpop.f32.mrb[0].mxu0
  %v2631 = vadd.f32 %v2374, %v2630
  %v2632 = vpop.f32.mrb[0].mxu0
  %2633 = vmatprep.mubr.bf16.mxu0 0
  %2634 = vmatmul.mubr.bf16.gmra.mrb[0].mxu0 %v1092
  %v2635 = vpop.f32.mrb[0].mxu0
  %v2636 = vadd.f32 %v2379, %v2635
  %v2637 = vpop.f32.mrb[0].mxu0
  %v2638 = vpop.f32.mrb[0].mxu0
  %v2639 = vadd.f32 %v2382, %v2638
  %v2640 = vpop.f32.mrb[0].mxu0
  %2641 = vmatprep.mubr.bf16.mxu0 0
  %2642 = vmatmul.mubr.bf16.gmra.mrb[0].mxu0 %v1099
  %v2643 = vpop.f32.mrb[0].mxu0
  %v2644 = vadd.f32 %v2387, %v2643
  %v2645 = vpop.f32.mrb[0].mxu0
  %v2646 = vpop.f32.mrb[0].mxu0
  %v2647 = vadd.f32 %v2390, %v2646
  %v2648 = vpop.f32.mrb[0].mxu0
  %2649 = vmatprep.mubr.bf16.mxu0 0
  %2650 = vmatmul.mubr.bf16.gmra.mrb[0].mxu0 %v1106
  %v2651 = vpop.f32.mrb[0].mxu0
  %v2652 = vadd.f32 %v2395, %v2651
  %v2653 = vpop.f32.mrb[0].mxu0
  %v2654 = vpop.f32.mrb[0].mxu0
  %v2655 = vadd.f32 %v2398, %v2654
  %v2656 = vpop.f32.mrb[0].mxu0
  %2657 = vmatprep.mubr.bf16.mxu0 0
  %2658 = vmatmul.mubr.bf16.gmra.mrb[0].mxu0 %v1113
  %v2659 = vpop.f32.mrb[0].mxu0
  %v2660 = vadd.f32 %v2403, %v2659
  %v2661 = vpop.f32.mrb[0].mxu0
  %v2662 = vpop.f32.mrb[0].mxu0
  %v2663 = vadd.f32 %v2406, %v2662
  %v2664 = vpop.f32.mrb[0].mxu0
  %2665 = vmatprep.mubr.bf16.mxu0 0
  %2666 = vmatmul.mubr.bf16.gmra.mrb[0].mxu0 %v1120
  %v2667 = vpop.f32.mrb[0].mxu0
  %v2668 = vadd.f32 %v2411, %v2667
  %v2669 = vpop.f32.mrb[0].mxu0
  %v2670 = vpop.f32.mrb[0].mxu0
  %v2671 = vadd.f32 %v2414, %v2670
  %v2672 = vpop.f32.mrb[0].mxu0
  %2673 = vmatprep.mubr.bf16.mxu0 0
  %2674 = vmatmul.mubr.bf16.gmra.mrb[0].mxu0 %v1127
  %v2675 = vpop.f32.mrb[0].mxu0
  %v2676 = vadd.f32 %v2419, %v2675
  %v2677 = vpop.f32.mrb[0].mxu0
  %v2678 = vpop.f32.mrb[0].mxu0
  %v2679 = vadd.f32 %v2422, %v2678
  %v2680 = vpop.f32.mrb[0].mxu0
  %2681 = vmatprep.mubr.bf16.mxu0 0
  %2682 = vmatmul.mubr.bf16.gmra.mrb[0].mxu0 %v1134
  %v2683 = vpop.f32.mrb[0].mxu0
  %v2684 = vadd.f32 %v2427, %v2683
  %v2685 = vpop.f32.mrb[0].mxu0
  %v2686 = vpop.f32.mrb[0].mxu0
  %v2687 = vadd.f32 %v2430, %v2686
  %v2688 = vpop.f32.mrb[0].mxu0
  %2689 = vmatprep.mubr.bf16.mxu0 0
  %2690 = vmatmul.mubr.bf16.gmra.mrb[0].mxu0 %v1141
  %v2691 = vpop.f32.mrb[0].mxu0
  %v2692 = vadd.f32 %v2435, %v2691
  %v2693 = vpop.f32.mrb[0].mxu0
  %v2694 = vpop.f32.mrb[0].mxu0
  %v2695 = vadd.f32 %v2438, %v2694
  %v2696 = vpop.f32.mrb[0].mxu0
  %2697 = vmatprep.mubr.bf16.mxu0 0
  %2698 = vmatmul.mubr.bf16.gmra.mrb[0].mxu0 %v1148
  %v2699 = vpop.f32.mrb[0].mxu0
  %v2700 = vadd.f32 %v2443, %v2699
  %v2701 = vpop.f32.mrb[0].mxu0
  %v2702 = vpop.f32.mrb[0].mxu0
  %v2703 = vadd.f32 %v2446, %v2702
  %v2704 = vpop.f32.mrb[0].mxu0
  %2705 = vmatprep.mubr.bf16.mxu0 0
  %2706 = vmatmul.mubr.bf16.gmra.mrb[0].mxu0 %v1155
  %v2707 = vpop.f32.mrb[0].mxu0
  %v2708 = vadd.f32 %v2451, %v2707
  %v2709 = vpop.f32.mrb[0].mxu0
  %v2710 = vpop.f32.mrb[0].mxu0
  %v2711 = vadd.f32 %v2454, %v2710
  %v2712 = vpop.f32.mrb[0].mxu0
  %2713 = vmatprep.mubr.bf16.mxu0 0
  %2714 = vmatmul.mubr.bf16.gmra.mrb[0].mxu0 %v1162
  %v2715 = vpop.f32.mrb[0].mxu0
  %v2716 = vadd.f32 %v2459, %v2715
  %v2717 = vpop.f32.mrb[0].mxu0
  %v2718 = vpop.f32.mrb[0].mxu0
  %v2719 = vadd.f32 %v2462, %v2718
  %v2720 = vpop.f32.mrb[0].mxu0
  %2721 = vmatprep.mubr.bf16.mxu0 0
  %2722 = vmatmul.mubr.bf16.gmra.mrb[0].mxu0 %v1169
  %v2723 = vpop.f32.mrb[0].mxu0
  %v2724 = vadd.f32 %v2467, %v2723
  %v2725 = vpop.f32.mrb[0].mxu0
  %v2726 = vpop.f32.mrb[0].mxu0
  %v2727 = vadd.f32 %v2470, %v2726
  %v2728 = vpop.f32.mrb[0].mxu0
  %2729 = vdwg.mxu0
  %v2730 = vmax.f32 %v2508, 0.0
  %v2731 = vmax.f32 %v2511, 0.0
  %v2732 = vmax.f32 %v2516, 0.0
  %v2733 = vmax.f32 %v2519, 0.0
  %v2734 = vmax.f32 %v2524, 0.0
  %v2735 = vmax.f32 %v2527, 0.0
  %v2736 = vmax.f32 %v2532, 0.0
  %v2737 = vmax.f32 %v2535, 0.0
  %v2738 = vmax.f32 %v2540, 0.0
  %v2739 = vmax.f32 %v2543, 0.0
  %v2740 = vmax.f32 %v2548, 0.0
  %v2741 = vmax.f32 %v2551, 0.0
  %v2742 = vmax.f32 %v2556, 0.0
  %v2743 = vmax.f32 %v2559, 0.0
  %v2744 = vmax.f32 %v2564, 0.0
  %v2745 = vmax.f32 %v2567, 0.0
  %v2746 = vmax.f32 %v2572, 0.0
  %v2747 = vmax.f32 %v2575, 0.0
  %v2748 = vmax.f32 %v2580, 0.0
  %v2749 = vmax.f32 %v2583, 0.0
  %v2750 = vmax.f32 %v2588, 0.0
  %v2751 = vmax.f32 %v2591, 0.0
  %v2752 = vmax.f32 %v2596, 0.0
  %v2753 = vmax.f32 %v2599, 0.0
  %v2754 = vmax.f32 %v2604, 0.0
  %v2755 = vmax.f32 %v2607, 0.0
  %v2756 = vmax.f32 %v2612, 0.0
  %v2757 = vmax.f32 %v2615, 0.0
  %v2758 = vmax.f32 %v2620, 0.0
  %v2759 = vmax.f32 %v2623, 0.0
  %v2760 = vmax.f32 %v2628, 0.0
  %v2761 = vmax.f32 %v2631, 0.0
  %v2762 = vmax.f32 %v2636, 0.0
  %v2763 = vmax.f32 %v2639, 0.0
  %v2764 = vmax.f32 %v2644, 0.0
  %v2765 = vmax.f32 %v2647, 0.0
  %v2766 = vmax.f32 %v2652, 0.0
  %v2767 = vmax.f32 %v2655, 0.0
  %v2768 = vmax.f32 %v2660, 0.0
  %v2769 = vmax.f32 %v2663, 0.0
  %v2770 = vmax.f32 %v2668, 0.0
  %v2771 = vmax.f32 %v2671, 0.0
  %v2772 = vmax.f32 %v2676, 0.0
  %v2773 = vmax.f32 %v2679, 0.0
  %v2774 = vmax.f32 %v2684, 0.0
  %v2775 = vmax.f32 %v2687, 0.0
  %v2776 = vmax.f32 %v2692, 0.0
  %v2777 = vmax.f32 %v2695, 0.0
  %v2778 = vmax.f32 %v2700, 0.0
  %v2779 = vmax.f32 %v2703, 0.0
  %v2780 = vmax.f32 %v2708, 0.0
  %v2781 = vmax.f32 %v2711, 0.0
  %v2782 = vmax.f32 %v2716, 0.0
  %v2783 = vmax.f32 %v2719, 0.0
  %v2784 = vmax.f32 %v2724, 0.0
  %v2785 = vmax.f32 %v2727, 0.0
  %vm2786 = vcmask 523264
  %v2787 = vsel %vm2786, %v2730, -inf
  %v2788 = vsel %vm2786, %v2737, -inf
  %v2789 = vmax.f32 %v2787, %v2788
  %v2790 = vsel %vm2786, %v2744, -inf
  %v2791 = vmax.f32 %v2789, %v2790
  %v2792 = vsel %vm2786, %v2751, -inf
  %v2793 = vmax.f32 %v2791, %v2792
  %v2794 = vsel %vm2786, %v2731, -inf
  %v2795 = vsel %vm2786, %v2738, -inf
  %v2796 = vmax.f32 %v2794, %v2795
  %v2797 = vsel %vm2786, %v2745, -inf
  %v2798 = vmax.f32 %v2796, %v2797
  %v2799 = vsel %vm2786, %v2752, -inf
  %v2800 = vmax.f32 %v2798, %v2799
  %v2801 = vsel %vm2786, %v2732, -inf
  %v2802 = vsel %vm2786, %v2739, -inf
  %v2803 = vmax.f32 %v2801, %v2802
  %v2804 = vsel %vm2786, %v2746, -inf
  %v2805 = vmax.f32 %v2803, %v2804
  %v2806 = vsel %vm2786, %v2753, -inf
  %v2807 = vmax.f32 %v2805, %v2806
  %v2808 = vsel %vm2786, %v2733, -inf
  %v2809 = vsel %vm2786, %v2740, -inf
  %v2810 = vmax.f32 %v2808, %v2809
  %v2811 = vsel %vm2786, %v2747, -inf
  %v2812 = vmax.f32 %v2810, %v2811
  %v2813 = vsel %vm2786, %v2754, -inf
  %v2814 = vmax.f32 %v2812, %v2813
  %v2815 = vsel %vm2786, %v2734, -inf
  %v2816 = vsel %vm2786, %v2741, -inf
  %v2817 = vmax.f32 %v2815, %v2816
  %v2818 = vsel %vm2786, %v2748, -inf
  %v2819 = vmax.f32 %v2817, %v2818
  %v2820 = vsel %vm2786, %v2755, -inf
  %v2821 = vmax.f32 %v2819, %v2820
  %v2822 = vsel %vm2786, %v2735, -inf
  %v2823 = vsel %vm2786, %v2742, -inf
  %v2824 = vmax.f32 %v2822, %v2823
  %v2825 = vsel %vm2786, %v2749, -inf
  %v2826 = vmax.f32 %v2824, %v2825
  %v2827 = vsel %vm2786, %v2756, -inf
  %v2828 = vmax.f32 %v2826, %v2827
  %v2829 = vsel %vm2786, %v2736, -inf
  %v2830 = vsel %vm2786, %v2743, -inf
  %v2831 = vmax.f32 %v2829, %v2830
  %v2832 = vsel %vm2786, %v2750, -inf
  %v2833 = vmax.f32 %v2831, %v2832
  %v2834 = vsel %vm2786, %v2757, -inf
  %v2835 = vmax.f32 %v2833, %v2834
  %v2836 = vsel %vm2786, %v2758, -inf
  %v2837 = vsel %vm2786, %v2765, -inf
  %v2838 = vmax.f32 %v2836, %v2837
  %v2839 = vsel %vm2786, %v2772, -inf
  %v2840 = vmax.f32 %v2838, %v2839
  %v2841 = vsel %vm2786, %v2779, -inf
  %v2842 = vmax.f32 %v2840, %v2841
  %v2843 = vsel %vm2786, %v2759, -inf
  %v2844 = vsel %vm2786, %v2766, -inf
  %v2845 = vmax.f32 %v2843, %v2844
  %v2846 = vsel %vm2786, %v2773, -inf
  %v2847 = vmax.f32 %v2845, %v2846
  %v2848 = vsel %vm2786, %v2780, -inf
  %v2849 = vmax.f32 %v2847, %v2848
  %v2850 = vsel %vm2786, %v2760, -inf
  %v2851 = vsel %vm2786, %v2767, -inf
  %v2852 = vmax.f32 %v2850, %v2851
  %v2853 = vsel %vm2786, %v2774, -inf
  %v2854 = vmax.f32 %v2852, %v2853
  %v2855 = vsel %vm2786, %v2781, -inf
  %v2856 = vmax.f32 %v2854, %v2855
  %v2857 = vsel %vm2786, %v2761, -inf
  %v2858 = vsel %vm2786, %v2768, -inf
  %v2859 = vmax.f32 %v2857, %v2858
  %v2860 = vsel %vm2786, %v2775, -inf
  %v2861 = vmax.f32 %v2859, %v2860
  %v2862 = vsel %vm2786, %v2782, -inf
  %v2863 = vmax.f32 %v2861, %v2862
  %v2864 = vsel %vm2786, %v2762, -inf
  %v2865 = vsel %vm2786, %v2769, -inf
  %v2866 = vmax.f32 %v2864, %v2865
  %v2867 = vsel %vm2786, %v2776, -inf
  %v2868 = vmax.f32 %v2866, %v2867
  %v2869 = vsel %vm2786, %v2783, -inf
  %v2870 = vmax.f32 %v2868, %v2869
  %v2871 = vsel %vm2786, %v2763, -inf
  %v2872 = vsel %vm2786, %v2770, -inf
  %v2873 = vmax.f32 %v2871, %v2872
  %v2874 = vsel %vm2786, %v2777, -inf
  %v2875 = vmax.f32 %v2873, %v2874
  %v2876 = vsel %vm2786, %v2784, -inf
  %v2877 = vmax.f32 %v2875, %v2876
  %v2878 = vsel %vm2786, %v2764, -inf
  %v2879 = vsel %vm2786, %v2771, -inf
  %v2880 = vmax.f32 %v2878, %v2879
  %v2881 = vsel %vm2786, %v2778, -inf
  %v2882 = vmax.f32 %v2880, %v2881
  %v2883 = vsel %vm2786, %v2785, -inf
  %v2884 = vmax.f32 %v2882, %v2883
  %2885 = vst.msk [vmem:[%s3] sm:$0xff] %vm2786, %v2793
  %2886 = vst.msk [vmem:[%s3 + $0x8] sm:$0xff] %vm2786, %v2800
  %2887 = vst.msk [vmem:[%s3 + $0x10] sm:$0xff] %vm2786, %v2807
  %2888 = vst.msk [vmem:[%s3 + $0x18] sm:$0xff] %vm2786, %v2814
  %2889 = vst.msk [vmem:[%s3 + $0x20] sm:$0xff] %vm2786, %v2821
  %2890 = vst.msk [vmem:[%s3 + $0x28] sm:$0xff] %vm2786, %v2828
  %2891 = vst.msk [vmem:[%s3 + $0x30] sm:$0xff] %vm2786, %v2835
  %2892 = vst.msk [vmem:[%s3 + $0x38] sm:$0xff] %vm2786, %v2842
  %2893 = vst.msk [vmem:[%s3 + $0x40] sm:$0xff] %vm2786, %v2849
  %2894 = vst.msk [vmem:[%s3 + $0x48] sm:$0xff] %vm2786, %v2856
  %2895 = vst.msk [vmem:[%s3 + $0x50] sm:$0xff] %vm2786, %v2863
  %2896 = vst.msk [vmem:[%s3 + $0x58] sm:$0xff] %vm2786, %v2870
  %2897 = vst.msk [vmem:[%s3 + $0x60] sm:$0xff] %vm2786, %v2877
  %2898 = vst.msk [vmem:[%s3 + $0x68] sm:$0xff] %vm2786, %v2884
  // Predicated region
  $region14: #{flnet_forward.4} parent=0 // pred_check
    _
  $region15: #{flnet_forward.4} parent=0 // pred_check_branch
    %2900 = sbr.rel (0) target = $region17
  $region16: #{flnet_forward.4} parent=0 // pred_region
    _
  $region17: #{flnet_forward.4} parent=0 // pred_fallthru
    _
  // Predicated region
  $region18: #{flnet_forward.4} parent=0 // pred_check
    _
  $region19: #{flnet_forward.4} parent=0 // pred_check_branch
    %2902 = sbr.rel (0) target = $region21
  $region20: #{flnet_forward.4} parent=0 // pred_region
    _
  $region21: #{flnet_forward.4} parent=0 // pred_fallthru
    _

// kernel: flnet_forward.5
$region0: #{flnet_forward.5}
  #allocation0 [shape = 'u32[]', space=smem, size = 0x4, offset = 0x4, fixed_abs, tag = 'smem constant byte address 0x4 - core index']
  #allocation1 [shape = 'u32[144,128]{1,0:T(1,128)}', space=vmem, size = 0x12000, scoped, tag = 'internal scratch']
  %s0 = inlined_call_operand.vmem [shape: bf16[2,3136], index: 0, kind: input, shape index: {}]
  %s1 = inlined_call_operand.vmem [shape: bf16[512,3136], index: 1, kind: input, shape index: {}]
  %s2 = inlined_call_operand.vmem [shape: f32[1,512], index: 2, kind: input, shape index: {}]
  %s3 = inlined_call_operand.vmem [shape: bf16[10,512], index: 3, kind: input, shape index: {}]
  %s4 = inlined_call_operand.vmem [shape: f32[4,2,10], index: 4, kind: output, shape index: {}]
  %s5 = sld [smem:[#allocation0]]
  $region90: #{flnet_forward.5} parent=0
    _
  %s7 = ssub.s32 1, %s5
  %s8 = scalar_select 0, %s7, %s5
  $region1: #{flnet_forward.5} parent=0
    #allocation2 [shape = 'u8[8192]{0}', space=vmem, size = 0x2000, scoped, tag = 'input window, operand 3']
    loop: start=0, step=1, limit=6
    $region2: #{flnet_forward.5} parent=1 // loop_pre_header
      _
    $region3: #{flnet_forward.5} parent=1 // loop_header
      %s10 = sphi 0, %s14
      %p11 = scmp.ge.s32.totalorder %s10, 6
      %s18 = sphi 0, %s18
      %s20 = sphi 0, %s18
      %s21 = sphi 0, %s20
      %s35 = sphi 0, %s21
      %s41 = sphi 0, %s43
      %s44 = sphi 0, %s41
      %s45 = sphi 0, %s44
      %s61 = sphi 0, %s45
      %s67 = sphi 0, %s69
      %s70 = sphi 0, %s67
      %s71 = sphi 0, %s70
      %s87 = sphi 0, %s71
      %s93 = sphi 0, %s95
      %s96 = sphi 0, %s93
      %s97 = sphi 0, %s96
      %s113 = sphi 0, %s97
      %s119 = sphi 0, %s121
      %s122 = sphi 0, %s119
      %s123 = sphi 0, %s122
      %s139 = sphi 0, %s123
    $region4: #{flnet_forward.5} parent=1 // loop_header_branch
      %13 = sbr.rel (%p11) target = $region8
    $region5: #{flnet_forward.5} parent=1 // loop_body
      %s15 = ssub.s32 %s10, 1
      %s16 = ssub.s32 %s10, 2
      %s17 = sadd.s32 %s10, 1
      %s19 = sadd.s32 %s18, 1
      %p22 = scmp.eq.s32.totalorder %s10, 3
      %p23 = scmp.ne.s32.totalorder %s18, %s20
      %p24 = scmp.eq.s32.totalorder %s10, 0
      %p25 = por %p23, %p24
      %p26 = scmp.ne.s32.totalorder %s18, %s20
      %p27 = scmp.eq.s32.totalorder %s15, 3
      %p28 = por %p26, %p27
      %p29 = scmp.ne.s32.totalorder %s20, %s21
      %p30 = scmp.eq.s32.totalorder %s15, 0
      %p31 = por %p29, %p30
      %p32 = scmp.ne.s32.totalorder %s20, %s21
      %p33 = scmp.eq.s32.totalorder %s16, 3
      %p34 = por %p32, %p33
      %p36 = scmp.ne.s32.totalorder %s21, %s35
      %p37 = scmp.eq.s32.totalorder %s16, 0
      %p38 = por %p36, %p37
      %s39 = ssub.s32 %s10, %s17
      %p40 = scmp.eq.s32.totalorder %s39, 0
      %s42 = sadd.s32 %s41, 1
      %s43 = scalar_select %p40, %s41, %s42
      %p46 = pneg %p40
      %p47 = scmp.eq.s32.totalorder %s10, 3
      %p48 = por %p46, %p47
      %p49 = scmp.ne.s32.totalorder %s41, %s44
      %p50 = scmp.eq.s32.totalorder %s10, 0
      %p51 = por %p49, %p50
      %p52 = scmp.ne.s32.totalorder %s41, %s44
      %p53 = scmp.eq.s32.totalorder %s15, 3
      %p54 = por %p52, %p53
      %p55 = scmp.ne.s32.totalorder %s44, %s45
      %p56 = scmp.eq.s32.totalorder %s15, 0
      %p57 = por %p55, %p56
      %p58 = scmp.ne.s32.totalorder %s44, %s45
      %p59 = scmp.eq.s32.totalorder %s16, 3
      %p60 = por %p58, %p59
      %p62 = scmp.ne.s32.totalorder %s45, %s61
      %p63 = scmp.eq.s32.totalorder %s16, 0
      %p64 = por %p62, %p63
      %s65 = ssub.s32 %s10, %s17
      %p66 = scmp.eq.s32.totalorder %s65, 0
      %s68 = sadd.s32 %s67, 1
      %s69 = scalar_select %p66, %s67, %s68
      %p72 = pneg %p66
      %p73 = scmp.eq.s32.totalorder %s10, 3
      %p74 = por %p72, %p73
      %p75 = scmp.ne.s32.totalorder %s67, %s70
      %p76 = scmp.eq.s32.totalorder %s10, 0
      %p77 = por %p75, %p76
      %p78 = scmp.ne.s32.totalorder %s67, %s70
      %p79 = scmp.eq.s32.totalorder %s15, 3
      %p80 = por %p78, %p79
      %p81 = scmp.ne.s32.totalorder %s70, %s71
      %p82 = scmp.eq.s32.totalorder %s15, 0
      %p83 = por %p81, %p82
      %p84 = scmp.ne.s32.totalorder %s70, %s71
      %p85 = scmp.eq.s32.totalorder %s16, 3
      %p86 = por %p84, %p85
      %p88 = scmp.ne.s32.totalorder %s71, %s87
      %p89 = scmp.eq.s32.totalorder %s16, 0
      %p90 = por %p88, %p89
      %s91 = ssub.s32 %s10, %s17
      %p92 = scmp.eq.s32.totalorder %s91, 0
      %s94 = sadd.s32 %s93, 1
      %s95 = scalar_select %p92, %s93, %s94
      %p98 = pneg %p92
      %p99 = scmp.eq.s32.totalorder %s10, 3
      %p100 = por %p98, %p99
      %p101 = scmp.ne.s32.totalorder %s93, %s96
      %p102 = scmp.eq.s32.totalorder %s10, 0
      %p103 = por %p101, %p102
      %p104 = scmp.ne.s32.totalorder %s93, %s96
      %p105 = scmp.eq.s32.totalorder %s15, 3
      %p106 = por %p104, %p105
      %p107 = scmp.ne.s32.totalorder %s96, %s97
      %p108 = scmp.eq.s32.totalorder %s15, 0
      %p109 = por %p107, %p108
      %p110 = scmp.ne.s32.totalorder %s96, %s97
      %p111 = scmp.eq.s32.totalorder %s16, 3
      %p112 = por %p110, %p111
      %p114 = scmp.ne.s32.totalorder %s97, %s113
      %p115 = scmp.eq.s32.totalorder %s16, 0
      %p116 = por %p114, %p115
      %s117 = ssub.s32 %s10, %s17
      %p118 = scmp.eq.s32.totalorder %s117, 0
      %s120 = sadd.s32 %s119, 1
      %s121 = scalar_select %p118, %s119, %s120
      %p124 = pneg %p118
      %p125 = scmp.eq.s32.totalorder %s10, 3
      %p126 = por %p124, %p125
      %p127 = scmp.ne.s32.totalorder %s119, %s122
      %p128 = scmp.eq.s32.totalorder %s10, 0
      %p129 = por %p127, %p128
      %p130 = scmp.ne.s32.totalorder %s119, %s122
      %p131 = scmp.eq.s32.totalorder %s15, 3
      %p132 = por %p130, %p131
      %p133 = scmp.ne.s32.totalorder %s122, %s123
      %p134 = scmp.eq.s32.totalorder %s15, 0
      %p135 = por %p133, %p134
      %p136 = scmp.ne.s32.totalorder %s122, %s123
      %p137 = scmp.eq.s32.totalorder %s16, 3
      %p138 = por %p136, %p137
      %p140 = scmp.ne.s32.totalorder %s123, %s139
      %p141 = scmp.eq.s32.totalorder %s16, 0
      %p142 = por %p140, %p141
      %p143 = scmp.le.s32.totalorder 1, %s10
      %p144 = scmp.lt.s32.totalorder %s10, 5
      %p145 = pnand %p143, %p144
      %p146 = pneg %p145
      // Predicated region
      $region9: #{flnet_forward.5} parent=5 // pred_check
        _
      $region10: #{flnet_forward.5} parent=5 // pred_check_branch
        %148 = sbr.rel (%p145) target = $region12
      $region11: #{flnet_forward.5} parent=5 // pred_region
        %s149 = ssub.s32 %s10, 1
        // Predicated region
        $region13: #{flnet_forward.5} parent=11 // pred_check
          %p150 = pneg %p31
        $region14: #{flnet_forward.5} parent=11 // pred_check_branch
          %152 = sbr.rel (%p150) target = $region16
        $region15: #{flnet_forward.5} parent=11 // pred_region
          _
        $region16: #{flnet_forward.5} parent=11 // pred_fallthru
          _
      $region12: #{flnet_forward.5} parent=5 // pred_fallthru
        _
      %p153 = scmp.lt.s32.totalorder %s10, 4
      // Predicated region
      $region17: #{flnet_forward.5} parent=5 // pred_check
        %p154 = pneg %p153
      $region18: #{flnet_forward.5} parent=5 // pred_check_branch
        %156 = sbr.rel (%p154) target = $region20
      $region19: #{flnet_forward.5} parent=5 // pred_region
        // Predicated region
        $region21: #{flnet_forward.5} parent=19 // pred_check
          %p157 = pneg %p51
        $region22: #{flnet_forward.5} parent=19 // pred_check_branch
          %159 = sbr.rel (%p157) target = $region24
        $region23: #{flnet_forward.5} parent=19 // pred_region
          %s160 = smul.u32 16, %s10
          %p161 = scmp.lt.s32.totalorder %s160, 63
          %s162 = scalar_select %p161, %s160, 63
          %s163 = smul.addr %s162, 25
          %s164 = smul.addr %s163, 4
          %s165 = scalar_lea.vmem %s1, %s164
          %s166 = smul.u32 16, %s10
        $region24: #{flnet_forward.5} parent=19 // pred_fallthru
          _
        // Predicated region
        $region25: #{flnet_forward.5} parent=19 // pred_check
          %p167 = pneg %p77
        $region26: #{flnet_forward.5} parent=19 // pred_check_branch
          %169 = sbr.rel (%p167) target = $region28
        $region27: #{flnet_forward.5} parent=19 // pred_region
          %p170 = scmp.lt.s32.totalorder %s10, 3
          %s171 = scalar_select %p170, %s10, 3
          %s172 = scalar_lea.vmem %s2, %s171
        $region28: #{flnet_forward.5} parent=19 // pred_fallthru
          _
        // Predicated region
        $region29: #{flnet_forward.5} parent=19 // pred_check
          %p173 = pneg %p103
        $region30: #{flnet_forward.5} parent=19 // pred_check_branch
          %175 = sbr.rel (%p173) target = $region32
        $region31: #{flnet_forward.5} parent=19 // pred_region
          %s176 = sand.u32 %s93, 1
          %s177 = sand.u32 %s93, 1
          %s178 = smul.addr %s177, 8
          %s179 = scalar_lea.vmem [#allocation2], %s178
          %s180 = smul.addr %s10, 4
          %s181 = scalar_lea.vmem %s3, %s180
          // Predicated region
          $region33: #{flnet_forward.5} parent=31 // pred_check
            _
          $region34: #{flnet_forward.5} parent=31 // pred_check_branch
            %183 = sbr.rel (0) target = $region36
          $region35: #{flnet_forward.5} parent=31 // pred_region
            // Predicated region
            $region37: #{flnet_forward.5} parent=35 // pred_check
              _
            $region38: #{flnet_forward.5} parent=35 // pred_check_branch
              %185 = sbr.rel target = $region40
            $region39: #{flnet_forward.5} parent=35 // pred_region
              // Predicated region
              $region52: #{flnet_forward.5} parent=39 // pred_check
                _
              $region53: #{flnet_forward.5} parent=39 // pred_check_branch
                %202 = sbr.rel (0) target = $region55
              $region54: #{flnet_forward.5} parent=39 // pred_region
                loop: start=0, step=1, limit=1
                $region56: #{flnet_forward.5} parent=54 // loop_pre_header
                  _
                $region57: #{flnet_forward.5} parent=54 // loop_header
                  %s204 = sphi 0, %s208
                  %p205 = scmp.ge.s32.totalorder %s204, 1
                  %s209 = sphi %s181, %s181
                  %s210 = sphi %s179, %s179
                $region58: #{flnet_forward.5} parent=54 // loop_header_branch
                  %207 = sbr.rel (%p205) target = $region62
                $region59: #{flnet_forward.5} parent=54 // loop_body
                  _
                $region60: #{flnet_forward.5} parent=54 // loop_footer
                  %s208 = sadd.s32 1, %s204
                $region61: #{flnet_forward.5} parent=54 // loop_footer_branch
                  %203 = sbr.rel target = $region57
                $region62: #{flnet_forward.5} parent=54 // loop_exit
                  _
                loop: start=0, step=1, limit=1
                $region63: #{flnet_forward.5} parent=54 // loop_pre_header
                  _
                $region64: #{flnet_forward.5} parent=54 // loop_header
                  %s213 = sphi 0, %s217
                  %p214 = scmp.ge.s32.totalorder %s213, 1
                  %s218 = sphi %s181, %s181
                  %s219 = sphi %s179, %s179
                $region65: #{flnet_forward.5} parent=54 // loop_header_branch
                  %216 = sbr.rel (%p214) target = $region69
                $region66: #{flnet_forward.5} parent=54 // loop_body
                  %v220 = vld [vmem:[%s218] sm:$0xf]
                  %221 = vst [vmem:[%s219] sm:$0xf] %v220
                  %v222 = vld [vmem:[%s218 + $0x10] sm:$0xf]
                  %223 = vst [vmem:[%s219 + $0x4] sm:$0xf] %v222
                $region67: #{flnet_forward.5} parent=54 // loop_footer
                  %s217 = sadd.s32 1, %s213
                $region68: #{flnet_forward.5} parent=54 // loop_footer_branch
                  %212 = sbr.rel target = $region64
                $region69: #{flnet_forward.5} parent=54 // loop_exit
                  _
              $region55: #{flnet_forward.5} parent=39 // pred_fallthru
                _
            $region40: #{flnet_forward.5} parent=35 // pred_fallthru
              _
            // Predicated region
            $region41: #{flnet_forward.5} parent=35 // pred_check
              _
            $region42: #{flnet_forward.5} parent=35 // pred_check_branch
              %187 = sbr.rel (0) target = $region44
            $region43: #{flnet_forward.5} parent=35 // pred_region
              loop: start=0, step=1, limit=1
              $region45: #{flnet_forward.5} parent=43 // loop_pre_header
                _
              $region46: #{flnet_forward.5} parent=43 // loop_header
                %s190 = sphi 0, %s194
                %p191 = scmp.ge.s32.totalorder %s190, 1
                %s195 = sphi %s181, %s181
                %s196 = sphi %s179, %s179
              $region47: #{flnet_forward.5} parent=43 // loop_header_branch
                %193 = sbr.rel (%p191) target = $region51
              $region48: #{flnet_forward.5} parent=43 // loop_body
                %v197 = vld [vmem:[%s195] sm:$0xf]
                %198 = vst [vmem:[%s196] sm:$0xf] %v197
                %v199 = vld [vmem:[%s195 + $0x10] sm:$0xf]
                %200 = vst [vmem:[%s196 + $0x4] sm:$0xf] %v199
              $region49: #{flnet_forward.5} parent=43 // loop_footer
                %s194 = sadd.s32 1, %s190
              $region50: #{flnet_forward.5} parent=43 // loop_footer_branch
                %189 = sbr.rel target = $region46
              $region51: #{flnet_forward.5} parent=43 // loop_exit
                _
            $region44: #{flnet_forward.5} parent=35 // pred_fallthru
              _
          $region36: #{flnet_forward.5} parent=31 // pred_fallthru
            _
          %224 = vnop
        $region32: #{flnet_forward.5} parent=19 // pred_fallthru
          _
      $region20: #{flnet_forward.5} parent=5 // pred_fallthru
        _
      %p225 = scmp.le.s32.totalorder 1, %s10
      %p226 = scmp.lt.s32.totalorder %s10, 5
      %p227 = pnand %p225, %p226
      %p228 = pneg %p227
      // Predicated region
      $region70: #{flnet_forward.5} parent=5 // pred_check
        _
      $region71: #{flnet_forward.5} parent=5 // pred_check_branch
        %230 = sbr.rel (%p227) target = $region73
      $region72: #{flnet_forward.5} parent=5 // pred_region
        %s231 = ssub.s32 %s10, 1
        %s232 = sand.u32 %s96, 1
        %s233 = sand.u32 %s96, 1
        %s234 = smul.addr %s233, 8
        %s235 = scalar_lea.vmem [#allocation2], %s234
        // Predicated region
        $region74: #{flnet_forward.5} parent=72 // pred_check
          %p236 = pneg %p109
        $region75: #{flnet_forward.5} parent=72 // pred_check_branch
          %238 = sbr.rel (%p236) target = $region77
        $region76: #{flnet_forward.5} parent=72 // pred_region
          _
        $region77: #{flnet_forward.5} parent=72 // pred_fallthru
          _
        %p239 = pneg %p31
        %p240 = pneg %p28
        %s241 = smul.u32 16, %s15
        %p242 = scmp.lt.s32.totalorder %s241, 63
        %s243 = scalar_select %p242, %s241, 63
        %s244 = smul.addr %s243, 25
        %s245 = smul.addr %s244, 4
        %s246 = scalar_lea.vmem %s1, %s245
        %p247 = pneg %p57
        %p248 = pneg %p54
        %p249 = scmp.lt.s32.totalorder %s15, 3
        %s250 = scalar_select %p249, %s15, 3
        %s251 = scalar_lea.vmem %s2, %s250
        %p252 = pneg %p83
        %p253 = pneg %p80
        %s254 = sand.u32 %s96, 1
        %s255 = sand.u32 %s96, 1
        %s256 = smul.addr %s255, 8
        %s257 = scalar_lea.vmem [#allocation2], %s256
        %p258 = pneg %p109
        %p259 = pneg %p106
        %p260 = pneg %p135
        %p261 = pneg %p132
        %p262 = scmp.lt.s32.totalorder %s15, 3
        %s263 = scalar_select %p262, %s15, 3
        %s264 = smul.addr %s263, 2
        %s265 = scalar_lea.vmem %s4, %s264
        %s266 = smul.u32 16, %s15
        %p267 = scmp.lt.s32.totalorder %s266, 63
        %s268 = scalar_select %p267, %s266, 63
        %s269 = smul.addr %s268, 25
        %s270 = smul.addr %s269, 4
        %s271 = scalar_lea.vmem %s1, %s270
        %s272 = smul.u32 16, %s15
        %p273 = scmp.lt.s32.totalorder %s15, 3
        %s274 = scalar_select %p273, %s15, 3
        %s275 = scalar_lea.vmem %s2, %s274
        %p276 = scmp.lt.s32.totalorder %s15, 3
        %s277 = scalar_select %p276, %s15, 3
        %s278 = smul.addr %s277, 2
        %s279 = scalar_lea.vmem %s4, %s278
        %v281 = vld [vmem:[%s0] sm:$0xff]
        %v282 = vld [vmem:[%s0 + $0x8] sm:$0xff]
        %v283 = vld [vmem:[%s0 + $0x10] sm:$0xff]
        %v284 = vld [vmem:[%s0 + $0x18] sm:$0x1]
        %v285 = vld [vmem:[%s271] sm:$0xff]
        %v286 = vld [vmem:[%s271 + $0x8] sm:$0xff]
        %v287 = vld [vmem:[%s271 + $0x10] sm:$0xff]
        %v288 = vld [vmem:[%s271 + $0x18] sm:$0xff]
        %v289 = vld [vmem:[%s271 + $0x20] sm:$0xff]
        %v290 = vld [vmem:[%s271 + $0x28] sm:$0xff]
        %v291 = vld [vmem:[%s271 + $0x30] sm:$0xff]
        %v292 = vld [vmem:[%s271 + $0x38] sm:$0xff]
        %v293 = vld [vmem:[%s271 + $0x40] sm:$0xff]
        %v294 = vld [vmem:[%s271 + $0x48] sm:$0xff]
        %v295 = vld [vmem:[%s271 + $0x50] sm:$0xff]
        %v296 = vld [vmem:[%s271 + $0x58] sm:$0xff]
        %v297 = vld [vmem:[%s271 + $0x60] sm:$0xf]
        %v298 = vld [vmem:[%s271 + $0x64] sm:$0xff]
        %v299 = vld [vmem:[%s271 + $0x6c] sm:$0xff]
        %v300 = vld [vmem:[%s271 + $0x74] sm:$0xff]
        %v301 = vld [vmem:[%s271 + $0x7c] sm:$0xff]
        %v302 = vld [vmem:[%s271 + $0x84] sm:$0xff]
        %v303 = vld [vmem:[%s271 + $0x8c] sm:$0xff]
        %v304 = vld [vmem:[%s271 + $0x94] sm:$0xff]
        %v305 = vld [vmem:[%s271 + $0x9c] sm:$0xff]
        %v306 = vld [vmem:[%s271 + $0xa4] sm:$0xff]
        %v307 = vld [vmem:[%s271 + $0xac] sm:$0xff]
        %v308 = vld [vmem:[%s271 + $0xb4] sm:$0xff]
        %v309 = vld [vmem:[%s271 + $0xbc] sm:$0xff]
        %v310 = vld [vmem:[%s271 + $0xc4] sm:$0xf]
        %v311 = vld [vmem:[%s271 + $0xc8] sm:$0xff]
        %v312 = vld [vmem:[%s271 + $0xd0] sm:$0xff]
        %v313 = vld [vmem:[%s271 + $0xd8] sm:$0xff]
        %v314 = vld [vmem:[%s271 + $0xe0] sm:$0xff]
        %v315 = vld [vmem:[%s271 + $0xe8] sm:$0xff]
        %v316 = vld [vmem:[%s271 + $0xf0] sm:$0xff]
        %v317 = vld [vmem:[%s271 + $0xf8] sm:$0xff]
        %v318 = vld [vmem:[%s271 + $0x100] sm:$0xff]
        %v319 = vld [vmem:[%s271 + $0x108] sm:$0xff]
        %v320 = vld [vmem:[%s271 + $0x110] sm:$0xff]
        %v321 = vld [vmem:[%s271 + $0x118] sm:$0xff]
        %v322 = vld [vmem:[%s271 + $0x120] sm:$0xff]
        %v323 = vld [vmem:[%s271 + $0x128] sm:$0xf]
        %v324 = vld [vmem:[%s271 + $0x12c] sm:$0xff]
        %v325 = vld [vmem:[%s271 + $0x134] sm:$0xff]
        %v326 = vld [vmem:[%s271 + $0x13c] sm:$0xff]
        %v327 = vld [vmem:[%s271 + $0x144] sm:$0xff]
        %v328 = vld [vmem:[%s271 + $0x14c] sm:$0xff]
        %v329 = vld [vmem:[%s271 + $0x154] sm:$0xff]
        %v330 = vld [vmem:[%s271 + $0x15c] sm:$0xff]
        %v331 = vld [vmem:[%s271 + $0x164] sm:$0xff]
        %v332 = vld [vmem:[%s271 + $0x16c] sm:$0xff]
        %v333 = vld [vmem:[%s271 + $0x174] sm:$0xff]
        %v334 = vld [vmem:[%s271 + $0x17c] sm:$0xff]
        %v335 = vld [vmem:[%s271 + $0x184] sm:$0xff]
        %v336 = vld [vmem:[%s271 + $0x18c] sm:$0xf]
        %v337 = vld [vmem:[%s271 + $0x190] sm:$0xff]
        %v338 = vld [vmem:[%s271 + $0x198] sm:$0xff]
        %v339 = vld [vmem:[%s271 + $0x1a0] sm:$0xff]
        %v340 = vld [vmem:[%s271 + $0x1a8] sm:$0xff]
        %v341 = vld [vmem:[%s271 + $0x1b0] sm:$0xff]
        %v342 = vld [vmem:[%s271 + $0x1b8] sm:$0xff]
        %v343 = vld [vmem:[%s271 + $0x1c0] sm:$0xff]
        %v344 = vld [vmem:[%s271 + $0x1c8] sm:$0xff]
        %v345 = vld [vmem:[%s271 + $0x1d0] sm:$0xff]
        %v346 = vld [vmem:[%s271 + $0x1d8] sm:$0xff]
        %v347 = vld [vmem:[%s271 + $0x1e0] sm:$0xff]
        %v348 = vld [vmem:[%s271 + $0x1e8] sm:$0xff]
        %v349 = vld [vmem:[%s271 + $0x1f0] sm:$0xf]
        %v350 = vld [vmem:[%s271 + $0x1f4] sm:$0xff]
        %v351 = vld [vmem:[%s271 + $0x1fc] sm:$0xff]
        %v352 = vld [vmem:[%s271 + $0x204] sm:$0xff]
        %v353 = vld [vmem:[%s271 + $0x20c] sm:$0xff]
        %v354 = vld [vmem:[%s271 + $0x214] sm:$0xff]
        %v355 = vld [vmem:[%s271 + $0x21c] sm:$0xff]
        %v356 = vld [vmem:[%s271 + $0x224] sm:$0xff]
        %v357 = vld [vmem:[%s271 + $0x22c] sm:$0xff]
        %v358 = vld [vmem:[%s271 + $0x234] sm:$0xff]
        %v359 = vld [vmem:[%s271 + $0x23c] sm:$0xff]
        %v360 = vld [vmem:[%s271 + $0x244] sm:$0xff]
        %v361 = vld [vmem:[%s271 + $0x24c] sm:$0xff]
        %v362 = vld [vmem:[%s271 + $0x254] sm:$0xf]
        %v363 = vld [vmem:[%s271 + $0x258] sm:$0xff]
        %v364 = vld [vmem:[%s271 + $0x260] sm:$0xff]
        %v365 = vld [vmem:[%s271 + $0x268] sm:$0xff]
        %v366 = vld [vmem:[%s271 + $0x270] sm:$0xff]
        %v367 = vld [vmem:[%s271 + $0x278] sm:$0xff]
        %v368 = vld [vmem:[%s271 + $0x280] sm:$0xff]
        %v369 = vld [vmem:[%s271 + $0x288] sm:$0xff]
        %v370 = vld [vmem:[%s271 + $0x290] sm:$0xff]
        %v371 = vld [vmem:[%s271 + $0x298] sm:$0xff]
        %v372 = vld [vmem:[%s271 + $0x2a0] sm:$0xff]
        %v373 = vld [vmem:[%s271 + $0x2a8] sm:$0xff]
        %v374 = vld [vmem:[%s271 + $0x2b0] sm:$0xff]
        %v375 = vld [vmem:[%s271 + $0x2b8] sm:$0xf]
        %v376 = vld [vmem:[%s271 + $0x2bc] sm:$0xff]
        %v377 = vld [vmem:[%s271 + $0x2c4] sm:$0xff]
        %v378 = vld [vmem:[%s271 + $0x2cc] sm:$0xff]
        %v379 = vld [vmem:[%s271 + $0x2d4] sm:$0xff]
        %v380 = vld [vmem:[%s271 + $0x2dc] sm:$0xff]
        %v381 = vld [vmem:[%s271 + $0x2e4] sm:$0xff]
        %v382 = vld [vmem:[%s271 + $0x2ec] sm:$0xff]
        %v383 = vld [vmem:[%s271 + $0x2f4] sm:$0xff]
        %v384 = vld [vmem:[%s271 + $0x2fc] sm:$0xff]
        %v385 = vld [vmem:[%s271 + $0x304] sm:$0xff]
        %v386 = vld [vmem:[%s271 + $0x30c] sm:$0xff]
        %v387 = vld [vmem:[%s271 + $0x314] sm:$0xff]
        %v388 = vld [vmem:[%s271 + $0x31c] sm:$0xf]
        %v389 = vld [vmem:[%s271 + $0x320] sm:$0xff]
        %v390 = vld [vmem:[%s271 + $0x328] sm:$0xff]
        %v391 = vld [vmem:[%s271 + $0x330] sm:$0xff]
        %v392 = vld [vmem:[%s271 + $0x338] sm:$0xff]
        %v393 = vld [vmem:[%s271 + $0x340] sm:$0xff]
        %v394 = vld [vmem:[%s271 + $0x348] sm:$0xff]
        %v395 = vld [vmem:[%s271 + $0x350] sm:$0xff]
        %v396 = vld [vmem:[%s271 + $0x358] sm:$0xff]
        %v397 = vld [vmem:[%s271 + $0x360] sm:$0xff]
        %v398 = vld [vmem:[%s271 + $0x368] sm:$0xff]
        %v399 = vld [vmem:[%s271 + $0x370] sm:$0xff]
        %v400 = vld [vmem:[%s271 + $0x378] sm:$0xff]
        %v401 = vld [vmem:[%s271 + $0x380] sm:$0xf]
        %v402 = vld [vmem:[%s271 + $0x384] sm:$0xff]
        %v403 = vld [vmem:[%s271 + $0x38c] sm:$0xff]
        %v404 = vld [vmem:[%s271 + $0x394] sm:$0xff]
        %v405 = vld [vmem:[%s271 + $0x39c] sm:$0xff]
        %v406 = vld [vmem:[%s271 + $0x3a4] sm:$0xff]
        %v407 = vld [vmem:[%s271 + $0x3ac] sm:$0xff]
        %v408 = vld [vmem:[%s271 + $0x3b4] sm:$0xff]
        %v409 = vld [vmem:[%s271 + $0x3bc] sm:$0xff]
        %v410 = vld [vmem:[%s271 + $0x3c4] sm:$0xff]
        %v411 = vld [vmem:[%s271 + $0x3cc] sm:$0xff]
        %v412 = vld [vmem:[%s271 + $0x3d4] sm:$0xff]
        %v413 = vld [vmem:[%s271 + $0x3dc] sm:$0xff]
        %v414 = vld [vmem:[%s271 + $0x3e4] sm:$0xf]
        %v415 = vld [vmem:[%s271 + $0x3e8] sm:$0xff]
        %v416 = vld [vmem:[%s271 + $0x3f0] sm:$0xff]
        %v417 = vld [vmem:[%s271 + $0x3f8] sm:$0xff]
        %v418 = vld [vmem:[%s271 + $0x400] sm:$0xff]
        %v419 = vld [vmem:[%s271 + $0x408] sm:$0xff]
        %v420 = vld [vmem:[%s271 + $0x410] sm:$0xff]
        %v421 = vld [vmem:[%s271 + $0x418] sm:$0xff]
        %v422 = vld [vmem:[%s271 + $0x420] sm:$0xff]
        %v423 = vld [vmem:[%s271 + $0x428] sm:$0xff]
        %v424 = vld [vmem:[%s271 + $0x430] sm:$0xff]
        %v425 = vld [vmem:[%s271 + $0x438] sm:$0xff]
        %v426 = vld [vmem:[%s271 + $0x440] sm:$0xff]
        %v427 = vld [vmem:[%s271 + $0x448] sm:$0xf]
        %v428 = vld [vmem:[%s271 + $0x44c] sm:$0xff]
        %v429 = vld [vmem:[%s271 + $0x454] sm:$0xff]
        %v430 = vld [vmem:[%s271 + $0x45c] sm:$0xff]
        %v431 = vld [vmem:[%s271 + $0x464] sm:$0xff]
        %v432 = vld [vmem:[%s271 + $0x46c] sm:$0xff]
        %v433 = vld [vmem:[%s271 + $0x474] sm:$0xff]
        %v434 = vld [vmem:[%s271 + $0x47c] sm:$0xff]
        %v435 = vld [vmem:[%s271 + $0x484] sm:$0xff]
        %v436 = vld [vmem:[%s271 + $0x48c] sm:$0xff]
        %v437 = vld [vmem:[%s271 + $0x494] sm:$0xff]
        %v438 = vld [vmem:[%s271 + $0x49c] sm:$0xff]
        %v439 = vld [vmem:[%s271 + $0x4a4] sm:$0xff]
        %v440 = vld [vmem:[%s271 + $0x4ac] sm:$0xf]
        %v441 = vld [vmem:[%s271 + $0x4b0] sm:$0xff]
        %v442 = vld [vmem:[%s271 + $0x4b8] sm:$0xff]
        %v443 = vld [vmem:[%s271 + $0x4c0] sm:$0xff]
        %v444 = vld [vmem:[%s271 + $0x4c8] sm:$0xff]
        %v445 = vld [vmem:[%s271 + $0x4d0] sm:$0xff]
        %v446 = vld [vmem:[%s271 + $0x4d8] sm:$0xff]
        %v447 = vld [vmem:[%s271 + $0x4e0] sm:$0xff]
        %v448 = vld [vmem:[%s271 + $0x4e8] sm:$0xff]
        %v449 = vld [vmem:[%s271 + $0x4f0] sm:$0xff]
        %v450 = vld [vmem:[%s271 + $0x4f8] sm:$0xff]
        %v451 = vld [vmem:[%s271 + $0x500] sm:$0xff]
        %v452 = vld [vmem:[%s271 + $0x508] sm:$0xff]
        %v453 = vld [vmem:[%s271 + $0x510] sm:$0xf]
        %v454 = vld [vmem:[%s271 + $0x514] sm:$0xff]
        %v455 = vld [vmem:[%s271 + $0x51c] sm:$0xff]
        %v456 = vld [vmem:[%s271 + $0x524] sm:$0xff]
        %v457 = vld [vmem:[%s271 + $0x52c] sm:$0xff]
        %v458 = vld [vmem:[%s271 + $0x534] sm:$0xff]
        %v459 = vld [vmem:[%s271 + $0x53c] sm:$0xff]
        %v460 = vld [vmem:[%s271 + $0x544] sm:$0xff]
        %v461 = vld [vmem:[%s271 + $0x54c] sm:$0xff]
        %v462 = vld [vmem:[%s271 + $0x554] sm:$0xff]
        %v463 = vld [vmem:[%s271 + $0x55c] sm:$0xff]
        %v464 = vld [vmem:[%s271 + $0x564] sm:$0xff]
        %v465 = vld [vmem:[%s271 + $0x56c] sm:$0xff]
        %v466 = vld [vmem:[%s271 + $0x574] sm:$0xf]
        %v467 = vld [vmem:[%s271 + $0x578] sm:$0xff]
        %v468 = vld [vmem:[%s271 + $0x580] sm:$0xff]
        %v469 = vld [vmem:[%s271 + $0x588] sm:$0xff]
        %v470 = vld [vmem:[%s271 + $0x590] sm:$0xff]
        %v471 = vld [vmem:[%s271 + $0x598] sm:$0xff]
        %v472 = vld [vmem:[%s271 + $0x5a0] sm:$0xff]
        %v473 = vld [vmem:[%s271 + $0x5a8] sm:$0xff]
        %v474 = vld [vmem:[%s271 + $0x5b0] sm:$0xff]
        %v475 = vld [vmem:[%s271 + $0x5b8] sm:$0xff]
        %v476 = vld [vmem:[%s271 + $0x5c0] sm:$0xff]
        %v477 = vld [vmem:[%s271 + $0x5c8] sm:$0xff]
        %v478 = vld [vmem:[%s271 + $0x5d0] sm:$0xff]
        %v479 = vld [vmem:[%s271 + $0x5d8] sm:$0xf]
        %v480 = vld [vmem:[%s271 + $0x5dc] sm:$0xff]
        %v481 = vld [vmem:[%s271 + $0x5e4] sm:$0xff]
        %v482 = vld [vmem:[%s271 + $0x5ec] sm:$0xff]
        %v483 = vld [vmem:[%s271 + $0x5f4] sm:$0xff]
        %v484 = vld [vmem:[%s271 + $0x5fc] sm:$0xff]
        %v485 = vld [vmem:[%s271 + $0x604] sm:$0xff]
        %v486 = vld [vmem:[%s271 + $0x60c] sm:$0xff]
        %v487 = vld [vmem:[%s271 + $0x614] sm:$0xff]
        %v488 = vld [vmem:[%s271 + $0x61c] sm:$0xff]
        %v489 = vld [vmem:[%s271 + $0x624] sm:$0xff]
        %v490 = vld [vmem:[%s271 + $0x62c] sm:$0xff]
        %v491 = vld [vmem:[%s271 + $0x634] sm:$0xff]
        %v492 = vld [vmem:[%s271 + $0x63c] sm:$0xf]
        %v493 = vld [vmem:[%s275] sm:$0x1]
        %v495 = vlaneseq
        %v496 = vshrl.u32 %v495, 7
        %v497 = vsub.s32 0, %v496
        %v498 = vrot.slane %v493, %v497
        %v504 = vcombine.high %v281, %v281
        %v506 = vunpack.c.l.s4 1966171168
        %v507 = vunpack.c.0.s8 %v506
        %v508 = vlaneseq
        %v509 = vshrl.u32 %v508, 7
        %v510 = vsub.s32 %v507, %v509
        %v511 = vrot.slane %v281, %v510
        %v513 = vunpack.c.l.s4 1966171168
        %v514 = vunpack.c.0.s8 %v513
        %v515 = vlaneseq
        %v516 = vshrl.u32 %v515, 7
        %v517 = vsub.s32 %v514, %v516
        %v518 = vrot.slane %v504, %v517
        %v519 = vcombine.high %v511, %v511
        %v520 = vcombine.high %v518, %v518
        %v522 = vunpack.c.l.s4 1966171168
        %v523 = vunpack.c.0.s8 %v522
        %v524 = vlaneseq
        %v525 = vshrl.u32 %v524, 7
        %v526 = vsub.s32 %v523, %v525
        %v527 = vrot.slane %v511, %v526
        %v529 = vunpack.c.l.s4 1966171168
        %v530 = vunpack.c.0.s8 %v529
        %v531 = vlaneseq
        %v532 = vshrl.u32 %v531, 7
        %v533 = vsub.s32 %v530, %v532
        %v534 = vrot.slane %v518, %v533
        %v536 = vunpack.c.l.s4 1966171168
        %v537 = vunpack.c.0.s8 %v536
        %v538 = vlaneseq
        %v539 = vshrl.u32 %v538, 7
        %v540 = vsub.s32 %v537, %v539
        %v541 = vrot.slane %v519, %v540
        %v543 = vunpack.c.l.s4 1966171168
        %v544 = vunpack.c.0.s8 %v543
        %v545 = vlaneseq
        %v546 = vshrl.u32 %v545, 7
        %v547 = vsub.s32 %v544, %v546
        %v548 = vrot.slane %v520, %v547
        %v549 = vcombine.high %v527, %v527
        %v550 = vcombine.high %v534, %v534
        %v551 = vcombine.high %v541, %v541
        %v552 = vcombine.high %v548, %v548
        %v553 = vcombine.high %v282, %v282
        %v555 = vunpack.c.l.s4 1966171168
        %v556 = vunpack.c.0.s8 %v555
        %v557 = vlaneseq
        %v558 = vshrl.u32 %v557, 7
        %v559 = vsub.s32 %v556, %v558
        %v560 = vrot.slane %v282, %v559
        %v562 = vunpack.c.l.s4 1966171168
        %v563 = vunpack.c.0.s8 %v562
        %v564 = vlaneseq
        %v565 = vshrl.u32 %v564, 7
        %v566 = vsub.s32 %v563, %v565
        %v567 = vrot.slane %v553, %v566
        %v568 = vcombine.high %v560, %v560
        %v569 = vcombine.high %v567, %v567
        %v571 = vunpack.c.l.s4 1966171168
        %v572 = vunpack.c.0.s8 %v571
        %v573 = vlaneseq
        %v574 = vshrl.u32 %v573, 7
        %v575 = vsub.s32 %v572, %v574
        %v576 = vrot.slane %v560, %v575
        %v578 = vunpack.c.l.s4 1966171168
        %v579 = vunpack.c.0.s8 %v578
        %v580 = vlaneseq
        %v581 = vshrl.u32 %v580, 7
        %v582 = vsub.s32 %v579, %v581
        %v583 = vrot.slane %v567, %v582
        %v585 = vunpack.c.l.s4 1966171168
        %v586 = vunpack.c.0.s8 %v585
        %v587 = vlaneseq
        %v588 = vshrl.u32 %v587, 7
        %v589 = vsub.s32 %v586, %v588
        %v590 = vrot.slane %v568, %v589
        %v592 = vunpack.c.l.s4 1966171168
        %v593 = vunpack.c.0.s8 %v592
        %v594 = vlaneseq
        %v595 = vshrl.u32 %v594, 7
        %v596 = vsub.s32 %v593, %v595
        %v597 = vrot.slane %v569, %v596
        %v598 = vcombine.high %v576, %v576
        %v599 = vcombine.high %v583, %v583
        %v600 = vcombine.high %v590, %v590
        %v601 = vcombine.high %v597, %v597
        %v602 = vcombine.high %v283, %v283
        %v604 = vunpack.c.l.s4 1966171168
        %v605 = vunpack.c.0.s8 %v604
        %v606 = vlaneseq
        %v607 = vshrl.u32 %v606, 7
        %v608 = vsub.s32 %v605, %v607
        %v609 = vrot.slane %v283, %v608
        %v611 = vunpack.c.l.s4 1966171168
        %v612 = vunpack.c.0.s8 %v611
        %v613 = vlaneseq
        %v614 = vshrl.u32 %v613, 7
        %v615 = vsub.s32 %v612, %v614
        %v616 = vrot.slane %v602, %v615
        %v617 = vcombine.high %v609, %v609
        %v618 = vcombine.high %v616, %v616
        %v620 = vunpack.c.l.s4 1966171168
        %v621 = vunpack.c.0.s8 %v620
        %v622 = vlaneseq
        %v623 = vshrl.u32 %v622, 7
        %v624 = vsub.s32 %v621, %v623
        %v625 = vrot.slane %v609, %v624
        %v627 = vunpack.c.l.s4 1966171168
        %v628 = vunpack.c.0.s8 %v627
        %v629 = vlaneseq
        %v630 = vshrl.u32 %v629, 7
        %v631 = vsub.s32 %v628, %v630
        %v632 = vrot.slane %v616, %v631
        %v634 = vunpack.c.l.s4 1966171168
        %v635 = vunpack.c.0.s8 %v634
        %v636 = vlaneseq
        %v637 = vshrl.u32 %v636, 7
        %v638 = vsub.s32 %v635, %v637
        %v639 = vrot.slane %v617, %v638
        %v641 = vunpack.c.l.s4 1966171168
        %v642 = vunpack.c.0.s8 %v641
        %v643 = vlaneseq
        %v644 = vshrl.u32 %v643, 7
        %v645 = vsub.s32 %v642, %v644
        %v646 = vrot.slane %v618, %v645
        %v647 = vcombine.high %v625, %v625
        %v648 = vcombine.high %v632, %v632
        %v649 = vcombine.high %v639, %v639
        %v650 = vcombine.high %v646, %v646
        %v652 = vunpack.c.l.s4 1966171168
        %v653 = vunpack.c.0.s8 %v652
        %v654 = vlaneseq
        %v655 = vshrl.u32 %v654, 7
        %v656 = vsub.s32 %v653, %v655
        %v657 = vrot.slane %v284, %v656
        %v659 = vunpack.c.l.s4 1966171168
        %v660 = vunpack.c.0.s8 %v659
        %v661 = vlaneseq
        %v662 = vshrl.u32 %v661, 7
        %v663 = vsub.s32 %v660, %v662
        %v664 = vrot.slane %v657, %v663
        %v897 = vunpack.c.l.b16 %v285
        %v898 = vunpack.c.h.b16 %v285
        %v899 = vunpack.c.l.b16 %v286
        %v900 = vunpack.c.h.b16 %v286
        %v901 = vunpack.c.l.b16 %v287
        %v902 = vunpack.c.h.b16 %v287
        %v903 = vunpack.c.l.b16 %v288
        %v904 = vunpack.c.h.b16 %v288
        %v905 = vunpack.c.l.b16 %v289
        %v906 = vunpack.c.h.b16 %v289
        %v907 = vunpack.c.l.b16 %v290
        %v908 = vunpack.c.h.b16 %v290
        %v909 = vunpack.c.l.b16 %v291
        %v910 = vunpack.c.h.b16 %v291
        %v911 = vunpack.c.l.b16 %v292
        %v912 = vunpack.c.h.b16 %v292
        %v913 = vunpack.c.l.b16 %v293
        %v914 = vunpack.c.h.b16 %v293
        %v915 = vunpack.c.l.b16 %v294
        %v916 = vunpack.c.h.b16 %v294
        %v917 = vunpack.c.l.b16 %v295
        %v918 = vunpack.c.h.b16 %v295
        %v919 = vunpack.c.l.b16 %v296
        %v920 = vunpack.c.h.b16 %v296
        %v921 = vunpack.c.l.b16 %v297
        %v922 = vunpack.c.l.b16 %v298
        %v923 = vunpack.c.h.b16 %v298
        %v924 = vunpack.c.l.b16 %v299
        %v925 = vunpack.c.h.b16 %v299
        %v926 = vunpack.c.l.b16 %v300
        %v927 = vunpack.c.h.b16 %v300
        %v928 = vunpack.c.l.b16 %v301
        %v929 = vunpack.c.h.b16 %v301
        %v930 = vunpack.c.l.b16 %v302
        %v931 = vunpack.c.h.b16 %v302
        %v932 = vunpack.c.l.b16 %v303
        %v933 = vunpack.c.h.b16 %v303
        %v934 = vunpack.c.l.b16 %v304
        %v935 = vunpack.c.h.b16 %v304
        %v936 = vunpack.c.l.b16 %v305
        %v937 = vunpack.c.h.b16 %v305
        %v938 = vunpack.c.l.b16 %v306
        %v939 = vunpack.c.h.b16 %v306
        %v940 = vunpack.c.l.b16 %v307
        %v941 = vunpack.c.h.b16 %v307
        %v942 = vunpack.c.l.b16 %v308
        %v943 = vunpack.c.h.b16 %v308
        %v944 = vunpack.c.l.b16 %v309
        %v945 = vunpack.c.h.b16 %v309
        %v946 = vunpack.c.l.b16 %v310
        %v947 = vunpack.c.l.b16 %v311
        %v948 = vunpack.c.h.b16 %v311
        %v949 = vunpack.c.l.b16 %v312
        %v950 = vunpack.c.h.b16 %v312
        %v951 = vunpack.c.l.b16 %v313
        %v952 = vunpack.c.h.b16 %v313
        %v953 = vunpack.c.l.b16 %v314
        %v954 = vunpack.c.h.b16 %v314
        %v955 = vunpack.c.l.b16 %v315
        %v956 = vunpack.c.h.b16 %v315
        %v957 = vunpack.c.l.b16 %v316
        %v958 = vunpack.c.h.b16 %v316
        %v959 = vunpack.c.l.b16 %v317
        %v960 = vunpack.c.h.b16 %v317
        %v961 = vunpack.c.l.b16 %v318
        %v962 = vunpack.c.h.b16 %v318
        %v963 = vunpack.c.l.b16 %v319
        %v964 = vunpack.c.h.b16 %v319
        %v965 = vunpack.c.l.b16 %v320
        %v966 = vunpack.c.h.b16 %v320
        %v967 = vunpack.c.l.b16 %v321
        %v968 = vunpack.c.h.b16 %v321
        %v969 = vunpack.c.l.b16 %v322
        %v970 = vunpack.c.h.b16 %v322
        %v971 = vunpack.c.l.b16 %v323
        %v972 = vunpack.c.l.b16 %v324
        %v973 = vunpack.c.h.b16 %v324
        %v974 = vunpack.c.l.b16 %v325
        %v975 = vunpack.c.h.b16 %v325
        %v976 = vunpack.c.l.b16 %v326
        %v977 = vunpack.c.h.b16 %v326
        %v978 = vunpack.c.l.b16 %v327
        %v979 = vunpack.c.h.b16 %v327
        %v980 = vunpack.c.l.b16 %v328
        %v981 = vunpack.c.h.b16 %v328
        %v982 = vunpack.c.l.b16 %v329
        %v983 = vunpack.c.h.b16 %v329
        %v984 = vunpack.c.l.b16 %v330
        %v985 = vunpack.c.h.b16 %v330
        %v986 = vunpack.c.l.b16 %v331
        %v987 = vunpack.c.h.b16 %v331
        %v988 = vunpack.c.l.b16 %v332
        %v989 = vunpack.c.h.b16 %v332
        %v990 = vunpack.c.l.b16 %v333
        %v991 = vunpack.c.h.b16 %v333
        %v992 = vunpack.c.l.b16 %v334
        %v993 = vunpack.c.h.b16 %v334
        %v994 = vunpack.c.l.b16 %v335
        %v995 = vunpack.c.h.b16 %v335
        %v996 = vunpack.c.l.b16 %v336
        %v997 = vunpack.c.l.b16 %v337
        %v998 = vunpack.c.h.b16 %v337
        %v999 = vunpack.c.l.b16 %v338
        %v1000 = vunpack.c.h.b16 %v338
        %v1001 = vunpack.c.l.b16 %v339
        %v1002 = vunpack.c.h.b16 %v339
        %v1003 = vunpack.c.l.b16 %v340
        %v1004 = vunpack.c.h.b16 %v340
        %v1005 = vunpack.c.l.b16 %v341
        %v1006 = vunpack.c.h.b16 %v341
        %v1007 = vunpack.c.l.b16 %v342
        %v1008 = vunpack.c.h.b16 %v342
        %v1009 = vunpack.c.l.b16 %v343
        %v1010 = vunpack.c.h.b16 %v343
        %v1011 = vunpack.c.l.b16 %v344
        %v1012 = vunpack.c.h.b16 %v344
        %v1013 = vunpack.c.l.b16 %v345
        %v1014 = vunpack.c.h.b16 %v345
        %v1015 = vunpack.c.l.b16 %v346
        %v1016 = vunpack.c.h.b16 %v346
        %v1017 = vunpack.c.l.b16 %v347
        %v1018 = vunpack.c.h.b16 %v347
        %v1019 = vunpack.c.l.b16 %v348
        %v1020 = vunpack.c.h.b16 %v348
        %v1021 = vunpack.c.l.b16 %v349
        %v1022 = vunpack.c.l.b16 %v350
        %v1023 = vunpack.c.h.b16 %v350
        %v1024 = vunpack.c.l.b16 %v351
        %v1025 = vunpack.c.h.b16 %v351
        %v1026 = vunpack.c.l.b16 %v352
        %v1027 = vunpack.c.h.b16 %v352
        %v1028 = vunpack.c.l.b16 %v353
        %v1029 = vunpack.c.h.b16 %v353
        %v1030 = vunpack.c.l.b16 %v354
        %v1031 = vunpack.c.h.b16 %v354
        %v1032 = vunpack.c.l.b16 %v355
        %v1033 = vunpack.c.h.b16 %v355
        %v1034 = vunpack.c.l.b16 %v356
        %v1035 = vunpack.c.h.b16 %v356
        %v1036 = vunpack.c.l.b16 %v357
        %v1037 = vunpack.c.h.b16 %v357
        %v1038 = vunpack.c.l.b16 %v358
        %v1039 = vunpack.c.h.b16 %v358
        %v1040 = vunpack.c.l.b16 %v359
        %v1041 = vunpack.c.h.b16 %v359
        %v1042 = vunpack.c.l.b16 %v360
        %v1043 = vunpack.c.h.b16 %v360
        %v1044 = vunpack.c.l.b16 %v361
        %v1045 = vunpack.c.h.b16 %v361
        %v1046 = vunpack.c.l.b16 %v362
        %v1047 = vunpack.c.l.b16 %v363
        %v1048 = vunpack.c.h.b16 %v363
        %v1049 = vunpack.c.l.b16 %v364
        %v1050 = vunpack.c.h.b16 %v364
        %v1051 = vunpack.c.l.b16 %v365
        %v1052 = vunpack.c.h.b16 %v365
        %v1053 = vunpack.c.l.b16 %v366
        %v1054 = vunpack.c.h.b16 %v366
        %v1055 = vunpack.c.l.b16 %v367
        %v1056 = vunpack.c.h.b16 %v367
        %v1057 = vunpack.c.l.b16 %v368
        %v1058 = vunpack.c.h.b16 %v368
        %v1059 = vunpack.c.l.b16 %v369
        %v1060 = vunpack.c.h.b16 %v369
        %v1061 = vunpack.c.l.b16 %v370
        %v1062 = vunpack.c.h.b16 %v370
        %v1063 = vunpack.c.l.b16 %v371
        %v1064 = vunpack.c.h.b16 %v371
        %v1065 = vunpack.c.l.b16 %v372
        %v1066 = vunpack.c.h.b16 %v372
        %v1067 = vunpack.c.l.b16 %v373
        %v1068 = vunpack.c.h.b16 %v373
        %v1069 = vunpack.c.l.b16 %v374
        %v1070 = vunpack.c.h.b16 %v374
        %v1071 = vunpack.c.l.b16 %v375
        %v1072 = vunpack.c.l.b16 %v376
        %v1073 = vunpack.c.h.b16 %v376
        %v1074 = vunpack.c.l.b16 %v377
        %v1075 = vunpack.c.h.b16 %v377
        %v1076 = vunpack.c.l.b16 %v378
        %v1077 = vunpack.c.h.b16 %v378
        %v1078 = vunpack.c.l.b16 %v379
        %v1079 = vunpack.c.h.b16 %v379
        %v1080 = vunpack.c.l.b16 %v380
        %v1081 = vunpack.c.h.b16 %v380
        %v1082 = vunpack.c.l.b16 %v381
        %v1083 = vunpack.c.h.b16 %v381
        %v1084 = vunpack.c.l.b16 %v382
        %v1085 = vunpack.c.h.b16 %v382
        %v1086 = vunpack.c.l.b16 %v383
        %v1087 = vunpack.c.h.b16 %v383
        %v1088 = vunpack.c.l.b16 %v384
        %v1089 = vunpack.c.h.b16 %v384
        %v1090 = vunpack.c.l.b16 %v385
        %v1091 = vunpack.c.h.b16 %v385
        %v1092 = vunpack.c.l.b16 %v386
        %v1093 = vunpack.c.h.b16 %v386
        %v1094 = vunpack.c.l.b16 %v387
        %v1095 = vunpack.c.h.b16 %v387
        %v1096 = vunpack.c.l.b16 %v388
        %v1097 = vunpack.c.l.b16 %v389
        %v1098 = vunpack.c.h.b16 %v389
        %v1099 = vunpack.c.l.b16 %v390
        %v1100 = vunpack.c.h.b16 %v390
        %v1101 = vunpack.c.l.b16 %v391
        %v1102 = vunpack.c.h.b16 %v391
        %v1103 = vunpack.c.l.b16 %v392
        %v1104 = vunpack.c.h.b16 %v392
        %v1105 = vunpack.c.l.b16 %v393
        %v1106 = vunpack.c.h.b16 %v393
        %v1107 = vunpack.c.l.b16 %v394
        %v1108 = vunpack.c.h.b16 %v394
        %v1109 = vunpack.c.l.b16 %v395
        %v1110 = vunpack.c.h.b16 %v395
        %v1111 = vunpack.c.l.b16 %v396
        %v1112 = vunpack.c.h.b16 %v396
        %v1113 = vunpack.c.l.b16 %v397
        %v1114 = vunpack.c.h.b16 %v397
        %v1115 = vunpack.c.l.b16 %v398
        %v1116 = vunpack.c.h.b16 %v398
        %v1117 = vunpack.c.l.b16 %v399
        %v1118 = vunpack.c.h.b16 %v399
        %v1119 = vunpack.c.l.b16 %v400
        %v1120 = vunpack.c.h.b16 %v400
        %v1121 = vunpack.c.l.b16 %v401
        %v1122 = vunpack.c.l.b16 %v402
        %v1123 = vunpack.c.h.b16 %v402
        %v1124 = vunpack.c.l.b16 %v403
        %v1125 = vunpack.c.h.b16 %v403
        %v1126 = vunpack.c.l.b16 %v404
        %v1127 = vunpack.c.h.b16 %v404
        %v1128 = vunpack.c.l.b16 %v405
        %v1129 = vunpack.c.h.b16 %v405
        %v1130 = vunpack.c.l.b16 %v406
        %v1131 = vunpack.c.h.b16 %v406
        %v1132 = vunpack.c.l.b16 %v407
        %v1133 = vunpack.c.h.b16 %v407
        %v1134 = vunpack.c.l.b16 %v408
        %v1135 = vunpack.c.h.b16 %v408
        %v1136 = vunpack.c.l.b16 %v409
        %v1137 = vunpack.c.h.b16 %v409
        %v1138 = vunpack.c.l.b16 %v410
        %v1139 = vunpack.c.h.b16 %v410
        %v1140 = vunpack.c.l.b16 %v411
        %v1141 = vunpack.c.h.b16 %v411
        %v1142 = vunpack.c.l.b16 %v412
        %v1143 = vunpack.c.h.b16 %v412
        %v1144 = vunpack.c.l.b16 %v413
        %v1145 = vunpack.c.h.b16 %v413
        %v1146 = vunpack.c.l.b16 %v414
        %v1147 = vunpack.c.l.b16 %v415
        %v1148 = vunpack.c.h.b16 %v415
        %v1149 = vunpack.c.l.b16 %v416
        %v1150 = vunpack.c.h.b16 %v416
        %v1151 = vunpack.c.l.b16 %v417
        %v1152 = vunpack.c.h.b16 %v417
        %v1153 = vunpack.c.l.b16 %v418
        %v1154 = vunpack.c.h.b16 %v418
        %v1155 = vunpack.c.l.b16 %v419
        %v1156 = vunpack.c.h.b16 %v419
        %v1157 = vunpack.c.l.b16 %v420
        %v1158 = vunpack.c.h.b16 %v420
        %v1159 = vunpack.c.l.b16 %v421
        %v1160 = vunpack.c.h.b16 %v421
        %v1161 = vunpack.c.l.b16 %v422
        %v1162 = vunpack.c.h.b16 %v422
        %v1163 = vunpack.c.l.b16 %v423
        %v1164 = vunpack.c.h.b16 %v423
        %v1165 = vunpack.c.l.b16 %v424
        %v1166 = vunpack.c.h.b16 %v424
        %v1167 = vunpack.c.l.b16 %v425
        %v1168 = vunpack.c.h.b16 %v425
        %v1169 = vunpack.c.l.b16 %v426
        %v1170 = vunpack.c.h.b16 %v426
        %v1171 = vunpack.c.l.b16 %v427
        %v1172 = vunpack.c.l.b16 %v428
        %v1173 = vunpack.c.h.b16 %v428
        %v1174 = vunpack.c.l.b16 %v429
        %v1175 = vunpack.c.h.b16 %v429
        %v1176 = vunpack.c.l.b16 %v430
        %v1177 = vunpack.c.h.b16 %v430
        %v1178 = vunpack.c.l.b16 %v431
        %v1179 = vunpack.c.h.b16 %v431
        %v1180 = vunpack.c.l.b16 %v432
        %v1181 = vunpack.c.h.b16 %v432
        %v1182 = vunpack.c.l.b16 %v433
        %v1183 = vunpack.c.h.b16 %v433
        %v1184 = vunpack.c.l.b16 %v434
        %v1185 = vunpack.c.h.b16 %v434
        %v1186 = vunpack.c.l.b16 %v435
        %v1187 = vunpack.c.h.b16 %v435
        %v1188 = vunpack.c.l.b16 %v436
        %v1189 = vunpack.c.h.b16 %v436
        %v1190 = vunpack.c.l.b16 %v437
        %v1191 = vunpack.c.h.b16 %v437
        %v1192 = vunpack.c.l.b16 %v438
        %v1193 = vunpack.c.h.b16 %v438
        %v1194 = vunpack.c.l.b16 %v439
        %v1195 = vunpack.c.h.b16 %v439
        %v1196 = vunpack.c.l.b16 %v440
        %v1197 = vunpack.c.l.b16 %v441
        %v1198 = vunpack.c.h.b16 %v441
        %v1199 = vunpack.c.l.b16 %v442
        %v1200 = vunpack.c.h.b16 %v442
        %v1201 = vunpack.c.l.b16 %v443
        %v1202 = vunpack.c.h.b16 %v443
        %v1203 = vunpack.c.l.b16 %v444
        %v1204 = vunpack.c.h.b16 %v444
        %v1205 = vunpack.c.l.b16 %v445
        %v1206 = vunpack.c.h.b16 %v445
        %v1207 = vunpack.c.l.b16 %v446
        %v1208 = vunpack.c.h.b16 %v446
        %v1209 = vunpack.c.l.b16 %v447
        %v1210 = vunpack.c.h.b16 %v447
        %v1211 = vunpack.c.l.b16 %v448
        %v1212 = vunpack.c.h.b16 %v448
        %v1213 = vunpack.c.l.b16 %v449
        %v1214 = vunpack.c.h.b16 %v449
        %v1215 = vunpack.c.l.b16 %v450
        %v1216 = vunpack.c.h.b16 %v450
        %v1217 = vunpack.c.l.b16 %v451
        %v1218 = vunpack.c.h.b16 %v451
        %v1219 = vunpack.c.l.b16 %v452
        %v1220 = vunpack.c.h.b16 %v452
        %v1221 = vunpack.c.l.b16 %v453
        %v1222 = vunpack.c.l.b16 %v454
        %v1223 = vunpack.c.h.b16 %v454
        %v1224 = vunpack.c.l.b16 %v455
        %v1225 = vunpack.c.h.b16 %v455
        %v1226 = vunpack.c.l.b16 %v456
        %v1227 = vunpack.c.h.b16 %v456
        %v1228 = vunpack.c.l.b16 %v457
        %v1229 = vunpack.c.h.b16 %v457
        %v1230 = vunpack.c.l.b16 %v458
        %v1231 = vunpack.c.h.b16 %v458
        %v1232 = vunpack.c.l.b16 %v459
        %v1233 = vunpack.c.h.b16 %v459
        %v1234 = vunpack.c.l.b16 %v460
        %v1235 = vunpack.c.h.b16 %v460
        %v1236 = vunpack.c.l.b16 %v461
        %v1237 = vunpack.c.h.b16 %v461
        %v1238 = vunpack.c.l.b16 %v462
        %v1239 = vunpack.c.h.b16 %v462
        %v1240 = vunpack.c.l.b16 %v463
        %v1241 = vunpack.c.h.b16 %v463
        %v1242 = vunpack.c.l.b16 %v464
        %v1243 = vunpack.c.h.b16 %v464
        %v1244 = vunpack.c.l.b16 %v465
        %v1245 = vunpack.c.h.b16 %v465
        %v1246 = vunpack.c.l.b16 %v466
        %v1247 = vunpack.c.l.b16 %v467
        %v1248 = vunpack.c.h.b16 %v467
        %v1249 = vunpack.c.l.b16 %v468
        %v1250 = vunpack.c.h.b16 %v468
        %v1251 = vunpack.c.l.b16 %v469
        %v1252 = vunpack.c.h.b16 %v469
        %v1253 = vunpack.c.l.b16 %v470
        %v1254 = vunpack.c.h.b16 %v470
        %v1255 = vunpack.c.l.b16 %v471
        %v1256 = vunpack.c.h.b16 %v471
        %v1257 = vunpack.c.l.b16 %v472
        %v1258 = vunpack.c.h.b16 %v472
        %v1259 = vunpack.c.l.b16 %v473
        %v1260 = vunpack.c.h.b16 %v473
        %v1261 = vunpack.c.l.b16 %v474
        %v1262 = vunpack.c.h.b16 %v474
        %v1263 = vunpack.c.l.b16 %v475
        %v1264 = vunpack.c.h.b16 %v475
        %v1265 = vunpack.c.l.b16 %v476
        %v1266 = vunpack.c.h.b16 %v476
        %v1267 = vunpack.c.l.b16 %v477
        %v1268 = vunpack.c.h.b16 %v477
        %v1269 = vunpack.c.l.b16 %v478
        %v1270 = vunpack.c.h.b16 %v478
        %v1271 = vunpack.c.l.b16 %v479
        %v1272 = vunpack.c.l.b16 %v480
        %v1273 = vunpack.c.h.b16 %v480
        %v1274 = vunpack.c.l.b16 %v481
        %v1275 = vunpack.c.h.b16 %v481
        %v1276 = vunpack.c.l.b16 %v482
        %v1277 = vunpack.c.h.b16 %v482
        %v1278 = vunpack.c.l.b16 %v483
        %v1279 = vunpack.c.h.b16 %v483
        %v1280 = vunpack.c.l.b16 %v484
        %v1281 = vunpack.c.h.b16 %v484
        %v1282 = vunpack.c.l.b16 %v485
        %v1283 = vunpack.c.h.b16 %v485
        %v1284 = vunpack.c.l.b16 %v486
        %v1285 = vunpack.c.h.b16 %v486
        %v1286 = vunpack.c.l.b16 %v487
        %v1287 = vunpack.c.h.b16 %v487
        %v1288 = vunpack.c.l.b16 %v488
        %v1289 = vunpack.c.h.b16 %v488
        %v1290 = vunpack.c.l.b16 %v489
        %v1291 = vunpack.c.h.b16 %v489
        %v1292 = vunpack.c.l.b16 %v490
        %v1293 = vunpack.c.h.b16 %v490
        %v1294 = vunpack.c.l.b16 %v491
        %v1295 = vunpack.c.h.b16 %v491
        %v1296 = vunpack.c.l.b16 %v492
        %v1297 = vpack.c.b16 %v922, %v897
        %v1298 = vpack.c.b16 %v923, %v898
        %v1299 = vpack.c.b16 %v924, %v899
        %v1300 = vpack.c.b16 %v925, %v900
        %v1301 = vpack.c.b16 %v926, %v901
        %v1302 = vpack.c.b16 %v927, %v902
        %v1303 = vpack.c.b16 %v928, %v903
        %v1304 = vpack.c.b16 %v929, %v904
        %v1305 = vpack.c.b16 %v930, %v905
        %v1306 = vpack.c.b16 %v931, %v906
        %v1307 = vpack.c.b16 %v932, %v907
        %v1308 = vpack.c.b16 %v933, %v908
        %v1309 = vpack.c.b16 %v934, %v909
        %v1310 = vpack.c.b16 %v935, %v910
        %v1311 = vpack.c.b16 %v936, %v911
        %v1312 = vpack.c.b16 %v937, %v912
        %v1313 = vpack.c.b16 %v938, %v913
        %v1314 = vpack.c.b16 %v939, %v914
        %v1315 = vpack.c.b16 %v940, %v915
        %v1316 = vpack.c.b16 %v941, %v916
        %v1317 = vpack.c.b16 %v942, %v917
        %v1318 = vpack.c.b16 %v943, %v918
        %v1319 = vpack.c.b16 %v944, %v919
        %v1320 = vpack.c.b16 %v945, %v920
        %v1321 = vpack.c.b16 %v946, %v921
        %v1322 = vpack.c.b16 %v972, %v947
        %v1323 = vpack.c.b16 %v973, %v948
        %v1324 = vpack.c.b16 %v974, %v949
        %v1325 = vpack.c.b16 %v975, %v950
        %v1326 = vpack.c.b16 %v976, %v951
        %v1327 = vpack.c.b16 %v977, %v952
        %v1328 = vpack.c.b16 %v978, %v953
        %v1329 = vpack.c.b16 %v979, %v954
        %v1330 = vpack.c.b16 %v980, %v955
        %v1331 = vpack.c.b16 %v981, %v956
        %v1332 = vpack.c.b16 %v982, %v957
        %v1333 = vpack.c.b16 %v983, %v958
        %v1334 = vpack.c.b16 %v984, %v959
        %v1335 = vpack.c.b16 %v985, %v960
        %v1336 = vpack.c.b16 %v986, %v961
        %v1337 = vpack.c.b16 %v987, %v962
        %v1338 = vpack.c.b16 %v988, %v963
        %v1339 = vpack.c.b16 %v989, %v964
        %v1340 = vpack.c.b16 %v990, %v965
        %v1341 = vpack.c.b16 %v991, %v966
        %v1342 = vpack.c.b16 %v992, %v967
        %v1343 = vpack.c.b16 %v993, %v968
        %v1344 = vpack.c.b16 %v994, %v969
        %v1345 = vpack.c.b16 %v995, %v970
        %v1346 = vpack.c.b16 %v996, %v971
        %v1347 = vpack.c.b16 %v1022, %v997
        %v1348 = vpack.c.b16 %v1023, %v998
        %v1349 = vpack.c.b16 %v1024, %v999
        %v1350 = vpack.c.b16 %v1025, %v1000
        %v1351 = vpack.c.b16 %v1026, %v1001
        %v1352 = vpack.c.b16 %v1027, %v1002
        %v1353 = vpack.c.b16 %v1028, %v1003
        %v1354 = vpack.c.b16 %v1029, %v1004
        %v1355 = vpack.c.b16 %v1030, %v1005
        %v1356 = vpack.c.b16 %v1031, %v1006
        %v1357 = vpack.c.b16 %v1032, %v1007
        %v1358 = vpack.c.b16 %v1033, %v1008
        %v1359 = vpack.c.b16 %v1034, %v1009
        %v1360 = vpack.c.b16 %v1035, %v1010
        %v1361 = vpack.c.b16 %v1036, %v1011
        %v1362 = vpack.c.b16 %v1037, %v1012
        %v1363 = vpack.c.b16 %v1038, %v1013
        %v1364 = vpack.c.b16 %v1039, %v1014
        %v1365 = vpack.c.b16 %v1040, %v1015
        %v1366 = vpack.c.b16 %v1041, %v1016
        %v1367 = vpack.c.b16 %v1042, %v1017
        %v1368 = vpack.c.b16 %v1043, %v1018
        %v1369 = vpack.c.b16 %v1044, %v1019
        %v1370 = vpack.c.b16 %v1045, %v1020
        %v1371 = vpack.c.b16 %v1046, %v1021
        %v1372 = vpack.c.b16 %v1072, %v1047
        %v1373 = vpack.c.b16 %v1073, %v1048
        %v1374 = vpack.c.b16 %v1074, %v1049
        %v1375 = vpack.c.b16 %v1075, %v1050
        %v1376 = vpack.c.b16 %v1076, %v1051
        %v1377 = vpack.c.b16 %v1077, %v1052
        %v1378 = vpack.c.b16 %v1078, %v1053
        %v1379 = vpack.c.b16 %v1079, %v1054
        %v1380 = vpack.c.b16 %v1080, %v1055
        %v1381 = vpack.c.b16 %v1081, %v1056
        %v1382 = vpack.c.b16 %v1082, %v1057
        %v1383 = vpack.c.b16 %v1083, %v1058
        %v1384 = vpack.c.b16 %v1084, %v1059
        %v1385 = vpack.c.b16 %v1085, %v1060
        %v1386 = vpack.c.b16 %v1086, %v1061
        %v1387 = vpack.c.b16 %v1087, %v1062
        %v1388 = vpack.c.b16 %v1088, %v1063
        %v1389 = vpack.c.b16 %v1089, %v1064
        %v1390 = vpack.c.b16 %v1090, %v1065
        %v1391 = vpack.c.b16 %v1091, %v1066
        %v1392 = vpack.c.b16 %v1092, %v1067
        %v1393 = vpack.c.b16 %v1093, %v1068
        %v1394 = vpack.c.b16 %v1094, %v1069
        %v1395 = vpack.c.b16 %v1095, %v1070
        %v1396 = vpack.c.b16 %v1096, %v1071
        %v1397 = vpack.c.b16 %v1122, %v1097
        %v1398 = vpack.c.b16 %v1123, %v1098
        %v1399 = vpack.c.b16 %v1124, %v1099
        %v1400 = vpack.c.b16 %v1125, %v1100
        %v1401 = vpack.c.b16 %v1126, %v1101
        %v1402 = vpack.c.b16 %v1127, %v1102
        %v1403 = vpack.c.b16 %v1128, %v1103
        %v1404 = vpack.c.b16 %v1129, %v1104
        %v1405 = vpack.c.b16 %v1130, %v1105
        %v1406 = vpack.c.b16 %v1131, %v1106
        %v1407 = vpack.c.b16 %v1132, %v1107
        %v1408 = vpack.c.b16 %v1133, %v1108
        %v1409 = vpack.c.b16 %v1134, %v1109
        %v1410 = vpack.c.b16 %v1135, %v1110
        %v1411 = vpack.c.b16 %v1136, %v1111
        %v1412 = vpack.c.b16 %v1137, %v1112
        %v1413 = vpack.c.b16 %v1138, %v1113
        %v1414 = vpack.c.b16 %v1139, %v1114
        %v1415 = vpack.c.b16 %v1140, %v1115
        %v1416 = vpack.c.b16 %v1141, %v1116
        %v1417 = vpack.c.b16 %v1142, %v1117
        %v1418 = vpack.c.b16 %v1143, %v1118
        %v1419 = vpack.c.b16 %v1144, %v1119
        %v1420 = vpack.c.b16 %v1145, %v1120
        %v1421 = vpack.c.b16 %v1146, %v1121
        %v1422 = vpack.c.b16 %v1172, %v1147
        %v1423 = vpack.c.b16 %v1173, %v1148
        %v1424 = vpack.c.b16 %v1174, %v1149
        %v1425 = vpack.c.b16 %v1175, %v1150
        %v1426 = vpack.c.b16 %v1176, %v1151
        %v1427 = vpack.c.b16 %v1177, %v1152
        %v1428 = vpack.c.b16 %v1178, %v1153
        %v1429 = vpack.c.b16 %v1179, %v1154
        %v1430 = vpack.c.b16 %v1180, %v1155
        %v1431 = vpack.c.b16 %v1181, %v1156
        %v1432 = vpack.c.b16 %v1182, %v1157
        %v1433 = vpack.c.b16 %v1183, %v1158
        %v1434 = vpack.c.b16 %v1184, %v1159
        %v1435 = vpack.c.b16 %v1185, %v1160
        %v1436 = vpack.c.b16 %v1186, %v1161
        %v1437 = vpack.c.b16 %v1187, %v1162
        %v1438 = vpack.c.b16 %v1188, %v1163
        %v1439 = vpack.c.b16 %v1189, %v1164
        %v1440 = vpack.c.b16 %v1190, %v1165
        %v1441 = vpack.c.b16 %v1191, %v1166
        %v1442 = vpack.c.b16 %v1192, %v1167
        %v1443 = vpack.c.b16 %v1193, %v1168
        %v1444 = vpack.c.b16 %v1194, %v1169
        %v1445 = vpack.c.b16 %v1195, %v1170
        %v1446 = vpack.c.b16 %v1196, %v1171
        %v1447 = vpack.c.b16 %v1222, %v1197
        %v1448 = vpack.c.b16 %v1223, %v1198
        %v1449 = vpack.c.b16 %v1224, %v1199
        %v1450 = vpack.c.b16 %v1225, %v1200
        %v1451 = vpack.c.b16 %v1226, %v1201
        %v1452 = vpack.c.b16 %v1227, %v1202
        %v1453 = vpack.c.b16 %v1228, %v1203
        %v1454 = vpack.c.b16 %v1229, %v1204
        %v1455 = vpack.c.b16 %v1230, %v1205
        %v1456 = vpack.c.b16 %v1231, %v1206
        %v1457 = vpack.c.b16 %v1232, %v1207
        %v1458 = vpack.c.b16 %v1233, %v1208
        %v1459 = vpack.c.b16 %v1234, %v1209
        %v1460 = vpack.c.b16 %v1235, %v1210
        %v1461 = vpack.c.b16 %v1236, %v1211
        %v1462 = vpack.c.b16 %v1237, %v1212
        %v1463 = vpack.c.b16 %v1238, %v1213
        %v1464 = vpack.c.b16 %v1239, %v1214
        %v1465 = vpack.c.b16 %v1240, %v1215
        %v1466 = vpack.c.b16 %v1241, %v1216
        %v1467 = vpack.c.b16 %v1242, %v1217
        %v1468 = vpack.c.b16 %v1243, %v1218
        %v1469 = vpack.c.b16 %v1244, %v1219
        %v1470 = vpack.c.b16 %v1245, %v1220
        %v1471 = vpack.c.b16 %v1246, %v1221
        %v1472 = vpack.c.b16 %v1272, %v1247
        %v1473 = vpack.c.b16 %v1273, %v1248
        %v1474 = vpack.c.b16 %v1274, %v1249
        %v1475 = vpack.c.b16 %v1275, %v1250
        %v1476 = vpack.c.b16 %v1276, %v1251
        %v1477 = vpack.c.b16 %v1277, %v1252
        %v1478 = vpack.c.b16 %v1278, %v1253
        %v1479 = vpack.c.b16 %v1279, %v1254
        %v1480 = vpack.c.b16 %v1280, %v1255
        %v1481 = vpack.c.b16 %v1281, %v1256
        %v1482 = vpack.c.b16 %v1282, %v1257
        %v1483 = vpack.c.b16 %v1283, %v1258
        %v1484 = vpack.c.b16 %v1284, %v1259
        %v1485 = vpack.c.b16 %v1285, %v1260
        %v1486 = vpack.c.b16 %v1286, %v1261
        %v1487 = vpack.c.b16 %v1287, %v1262
        %v1488 = vpack.c.b16 %v1288, %v1263
        %v1489 = vpack.c.b16 %v1289, %v1264
        %v1490 = vpack.c.b16 %v1290, %v1265
        %v1491 = vpack.c.b16 %v1291, %v1266
        %v1492 = vpack.c.b16 %v1292, %v1267
        %v1493 = vpack.c.b16 %v1293, %v1268
        %v1494 = vpack.c.b16 %v1294, %v1269
        %v1495 = vpack.c.b16 %v1295, %v1270
        %v1496 = vpack.c.b16 %v1296, %v1271
        %vm1689 = vcmask 523264
        %v1691 = vsel %vm1689, %v664, 0
        %v1694 = vsel %vm1689, %v1321, 0
        %v1697 = vsel %vm1689, %v1346, 0
        %v1700 = vsel %vm1689, %v1371, 0
        %v1703 = vsel %vm1689, %v1396, 0
        %v1706 = vsel %vm1689, %v1421, 0
        %v1709 = vsel %vm1689, %v1446, 0
        %v1712 = vsel %vm1689, %v1471, 0
        %v1715 = vsel %vm1689, %v1496, 0
        %1717 = vmatprep.subr.bf16.mxu0 %v1298
        %1718 = vmatpush1.bf16.xpose.msra.mxu0 %v1297
        %1719 = vmatprep.subr.bf16.mxu0 %v1323
        %1720 = vmatpush1.bf16.xpose.msra.mxu0 %v1322
        %1721 = vmatprep.subr.bf16.mxu0 %v1348
        %1722 = vmatpush1.bf16.xpose.msra.mxu0 %v1347
        %1723 = vmatprep.subr.bf16.mxu0 %v1373
        %1724 = vmatpush1.bf16.xpose.msra.mxu0 %v1372
        %1725 = vmatprep.subr.bf16.mxu0 %v1398
        %1726 = vmatpush1.bf16.xpose.msra.mxu0 %v1397
        %1727 = vmatprep.subr.bf16.mxu0 %v1423
        %1728 = vmatpush1.bf16.xpose.msra.mxu0 %v1422
        %1729 = vmatprep.subr.bf16.mxu0 %v1448
        %1730 = vmatpush1.bf16.xpose.msra.mxu0 %v1447
        %1731 = vmatprep.subr.bf16.mxu0 %v1473
        %1732 = vmatpush1.bf16.xpose.msra.mxu0 %v1472
        %1733 = vmatprep.subr.bf16.mxu0 0
        %1734 = vmatpush1.bf16.xpose.msra.mxu0 0
        %1735 = vmatprep.subr.bf16.mxu0 0
        %1736 = vmatpush1.bf16.xpose.msra.mxu0 0
        %1737 = vmatprep.subr.bf16.mxu0 0
        %1738 = vmatpush1.bf16.xpose.msra.mxu0 0
        %1739 = vmatprep.subr.bf16.mxu0 0
        %1740 = vmatpush1.bf16.xpose.msra.mxu0 0
        %1741 = vmatprep.subr.bf16.mxu0 0
        %1742 = vmatpush1.bf16.xpose.msra.mxu0 0
        %1743 = vmatprep.subr.bf16.mxu0 0
        %1744 = vmatpush1.bf16.xpose.msra.mxu0 0
        %1745 = vmatprep.subr.bf16.mxu0 0
        %1746 = vmatpush1.bf16.xpose.msra.mxu0 0
        %1747 = vmatprep.subr.bf16.mxu0 0
        %1748 = vmatpush1.bf16.xpose.msra.mxu0 0
        %1749 = vmatprep.mubr.bf16.mxu0 %v541
        %1750 = vmatmul.mubr.bf16.gmra.mrb[0].mxu0 %v527
        %v1751 = vpop.f32.mrb[0].mxu0
        %v1752 = vadd.f32 %v498, %v1751
        %v1753 = vpop.f32.mrb[0].mxu0
        %v1754 = vpop.f32.mrb[0].mxu0
        %v1755 = vpop.f32.mrb[0].mxu0
        %1756 = vdwg.mxu0
        %1757 = vmatprep.subr.bf16.mxu0 %v1300
        %1758 = vmatpush1.bf16.xpose.msra.mxu0 %v1299
        %1759 = vmatprep.subr.bf16.mxu0 %v1325
        %1760 = vmatpush1.bf16.xpose.msra.mxu0 %v1324
        %1761 = vmatprep.subr.bf16.mxu0 %v1350
        %1762 = vmatpush1.bf16.xpose.msra.mxu0 %v1349
        %1763 = vmatprep.subr.bf16.mxu0 %v1375
        %1764 = vmatpush1.bf16.xpose.msra.mxu0 %v1374
        %1765 = vmatprep.subr.bf16.mxu0 %v1400
        %1766 = vmatpush1.bf16.xpose.msra.mxu0 %v1399
        %1767 = vmatprep.subr.bf16.mxu0 %v1425
        %1768 = vmatpush1.bf16.xpose.msra.mxu0 %v1424
        %1769 = vmatprep.subr.bf16.mxu0 %v1450
        %1770 = vmatpush1.bf16.xpose.msra.mxu0 %v1449
        %1771 = vmatprep.subr.bf16.mxu0 %v1475
        %1772 = vmatpush1.bf16.xpose.msra.mxu0 %v1474
        %1773 = vmatprep.subr.bf16.mxu0 0
        %1774 = vmatpush1.bf16.xpose.msra.mxu0 0
        %1775 = vmatprep.subr.bf16.mxu0 0
        %1776 = vmatpush1.bf16.xpose.msra.mxu0 0
        %1777 = vmatprep.subr.bf16.mxu0 0
        %1778 = vmatpush1.bf16.xpose.msra.mxu0 0
        %1779 = vmatprep.subr.bf16.mxu0 0
        %1780 = vmatpush1.bf16.xpose.msra.mxu0 0
        %1781 = vmatprep.subr.bf16.mxu0 0
        %1782 = vmatpush1.bf16.xpose.msra.mxu0 0
        %1783 = vmatprep.subr.bf16.mxu0 0
        %1784 = vmatpush1.bf16.xpose.msra.mxu0 0
        %1785 = vmatprep.subr.bf16.mxu0 0
        %1786 = vmatpush1.bf16.xpose.msra.mxu0 0
        %1787 = vmatprep.subr.bf16.mxu0 0
        %1788 = vmatpush1.bf16.xpose.msra.mxu0 0
        %1789 = vmatprep.mubr.bf16.mxu0 %v551
        %1790 = vmatmul.mubr.bf16.gmra.mrb[0].mxu0 %v549
        %v1791 = vpop.f32.mrb[0].mxu0
        %v1792 = vadd.f32 %v1752, %v1791
        %v1793 = vpop.f32.mrb[0].mxu0
        %v1794 = vpop.f32.mrb[0].mxu0
        %v1795 = vpop.f32.mrb[0].mxu0
        %1796 = vdwg.mxu0
        %1797 = vmatprep.subr.bf16.mxu0 %v1302
        %1798 = vmatpush1.bf16.xpose.msra.mxu0 %v1301
        %1799 = vmatprep.subr.bf16.mxu0 %v1327
        %1800 = vmatpush1.bf16.xpose.msra.mxu0 %v1326
        %1801 = vmatprep.subr.bf16.mxu0 %v1352
        %1802 = vmatpush1.bf16.xpose.msra.mxu0 %v1351
        %1803 = vmatprep.subr.bf16.mxu0 %v1377
        %1804 = vmatpush1.bf16.xpose.msra.mxu0 %v1376
        %1805 = vmatprep.subr.bf16.mxu0 %v1402
        %1806 = vmatpush1.bf16.xpose.msra.mxu0 %v1401
        %1807 = vmatprep.subr.bf16.mxu0 %v1427
        %1808 = vmatpush1.bf16.xpose.msra.mxu0 %v1426
        %1809 = vmatprep.subr.bf16.mxu0 %v1452
        %1810 = vmatpush1.bf16.xpose.msra.mxu0 %v1451
        %1811 = vmatprep.subr.bf16.mxu0 %v1477
        %1812 = vmatpush1.bf16.xpose.msra.mxu0 %v1476
        %1813 = vmatprep.subr.bf16.mxu0 0
        %1814 = vmatpush1.bf16.xpose.msra.mxu0 0
        %1815 = vmatprep.subr.bf16.mxu0 0
        %1816 = vmatpush1.bf16.xpose.msra.mxu0 0
        %1817 = vmatprep.subr.bf16.mxu0 0
        %1818 = vmatpush1.bf16.xpose.msra.mxu0 0
        %1819 = vmatprep.subr.bf16.mxu0 0
        %1820 = vmatpush1.bf16.xpose.msra.mxu0 0
        %1821 = vmatprep.subr.bf16.mxu0 0
        %1822 = vmatpush1.bf16.xpose.msra.mxu0 0
        %1823 = vmatprep.subr.bf16.mxu0 0
        %1824 = vmatpush1.bf16.xpose.msra.mxu0 0
        %1825 = vmatprep.subr.bf16.mxu0 0
        %1826 = vmatpush1.bf16.xpose.msra.mxu0 0
        %1827 = vmatprep.subr.bf16.mxu0 0
        %1828 = vmatpush1.bf16.xpose.msra.mxu0 0
        %1829 = vmatprep.mubr.bf16.mxu0 %v548
        %1830 = vmatmul.mubr.bf16.gmra.mrb[0].mxu0 %v534
        %v1831 = vpop.f32.mrb[0].mxu0
        %v1832 = vadd.f32 %v1792, %v1831
        %v1833 = vpop.f32.mrb[0].mxu0
        %v1834 = vpop.f32.mrb[0].mxu0
        %v1835 = vpop.f32.mrb[0].mxu0
        %1836 = vdwg.mxu0
        %1837 = vmatprep.subr.bf16.mxu0 %v1304
        %1838 = vmatpush1.bf16.xpose.msra.mxu0 %v1303
        %1839 = vmatprep.subr.bf16.mxu0 %v1329
        %1840 = vmatpush1.bf16.xpose.msra.mxu0 %v1328
        %1841 = vmatprep.subr.bf16.mxu0 %v1354
        %1842 = vmatpush1.bf16.xpose.msra.mxu0 %v1353
        %1843 = vmatprep.subr.bf16.mxu0 %v1379
        %1844 = vmatpush1.bf16.xpose.msra.mxu0 %v1378
        %1845 = vmatprep.subr.bf16.mxu0 %v1404
        %1846 = vmatpush1.bf16.xpose.msra.mxu0 %v1403
        %1847 = vmatprep.subr.bf16.mxu0 %v1429
        %1848 = vmatpush1.bf16.xpose.msra.mxu0 %v1428
        %1849 = vmatprep.subr.bf16.mxu0 %v1454
        %1850 = vmatpush1.bf16.xpose.msra.mxu0 %v1453
        %1851 = vmatprep.subr.bf16.mxu0 %v1479
        %1852 = vmatpush1.bf16.xpose.msra.mxu0 %v1478
        %1853 = vmatprep.subr.bf16.mxu0 0
        %1854 = vmatpush1.bf16.xpose.msra.mxu0 0
        %1855 = vmatprep.subr.bf16.mxu0 0
        %1856 = vmatpush1.bf16.xpose.msra.mxu0 0
        %1857 = vmatprep.subr.bf16.mxu0 0
        %1858 = vmatpush1.bf16.xpose.msra.mxu0 0
        %1859 = vmatprep.subr.bf16.mxu0 0
        %1860 = vmatpush1.bf16.xpose.msra.mxu0 0
        %1861 = vmatprep.subr.bf16.mxu0 0
        %1862 = vmatpush1.bf16.xpose.msra.mxu0 0
        %1863 = vmatprep.subr.bf16.mxu0 0
        %1864 = vmatpush1.bf16.xpose.msra.mxu0 0
        %1865 = vmatprep.subr.bf16.mxu0 0
        %1866 = vmatpush1.bf16.xpose.msra.mxu0 0
        %1867 = vmatprep.subr.bf16.mxu0 0
        %1868 = vmatpush1.bf16.xpose.msra.mxu0 0
        %1869 = vmatprep.mubr.bf16.mxu0 %v552
        %1870 = vmatmul.mubr.bf16.gmra.mrb[0].mxu0 %v550
        %v1871 = vpop.f32.mrb[0].mxu0
        %v1872 = vadd.f32 %v1832, %v1871
        %v1873 = vpop.f32.mrb[0].mxu0
        %v1874 = vpop.f32.mrb[0].mxu0
        %v1875 = vpop.f32.mrb[0].mxu0
        %1876 = vdwg.mxu0
        %1877 = vmatprep.subr.bf16.mxu0 %v1306
        %1878 = vmatpush1.bf16.xpose.msra.mxu0 %v1305
        %1879 = vmatprep.subr.bf16.mxu0 %v1331
        %1880 = vmatpush1.bf16.xpose.msra.mxu0 %v1330
        %1881 = vmatprep.subr.bf16.mxu0 %v1356
        %1882 = vmatpush1.bf16.xpose.msra.mxu0 %v1355
        %1883 = vmatprep.subr.bf16.mxu0 %v1381
        %1884 = vmatpush1.bf16.xpose.msra.mxu0 %v1380
        %1885 = vmatprep.subr.bf16.mxu0 %v1406
        %1886 = vmatpush1.bf16.xpose.msra.mxu0 %v1405
        %1887 = vmatprep.subr.bf16.mxu0 %v1431
        %1888 = vmatpush1.bf16.xpose.msra.mxu0 %v1430
        %1889 = vmatprep.subr.bf16.mxu0 %v1456
        %1890 = vmatpush1.bf16.xpose.msra.mxu0 %v1455
        %1891 = vmatprep.subr.bf16.mxu0 %v1481
        %1892 = vmatpush1.bf16.xpose.msra.mxu0 %v1480
        %1893 = vmatprep.subr.bf16.mxu0 0
        %1894 = vmatpush1.bf16.xpose.msra.mxu0 0
        %1895 = vmatprep.subr.bf16.mxu0 0
        %1896 = vmatpush1.bf16.xpose.msra.mxu0 0
        %1897 = vmatprep.subr.bf16.mxu0 0
        %1898 = vmatpush1.bf16.xpose.msra.mxu0 0
        %1899 = vmatprep.subr.bf16.mxu0 0
        %1900 = vmatpush1.bf16.xpose.msra.mxu0 0
        %1901 = vmatprep.subr.bf16.mxu0 0
        %1902 = vmatpush1.bf16.xpose.msra.mxu0 0
        %1903 = vmatprep.subr.bf16.mxu0 0
        %1904 = vmatpush1.bf16.xpose.msra.mxu0 0
        %1905 = vmatprep.subr.bf16.mxu0 0
        %1906 = vmatpush1.bf16.xpose.msra.mxu0 0
        %1907 = vmatprep.subr.bf16.mxu0 0
        %1908 = vmatpush1.bf16.xpose.msra.mxu0 0
        %1909 = vmatprep.mubr.bf16.mxu0 %v590
        %1910 = vmatmul.mubr.bf16.gmra.mrb[0].mxu0 %v576
        %v1911 = vpop.f32.mrb[0].mxu0
        %v1912 = vadd.f32 %v1872, %v1911
        %v1913 = vpop.f32.mrb[0].mxu0
        %v1914 = vpop.f32.mrb[0].mxu0
        %v1915 = vpop.f32.mrb[0].mxu0
        %1916 = vdwg.mxu0
        %1917 = vmatprep.subr.bf16.mxu0 %v1308
        %1918 = vmatpush1.bf16.xpose.msra.mxu0 %v1307
        %1919 = vmatprep.subr.bf16.mxu0 %v1333
        %1920 = vmatpush1.bf16.xpose.msra.mxu0 %v1332
        %1921 = vmatprep.subr.bf16.mxu0 %v1358
        %1922 = vmatpush1.bf16.xpose.msra.mxu0 %v1357
        %1923 = vmatprep.subr.bf16.mxu0 %v1383
        %1924 = vmatpush1.bf16.xpose.msra.mxu0 %v1382
        %1925 = vmatprep.subr.bf16.mxu0 %v1408
        %1926 = vmatpush1.bf16.xpose.msra.mxu0 %v1407
        %1927 = vmatprep.subr.bf16.mxu0 %v1433
        %1928 = vmatpush1.bf16.xpose.msra.mxu0 %v1432
        %1929 = vmatprep.subr.bf16.mxu0 %v1458
        %1930 = vmatpush1.bf16.xpose.msra.mxu0 %v1457
        %1931 = vmatprep.subr.bf16.mxu0 %v1483
        %1932 = vmatpush1.bf16.xpose.msra.mxu0 %v1482
        %1933 = vmatprep.subr.bf16.mxu0 0
        %1934 = vmatpush1.bf16.xpose.msra.mxu0 0
        %1935 = vmatprep.subr.bf16.mxu0 0
        %1936 = vmatpush1.bf16.xpose.msra.mxu0 0
        %1937 = vmatprep.subr.bf16.mxu0 0
        %1938 = vmatpush1.bf16.xpose.msra.mxu0 0
        %1939 = vmatprep.subr.bf16.mxu0 0
        %1940 = vmatpush1.bf16.xpose.msra.mxu0 0
        %1941 = vmatprep.subr.bf16.mxu0 0
        %1942 = vmatpush1.bf16.xpose.msra.mxu0 0
        %1943 = vmatprep.subr.bf16.mxu0 0
        %1944 = vmatpush1.bf16.xpose.msra.mxu0 0
        %1945 = vmatprep.subr.bf16.mxu0 0
        %1946 = vmatpush1.bf16.xpose.msra.mxu0 0
        %1947 = vmatprep.subr.bf16.mxu0 0
        %1948 = vmatpush1.bf16.xpose.msra.mxu0 0
        %1949 = vmatprep.mubr.bf16.mxu0 %v600
        %1950 = vmatmul.mubr.bf16.gmra.mrb[0].mxu0 %v598
        %v1951 = vpop.f32.mrb[0].mxu0
        %v1952 = vadd.f32 %v1912, %v1951
        %v1953 = vpop.f32.mrb[0].mxu0
        %v1954 = vpop.f32.mrb[0].mxu0
        %v1955 = vpop.f32.mrb[0].mxu0
        %1956 = vdwg.mxu0
        %1957 = vmatprep.subr.bf16.mxu0 %v1310
        %1958 = vmatpush1.bf16.xpose.msra.mxu0 %v1309
        %1959 = vmatprep.subr.bf16.mxu0 %v1335
        %1960 = vmatpush1.bf16.xpose.msra.mxu0 %v1334
        %1961 = vmatprep.subr.bf16.mxu0 %v1360
        %1962 = vmatpush1.bf16.xpose.msra.mxu0 %v1359
        %1963 = vmatprep.subr.bf16.mxu0 %v1385
        %1964 = vmatpush1.bf16.xpose.msra.mxu0 %v1384
        %1965 = vmatprep.subr.bf16.mxu0 %v1410
        %1966 = vmatpush1.bf16.xpose.msra.mxu0 %v1409
        %1967 = vmatprep.subr.bf16.mxu0 %v1435
        %1968 = vmatpush1.bf16.xpose.msra.mxu0 %v1434
        %1969 = vmatprep.subr.bf16.mxu0 %v1460
        %1970 = vmatpush1.bf16.xpose.msra.mxu0 %v1459
        %1971 = vmatprep.subr.bf16.mxu0 %v1485
        %1972 = vmatpush1.bf16.xpose.msra.mxu0 %v1484
        %1973 = vmatprep.subr.bf16.mxu0 0
        %1974 = vmatpush1.bf16.xpose.msra.mxu0 0
        %1975 = vmatprep.subr.bf16.mxu0 0
        %1976 = vmatpush1.bf16.xpose.msra.mxu0 0
        %1977 = vmatprep.subr.bf16.mxu0 0
        %1978 = vmatpush1.bf16.xpose.msra.mxu0 0
        %1979 = vmatprep.subr.bf16.mxu0 0
        %1980 = vmatpush1.bf16.xpose.msra.mxu0 0
        %1981 = vmatprep.subr.bf16.mxu0 0
        %1982 = vmatpush1.bf16.xpose.msra.mxu0 0
        %1983 = vmatprep.subr.bf16.mxu0 0
        %1984 = vmatpush1.bf16.xpose.msra.mxu0 0
        %1985 = vmatprep.subr.bf16.mxu0 0
        %1986 = vmatpush1.bf16.xpose.msra.mxu0 0
        %1987 = vmatprep.subr.bf16.mxu0 0
        %1988 = vmatpush1.bf16.xpose.msra.mxu0 0
        %1989 = vmatprep.mubr.bf16.mxu0 %v597
        %1990 = vmatmul.mubr.bf16.gmra.mrb[0].mxu0 %v583
        %v1991 = vpop.f32.mrb[0].mxu0
        %v1992 = vadd.f32 %v1952, %v1991
        %v1993 = vpop.f32.mrb[0].mxu0
        %v1994 = vpop.f32.mrb[0].mxu0
        %v1995 = vpop.f32.mrb[0].mxu0
        %1996 = vdwg.mxu0
        %1997 = vmatprep.subr.bf16.mxu0 %v1312
        %1998 = vmatpush1.bf16.xpose.msra.mxu0 %v1311
        %1999 = vmatprep.subr.bf16.mxu0 %v1337
        %2000 = vmatpush1.bf16.xpose.msra.mxu0 %v1336
        %2001 = vmatprep.subr.bf16.mxu0 %v1362
        %2002 = vmatpush1.bf16.xpose.msra.mxu0 %v1361
        %2003 = vmatprep.subr.bf16.mxu0 %v1387
        %2004 = vmatpush1.bf16.xpose.msra.mxu0 %v1386
        %2005 = vmatprep.subr.bf16.mxu0 %v1412
        %2006 = vmatpush1.bf16.xpose.msra.mxu0 %v1411
        %2007 = vmatprep.subr.bf16.mxu0 %v1437
        %2008 = vmatpush1.bf16.xpose.msra.mxu0 %v1436
        %2009 = vmatprep.subr.bf16.mxu0 %v1462
        %2010 = vmatpush1.bf16.xpose.msra.mxu0 %v1461
        %2011 = vmatprep.subr.bf16.mxu0 %v1487
        %2012 = vmatpush1.bf16.xpose.msra.mxu0 %v1486
        %2013 = vmatprep.subr.bf16.mxu0 0
        %2014 = vmatpush1.bf16.xpose.msra.mxu0 0
        %2015 = vmatprep.subr.bf16.mxu0 0
        %2016 = vmatpush1.bf16.xpose.msra.mxu0 0
        %2017 = vmatprep.subr.bf16.mxu0 0
        %2018 = vmatpush1.bf16.xpose.msra.mxu0 0
        %2019 = vmatprep.subr.bf16.mxu0 0
        %2020 = vmatpush1.bf16.xpose.msra.mxu0 0
        %2021 = vmatprep.subr.bf16.mxu0 0
        %2022 = vmatpush1.bf16.xpose.msra.mxu0 0
        %2023 = vmatprep.subr.bf16.mxu0 0
        %2024 = vmatpush1.bf16.xpose.msra.mxu0 0
        %2025 = vmatprep.subr.bf16.mxu0 0
        %2026 = vmatpush1.bf16.xpose.msra.mxu0 0
        %2027 = vmatprep.subr.bf16.mxu0 0
        %2028 = vmatpush1.bf16.xpose.msra.mxu0 0
        %2029 = vmatprep.mubr.bf16.mxu0 %v601
        %2030 = vmatmul.mubr.bf16.gmra.mrb[0].mxu0 %v599
        %v2031 = vpop.f32.mrb[0].mxu0
        %v2032 = vadd.f32 %v1992, %v2031
        %v2033 = vpop.f32.mrb[0].mxu0
        %v2034 = vpop.f32.mrb[0].mxu0
        %v2035 = vpop.f32.mrb[0].mxu0
        %2036 = vdwg.mxu0
        %2037 = vmatprep.subr.bf16.mxu0 %v1314
        %2038 = vmatpush1.bf16.xpose.msra.mxu0 %v1313
        %2039 = vmatprep.subr.bf16.mxu0 %v1339
        %2040 = vmatpush1.bf16.xpose.msra.mxu0 %v1338
        %2041 = vmatprep.subr.bf16.mxu0 %v1364
        %2042 = vmatpush1.bf16.xpose.msra.mxu0 %v1363
        %2043 = vmatprep.subr.bf16.mxu0 %v1389
        %2044 = vmatpush1.bf16.xpose.msra.mxu0 %v1388
        %2045 = vmatprep.subr.bf16.mxu0 %v1414
        %2046 = vmatpush1.bf16.xpose.msra.mxu0 %v1413
        %2047 = vmatprep.subr.bf16.mxu0 %v1439
        %2048 = vmatpush1.bf16.xpose.msra.mxu0 %v1438
        %2049 = vmatprep.subr.bf16.mxu0 %v1464
        %2050 = vmatpush1.bf16.xpose.msra.mxu0 %v1463
        %2051 = vmatprep.subr.bf16.mxu0 %v1489
        %2052 = vmatpush1.bf16.xpose.msra.mxu0 %v1488
        %2053 = vmatprep.subr.bf16.mxu0 0
        %2054 = vmatpush1.bf16.xpose.msra.mxu0 0
        %2055 = vmatprep.subr.bf16.mxu0 0
        %2056 = vmatpush1.bf16.xpose.msra.mxu0 0
        %2057 = vmatprep.subr.bf16.mxu0 0
        %2058 = vmatpush1.bf16.xpose.msra.mxu0 0
        %2059 = vmatprep.subr.bf16.mxu0 0
        %2060 = vmatpush1.bf16.xpose.msra.mxu0 0
        %2061 = vmatprep.subr.bf16.mxu0 0
        %2062 = vmatpush1.bf16.xpose.msra.mxu0 0
        %2063 = vmatprep.subr.bf16.mxu0 0
        %2064 = vmatpush1.bf16.xpose.msra.mxu0 0
        %2065 = vmatprep.subr.bf16.mxu0 0
        %2066 = vmatpush1.bf16.xpose.msra.mxu0 0
        %2067 = vmatprep.subr.bf16.mxu0 0
        %2068 = vmatpush1.bf16.xpose.msra.mxu0 0
        %2069 = vmatprep.mubr.bf16.mxu0 %v639
        %2070 = vmatmul.mubr.bf16.gmra.mrb[0].mxu0 %v625
        %v2071 = vpop.f32.mrb[0].mxu0
        %v2072 = vadd.f32 %v2032, %v2071
        %v2073 = vpop.f32.mrb[0].mxu0
        %v2074 = vpop.f32.mrb[0].mxu0
        %v2075 = vpop.f32.mrb[0].mxu0
        %2076 = vdwg.mxu0
        %2077 = vmatprep.subr.bf16.mxu0 %v1316
        %2078 = vmatpush1.bf16.xpose.msra.mxu0 %v1315
        %2079 = vmatprep.subr.bf16.mxu0 %v1341
        %2080 = vmatpush1.bf16.xpose.msra.mxu0 %v1340
        %2081 = vmatprep.subr.bf16.mxu0 %v1366
        %2082 = vmatpush1.bf16.xpose.msra.mxu0 %v1365
        %2083 = vmatprep.subr.bf16.mxu0 %v1391
        %2084 = vmatpush1.bf16.xpose.msra.mxu0 %v1390
        %2085 = vmatprep.subr.bf16.mxu0 %v1416
        %2086 = vmatpush1.bf16.xpose.msra.mxu0 %v1415
        %2087 = vmatprep.subr.bf16.mxu0 %v1441
        %2088 = vmatpush1.bf16.xpose.msra.mxu0 %v1440
        %2089 = vmatprep.subr.bf16.mxu0 %v1466
        %2090 = vmatpush1.bf16.xpose.msra.mxu0 %v1465
        %2091 = vmatprep.subr.bf16.mxu0 %v1491
        %2092 = vmatpush1.bf16.xpose.msra.mxu0 %v1490
        %2093 = vmatprep.subr.bf16.mxu0 0
        %2094 = vmatpush1.bf16.xpose.msra.mxu0 0
        %2095 = vmatprep.subr.bf16.mxu0 0
        %2096 = vmatpush1.bf16.xpose.msra.mxu0 0
        %2097 = vmatprep.subr.bf16.mxu0 0
        %2098 = vmatpush1.bf16.xpose.msra.mxu0 0
        %2099 = vmatprep.subr.bf16.mxu0 0
        %2100 = vmatpush1.bf16.xpose.msra.mxu0 0
        %2101 = vmatprep.subr.bf16.mxu0 0
        %2102 = vmatpush1.bf16.xpose.msra.mxu0 0
        %2103 = vmatprep.subr.bf16.mxu0 0
        %2104 = vmatpush1.bf16.xpose.msra.mxu0 0
        %2105 = vmatprep.subr.bf16.mxu0 0
        %2106 = vmatpush1.bf16.xpose.msra.mxu0 0
        %2107 = vmatprep.subr.bf16.mxu0 0
        %2108 = vmatpush1.bf16.xpose.msra.mxu0 0
        %2109 = vmatprep.mubr.bf16.mxu0 %v649
        %2110 = vmatmul.mubr.bf16.gmra.mrb[0].mxu0 %v647
        %v2111 = vpop.f32.mrb[0].mxu0
        %v2112 = vadd.f32 %v2072, %v2111
        %v2113 = vpop.f32.mrb[0].mxu0
        %v2114 = vpop.f32.mrb[0].mxu0
        %v2115 = vpop.f32.mrb[0].mxu0
        %2116 = vdwg.mxu0
        %2117 = vmatprep.subr.bf16.mxu0 %v1318
        %2118 = vmatpush1.bf16.xpose.msra.mxu0 %v1317
        %2119 = vmatprep.subr.bf16.mxu0 %v1343
        %2120 = vmatpush1.bf16.xpose.msra.mxu0 %v1342
        %2121 = vmatprep.subr.bf16.mxu0 %v1368
        %2122 = vmatpush1.bf16.xpose.msra.mxu0 %v1367
        %2123 = vmatprep.subr.bf16.mxu0 %v1393
        %2124 = vmatpush1.bf16.xpose.msra.mxu0 %v1392
        %2125 = vmatprep.subr.bf16.mxu0 %v1418
        %2126 = vmatpush1.bf16.xpose.msra.mxu0 %v1417
        %2127 = vmatprep.subr.bf16.mxu0 %v1443
        %2128 = vmatpush1.bf16.xpose.msra.mxu0 %v1442
        %2129 = vmatprep.subr.bf16.mxu0 %v1468
        %2130 = vmatpush1.bf16.xpose.msra.mxu0 %v1467
        %2131 = vmatprep.subr.bf16.mxu0 %v1493
        %2132 = vmatpush1.bf16.xpose.msra.mxu0 %v1492
        %2133 = vmatprep.subr.bf16.mxu0 0
        %2134 = vmatpush1.bf16.xpose.msra.mxu0 0
        %2135 = vmatprep.subr.bf16.mxu0 0
        %2136 = vmatpush1.bf16.xpose.msra.mxu0 0
        %2137 = vmatprep.subr.bf16.mxu0 0
        %2138 = vmatpush1.bf16.xpose.msra.mxu0 0
        %2139 = vmatprep.subr.bf16.mxu0 0
        %2140 = vmatpush1.bf16.xpose.msra.mxu0 0
        %2141 = vmatprep.subr.bf16.mxu0 0
        %2142 = vmatpush1.bf16.xpose.msra.mxu0 0
        %2143 = vmatprep.subr.bf16.mxu0 0
        %2144 = vmatpush1.bf16.xpose.msra.mxu0 0
        %2145 = vmatprep.subr.bf16.mxu0 0
        %2146 = vmatpush1.bf16.xpose.msra.mxu0 0
        %2147 = vmatprep.subr.bf16.mxu0 0
        %2148 = vmatpush1.bf16.xpose.msra.mxu0 0
        %2149 = vmatprep.mubr.bf16.mxu0 %v646
        %2150 = vmatmul.mubr.bf16.gmra.mrb[0].mxu0 %v632
        %v2151 = vpop.f32.mrb[0].mxu0
        %v2152 = vadd.f32 %v2112, %v2151
        %v2153 = vpop.f32.mrb[0].mxu0
        %v2154 = vpop.f32.mrb[0].mxu0
        %v2155 = vpop.f32.mrb[0].mxu0
        %2156 = vdwg.mxu0
        %2157 = vmatprep.subr.bf16.mxu0 %v1320
        %2158 = vmatpush1.bf16.xpose.msra.mxu0 %v1319
        %2159 = vmatprep.subr.bf16.mxu0 %v1345
        %2160 = vmatpush1.bf16.xpose.msra.mxu0 %v1344
        %2161 = vmatprep.subr.bf16.mxu0 %v1370
        %2162 = vmatpush1.bf16.xpose.msra.mxu0 %v1369
        %2163 = vmatprep.subr.bf16.mxu0 %v1395
        %2164 = vmatpush1.bf16.xpose.msra.mxu0 %v1394
        %2165 = vmatprep.subr.bf16.mxu0 %v1420
        %2166 = vmatpush1.bf16.xpose.msra.mxu0 %v1419
        %2167 = vmatprep.subr.bf16.mxu0 %v1445
        %2168 = vmatpush1.bf16.xpose.msra.mxu0 %v1444
        %2169 = vmatprep.subr.bf16.mxu0 %v1470
        %2170 = vmatpush1.bf16.xpose.msra.mxu0 %v1469
        %2171 = vmatprep.subr.bf16.mxu0 %v1495
        %2172 = vmatpush1.bf16.xpose.msra.mxu0 %v1494
        %2173 = vmatprep.subr.bf16.mxu0 0
        %2174 = vmatpush1.bf16.xpose.msra.mxu0 0
        %2175 = vmatprep.subr.bf16.mxu0 0
        %2176 = vmatpush1.bf16.xpose.msra.mxu0 0
        %2177 = vmatprep.subr.bf16.mxu0 0
        %2178 = vmatpush1.bf16.xpose.msra.mxu0 0
        %2179 = vmatprep.subr.bf16.mxu0 0
        %2180 = vmatpush1.bf16.xpose.msra.mxu0 0
        %2181 = vmatprep.subr.bf16.mxu0 0
        %2182 = vmatpush1.bf16.xpose.msra.mxu0 0
        %2183 = vmatprep.subr.bf16.mxu0 0
        %2184 = vmatpush1.bf16.xpose.msra.mxu0 0
        %2185 = vmatprep.subr.bf16.mxu0 0
        %2186 = vmatpush1.bf16.xpose.msra.mxu0 0
        %2187 = vmatprep.subr.bf16.mxu0 0
        %2188 = vmatpush1.bf16.xpose.msra.mxu0 0
        %2189 = vmatprep.mubr.bf16.mxu0 %v650
        %2190 = vmatmul.mubr.bf16.gmra.mrb[0].mxu0 %v648
        %v2191 = vpop.f32.mrb[0].mxu0
        %v2192 = vadd.f32 %v2152, %v2191
        %v2193 = vpop.f32.mrb[0].mxu0
        %v2194 = vpop.f32.mrb[0].mxu0
        %v2195 = vpop.f32.mrb[0].mxu0
        %2196 = vdwg.mxu0
        %2197 = vmatprep.subr.bf16.mxu0 0
        %2198 = vmatpush1.bf16.xpose.msra.mxu0 %v1694
        %2199 = vmatprep.subr.bf16.mxu0 0
        %2200 = vmatpush1.bf16.xpose.msra.mxu0 %v1697
        %2201 = vmatprep.subr.bf16.mxu0 0
        %2202 = vmatpush1.bf16.xpose.msra.mxu0 %v1700
        %2203 = vmatprep.subr.bf16.mxu0 0
        %2204 = vmatpush1.bf16.xpose.msra.mxu0 %v1703
        %2205 = vmatprep.subr.bf16.mxu0 0
        %2206 = vmatpush1.bf16.xpose.msra.mxu0 %v1706
        %2207 = vmatprep.subr.bf16.mxu0 0
        %2208 = vmatpush1.bf16.xpose.msra.mxu0 %v1709
        %2209 = vmatprep.subr.bf16.mxu0 0
        %2210 = vmatpush1.bf16.xpose.msra.mxu0 %v1712
        %2211 = vmatprep.subr.bf16.mxu0 0
        %2212 = vmatpush1.bf16.xpose.msra.mxu0 %v1715
        %2213 = vmatprep.subr.bf16.mxu0 0
        %2214 = vmatpush1.bf16.xpose.msra.mxu0 0
        %2215 = vmatprep.subr.bf16.mxu0 0
        %2216 = vmatpush1.bf16.xpose.msra.mxu0 0
        %2217 = vmatprep.subr.bf16.mxu0 0
        %2218 = vmatpush1.bf16.xpose.msra.mxu0 0
        %2219 = vmatprep.subr.bf16.mxu0 0
        %2220 = vmatpush1.bf16.xpose.msra.mxu0 0
        %2221 = vmatprep.subr.bf16.mxu0 0
        %2222 = vmatpush1.bf16.xpose.msra.mxu0 0
        %2223 = vmatprep.subr.bf16.mxu0 0
        %2224 = vmatpush1.bf16.xpose.msra.mxu0 0
        %2225 = vmatprep.subr.bf16.mxu0 0
        %2226 = vmatpush1.bf16.xpose.msra.mxu0 0
        %2227 = vmatprep.subr.bf16.mxu0 0
        %2228 = vmatpush1.bf16.xpose.msra.mxu0 0
        %2229 = vmatprep.mubr.bf16.mxu0 0
        %2230 = vmatmul.mubr.bf16.gmra.mrb[0].mxu0 %v1691
        %v2231 = vpop.f32.mrb[0].mxu0
        %v2232 = vadd.f32 %v2192, %v2231
        %v2233 = vpop.f32.mrb[0].mxu0
        %v2234 = vpop.f32.mrb[0].mxu0
        %v2235 = vpop.f32.mrb[0].mxu0
        %2236 = vdwg.mxu0
        %v2237 = vmax.f32 %v2232, 0.0
        %v2238 = vpack.c.bf16 %v2237, %v2237
        %v2239 = vld [vmem:[%s235] sm:$0xf]
        %v2240 = vld [vmem:[%s235 + $0x4] sm:$0x1]
        %v2243 = vunpack.c.l.b16 %v2239
        %v2244 = vunpack.c.l.b16 %v2240
        %v2245 = vpack.c.b16 %v2244, %v2243
        %2247 = vmatprep.subr.bf16.mxu0 0
        %2248 = vmatpush1.bf16.xpose.msra.mxu0 %v2245
        %2249 = vmatprep.subr.bf16.mxu0 0
        %2250 = vmatpush1.bf16.xpose.msra.mxu0 0
        %2251 = vmatprep.subr.bf16.mxu0 0
        %2252 = vmatpush1.bf16.xpose.msra.mxu0 0
        %2253 = vmatprep.subr.bf16.mxu0 0
        %2254 = vmatpush1.bf16.xpose.msra.mxu0 0
        %2255 = vmatprep.subr.bf16.mxu0 0
        %2256 = vmatpush1.bf16.xpose.msra.mxu0 0
        %2257 = vmatprep.subr.bf16.mxu0 0
        %2258 = vmatpush1.bf16.xpose.msra.mxu0 0
        %2259 = vmatprep.subr.bf16.mxu0 0
        %2260 = vmatpush1.bf16.xpose.msra.mxu0 0
        %2261 = vmatprep.subr.bf16.mxu0 0
        %2262 = vmatpush1.bf16.xpose.msra.mxu0 0
        %2263 = vmatprep.subr.bf16.mxu0 0
        %2264 = vmatpush1.bf16.xpose.msra.mxu0 0
        %2265 = vmatprep.subr.bf16.mxu0 0
        %2266 = vmatpush1.bf16.xpose.msra.mxu0 0
        %2267 = vmatprep.subr.bf16.mxu0 0
        %2268 = vmatpush1.bf16.xpose.msra.mxu0 0
        %2269 = vmatprep.subr.bf16.mxu0 0
        %2270 = vmatpush1.bf16.xpose.msra.mxu0 0
        %2271 = vmatprep.subr.bf16.mxu0 0
        %2272 = vmatpush1.bf16.xpose.msra.mxu0 0
        %2273 = vmatprep.subr.bf16.mxu0 0
        %2274 = vmatpush1.bf16.xpose.msra.mxu0 0
        %2275 = vmatprep.subr.bf16.mxu0 0
        %2276 = vmatpush1.bf16.xpose.msra.mxu0 0
        %2277 = vmatprep.subr.bf16.mxu0 0
        %2278 = vmatpush1.bf16.xpose.msra.mxu0 0
        %2279 = vmatprep.mubr.bf16.mxu0 0
        %2280 = vmatmul.mubr.bf16.gmra.mrb[0].mxu0 %v2238
        %v2281 = vpop.f32.mrb[0].mxu0
        %v2282 = vadd.f32 0.0, %v2281
        %v2283 = vpop.f32.mrb[0].mxu0
        %v2284 = vpop.f32.mrb[0].mxu0
        %v2285 = vpop.f32.mrb[0].mxu0
        %2286 = vdwg.mxu0
        %vm2287 = vcmask 74752
        %2288 = vst.msk [vmem:[%s279] sm:$0x3] %vm2287, %v2282
        %p2289 = scmp.lt.s32.totalorder %s15, 3
        %s2290 = scalar_select %p2289, %s15, 3
        %s2291 = smul.addr %s2290, 2
        %s2292 = scalar_lea.vmem %s4, %s2291
        // Predicated region
        $region78: #{flnet_forward.5} parent=72 // pred_check
          %p2293 = pneg %p132
        $region79: #{flnet_forward.5} parent=72 // pred_check_branch
          %2295 = sbr.rel (%p2293) target = $region81
        $region80: #{flnet_forward.5} parent=72 // pred_region
          _
        $region81: #{flnet_forward.5} parent=72 // pred_fallthru
          _
      $region73: #{flnet_forward.5} parent=5 // pred_fallthru
        _
      %p2296 = scmp.le.s32.totalorder 2, %s10
      // Predicated region
      $region82: #{flnet_forward.5} parent=5 // pred_check
        %p2297 = pneg %p2296
      $region83: #{flnet_forward.5} parent=5 // pred_check_branch
        %2299 = sbr.rel (%p2297) target = $region85
      $region84: #{flnet_forward.5} parent=5 // pred_region
        %s2300 = ssub.s32 %s10, 2
        // Predicated region
        $region86: #{flnet_forward.5} parent=84 // pred_check
          %p2301 = pneg %p138
        $region87: #{flnet_forward.5} parent=84 // pred_check_branch
          %2303 = sbr.rel (%p2301) target = $region89
        $region88: #{flnet_forward.5} parent=84 // pred_region
          %p2304 = scmp.lt.s32.totalorder %s16, 3
          %s2305 = scalar_select %p2304, %s16, 3
          %s2306 = smul.addr %s2305, 2
          %s2307 = scalar_lea.vmem %s4, %s2306
        $region89: #{flnet_forward.5} parent=84 // pred_fallthru
          _
      $region85: #{flnet_forward.5} parent=5 // pred_fallthru
        _
    $region6: #{flnet_forward.5} parent=1 // loop_footer
      %s14 = sadd.s32 1, %s10
    $region7: #{flnet_forward.5} parent=1 // loop_footer_branch
      %9 = sbr.rel target = $region3
    $region8: #{flnet_forward.5} parent=1 // loop_exit
      _

</llo_original>
